<compile_context>
chip_gen: v5e
topology: v5e:2x2
jax: 0.10.0
libtpu: 0.0.40
codegen_flags: <defaults>
</compile_context>

<pallas_src>
import jax
import jax.numpy as jnp
from jax.experimental import pallas as pl
from jax.experimental.pallas import tpu as pltpu

IN_FEATURES = 64 * 7 * 7   # 3136
HIDDEN = 1024
SPLIT = 512                # val/adv split point
N_ACTIONS = 4
MAX_BATCH_TILE = 256       # rows of x per grid step (VMEM-bounded)


def _round_up(n, m):
    return ((n + m - 1) // m) * m


def duelnet_kernel(x_ref, wfc_ref, bfc_ref, wval_ref, bval_ref,
                   wadv_ref, badv_ref, o_ref):
    """One grid step = one batch tile.  W_fc's block index is b-invariant,
    so the full (3136, 1024) bf16 weight stays resident in VMEM; both hidden
    halves and the dueling combine are computed here."""
    # fc: (bm, 3136)bf16 @ (3136, 1024)bf16 -> f32 accumulate on the MXU.
    x = x_ref[...].astype(jnp.bfloat16)        # in-kernel cast: free VPU op
    h = jnp.dot(x, wfc_ref[...], preferred_element_type=jnp.float32)
    h = jnp.maximum(h + bfc_ref[...], 0.0)     # f32 bias + ReLU (v5e-safe)

    # Dueling heads on the two 512-wide (lane-aligned) halves of h.
    val = jnp.dot(h[:, :SPLIT], wval_ref[...],
                  preferred_element_type=jnp.float32) + bval_ref[...]
    adv = jnp.dot(h[:, SPLIT:], wadv_ref[...],
                  preferred_element_type=jnp.float32) + badv_ref[...]
    o_ref[...] = val + adv - jnp.mean(adv, axis=1, keepdims=True)


def duelnet_forward(x, params):
    B = x.shape[0]
    # Minimal padding: round B to 16 (bf16 sublane packing for the x tile),
    # then split into the fewest equal tiles of at most MAX_BATCH_TILE rows.
    b16 = _round_up(max(B, 1), 16)
    num_tiles = pl.cdiv(b16, MAX_BATCH_TILE)
    bm = _round_up(pl.cdiv(b16, num_tiles), 16)
    B_pad = bm * num_tiles
    if B_pad != B:
        x = jnp.pad(x, ((0, B_pad - B), (0, 0)))

    # Advisory cost estimate: ~6.4 MB bf16 weight stream + f32 activations.
    flops = 2 * B_pad * IN_FEATURES * HIDDEN + 2 * B_pad * SPLIT * (1 + N_ACTIONS)
    bytes_accessed = (IN_FEATURES * HIDDEN * 2          # bf16 W_fc (once)
                      + B_pad * IN_FEATURES * 4         # f32 x
                      + B_pad * N_ACTIONS * 4           # f32 out
                      + (HIDDEN + SPLIT * (1 + N_ACTIONS) + 1 + N_ACTIONS) * 4)
    cost = pl.CostEstimate(flops=flops, transcendentals=0,
                           bytes_accessed=bytes_accessed)

    out = pl.pallas_call(
        duelnet_kernel,
        out_shape=jax.ShapeDtypeStruct((B_pad, N_ACTIONS), jnp.float32),
        grid_spec=pltpu.PrefetchScalarGridSpec(
            num_scalar_prefetch=0,
            grid=(num_tiles,),
            in_specs=[
                # x tile: one (bm, 3136) f32 slab per batch tile.
                pl.BlockSpec((bm, IN_FEATURES), lambda b: (b, 0)),
                # W_fc: b-invariant index -> fetched once, resident in VMEM.
                pl.BlockSpec((IN_FEATURES, HIDDEN), lambda b: (0, 0)),
                pl.BlockSpec((1, HIDDEN), lambda b: (0, 0)),
                # Head weights/biases: tiny, full-extent, b-invariant.
                pl.BlockSpec((SPLIT, 1), lambda b: (0, 0)),
                pl.BlockSpec((1, 1), lambda b: (0, 0)),
                pl.BlockSpec((SPLIT, N_ACTIONS), lambda b: (0, 0)),
                pl.BlockSpec((1, N_ACTIONS), lambda b: (0, 0)),
            ],
            out_specs=pl.BlockSpec((bm, N_ACTIONS), lambda b: (b, 0)),
        ),
        compiler_params=pltpu.CompilerParams(
            # batch tiles are independent -> shard across TCs on v7x.
            dimension_semantics=("parallel",),
            vmem_limit_bytes=32 * 1024 * 1024,
        ),
        cost_estimate=cost,
    )(x, params["w_fc"], params["b_fc"],
      params["w_val"], params["b_val"], params["w_adv"], params["b_adv"])

    return out[:B]


def init_params(key):
    """Deterministic init mimicking nn.Linear default: U(+-1/sqrt(fan_in)).
    Weights stored transposed vs torch: (in_features, out_features).
    W_fc is cast to bf16 ONCE here (the kernel streams it as bf16)."""
    k1, k2, k3, k4, k5, k6 = jax.random.split(key, 6)

    def uniform(k, shape, fan_in):
        bound = 1.0 / jnp.sqrt(fan_in)
        return jax.random.uniform(k, shape, jnp.float32, -bound, bound)

    return {
        "w_fc":  uniform(k1, (IN_FEATURES, HIDDEN), IN_FEATURES).astype(jnp.bfloat16),
        "b_fc":  uniform(k2, (1, HIDDEN), IN_FEATURES),
        "w_val": uniform(k3, (SPLIT, 1), SPLIT),
        "b_val": uniform(k4, (1, 1), SPLIT),
        "w_adv": uniform(k5, (SPLIT, N_ACTIONS), SPLIT),
        "b_adv": uniform(k6, (1, N_ACTIONS), SPLIT),
    }


def duelnet_reference(x, p):
    """Pure-JAX reference matching the kernel's numerics (bf16 fc operands,
    f32 accumulation / elementwise), same math as the torch forward."""
    xb = x.astype(jnp.bfloat16)
    h = jnp.dot(xb, p["w_fc"], preferred_element_type=jnp.float32) + p["b_fc"]
    h = jnp.maximum(h, 0.0)
    val = h[:, :SPLIT] @ p["w_val"] + p["b_val"]
    adv = h[:, SPLIT:] @ p["w_adv"] + p["b_adv"]
    return val + adv - jnp.mean(adv, axis=1, keepdims=True)


if __name__ == "__main__":
    key = jax.random.PRNGKey(0)
    kx, kp = jax.random.split(key)

    B = 2
    x = jax.random.normal(kx, (B, IN_FEATURES), jnp.float32)
    params = init_params(kp)

    out = duelnet_forward(x, params)
    out = jax.block_until_ready(out)

    ref = duelnet_reference(x, params)
    assert out.shape == (B, N_ACTIONS)
    assert jnp.allclose(out, ref, atol=2e-3, rtol=2e-3), "mismatch vs reference"

    print("KERNEL_OK")
</pallas_src>

<mosaic_0001>
module attributes {stable_mosaic.version = 11 : i64} {
  func.func @duelnet_kernel(%arg0: i32, %arg1: memref<16x3136xf32, #tpu.memory_space<vmem>>, %arg2: memref<3136x1024xbf16, #tpu.memory_space<vmem>>, %arg3: memref<1x1024xf32, #tpu.memory_space<vmem>>, %arg4: memref<512x1xf32, #tpu.memory_space<vmem>>, %arg5: memref<1x1xf32, #tpu.memory_space<vmem>>, %arg6: memref<512x4xf32, #tpu.memory_space<vmem>>, %arg7: memref<1x4xf32, #tpu.memory_space<vmem>>, %arg8: memref<16x4xf32, #tpu.memory_space<vmem>>) attributes {dimension_semantics = [#tpu.dimension_semantics<parallel>], iteration_bounds = array<i64: 1>, scalar_prefetch = 0 : i64, scratch_operands = 0 : i64, tpu.core_type = #tpu.core_type<tc>, window_params = [{transform_indices = @transform_0, window_bounds = array<i64: 16, 3136>}, {pipeline_mode = #tpu.pipeline_mode<synchronous>, transform_indices = @transform_1, window_bounds = array<i64: 3136, 1024>}, {pipeline_mode = #tpu.pipeline_mode<synchronous>, transform_indices = @transform_2, window_bounds = array<i64: 1, 1024>}, {pipeline_mode = #tpu.pipeline_mode<synchronous>, transform_indices = @transform_3, window_bounds = array<i64: 512, 1>}, {pipeline_mode = #tpu.pipeline_mode<synchronous>, transform_indices = @transform_4, window_bounds = array<i64: 1, 1>}, {pipeline_mode = #tpu.pipeline_mode<synchronous>, transform_indices = @transform_5, window_bounds = array<i64: 512, 4>}, {pipeline_mode = #tpu.pipeline_mode<synchronous>, transform_indices = @transform_6, window_bounds = array<i64: 1, 4>}, {transform_indices = @transform_7, window_bounds = array<i64: 16, 4>}]} {
    %c0 = arith.constant 0 : index
    %c0_0 = arith.constant 0 : index
    %0 = vector.load %arg1[%c0, %c0_0] : memref<16x3136xf32, #tpu.memory_space<vmem>>, vector<16x3136xf32>
    %1 = arith.truncf %0 : vector<16x3136xf32> to vector<16x3136xbf16>
    %c0_1 = arith.constant 0 : index
    %c0_2 = arith.constant 0 : index
    %2 = vector.load %arg2[%c0_1, %c0_2] : memref<3136x1024xbf16, #tpu.memory_space<vmem>>, vector<3136x1024xbf16>
    %cst = arith.constant dense<0.000000e+00> : vector<16x1024xf32>
    %3 = tpu.matmul %1, %2, %cst {dimension_numbers = #tpu.dot_dimension_numbers<[1], [0], [0], [1], [0, 0, 1, 1], [], []>} : vector<16x3136xbf16>, vector<3136x1024xbf16>, vector<16x1024xf32> -> vector<16x1024xf32>
    %c0_3 = arith.constant 0 : index
    %c0_4 = arith.constant 0 : index
    %4 = vector.load %arg3[%c0_3, %c0_4] : memref<1x1024xf32, #tpu.memory_space<vmem>>, vector<1x1024xf32>
    %5 = vector.broadcast %4 : vector<1x1024xf32> to vector<16x1024xf32>
    %6 = arith.addf %3, %5 : vector<16x1024xf32>
    %cst_5 = arith.constant 0.000000e+00 : f32
    %7 = vector.broadcast %cst_5 : f32 to vector<16x1024xf32>
    %8 = arith.maximumf %6, %7 : vector<16x1024xf32>
    %9 = vector.extract_strided_slice %8 {offsets = [0, 0], sizes = [16, 512], strides = [1, 1]} : vector<16x1024xf32> to vector<16x512xf32>
    %c0_6 = arith.constant 0 : index
    %c0_7 = arith.constant 0 : index
    %10 = vector.load %arg4[%c0_6, %c0_7] : memref<512x1xf32, #tpu.memory_space<vmem>>, vector<512x1xf32>
    %cst_8 = arith.constant dense<0.000000e+00> : vector<16x1xf32>
    %11 = tpu.matmul %9, %10, %cst_8 {dimension_numbers = #tpu.dot_dimension_numbers<[1], [0], [0], [1], [0, 0, 1, 1], [], []>} : vector<16x512xf32>, vector<512x1xf32>, vector<16x1xf32> -> vector<16x1xf32>
    %c0_9 = arith.constant 0 : index
    %c0_10 = arith.constant 0 : index
    %12 = vector.load %arg5[%c0_9, %c0_10] : memref<1x1xf32, #tpu.memory_space<vmem>>, vector<1x1xf32>
    %13 = vector.broadcast %12 : vector<1x1xf32> to vector<16x1xf32>
    %14 = arith.addf %11, %13 : vector<16x1xf32>
    %15 = vector.extract_strided_slice %8 {offsets = [0, 512], sizes = [16, 512], strides = [1, 1]} : vector<16x1024xf32> to vector<16x512xf32>
    %c0_11 = arith.constant 0 : index
    %c0_12 = arith.constant 0 : index
    %16 = vector.load %arg6[%c0_11, %c0_12] : memref<512x4xf32, #tpu.memory_space<vmem>>, vector<512x4xf32>
    %cst_13 = arith.constant dense<0.000000e+00> : vector<16x4xf32>
    %17 = tpu.matmul %15, %16, %cst_13 {dimension_numbers = #tpu.dot_dimension_numbers<[1], [0], [0], [1], [0, 0, 1, 1], [], []>} : vector<16x512xf32>, vector<512x4xf32>, vector<16x4xf32> -> vector<16x4xf32>
    %c0_14 = arith.constant 0 : index
    %c0_15 = arith.constant 0 : index
    %18 = vector.load %arg7[%c0_14, %c0_15] : memref<1x4xf32, #tpu.memory_space<vmem>>, vector<1x4xf32>
    %19 = vector.broadcast %18 : vector<1x4xf32> to vector<16x4xf32>
    %20 = arith.addf %17, %19 : vector<16x4xf32>
    %21 = vector.broadcast %14 : vector<16x1xf32> to vector<16x4xf32>
    %22 = arith.addf %21, %20 : vector<16x4xf32>
    %cst_16 = arith.constant dense<0.000000e+00> : vector<16xf32>
    %23 = vector.multi_reduction <add>, %20, %cst_16 [1] : vector<16x4xf32> to vector<16xf32>
    %24 = vector.shape_cast %23 : vector<16xf32> to vector<16x1xf32>
    %cst_17 = arith.constant 4.000000e+00 : f32
    %25 = vector.broadcast %cst_17 : f32 to vector<16x1xf32>
    %26 = arith.divf %24, %25 : vector<16x1xf32>
    %27 = vector.broadcast %26 : vector<16x1xf32> to vector<16x4xf32>
    %28 = arith.subf %22, %27 : vector<16x4xf32>
    %c0_18 = arith.constant 0 : index
    %c0_19 = arith.constant 0 : index
    %29 = vector.load %arg8[%c0_18, %c0_19] : memref<16x4xf32, #tpu.memory_space<vmem>>, vector<16x4xf32>
    tpu.vector_store %arg8[%c0_18, %c0_19], %28 {strides = array<i32>} : memref<16x4xf32, #tpu.memory_space<vmem>>, vector<16x4xf32>,
    return
  }
  func.func @transform_0(%arg0: i32) -> (i32, i32) {
    %c0_i32 = arith.constant 0 : i32
    %c0_i32_0 = arith.constant 0 : i32
    return %arg0, %c0_i32 : i32, i32
  }
  func.func @transform_1(%arg0: i32) -> (i32, i32) {
    %c0_i32 = arith.constant 0 : i32
    %c0_i32_0 = arith.constant 0 : i32
    %c0_i32_1 = arith.constant 0 : i32
    return %c0_i32, %c0_i32_0 : i32, i32
  }
  func.func @transform_2(%arg0: i32) -> (i32, i32) {
    %c0_i32 = arith.constant 0 : i32
    %c0_i32_0 = arith.constant 0 : i32
    %c0_i32_1 = arith.constant 0 : i32
    return %c0_i32, %c0_i32_0 : i32, i32
  }
  func.func @transform_3(%arg0: i32) -> (i32, i32) {
    %c0_i32 = arith.constant 0 : i32
    %c0_i32_0 = arith.constant 0 : i32
    %c0_i32_1 = arith.constant 0 : i32
    return %c0_i32, %c0_i32_0 : i32, i32
  }
  func.func @transform_4(%arg0: i32) -> (i32, i32) {
    %c0_i32 = arith.constant 0 : i32
    %c0_i32_0 = arith.constant 0 : i32
    %c0_i32_1 = arith.constant 0 : i32
    return %c0_i32, %c0_i32_0 : i32, i32
  }
  func.func @transform_5(%arg0: i32) -> (i32, i32) {
    %c0_i32 = arith.constant 0 : i32
    %c0_i32_0 = arith.constant 0 : i32
    %c0_i32_1 = arith.constant 0 : i32
    return %c0_i32, %c0_i32_0 : i32, i32
  }
  func.func @transform_6(%arg0: i32) -> (i32, i32) {
    %c0_i32 = arith.constant 0 : i32
    %c0_i32_0 = arith.constant 0 : i32
    %c0_i32_1 = arith.constant 0 : i32
    return %c0_i32, %c0_i32_0 : i32, i32
  }
  func.func @transform_7(%arg0: i32) -> (i32, i32) {
    %c0_i32 = arith.constant 0 : i32
    %c0_i32_0 = arith.constant 0 : i32
    return %arg0, %c0_i32 : i32, i32
  }
}

</mosaic_0001>

<llo_original>
// kernel: tpu_custom_call.1
$region0: #{tpu_custom_call.1}
  #allocation0 [shape = 'u32[]', space=smem, size = 0x4, offset = 0x4, fixed_abs, tag = 'smem constant byte address 0x4 - core index']
  #allocation1 [shape = 'u32[72,128]{1,0:T(1,128)}', space=vmem, size = 0x9000, scoped, tag = 'internal scratch']
  #allocation2 [shape = 'f32[1,1]{1,0:T(1,128)S(1)}', space=vmem, size = 0x200, scoped, tag = 'scoped memory for tpu_custom_call.1']
  %s0 = inlined_call_operand.hbm [shape: f32[16,3136], index: 0, kind: input, shape index: {}]
  %s1 = inlined_call_operand.hbm [shape: bf16[3136,1024], index: 1, kind: input, shape index: {}]
  %s2 = inlined_call_operand.hbm [shape: f32[1,1024], index: 2, kind: input, shape index: {}]
  %s3 = inlined_call_operand.vmem [shape: f32[512,1], index: 3, kind: input, shape index: {}]
  %s4 = inlined_call_operand.<no memory space> [shape: f32[1,1], index: 4, kind: input, shape index: {}]
  %s5 = inlined_call_operand.vmem [shape: f32[512,4], index: 5, kind: input, shape index: {}]
  %s6 = inlined_call_operand.hbm [shape: f32[1,4], index: 6, kind: input, shape index: {}]
  %s7 = inlined_call_operand.vmem [shape: f32[16,4], index: 7, kind: output, shape index: {}]
  %s8 = sld [smem:[#allocation0]]
  $region54: #{tpu_custom_call.1} parent=0
    _
  %s10 = ssub.s32 1, %s8
  %s11 = scalar_select 0, %s10, %s8
  %v12 = vstv %s4
  %13 = vst [vmem:[#allocation2] sm:$0x1] %v12
  $region1: #{tpu_custom_call.1} parent=0
    #allocation3 [shape = 'u8[204800]{0}', space=vmem, size = 0x32000, scoped, tag = 'input window, operand 0, single buffered']
    #allocation4 [shape = 's32[1]{0}', space=sflag, size = 0x4, scoped, tag = 'scoped memory for tpu_custom_call.1']
    #allocation5 [shape = 'u8[6422528]{0}', space=vmem, size = 0x620000, scoped, tag = 'input window, operand 1, single buffered']
    #allocation6 [shape = 's32[1]{0}', space=sflag, size = 0x4, scoped, tag = 'scoped memory for tpu_custom_call.1']
    #allocation7 [shape = 'u8[4096]{0}', space=vmem, size = 0x1000, scoped, tag = 'input window, operand 2, single buffered']
    #allocation8 [shape = 'u8[512]{0}', space=vmem, size = 0x400, scoped, tag = 'input window, operand 6, single buffered']
    #allocation9 [shape = 's32[1]{0}', space=sflag, size = 0x4, scoped, tag = 'scoped memory for tpu_custom_call.1']
    %14 = vsyncpa [#allocation4], 0
    %15 = vsyncpa [#allocation6], 0
    %16 = vsyncpa [#allocation9], 0
    // Predicated region
    $region2: #{tpu_custom_call.1} parent=1 // pred_check
      _
    $region3: #{tpu_custom_call.1} parent=1 // pred_check_branch
      %18 = sbr.rel (0) target = $region5
    $region4: #{tpu_custom_call.1} parent=1 // pred_region
      %20 = vsyncadd [#allocation4], 0
      %s21 = sshll.u32 %s0, 4
      %s22 = int_to_ptr.hbm [resolvable:$true] %s21
      %s23 = sshll.u32 [#allocation3], 4
      %s24 = int_to_ptr.vmem [resolvable:$true] %s23
      %29 = dma.hbm_to_vmem [thread:$0]  %s22, 6400, %s24, [#allocation4], 3200, 3200, 200
    $region5: #{tpu_custom_call.1} parent=1 // pred_fallthru
      _
    // Predicated region
    $region6: #{tpu_custom_call.1} parent=1 // pred_check
      _
    $region7: #{tpu_custom_call.1} parent=1 // pred_check_branch
      %31 = sbr.rel (0) target = $region9
    $region8: #{tpu_custom_call.1} parent=1 // pred_region
      %33 = vsyncadd [#allocation6], 0
      %s34 = sshll.u32 %s1, 4
      %s35 = int_to_ptr.hbm [resolvable:$true] %s34
      %s36 = sshll.u32 [#allocation5], 4
      %s37 = int_to_ptr.vmem [resolvable:$true] %s36
      %42 = dma.hbm_to_vmem [thread:$0]  %s35, 200704, %s37, [#allocation6], 512, 512, 32
    $region9: #{tpu_custom_call.1} parent=1 // pred_fallthru
      _
    // Predicated region
    $region10: #{tpu_custom_call.1} parent=1 // pred_check
      _
    $region11: #{tpu_custom_call.1} parent=1 // pred_check_branch
      %44 = sbr.rel (0) target = $region13
    $region12: #{tpu_custom_call.1} parent=1 // pred_region
      %46 = vsyncadd [#allocation6], 0
      %s48 = sshll.u32 %s2, 4
      %s49 = int_to_ptr.hbm [resolvable:$true] %s48
      %s50 = sshll.u32 [#allocation7], 4
      %s51 = int_to_ptr.vmem [resolvable:$true] %s50
      %53 = dma.hbm_to_vmem [thread:$0]  %s49, 128, %s51, [#allocation6]
    $region13: #{tpu_custom_call.1} parent=1 // pred_fallthru
      _
    // Predicated region
    $region14: #{tpu_custom_call.1} parent=1 // pred_check
      _
    $region15: #{tpu_custom_call.1} parent=1 // pred_check_branch
      %55 = sbr.rel (0) target = $region17
    $region16: #{tpu_custom_call.1} parent=1 // pred_region
      _
    $region17: #{tpu_custom_call.1} parent=1 // pred_fallthru
      _
    // Predicated region
    $region18: #{tpu_custom_call.1} parent=1 // pred_check
      _
    $region19: #{tpu_custom_call.1} parent=1 // pred_check_branch
      %57 = sbr.rel (0) target = $region21
    $region20: #{tpu_custom_call.1} parent=1 // pred_region
      _
    $region21: #{tpu_custom_call.1} parent=1 // pred_fallthru
      _
    // Predicated region
    $region22: #{tpu_custom_call.1} parent=1 // pred_check
      _
    $region23: #{tpu_custom_call.1} parent=1 // pred_check_branch
      %59 = sbr.rel (0) target = $region25
    $region24: #{tpu_custom_call.1} parent=1 // pred_region
      _
    $region25: #{tpu_custom_call.1} parent=1 // pred_fallthru
      _
    // Predicated region
    $region26: #{tpu_custom_call.1} parent=1 // pred_check
      _
    $region27: #{tpu_custom_call.1} parent=1 // pred_check_branch
      %61 = sbr.rel (0) target = $region29
    $region28: #{tpu_custom_call.1} parent=1 // pred_region
      %63 = vsyncadd [#allocation9], 0
      %s65 = sshll.u32 %s6, 4
      %s66 = int_to_ptr.hbm [resolvable:$true] %s65
      %s67 = sshll.u32 [#allocation8], 4
      %s68 = int_to_ptr.vmem [resolvable:$true] %s67
      %70 = dma.hbm_to_vmem [thread:$0]  %s66, 16, %s68, [#allocation9]
    $region29: #{tpu_custom_call.1} parent=1 // pred_fallthru
      _
    // Predicated region
    $region30: #{tpu_custom_call.1} parent=1 // pred_check
      _
    $region31: #{tpu_custom_call.1} parent=1 // pred_check_branch
      %72 = sbr.rel (0) target = $region33
    $region32: #{tpu_custom_call.1} parent=1 // pred_region
      %74 = dma.done [#allocation4], 6400
    $region33: #{tpu_custom_call.1} parent=1 // pred_fallthru
      _
    // Predicated region
    $region34: #{tpu_custom_call.1} parent=1 // pred_check
      _
    $region35: #{tpu_custom_call.1} parent=1 // pred_check_branch
      %76 = sbr.rel (0) target = $region37
    $region36: #{tpu_custom_call.1} parent=1 // pred_region
      %78 = dma.done [#allocation6], 200704
    $region37: #{tpu_custom_call.1} parent=1 // pred_fallthru
      _
    // Predicated region
    $region38: #{tpu_custom_call.1} parent=1 // pred_check
      _
    $region39: #{tpu_custom_call.1} parent=1 // pred_check_branch
      %80 = sbr.rel (0) target = $region41
    $region40: #{tpu_custom_call.1} parent=1 // pred_region
      %82 = dma.done [#allocation6], 128
    $region41: #{tpu_custom_call.1} parent=1 // pred_fallthru
      _
    // Predicated region
    $region42: #{tpu_custom_call.1} parent=1 // pred_check
      _
    $region43: #{tpu_custom_call.1} parent=1 // pred_check_branch
      %84 = sbr.rel (0) target = $region45
    $region44: #{tpu_custom_call.1} parent=1 // pred_region
      %86 = dma.done [#allocation9], 16
    $region45: #{tpu_custom_call.1} parent=1 // pred_fallthru
      _
    %v88 = vld [vmem:[#allocation3] sm:$0xff]
    %v89 = vld [vmem:[#allocation3 + $0x8] sm:$0xff]
    %v90 = vld [vmem:[#allocation3 + $0x10] sm:$0xff]
    %v91 = vld [vmem:[#allocation3 + $0x18] sm:$0xff]
    %v92 = vld [vmem:[#allocation3 + $0x20] sm:$0xff]
    %v93 = vld [vmem:[#allocation3 + $0x28] sm:$0xff]
    %v94 = vld [vmem:[#allocation3 + $0x30] sm:$0xff]
    %v95 = vld [vmem:[#allocation3 + $0x38] sm:$0xff]
    %v96 = vld [vmem:[#allocation3 + $0x40] sm:$0xff]
    %v97 = vld [vmem:[#allocation3 + $0x48] sm:$0xff]
    %v98 = vld [vmem:[#allocation3 + $0x50] sm:$0xff]
    %v99 = vld [vmem:[#allocation3 + $0x58] sm:$0xff]
    %v100 = vld [vmem:[#allocation3 + $0x60] sm:$0xff]
    %v101 = vld [vmem:[#allocation3 + $0x68] sm:$0xff]
    %v102 = vld [vmem:[#allocation3 + $0x70] sm:$0xff]
    %v103 = vld [vmem:[#allocation3 + $0x78] sm:$0xff]
    %v104 = vld [vmem:[#allocation3 + $0x80] sm:$0xff]
    %v105 = vld [vmem:[#allocation3 + $0x88] sm:$0xff]
    %v106 = vld [vmem:[#allocation3 + $0x90] sm:$0xff]
    %v107 = vld [vmem:[#allocation3 + $0x98] sm:$0xff]
    %v108 = vld [vmem:[#allocation3 + $0xa0] sm:$0xff]
    %v109 = vld [vmem:[#allocation3 + $0xa8] sm:$0xff]
    %v110 = vld [vmem:[#allocation3 + $0xb0] sm:$0xff]
    %v111 = vld [vmem:[#allocation3 + $0xb8] sm:$0xff]
    %v112 = vld [vmem:[#allocation3 + $0xc0] sm:$0xff]
    %v113 = vld [vmem:[#allocation3 + $0xc8] sm:$0xff]
    %v114 = vld [vmem:[#allocation3 + $0xd0] sm:$0xff]
    %v115 = vld [vmem:[#allocation3 + $0xd8] sm:$0xff]
    %v116 = vld [vmem:[#allocation3 + $0xe0] sm:$0xff]
    %v117 = vld [vmem:[#allocation3 + $0xe8] sm:$0xff]
    %v118 = vld [vmem:[#allocation3 + $0xf0] sm:$0xff]
    %v119 = vld [vmem:[#allocation3 + $0xf8] sm:$0xff]
    %v120 = vld [vmem:[#allocation3 + $0x100] sm:$0xff]
    %v121 = vld [vmem:[#allocation3 + $0x108] sm:$0xff]
    %v122 = vld [vmem:[#allocation3 + $0x110] sm:$0xff]
    %v123 = vld [vmem:[#allocation3 + $0x118] sm:$0xff]
    %v124 = vld [vmem:[#allocation3 + $0x120] sm:$0xff]
    %v125 = vld [vmem:[#allocation3 + $0x128] sm:$0xff]
    %v126 = vld [vmem:[#allocation3 + $0x130] sm:$0xff]
    %v127 = vld [vmem:[#allocation3 + $0x138] sm:$0xff]
    %v128 = vld [vmem:[#allocation3 + $0x140] sm:$0xff]
    %v129 = vld [vmem:[#allocation3 + $0x148] sm:$0xff]
    %v130 = vld [vmem:[#allocation3 + $0x150] sm:$0xff]
    %v131 = vld [vmem:[#allocation3 + $0x158] sm:$0xff]
    %v132 = vld [vmem:[#allocation3 + $0x160] sm:$0xff]
    %v133 = vld [vmem:[#allocation3 + $0x168] sm:$0xff]
    %v134 = vld [vmem:[#allocation3 + $0x170] sm:$0xff]
    %v135 = vld [vmem:[#allocation3 + $0x178] sm:$0xff]
    %v136 = vld [vmem:[#allocation3 + $0x180] sm:$0xff]
    %v137 = vld [vmem:[#allocation3 + $0x188] sm:$0xff]
    %v138 = vpack.c.bf16 %v113, %v88
    %v139 = vpack.c.bf16 %v114, %v89
    %v140 = vpack.c.bf16 %v115, %v90
    %v141 = vpack.c.bf16 %v116, %v91
    %v142 = vpack.c.bf16 %v117, %v92
    %v143 = vpack.c.bf16 %v118, %v93
    %v144 = vpack.c.bf16 %v119, %v94
    %v145 = vpack.c.bf16 %v120, %v95
    %v146 = vpack.c.bf16 %v121, %v96
    %v147 = vpack.c.bf16 %v122, %v97
    %v148 = vpack.c.bf16 %v123, %v98
    %v149 = vpack.c.bf16 %v124, %v99
    %v150 = vpack.c.bf16 %v125, %v100
    %v151 = vpack.c.bf16 %v126, %v101
    %v152 = vpack.c.bf16 %v127, %v102
    %v153 = vpack.c.bf16 %v128, %v103
    %v154 = vpack.c.bf16 %v129, %v104
    %v155 = vpack.c.bf16 %v130, %v105
    %v156 = vpack.c.bf16 %v131, %v106
    %v157 = vpack.c.bf16 %v132, %v107
    %v158 = vpack.c.bf16 %v133, %v108
    %v159 = vpack.c.bf16 %v134, %v109
    %v160 = vpack.c.bf16 %v135, %v110
    %v161 = vpack.c.bf16 %v136, %v111
    %v162 = vpack.c.bf16 %v137, %v112
    %v163 = vld [vmem:[#allocation5] sm:$0xff]
    %v164 = vld [vmem:[#allocation5 + $0x8] sm:$0xff]
    %v165 = vld [vmem:[#allocation5 + $0x10] sm:$0xff]
    %v166 = vld [vmem:[#allocation5 + $0x18] sm:$0xff]
    %v167 = vld [vmem:[#allocation5 + $0x20] sm:$0xff]
    %v168 = vld [vmem:[#allocation5 + $0x28] sm:$0xff]
    %v169 = vld [vmem:[#allocation5 + $0x30] sm:$0xff]
    %v170 = vld [vmem:[#allocation5 + $0x38] sm:$0xff]
    %v171 = vld [vmem:[#allocation5 + $0x40] sm:$0xff]
    %v172 = vld [vmem:[#allocation5 + $0x48] sm:$0xff]
    %v173 = vld [vmem:[#allocation5 + $0x50] sm:$0xff]
    %v174 = vld [vmem:[#allocation5 + $0x58] sm:$0xff]
    %v175 = vld [vmem:[#allocation5 + $0x60] sm:$0xff]
    %v176 = vld [vmem:[#allocation5 + $0x68] sm:$0xff]
    %v177 = vld [vmem:[#allocation5 + $0x70] sm:$0xff]
    %v178 = vld [vmem:[#allocation5 + $0x78] sm:$0xff]
    %v179 = vld [vmem:[#allocation5 + $0x80] sm:$0xff]
    %v180 = vld [vmem:[#allocation5 + $0x88] sm:$0xff]
    %v181 = vld [vmem:[#allocation5 + $0x90] sm:$0xff]
    %v182 = vld [vmem:[#allocation5 + $0x98] sm:$0xff]
    %v183 = vld [vmem:[#allocation5 + $0xa0] sm:$0xff]
    %v184 = vld [vmem:[#allocation5 + $0xa8] sm:$0xff]
    %v185 = vld [vmem:[#allocation5 + $0xb0] sm:$0xff]
    %v186 = vld [vmem:[#allocation5 + $0xb8] sm:$0xff]
    %v187 = vld [vmem:[#allocation5 + $0xc0] sm:$0xff]
    %v188 = vld [vmem:[#allocation5 + $0xc8] sm:$0xff]
    %v189 = vld [vmem:[#allocation5 + $0xd0] sm:$0xff]
    %v190 = vld [vmem:[#allocation5 + $0xd8] sm:$0xff]
    %v191 = vld [vmem:[#allocation5 + $0xe0] sm:$0xff]
    %v192 = vld [vmem:[#allocation5 + $0xe8] sm:$0xff]
    %v193 = vld [vmem:[#allocation5 + $0xf0] sm:$0xff]
    %v194 = vld [vmem:[#allocation5 + $0xf8] sm:$0xff]
    %v195 = vld [vmem:[#allocation5 + $0x100] sm:$0xff]
    %v196 = vld [vmem:[#allocation5 + $0x108] sm:$0xff]
    %v197 = vld [vmem:[#allocation5 + $0x110] sm:$0xff]
    %v198 = vld [vmem:[#allocation5 + $0x118] sm:$0xff]
    %v199 = vld [vmem:[#allocation5 + $0x120] sm:$0xff]
    %v200 = vld [vmem:[#allocation5 + $0x128] sm:$0xff]
    %v201 = vld [vmem:[#allocation5 + $0x130] sm:$0xff]
    %v202 = vld [vmem:[#allocation5 + $0x138] sm:$0xff]
    %v203 = vld [vmem:[#allocation5 + $0x140] sm:$0xff]
    %v204 = vld [vmem:[#allocation5 + $0x148] sm:$0xff]
    %v205 = vld [vmem:[#allocation5 + $0x150] sm:$0xff]
    %v206 = vld [vmem:[#allocation5 + $0x158] sm:$0xff]
    %v207 = vld [vmem:[#allocation5 + $0x160] sm:$0xff]
    %v208 = vld [vmem:[#allocation5 + $0x168] sm:$0xff]
    %v209 = vld [vmem:[#allocation5 + $0x170] sm:$0xff]
    %v210 = vld [vmem:[#allocation5 + $0x178] sm:$0xff]
    %v211 = vld [vmem:[#allocation5 + $0x180] sm:$0xff]
    %v212 = vld [vmem:[#allocation5 + $0x188] sm:$0xff]
    %v213 = vld [vmem:[#allocation5 + $0x190] sm:$0xff]
    %v214 = vld [vmem:[#allocation5 + $0x198] sm:$0xff]
    %v215 = vld [vmem:[#allocation5 + $0x1a0] sm:$0xff]
    %v216 = vld [vmem:[#allocation5 + $0x1a8] sm:$0xff]
    %v217 = vld [vmem:[#allocation5 + $0x1b0] sm:$0xff]
    %v218 = vld [vmem:[#allocation5 + $0x1b8] sm:$0xff]
    %v219 = vld [vmem:[#allocation5 + $0x1c0] sm:$0xff]
    %v220 = vld [vmem:[#allocation5 + $0x1c8] sm:$0xff]
    %v221 = vld [vmem:[#allocation5 + $0x1d0] sm:$0xff]
    %v222 = vld [vmem:[#allocation5 + $0x1d8] sm:$0xff]
    %v223 = vld [vmem:[#allocation5 + $0x1e0] sm:$0xff]
    %v224 = vld [vmem:[#allocation5 + $0x1e8] sm:$0xff]
    %v225 = vld [vmem:[#allocation5 + $0x1f0] sm:$0xff]
    %v226 = vld [vmem:[#allocation5 + $0x1f8] sm:$0xff]
    %v227 = vld [vmem:[#allocation5 + $0x200] sm:$0xff]
    %v228 = vld [vmem:[#allocation5 + $0x208] sm:$0xff]
    %v229 = vld [vmem:[#allocation5 + $0x210] sm:$0xff]
    %v230 = vld [vmem:[#allocation5 + $0x218] sm:$0xff]
    %v231 = vld [vmem:[#allocation5 + $0x220] sm:$0xff]
    %v232 = vld [vmem:[#allocation5 + $0x228] sm:$0xff]
    %v233 = vld [vmem:[#allocation5 + $0x230] sm:$0xff]
    %v234 = vld [vmem:[#allocation5 + $0x238] sm:$0xff]
    %v235 = vld [vmem:[#allocation5 + $0x240] sm:$0xff]
    %v236 = vld [vmem:[#allocation5 + $0x248] sm:$0xff]
    %v237 = vld [vmem:[#allocation5 + $0x250] sm:$0xff]
    %v238 = vld [vmem:[#allocation5 + $0x258] sm:$0xff]
    %v239 = vld [vmem:[#allocation5 + $0x260] sm:$0xff]
    %v240 = vld [vmem:[#allocation5 + $0x268] sm:$0xff]
    %v241 = vld [vmem:[#allocation5 + $0x270] sm:$0xff]
    %v242 = vld [vmem:[#allocation5 + $0x278] sm:$0xff]
    %v243 = vld [vmem:[#allocation5 + $0x280] sm:$0xff]
    %v244 = vld [vmem:[#allocation5 + $0x288] sm:$0xff]
    %v245 = vld [vmem:[#allocation5 + $0x290] sm:$0xff]
    %v246 = vld [vmem:[#allocation5 + $0x298] sm:$0xff]
    %v247 = vld [vmem:[#allocation5 + $0x2a0] sm:$0xff]
    %v248 = vld [vmem:[#allocation5 + $0x2a8] sm:$0xff]
    %v249 = vld [vmem:[#allocation5 + $0x2b0] sm:$0xff]
    %v250 = vld [vmem:[#allocation5 + $0x2b8] sm:$0xff]
    %v251 = vld [vmem:[#allocation5 + $0x2c0] sm:$0xff]
    %v252 = vld [vmem:[#allocation5 + $0x2c8] sm:$0xff]
    %v253 = vld [vmem:[#allocation5 + $0x2d0] sm:$0xff]
    %v254 = vld [vmem:[#allocation5 + $0x2d8] sm:$0xff]
    %v255 = vld [vmem:[#allocation5 + $0x2e0] sm:$0xff]
    %v256 = vld [vmem:[#allocation5 + $0x2e8] sm:$0xff]
    %v257 = vld [vmem:[#allocation5 + $0x2f0] sm:$0xff]
    %v258 = vld [vmem:[#allocation5 + $0x2f8] sm:$0xff]
    %v259 = vld [vmem:[#allocation5 + $0x300] sm:$0xff]
    %v260 = vld [vmem:[#allocation5 + $0x308] sm:$0xff]
    %v261 = vld [vmem:[#allocation5 + $0x310] sm:$0xff]
    %v262 = vld [vmem:[#allocation5 + $0x318] sm:$0xff]
    %v263 = vld [vmem:[#allocation5 + $0x320] sm:$0xff]
    %v264 = vld [vmem:[#allocation5 + $0x328] sm:$0xff]
    %v265 = vld [vmem:[#allocation5 + $0x330] sm:$0xff]
    %v266 = vld [vmem:[#allocation5 + $0x338] sm:$0xff]
    %v267 = vld [vmem:[#allocation5 + $0x340] sm:$0xff]
    %v268 = vld [vmem:[#allocation5 + $0x348] sm:$0xff]
    %v269 = vld [vmem:[#allocation5 + $0x350] sm:$0xff]
    %v270 = vld [vmem:[#allocation5 + $0x358] sm:$0xff]
    %v271 = vld [vmem:[#allocation5 + $0x360] sm:$0xff]
    %v272 = vld [vmem:[#allocation5 + $0x368] sm:$0xff]
    %v273 = vld [vmem:[#allocation5 + $0x370] sm:$0xff]
    %v274 = vld [vmem:[#allocation5 + $0x378] sm:$0xff]
    %v275 = vld [vmem:[#allocation5 + $0x380] sm:$0xff]
    %v276 = vld [vmem:[#allocation5 + $0x388] sm:$0xff]
    %v277 = vld [vmem:[#allocation5 + $0x390] sm:$0xff]
    %v278 = vld [vmem:[#allocation5 + $0x398] sm:$0xff]
    %v279 = vld [vmem:[#allocation5 + $0x3a0] sm:$0xff]
    %v280 = vld [vmem:[#allocation5 + $0x3a8] sm:$0xff]
    %v281 = vld [vmem:[#allocation5 + $0x3b0] sm:$0xff]
    %v282 = vld [vmem:[#allocation5 + $0x3b8] sm:$0xff]
    %v283 = vld [vmem:[#allocation5 + $0x3c0] sm:$0xff]
    %v284 = vld [vmem:[#allocation5 + $0x3c8] sm:$0xff]
    %v285 = vld [vmem:[#allocation5 + $0x3d0] sm:$0xff]
    %v286 = vld [vmem:[#allocation5 + $0x3d8] sm:$0xff]
    %v287 = vld [vmem:[#allocation5 + $0x3e0] sm:$0xff]
    %v288 = vld [vmem:[#allocation5 + $0x3e8] sm:$0xff]
    %v289 = vld [vmem:[#allocation5 + $0x3f0] sm:$0xff]
    %v290 = vld [vmem:[#allocation5 + $0x3f8] sm:$0xff]
    %v291 = vld [vmem:[#allocation5 + $0x400] sm:$0xff]
    %v292 = vld [vmem:[#allocation5 + $0x408] sm:$0xff]
    %v293 = vld [vmem:[#allocation5 + $0x410] sm:$0xff]
    %v294 = vld [vmem:[#allocation5 + $0x418] sm:$0xff]
    %v295 = vld [vmem:[#allocation5 + $0x420] sm:$0xff]
    %v296 = vld [vmem:[#allocation5 + $0x428] sm:$0xff]
    %v297 = vld [vmem:[#allocation5 + $0x430] sm:$0xff]
    %v298 = vld [vmem:[#allocation5 + $0x438] sm:$0xff]
    %v299 = vld [vmem:[#allocation5 + $0x440] sm:$0xff]
    %v300 = vld [vmem:[#allocation5 + $0x448] sm:$0xff]
    %v301 = vld [vmem:[#allocation5 + $0x450] sm:$0xff]
    %v302 = vld [vmem:[#allocation5 + $0x458] sm:$0xff]
    %v303 = vld [vmem:[#allocation5 + $0x460] sm:$0xff]
    %v304 = vld [vmem:[#allocation5 + $0x468] sm:$0xff]
    %v305 = vld [vmem:[#allocation5 + $0x470] sm:$0xff]
    %v306 = vld [vmem:[#allocation5 + $0x478] sm:$0xff]
    %v307 = vld [vmem:[#allocation5 + $0x480] sm:$0xff]
    %v308 = vld [vmem:[#allocation5 + $0x488] sm:$0xff]
    %v309 = vld [vmem:[#allocation5 + $0x490] sm:$0xff]
    %v310 = vld [vmem:[#allocation5 + $0x498] sm:$0xff]
    %v311 = vld [vmem:[#allocation5 + $0x4a0] sm:$0xff]
    %v312 = vld [vmem:[#allocation5 + $0x4a8] sm:$0xff]
    %v313 = vld [vmem:[#allocation5 + $0x4b0] sm:$0xff]
    %v314 = vld [vmem:[#allocation5 + $0x4b8] sm:$0xff]
    %v315 = vld [vmem:[#allocation5 + $0x4c0] sm:$0xff]
    %v316 = vld [vmem:[#allocation5 + $0x4c8] sm:$0xff]
    %v317 = vld [vmem:[#allocation5 + $0x4d0] sm:$0xff]
    %v318 = vld [vmem:[#allocation5 + $0x4d8] sm:$0xff]
    %v319 = vld [vmem:[#allocation5 + $0x4e0] sm:$0xff]
    %v320 = vld [vmem:[#allocation5 + $0x4e8] sm:$0xff]
    %v321 = vld [vmem:[#allocation5 + $0x4f0] sm:$0xff]
    %v322 = vld [vmem:[#allocation5 + $0x4f8] sm:$0xff]
    %v323 = vld [vmem:[#allocation5 + $0x500] sm:$0xff]
    %v324 = vld [vmem:[#allocation5 + $0x508] sm:$0xff]
    %v325 = vld [vmem:[#allocation5 + $0x510] sm:$0xff]
    %v326 = vld [vmem:[#allocation5 + $0x518] sm:$0xff]
    %v327 = vld [vmem:[#allocation5 + $0x520] sm:$0xff]
    %v328 = vld [vmem:[#allocation5 + $0x528] sm:$0xff]
    %v329 = vld [vmem:[#allocation5 + $0x530] sm:$0xff]
    %v330 = vld [vmem:[#allocation5 + $0x538] sm:$0xff]
    %v331 = vld [vmem:[#allocation5 + $0x540] sm:$0xff]
    %v332 = vld [vmem:[#allocation5 + $0x548] sm:$0xff]
    %v333 = vld [vmem:[#allocation5 + $0x550] sm:$0xff]
    %v334 = vld [vmem:[#allocation5 + $0x558] sm:$0xff]
    %v335 = vld [vmem:[#allocation5 + $0x560] sm:$0xff]
    %v336 = vld [vmem:[#allocation5 + $0x568] sm:$0xff]
    %v337 = vld [vmem:[#allocation5 + $0x570] sm:$0xff]
    %v338 = vld [vmem:[#allocation5 + $0x578] sm:$0xff]
    %v339 = vld [vmem:[#allocation5 + $0x580] sm:$0xff]
    %v340 = vld [vmem:[#allocation5 + $0x588] sm:$0xff]
    %v341 = vld [vmem:[#allocation5 + $0x590] sm:$0xff]
    %v342 = vld [vmem:[#allocation5 + $0x598] sm:$0xff]
    %v343 = vld [vmem:[#allocation5 + $0x5a0] sm:$0xff]
    %v344 = vld [vmem:[#allocation5 + $0x5a8] sm:$0xff]
    %v345 = vld [vmem:[#allocation5 + $0x5b0] sm:$0xff]
    %v346 = vld [vmem:[#allocation5 + $0x5b8] sm:$0xff]
    %v347 = vld [vmem:[#allocation5 + $0x5c0] sm:$0xff]
    %v348 = vld [vmem:[#allocation5 + $0x5c8] sm:$0xff]
    %v349 = vld [vmem:[#allocation5 + $0x5d0] sm:$0xff]
    %v350 = vld [vmem:[#allocation5 + $0x5d8] sm:$0xff]
    %v351 = vld [vmem:[#allocation5 + $0x5e0] sm:$0xff]
    %v352 = vld [vmem:[#allocation5 + $0x5e8] sm:$0xff]
    %v353 = vld [vmem:[#allocation5 + $0x5f0] sm:$0xff]
    %v354 = vld [vmem:[#allocation5 + $0x5f8] sm:$0xff]
    %v355 = vld [vmem:[#allocation5 + $0x600] sm:$0xff]
    %v356 = vld [vmem:[#allocation5 + $0x608] sm:$0xff]
    %v357 = vld [vmem:[#allocation5 + $0x610] sm:$0xff]
    %v358 = vld [vmem:[#allocation5 + $0x618] sm:$0xff]
    %v359 = vld [vmem:[#allocation5 + $0x620] sm:$0xff]
    %v360 = vld [vmem:[#allocation5 + $0x628] sm:$0xff]
    %v361 = vld [vmem:[#allocation5 + $0x630] sm:$0xff]
    %v362 = vld [vmem:[#allocation5 + $0x638] sm:$0xff]
    %v363 = vld [vmem:[#allocation5 + $0x640] sm:$0xff]
    %v364 = vld [vmem:[#allocation5 + $0x648] sm:$0xff]
    %v365 = vld [vmem:[#allocation5 + $0x650] sm:$0xff]
    %v366 = vld [vmem:[#allocation5 + $0x658] sm:$0xff]
    %v367 = vld [vmem:[#allocation5 + $0x660] sm:$0xff]
    %v368 = vld [vmem:[#allocation5 + $0x668] sm:$0xff]
    %v369 = vld [vmem:[#allocation5 + $0x670] sm:$0xff]
    %v370 = vld [vmem:[#allocation5 + $0x678] sm:$0xff]
    %v371 = vld [vmem:[#allocation5 + $0x680] sm:$0xff]
    %v372 = vld [vmem:[#allocation5 + $0x688] sm:$0xff]
    %v373 = vld [vmem:[#allocation5 + $0x690] sm:$0xff]
    %v374 = vld [vmem:[#allocation5 + $0x698] sm:$0xff]
    %v375 = vld [vmem:[#allocation5 + $0x6a0] sm:$0xff]
    %v376 = vld [vmem:[#allocation5 + $0x6a8] sm:$0xff]
    %v377 = vld [vmem:[#allocation5 + $0x6b0] sm:$0xff]
    %v378 = vld [vmem:[#allocation5 + $0x6b8] sm:$0xff]
    %v379 = vld [vmem:[#allocation5 + $0x6c0] sm:$0xff]
    %v380 = vld [vmem:[#allocation5 + $0x6c8] sm:$0xff]
    %v381 = vld [vmem:[#allocation5 + $0x6d0] sm:$0xff]
    %v382 = vld [vmem:[#allocation5 + $0x6d8] sm:$0xff]
    %v383 = vld [vmem:[#allocation5 + $0x6e0] sm:$0xff]
    %v384 = vld [vmem:[#allocation5 + $0x6e8] sm:$0xff]
    %v385 = vld [vmem:[#allocation5 + $0x6f0] sm:$0xff]
    %v386 = vld [vmem:[#allocation5 + $0x6f8] sm:$0xff]
    %v387 = vld [vmem:[#allocation5 + $0x700] sm:$0xff]
    %v388 = vld [vmem:[#allocation5 + $0x708] sm:$0xff]
    %v389 = vld [vmem:[#allocation5 + $0x710] sm:$0xff]
    %v390 = vld [vmem:[#allocation5 + $0x718] sm:$0xff]
    %v391 = vld [vmem:[#allocation5 + $0x720] sm:$0xff]
    %v392 = vld [vmem:[#allocation5 + $0x728] sm:$0xff]
    %v393 = vld [vmem:[#allocation5 + $0x730] sm:$0xff]
    %v394 = vld [vmem:[#allocation5 + $0x738] sm:$0xff]
    %v395 = vld [vmem:[#allocation5 + $0x740] sm:$0xff]
    %v396 = vld [vmem:[#allocation5 + $0x748] sm:$0xff]
    %v397 = vld [vmem:[#allocation5 + $0x750] sm:$0xff]
    %v398 = vld [vmem:[#allocation5 + $0x758] sm:$0xff]
    %v399 = vld [vmem:[#allocation5 + $0x760] sm:$0xff]
    %v400 = vld [vmem:[#allocation5 + $0x768] sm:$0xff]
    %v401 = vld [vmem:[#allocation5 + $0x770] sm:$0xff]
    %v402 = vld [vmem:[#allocation5 + $0x778] sm:$0xff]
    %v403 = vld [vmem:[#allocation5 + $0x780] sm:$0xff]
    %v404 = vld [vmem:[#allocation5 + $0x788] sm:$0xff]
    %v405 = vld [vmem:[#allocation5 + $0x790] sm:$0xff]
    %v406 = vld [vmem:[#allocation5 + $0x798] sm:$0xff]
    %v407 = vld [vmem:[#allocation5 + $0x7a0] sm:$0xff]
    %v408 = vld [vmem:[#allocation5 + $0x7a8] sm:$0xff]
    %v409 = vld [vmem:[#allocation5 + $0x7b0] sm:$0xff]
    %v410 = vld [vmem:[#allocation5 + $0x7b8] sm:$0xff]
    %v411 = vld [vmem:[#allocation5 + $0x7c0] sm:$0xff]
    %v412 = vld [vmem:[#allocation5 + $0x7c8] sm:$0xff]
    %v413 = vld [vmem:[#allocation5 + $0x7d0] sm:$0xff]
    %v414 = vld [vmem:[#allocation5 + $0x7d8] sm:$0xff]
    %v415 = vld [vmem:[#allocation5 + $0x7e0] sm:$0xff]
    %v416 = vld [vmem:[#allocation5 + $0x7e8] sm:$0xff]
    %v417 = vld [vmem:[#allocation5 + $0x7f0] sm:$0xff]
    %v418 = vld [vmem:[#allocation5 + $0x7f8] sm:$0xff]
    %v419 = vld [vmem:[#allocation5 + $0x800] sm:$0xff]
    %v420 = vld [vmem:[#allocation5 + $0x808] sm:$0xff]
    %v421 = vld [vmem:[#allocation5 + $0x810] sm:$0xff]
    %v422 = vld [vmem:[#allocation5 + $0x818] sm:$0xff]
    %v423 = vld [vmem:[#allocation5 + $0x820] sm:$0xff]
    %v424 = vld [vmem:[#allocation5 + $0x828] sm:$0xff]
    %v425 = vld [vmem:[#allocation5 + $0x830] sm:$0xff]
    %v426 = vld [vmem:[#allocation5 + $0x838] sm:$0xff]
    %v427 = vld [vmem:[#allocation5 + $0x840] sm:$0xff]
    %v428 = vld [vmem:[#allocation5 + $0x848] sm:$0xff]
    %v429 = vld [vmem:[#allocation5 + $0x850] sm:$0xff]
    %v430 = vld [vmem:[#allocation5 + $0x858] sm:$0xff]
    %v431 = vld [vmem:[#allocation5 + $0x860] sm:$0xff]
    %v432 = vld [vmem:[#allocation5 + $0x868] sm:$0xff]
    %v433 = vld [vmem:[#allocation5 + $0x870] sm:$0xff]
    %v434 = vld [vmem:[#allocation5 + $0x878] sm:$0xff]
    %v435 = vld [vmem:[#allocation5 + $0x880] sm:$0xff]
    %v436 = vld [vmem:[#allocation5 + $0x888] sm:$0xff]
    %v437 = vld [vmem:[#allocation5 + $0x890] sm:$0xff]
    %v438 = vld [vmem:[#allocation5 + $0x898] sm:$0xff]
    %v439 = vld [vmem:[#allocation5 + $0x8a0] sm:$0xff]
    %v440 = vld [vmem:[#allocation5 + $0x8a8] sm:$0xff]
    %v441 = vld [vmem:[#allocation5 + $0x8b0] sm:$0xff]
    %v442 = vld [vmem:[#allocation5 + $0x8b8] sm:$0xff]
    %v443 = vld [vmem:[#allocation5 + $0x8c0] sm:$0xff]
    %v444 = vld [vmem:[#allocation5 + $0x8c8] sm:$0xff]
    %v445 = vld [vmem:[#allocation5 + $0x8d0] sm:$0xff]
    %v446 = vld [vmem:[#allocation5 + $0x8d8] sm:$0xff]
    %v447 = vld [vmem:[#allocation5 + $0x8e0] sm:$0xff]
    %v448 = vld [vmem:[#allocation5 + $0x8e8] sm:$0xff]
    %v449 = vld [vmem:[#allocation5 + $0x8f0] sm:$0xff]
    %v450 = vld [vmem:[#allocation5 + $0x8f8] sm:$0xff]
    %v451 = vld [vmem:[#allocation5 + $0x900] sm:$0xff]
    %v452 = vld [vmem:[#allocation5 + $0x908] sm:$0xff]
    %v453 = vld [vmem:[#allocation5 + $0x910] sm:$0xff]
    %v454 = vld [vmem:[#allocation5 + $0x918] sm:$0xff]
    %v455 = vld [vmem:[#allocation5 + $0x920] sm:$0xff]
    %v456 = vld [vmem:[#allocation5 + $0x928] sm:$0xff]
    %v457 = vld [vmem:[#allocation5 + $0x930] sm:$0xff]
    %v458 = vld [vmem:[#allocation5 + $0x938] sm:$0xff]
    %v459 = vld [vmem:[#allocation5 + $0x940] sm:$0xff]
    %v460 = vld [vmem:[#allocation5 + $0x948] sm:$0xff]
    %v461 = vld [vmem:[#allocation5 + $0x950] sm:$0xff]
    %v462 = vld [vmem:[#allocation5 + $0x958] sm:$0xff]
    %v463 = vld [vmem:[#allocation5 + $0x960] sm:$0xff]
    %v464 = vld [vmem:[#allocation5 + $0x968] sm:$0xff]
    %v465 = vld [vmem:[#allocation5 + $0x970] sm:$0xff]
    %v466 = vld [vmem:[#allocation5 + $0x978] sm:$0xff]
    %v467 = vld [vmem:[#allocation5 + $0x980] sm:$0xff]
    %v468 = vld [vmem:[#allocation5 + $0x988] sm:$0xff]
    %v469 = vld [vmem:[#allocation5 + $0x990] sm:$0xff]
    %v470 = vld [vmem:[#allocation5 + $0x998] sm:$0xff]
    %v471 = vld [vmem:[#allocation5 + $0x9a0] sm:$0xff]
    %v472 = vld [vmem:[#allocation5 + $0x9a8] sm:$0xff]
    %v473 = vld [vmem:[#allocation5 + $0x9b0] sm:$0xff]
    %v474 = vld [vmem:[#allocation5 + $0x9b8] sm:$0xff]
    %v475 = vld [vmem:[#allocation5 + $0x9c0] sm:$0xff]
    %v476 = vld [vmem:[#allocation5 + $0x9c8] sm:$0xff]
    %v477 = vld [vmem:[#allocation5 + $0x9d0] sm:$0xff]
    %v478 = vld [vmem:[#allocation5 + $0x9d8] sm:$0xff]
    %v479 = vld [vmem:[#allocation5 + $0x9e0] sm:$0xff]
    %v480 = vld [vmem:[#allocation5 + $0x9e8] sm:$0xff]
    %v481 = vld [vmem:[#allocation5 + $0x9f0] sm:$0xff]
    %v482 = vld [vmem:[#allocation5 + $0x9f8] sm:$0xff]
    %v483 = vld [vmem:[#allocation5 + $0xa00] sm:$0xff]
    %v484 = vld [vmem:[#allocation5 + $0xa08] sm:$0xff]
    %v485 = vld [vmem:[#allocation5 + $0xa10] sm:$0xff]
    %v486 = vld [vmem:[#allocation5 + $0xa18] sm:$0xff]
    %v487 = vld [vmem:[#allocation5 + $0xa20] sm:$0xff]
    %v488 = vld [vmem:[#allocation5 + $0xa28] sm:$0xff]
    %v489 = vld [vmem:[#allocation5 + $0xa30] sm:$0xff]
    %v490 = vld [vmem:[#allocation5 + $0xa38] sm:$0xff]
    %v491 = vld [vmem:[#allocation5 + $0xa40] sm:$0xff]
    %v492 = vld [vmem:[#allocation5 + $0xa48] sm:$0xff]
    %v493 = vld [vmem:[#allocation5 + $0xa50] sm:$0xff]
    %v494 = vld [vmem:[#allocation5 + $0xa58] sm:$0xff]
    %v495 = vld [vmem:[#allocation5 + $0xa60] sm:$0xff]
    %v496 = vld [vmem:[#allocation5 + $0xa68] sm:$0xff]
    %v497 = vld [vmem:[#allocation5 + $0xa70] sm:$0xff]
    %v498 = vld [vmem:[#allocation5 + $0xa78] sm:$0xff]
    %v499 = vld [vmem:[#allocation5 + $0xa80] sm:$0xff]
    %v500 = vld [vmem:[#allocation5 + $0xa88] sm:$0xff]
    %v501 = vld [vmem:[#allocation5 + $0xa90] sm:$0xff]
    %v502 = vld [vmem:[#allocation5 + $0xa98] sm:$0xff]
    %v503 = vld [vmem:[#allocation5 + $0xaa0] sm:$0xff]
    %v504 = vld [vmem:[#allocation5 + $0xaa8] sm:$0xff]
    %v505 = vld [vmem:[#allocation5 + $0xab0] sm:$0xff]
    %v506 = vld [vmem:[#allocation5 + $0xab8] sm:$0xff]
    %v507 = vld [vmem:[#allocation5 + $0xac0] sm:$0xff]
    %v508 = vld [vmem:[#allocation5 + $0xac8] sm:$0xff]
    %v509 = vld [vmem:[#allocation5 + $0xad0] sm:$0xff]
    %v510 = vld [vmem:[#allocation5 + $0xad8] sm:$0xff]
    %v511 = vld [vmem:[#allocation5 + $0xae0] sm:$0xff]
    %v512 = vld [vmem:[#allocation5 + $0xae8] sm:$0xff]
    %v513 = vld [vmem:[#allocation5 + $0xaf0] sm:$0xff]
    %v514 = vld [vmem:[#allocation5 + $0xaf8] sm:$0xff]
    %v515 = vld [vmem:[#allocation5 + $0xb00] sm:$0xff]
    %v516 = vld [vmem:[#allocation5 + $0xb08] sm:$0xff]
    %v517 = vld [vmem:[#allocation5 + $0xb10] sm:$0xff]
    %v518 = vld [vmem:[#allocation5 + $0xb18] sm:$0xff]
    %v519 = vld [vmem:[#allocation5 + $0xb20] sm:$0xff]
    %v520 = vld [vmem:[#allocation5 + $0xb28] sm:$0xff]
    %v521 = vld [vmem:[#allocation5 + $0xb30] sm:$0xff]
    %v522 = vld [vmem:[#allocation5 + $0xb38] sm:$0xff]
    %v523 = vld [vmem:[#allocation5 + $0xb40] sm:$0xff]
    %v524 = vld [vmem:[#allocation5 + $0xb48] sm:$0xff]
    %v525 = vld [vmem:[#allocation5 + $0xb50] sm:$0xff]
    %v526 = vld [vmem:[#allocation5 + $0xb58] sm:$0xff]
    %v527 = vld [vmem:[#allocation5 + $0xb60] sm:$0xff]
    %v528 = vld [vmem:[#allocation5 + $0xb68] sm:$0xff]
    %v529 = vld [vmem:[#allocation5 + $0xb70] sm:$0xff]
    %v530 = vld [vmem:[#allocation5 + $0xb78] sm:$0xff]
    %v531 = vld [vmem:[#allocation5 + $0xb80] sm:$0xff]
    %v532 = vld [vmem:[#allocation5 + $0xb88] sm:$0xff]
    %v533 = vld [vmem:[#allocation5 + $0xb90] sm:$0xff]
    %v534 = vld [vmem:[#allocation5 + $0xb98] sm:$0xff]
    %v535 = vld [vmem:[#allocation5 + $0xba0] sm:$0xff]
    %v536 = vld [vmem:[#allocation5 + $0xba8] sm:$0xff]
    %v537 = vld [vmem:[#allocation5 + $0xbb0] sm:$0xff]
    %v538 = vld [vmem:[#allocation5 + $0xbb8] sm:$0xff]
    %v539 = vld [vmem:[#allocation5 + $0xbc0] sm:$0xff]
    %v540 = vld [vmem:[#allocation5 + $0xbc8] sm:$0xff]
    %v541 = vld [vmem:[#allocation5 + $0xbd0] sm:$0xff]
    %v542 = vld [vmem:[#allocation5 + $0xbd8] sm:$0xff]
    %v543 = vld [vmem:[#allocation5 + $0xbe0] sm:$0xff]
    %v544 = vld [vmem:[#allocation5 + $0xbe8] sm:$0xff]
    %v545 = vld [vmem:[#allocation5 + $0xbf0] sm:$0xff]
    %v546 = vld [vmem:[#allocation5 + $0xbf8] sm:$0xff]
    %v547 = vld [vmem:[#allocation5 + $0xc00] sm:$0xff]
    %v548 = vld [vmem:[#allocation5 + $0xc08] sm:$0xff]
    %v549 = vld [vmem:[#allocation5 + $0xc10] sm:$0xff]
    %v550 = vld [vmem:[#allocation5 + $0xc18] sm:$0xff]
    %v551 = vld [vmem:[#allocation5 + $0xc20] sm:$0xff]
    %v552 = vld [vmem:[#allocation5 + $0xc28] sm:$0xff]
    %v553 = vld [vmem:[#allocation5 + $0xc30] sm:$0xff]
    %v554 = vld [vmem:[#allocation5 + $0xc38] sm:$0xff]
    %v555 = vld [vmem:[#allocation5 + $0xc40] sm:$0xff]
    %v556 = vld [vmem:[#allocation5 + $0xc48] sm:$0xff]
    %v557 = vld [vmem:[#allocation5 + $0xc50] sm:$0xff]
    %v558 = vld [vmem:[#allocation5 + $0xc58] sm:$0xff]
    %v559 = vld [vmem:[#allocation5 + $0xc60] sm:$0xff]
    %v560 = vld [vmem:[#allocation5 + $0xc68] sm:$0xff]
    %v561 = vld [vmem:[#allocation5 + $0xc70] sm:$0xff]
    %v562 = vld [vmem:[#allocation5 + $0xc78] sm:$0xff]
    %v563 = vld [vmem:[#allocation5 + $0xc80] sm:$0xff]
    %v564 = vld [vmem:[#allocation5 + $0xc88] sm:$0xff]
    %v565 = vld [vmem:[#allocation5 + $0xc90] sm:$0xff]
    %v566 = vld [vmem:[#allocation5 + $0xc98] sm:$0xff]
    %v567 = vld [vmem:[#allocation5 + $0xca0] sm:$0xff]
    %v568 = vld [vmem:[#allocation5 + $0xca8] sm:$0xff]
    %v569 = vld [vmem:[#allocation5 + $0xcb0] sm:$0xff]
    %v570 = vld [vmem:[#allocation5 + $0xcb8] sm:$0xff]
    %v571 = vld [vmem:[#allocation5 + $0xcc0] sm:$0xff]
    %v572 = vld [vmem:[#allocation5 + $0xcc8] sm:$0xff]
    %v573 = vld [vmem:[#allocation5 + $0xcd0] sm:$0xff]
    %v574 = vld [vmem:[#allocation5 + $0xcd8] sm:$0xff]
    %v575 = vld [vmem:[#allocation5 + $0xce0] sm:$0xff]
    %v576 = vld [vmem:[#allocation5 + $0xce8] sm:$0xff]
    %v577 = vld [vmem:[#allocation5 + $0xcf0] sm:$0xff]
    %v578 = vld [vmem:[#allocation5 + $0xcf8] sm:$0xff]
    %v579 = vld [vmem:[#allocation5 + $0xd00] sm:$0xff]
    %v580 = vld [vmem:[#allocation5 + $0xd08] sm:$0xff]
    %v581 = vld [vmem:[#allocation5 + $0xd10] sm:$0xff]
    %v582 = vld [vmem:[#allocation5 + $0xd18] sm:$0xff]
    %v583 = vld [vmem:[#allocation5 + $0xd20] sm:$0xff]
    %v584 = vld [vmem:[#allocation5 + $0xd28] sm:$0xff]
    %v585 = vld [vmem:[#allocation5 + $0xd30] sm:$0xff]
    %v586 = vld [vmem:[#allocation5 + $0xd38] sm:$0xff]
    %v587 = vld [vmem:[#allocation5 + $0xd40] sm:$0xff]
    %v588 = vld [vmem:[#allocation5 + $0xd48] sm:$0xff]
    %v589 = vld [vmem:[#allocation5 + $0xd50] sm:$0xff]
    %v590 = vld [vmem:[#allocation5 + $0xd58] sm:$0xff]
    %v591 = vld [vmem:[#allocation5 + $0xd60] sm:$0xff]
    %v592 = vld [vmem:[#allocation5 + $0xd68] sm:$0xff]
    %v593 = vld [vmem:[#allocation5 + $0xd70] sm:$0xff]
    %v594 = vld [vmem:[#allocation5 + $0xd78] sm:$0xff]
    %v595 = vld [vmem:[#allocation5 + $0xd80] sm:$0xff]
    %v596 = vld [vmem:[#allocation5 + $0xd88] sm:$0xff]
    %v597 = vld [vmem:[#allocation5 + $0xd90] sm:$0xff]
    %v598 = vld [vmem:[#allocation5 + $0xd98] sm:$0xff]
    %v599 = vld [vmem:[#allocation5 + $0xda0] sm:$0xff]
    %v600 = vld [vmem:[#allocation5 + $0xda8] sm:$0xff]
    %v601 = vld [vmem:[#allocation5 + $0xdb0] sm:$0xff]
    %v602 = vld [vmem:[#allocation5 + $0xdb8] sm:$0xff]
    %v603 = vld [vmem:[#allocation5 + $0xdc0] sm:$0xff]
    %v604 = vld [vmem:[#allocation5 + $0xdc8] sm:$0xff]
    %v605 = vld [vmem:[#allocation5 + $0xdd0] sm:$0xff]
    %v606 = vld [vmem:[#allocation5 + $0xdd8] sm:$0xff]
    %v607 = vld [vmem:[#allocation5 + $0xde0] sm:$0xff]
    %v608 = vld [vmem:[#allocation5 + $0xde8] sm:$0xff]
    %v609 = vld [vmem:[#allocation5 + $0xdf0] sm:$0xff]
    %v610 = vld [vmem:[#allocation5 + $0xdf8] sm:$0xff]
    %v611 = vld [vmem:[#allocation5 + $0xe00] sm:$0xff]
    %v612 = vld [vmem:[#allocation5 + $0xe08] sm:$0xff]
    %v613 = vld [vmem:[#allocation5 + $0xe10] sm:$0xff]
    %v614 = vld [vmem:[#allocation5 + $0xe18] sm:$0xff]
    %v615 = vld [vmem:[#allocation5 + $0xe20] sm:$0xff]
    %v616 = vld [vmem:[#allocation5 + $0xe28] sm:$0xff]
    %v617 = vld [vmem:[#allocation5 + $0xe30] sm:$0xff]
    %v618 = vld [vmem:[#allocation5 + $0xe38] sm:$0xff]
    %v619 = vld [vmem:[#allocation5 + $0xe40] sm:$0xff]
    %v620 = vld [vmem:[#allocation5 + $0xe48] sm:$0xff]
    %v621 = vld [vmem:[#allocation5 + $0xe50] sm:$0xff]
    %v622 = vld [vmem:[#allocation5 + $0xe58] sm:$0xff]
    %v623 = vld [vmem:[#allocation5 + $0xe60] sm:$0xff]
    %v624 = vld [vmem:[#allocation5 + $0xe68] sm:$0xff]
    %v625 = vld [vmem:[#allocation5 + $0xe70] sm:$0xff]
    %v626 = vld [vmem:[#allocation5 + $0xe78] sm:$0xff]
    %v627 = vld [vmem:[#allocation5 + $0xe80] sm:$0xff]
    %v628 = vld [vmem:[#allocation5 + $0xe88] sm:$0xff]
    %v629 = vld [vmem:[#allocation5 + $0xe90] sm:$0xff]
    %v630 = vld [vmem:[#allocation5 + $0xe98] sm:$0xff]
    %v631 = vld [vmem:[#allocation5 + $0xea0] sm:$0xff]
    %v632 = vld [vmem:[#allocation5 + $0xea8] sm:$0xff]
    %v633 = vld [vmem:[#allocation5 + $0xeb0] sm:$0xff]
    %v634 = vld [vmem:[#allocation5 + $0xeb8] sm:$0xff]
    %v635 = vld [vmem:[#allocation5 + $0xec0] sm:$0xff]
    %v636 = vld [vmem:[#allocation5 + $0xec8] sm:$0xff]
    %v637 = vld [vmem:[#allocation5 + $0xed0] sm:$0xff]
    %v638 = vld [vmem:[#allocation5 + $0xed8] sm:$0xff]
    %v639 = vld [vmem:[#allocation5 + $0xee0] sm:$0xff]
    %v640 = vld [vmem:[#allocation5 + $0xee8] sm:$0xff]
    %v641 = vld [vmem:[#allocation5 + $0xef0] sm:$0xff]
    %v642 = vld [vmem:[#allocation5 + $0xef8] sm:$0xff]
    %v643 = vld [vmem:[#allocation5 + $0xf00] sm:$0xff]
    %v644 = vld [vmem:[#allocation5 + $0xf08] sm:$0xff]
    %v645 = vld [vmem:[#allocation5 + $0xf10] sm:$0xff]
    %v646 = vld [vmem:[#allocation5 + $0xf18] sm:$0xff]
    %v647 = vld [vmem:[#allocation5 + $0xf20] sm:$0xff]
    %v648 = vld [vmem:[#allocation5 + $0xf28] sm:$0xff]
    %v649 = vld [vmem:[#allocation5 + $0xf30] sm:$0xff]
    %v650 = vld [vmem:[#allocation5 + $0xf38] sm:$0xff]
    %v651 = vld [vmem:[#allocation5 + $0xf40] sm:$0xff]
    %v652 = vld [vmem:[#allocation5 + $0xf48] sm:$0xff]
    %v653 = vld [vmem:[#allocation5 + $0xf50] sm:$0xff]
    %v654 = vld [vmem:[#allocation5 + $0xf58] sm:$0xff]
    %v655 = vld [vmem:[#allocation5 + $0xf60] sm:$0xff]
    %v656 = vld [vmem:[#allocation5 + $0xf68] sm:$0xff]
    %v657 = vld [vmem:[#allocation5 + $0xf70] sm:$0xff]
    %v658 = vld [vmem:[#allocation5 + $0xf78] sm:$0xff]
    %v659 = vld [vmem:[#allocation5 + $0xf80] sm:$0xff]
    %v660 = vld [vmem:[#allocation5 + $0xf88] sm:$0xff]
    %v661 = vld [vmem:[#allocation5 + $0xf90] sm:$0xff]
    %v662 = vld [vmem:[#allocation5 + $0xf98] sm:$0xff]
    %v663 = vld [vmem:[#allocation5 + $0xfa0] sm:$0xff]
    %v664 = vld [vmem:[#allocation5 + $0xfa8] sm:$0xff]
    %v665 = vld [vmem:[#allocation5 + $0xfb0] sm:$0xff]
    %v666 = vld [vmem:[#allocation5 + $0xfb8] sm:$0xff]
    %v667 = vld [vmem:[#allocation5 + $0xfc0] sm:$0xff]
    %v668 = vld [vmem:[#allocation5 + $0xfc8] sm:$0xff]
    %v669 = vld [vmem:[#allocation5 + $0xfd0] sm:$0xff]
    %v670 = vld [vmem:[#allocation5 + $0xfd8] sm:$0xff]
    %v671 = vld [vmem:[#allocation5 + $0xfe0] sm:$0xff]
    %v672 = vld [vmem:[#allocation5 + $0xfe8] sm:$0xff]
    %v673 = vld [vmem:[#allocation5 + $0xff0] sm:$0xff]
    %v674 = vld [vmem:[#allocation5 + $0xff8] sm:$0xff]
    %v675 = vld [vmem:[#allocation5 + $0x1000] sm:$0xff]
    %v676 = vld [vmem:[#allocation5 + $0x1008] sm:$0xff]
    %v677 = vld [vmem:[#allocation5 + $0x1010] sm:$0xff]
    %v678 = vld [vmem:[#allocation5 + $0x1018] sm:$0xff]
    %v679 = vld [vmem:[#allocation5 + $0x1020] sm:$0xff]
    %v680 = vld [vmem:[#allocation5 + $0x1028] sm:$0xff]
    %v681 = vld [vmem:[#allocation5 + $0x1030] sm:$0xff]
    %v682 = vld [vmem:[#allocation5 + $0x1038] sm:$0xff]
    %v683 = vld [vmem:[#allocation5 + $0x1040] sm:$0xff]
    %v684 = vld [vmem:[#allocation5 + $0x1048] sm:$0xff]
    %v685 = vld [vmem:[#allocation5 + $0x1050] sm:$0xff]
    %v686 = vld [vmem:[#allocation5 + $0x1058] sm:$0xff]
    %v687 = vld [vmem:[#allocation5 + $0x1060] sm:$0xff]
    %v688 = vld [vmem:[#allocation5 + $0x1068] sm:$0xff]
    %v689 = vld [vmem:[#allocation5 + $0x1070] sm:$0xff]
    %v690 = vld [vmem:[#allocation5 + $0x1078] sm:$0xff]
    %v691 = vld [vmem:[#allocation5 + $0x1080] sm:$0xff]
    %v692 = vld [vmem:[#allocation5 + $0x1088] sm:$0xff]
    %v693 = vld [vmem:[#allocation5 + $0x1090] sm:$0xff]
    %v694 = vld [vmem:[#allocation5 + $0x1098] sm:$0xff]
    %v695 = vld [vmem:[#allocation5 + $0x10a0] sm:$0xff]
    %v696 = vld [vmem:[#allocation5 + $0x10a8] sm:$0xff]
    %v697 = vld [vmem:[#allocation5 + $0x10b0] sm:$0xff]
    %v698 = vld [vmem:[#allocation5 + $0x10b8] sm:$0xff]
    %v699 = vld [vmem:[#allocation5 + $0x10c0] sm:$0xff]
    %v700 = vld [vmem:[#allocation5 + $0x10c8] sm:$0xff]
    %v701 = vld [vmem:[#allocation5 + $0x10d0] sm:$0xff]
    %v702 = vld [vmem:[#allocation5 + $0x10d8] sm:$0xff]
    %v703 = vld [vmem:[#allocation5 + $0x10e0] sm:$0xff]
    %v704 = vld [vmem:[#allocation5 + $0x10e8] sm:$0xff]
    %v705 = vld [vmem:[#allocation5 + $0x10f0] sm:$0xff]
    %v706 = vld [vmem:[#allocation5 + $0x10f8] sm:$0xff]
    %v707 = vld [vmem:[#allocation5 + $0x1100] sm:$0xff]
    %v708 = vld [vmem:[#allocation5 + $0x1108] sm:$0xff]
    %v709 = vld [vmem:[#allocation5 + $0x1110] sm:$0xff]
    %v710 = vld [vmem:[#allocation5 + $0x1118] sm:$0xff]
    %v711 = vld [vmem:[#allocation5 + $0x1120] sm:$0xff]
    %v712 = vld [vmem:[#allocation5 + $0x1128] sm:$0xff]
    %v713 = vld [vmem:[#allocation5 + $0x1130] sm:$0xff]
    %v714 = vld [vmem:[#allocation5 + $0x1138] sm:$0xff]
    %v715 = vld [vmem:[#allocation5 + $0x1140] sm:$0xff]
    %v716 = vld [vmem:[#allocation5 + $0x1148] sm:$0xff]
    %v717 = vld [vmem:[#allocation5 + $0x1150] sm:$0xff]
    %v718 = vld [vmem:[#allocation5 + $0x1158] sm:$0xff]
    %v719 = vld [vmem:[#allocation5 + $0x1160] sm:$0xff]
    %v720 = vld [vmem:[#allocation5 + $0x1168] sm:$0xff]
    %v721 = vld [vmem:[#allocation5 + $0x1170] sm:$0xff]
    %v722 = vld [vmem:[#allocation5 + $0x1178] sm:$0xff]
    %v723 = vld [vmem:[#allocation5 + $0x1180] sm:$0xff]
    %v724 = vld [vmem:[#allocation5 + $0x1188] sm:$0xff]
    %v725 = vld [vmem:[#allocation5 + $0x1190] sm:$0xff]
    %v726 = vld [vmem:[#allocation5 + $0x1198] sm:$0xff]
    %v727 = vld [vmem:[#allocation5 + $0x11a0] sm:$0xff]
    %v728 = vld [vmem:[#allocation5 + $0x11a8] sm:$0xff]
    %v729 = vld [vmem:[#allocation5 + $0x11b0] sm:$0xff]
    %v730 = vld [vmem:[#allocation5 + $0x11b8] sm:$0xff]
    %v731 = vld [vmem:[#allocation5 + $0x11c0] sm:$0xff]
    %v732 = vld [vmem:[#allocation5 + $0x11c8] sm:$0xff]
    %v733 = vld [vmem:[#allocation5 + $0x11d0] sm:$0xff]
    %v734 = vld [vmem:[#allocation5 + $0x11d8] sm:$0xff]
    %v735 = vld [vmem:[#allocation5 + $0x11e0] sm:$0xff]
    %v736 = vld [vmem:[#allocation5 + $0x11e8] sm:$0xff]
    %v737 = vld [vmem:[#allocation5 + $0x11f0] sm:$0xff]
    %v738 = vld [vmem:[#allocation5 + $0x11f8] sm:$0xff]
    %v739 = vld [vmem:[#allocation5 + $0x1200] sm:$0xff]
    %v740 = vld [vmem:[#allocation5 + $0x1208] sm:$0xff]
    %v741 = vld [vmem:[#allocation5 + $0x1210] sm:$0xff]
    %v742 = vld [vmem:[#allocation5 + $0x1218] sm:$0xff]
    %v743 = vld [vmem:[#allocation5 + $0x1220] sm:$0xff]
    %v744 = vld [vmem:[#allocation5 + $0x1228] sm:$0xff]
    %v745 = vld [vmem:[#allocation5 + $0x1230] sm:$0xff]
    %v746 = vld [vmem:[#allocation5 + $0x1238] sm:$0xff]
    %v747 = vld [vmem:[#allocation5 + $0x1240] sm:$0xff]
    %v748 = vld [vmem:[#allocation5 + $0x1248] sm:$0xff]
    %v749 = vld [vmem:[#allocation5 + $0x1250] sm:$0xff]
    %v750 = vld [vmem:[#allocation5 + $0x1258] sm:$0xff]
    %v751 = vld [vmem:[#allocation5 + $0x1260] sm:$0xff]
    %v752 = vld [vmem:[#allocation5 + $0x1268] sm:$0xff]
    %v753 = vld [vmem:[#allocation5 + $0x1270] sm:$0xff]
    %v754 = vld [vmem:[#allocation5 + $0x1278] sm:$0xff]
    %v755 = vld [vmem:[#allocation5 + $0x1280] sm:$0xff]
    %v756 = vld [vmem:[#allocation5 + $0x1288] sm:$0xff]
    %v757 = vld [vmem:[#allocation5 + $0x1290] sm:$0xff]
    %v758 = vld [vmem:[#allocation5 + $0x1298] sm:$0xff]
    %v759 = vld [vmem:[#allocation5 + $0x12a0] sm:$0xff]
    %v760 = vld [vmem:[#allocation5 + $0x12a8] sm:$0xff]
    %v761 = vld [vmem:[#allocation5 + $0x12b0] sm:$0xff]
    %v762 = vld [vmem:[#allocation5 + $0x12b8] sm:$0xff]
    %v763 = vld [vmem:[#allocation5 + $0x12c0] sm:$0xff]
    %v764 = vld [vmem:[#allocation5 + $0x12c8] sm:$0xff]
    %v765 = vld [vmem:[#allocation5 + $0x12d0] sm:$0xff]
    %v766 = vld [vmem:[#allocation5 + $0x12d8] sm:$0xff]
    %v767 = vld [vmem:[#allocation5 + $0x12e0] sm:$0xff]
    %v768 = vld [vmem:[#allocation5 + $0x12e8] sm:$0xff]
    %v769 = vld [vmem:[#allocation5 + $0x12f0] sm:$0xff]
    %v770 = vld [vmem:[#allocation5 + $0x12f8] sm:$0xff]
    %v771 = vld [vmem:[#allocation5 + $0x1300] sm:$0xff]
    %v772 = vld [vmem:[#allocation5 + $0x1308] sm:$0xff]
    %v773 = vld [vmem:[#allocation5 + $0x1310] sm:$0xff]
    %v774 = vld [vmem:[#allocation5 + $0x1318] sm:$0xff]
    %v775 = vld [vmem:[#allocation5 + $0x1320] sm:$0xff]
    %v776 = vld [vmem:[#allocation5 + $0x1328] sm:$0xff]
    %v777 = vld [vmem:[#allocation5 + $0x1330] sm:$0xff]
    %v778 = vld [vmem:[#allocation5 + $0x1338] sm:$0xff]
    %v779 = vld [vmem:[#allocation5 + $0x1340] sm:$0xff]
    %v780 = vld [vmem:[#allocation5 + $0x1348] sm:$0xff]
    %v781 = vld [vmem:[#allocation5 + $0x1350] sm:$0xff]
    %v782 = vld [vmem:[#allocation5 + $0x1358] sm:$0xff]
    %v783 = vld [vmem:[#allocation5 + $0x1360] sm:$0xff]
    %v784 = vld [vmem:[#allocation5 + $0x1368] sm:$0xff]
    %v785 = vld [vmem:[#allocation5 + $0x1370] sm:$0xff]
    %v786 = vld [vmem:[#allocation5 + $0x1378] sm:$0xff]
    %v787 = vld [vmem:[#allocation5 + $0x1380] sm:$0xff]
    %v788 = vld [vmem:[#allocation5 + $0x1388] sm:$0xff]
    %v789 = vld [vmem:[#allocation5 + $0x1390] sm:$0xff]
    %v790 = vld [vmem:[#allocation5 + $0x1398] sm:$0xff]
    %v791 = vld [vmem:[#allocation5 + $0x13a0] sm:$0xff]
    %v792 = vld [vmem:[#allocation5 + $0x13a8] sm:$0xff]
    %v793 = vld [vmem:[#allocation5 + $0x13b0] sm:$0xff]
    %v794 = vld [vmem:[#allocation5 + $0x13b8] sm:$0xff]
    %v795 = vld [vmem:[#allocation5 + $0x13c0] sm:$0xff]
    %v796 = vld [vmem:[#allocation5 + $0x13c8] sm:$0xff]
    %v797 = vld [vmem:[#allocation5 + $0x13d0] sm:$0xff]
    %v798 = vld [vmem:[#allocation5 + $0x13d8] sm:$0xff]
    %v799 = vld [vmem:[#allocation5 + $0x13e0] sm:$0xff]
    %v800 = vld [vmem:[#allocation5 + $0x13e8] sm:$0xff]
    %v801 = vld [vmem:[#allocation5 + $0x13f0] sm:$0xff]
    %v802 = vld [vmem:[#allocation5 + $0x13f8] sm:$0xff]
    %v803 = vld [vmem:[#allocation5 + $0x1400] sm:$0xff]
    %v804 = vld [vmem:[#allocation5 + $0x1408] sm:$0xff]
    %v805 = vld [vmem:[#allocation5 + $0x1410] sm:$0xff]
    %v806 = vld [vmem:[#allocation5 + $0x1418] sm:$0xff]
    %v807 = vld [vmem:[#allocation5 + $0x1420] sm:$0xff]
    %v808 = vld [vmem:[#allocation5 + $0x1428] sm:$0xff]
    %v809 = vld [vmem:[#allocation5 + $0x1430] sm:$0xff]
    %v810 = vld [vmem:[#allocation5 + $0x1438] sm:$0xff]
    %v811 = vld [vmem:[#allocation5 + $0x1440] sm:$0xff]
    %v812 = vld [vmem:[#allocation5 + $0x1448] sm:$0xff]
    %v813 = vld [vmem:[#allocation5 + $0x1450] sm:$0xff]
    %v814 = vld [vmem:[#allocation5 + $0x1458] sm:$0xff]
    %v815 = vld [vmem:[#allocation5 + $0x1460] sm:$0xff]
    %v816 = vld [vmem:[#allocation5 + $0x1468] sm:$0xff]
    %v817 = vld [vmem:[#allocation5 + $0x1470] sm:$0xff]
    %v818 = vld [vmem:[#allocation5 + $0x1478] sm:$0xff]
    %v819 = vld [vmem:[#allocation5 + $0x1480] sm:$0xff]
    %v820 = vld [vmem:[#allocation5 + $0x1488] sm:$0xff]
    %v821 = vld [vmem:[#allocation5 + $0x1490] sm:$0xff]
    %v822 = vld [vmem:[#allocation5 + $0x1498] sm:$0xff]
    %v823 = vld [vmem:[#allocation5 + $0x14a0] sm:$0xff]
    %v824 = vld [vmem:[#allocation5 + $0x14a8] sm:$0xff]
    %v825 = vld [vmem:[#allocation5 + $0x14b0] sm:$0xff]
    %v826 = vld [vmem:[#allocation5 + $0x14b8] sm:$0xff]
    %v827 = vld [vmem:[#allocation5 + $0x14c0] sm:$0xff]
    %v828 = vld [vmem:[#allocation5 + $0x14c8] sm:$0xff]
    %v829 = vld [vmem:[#allocation5 + $0x14d0] sm:$0xff]
    %v830 = vld [vmem:[#allocation5 + $0x14d8] sm:$0xff]
    %v831 = vld [vmem:[#allocation5 + $0x14e0] sm:$0xff]
    %v832 = vld [vmem:[#allocation5 + $0x14e8] sm:$0xff]
    %v833 = vld [vmem:[#allocation5 + $0x14f0] sm:$0xff]
    %v834 = vld [vmem:[#allocation5 + $0x14f8] sm:$0xff]
    %v835 = vld [vmem:[#allocation5 + $0x1500] sm:$0xff]
    %v836 = vld [vmem:[#allocation5 + $0x1508] sm:$0xff]
    %v837 = vld [vmem:[#allocation5 + $0x1510] sm:$0xff]
    %v838 = vld [vmem:[#allocation5 + $0x1518] sm:$0xff]
    %v839 = vld [vmem:[#allocation5 + $0x1520] sm:$0xff]
    %v840 = vld [vmem:[#allocation5 + $0x1528] sm:$0xff]
    %v841 = vld [vmem:[#allocation5 + $0x1530] sm:$0xff]
    %v842 = vld [vmem:[#allocation5 + $0x1538] sm:$0xff]
    %v843 = vld [vmem:[#allocation5 + $0x1540] sm:$0xff]
    %v844 = vld [vmem:[#allocation5 + $0x1548] sm:$0xff]
    %v845 = vld [vmem:[#allocation5 + $0x1550] sm:$0xff]
    %v846 = vld [vmem:[#allocation5 + $0x1558] sm:$0xff]
    %v847 = vld [vmem:[#allocation5 + $0x1560] sm:$0xff]
    %v848 = vld [vmem:[#allocation5 + $0x1568] sm:$0xff]
    %v849 = vld [vmem:[#allocation5 + $0x1570] sm:$0xff]
    %v850 = vld [vmem:[#allocation5 + $0x1578] sm:$0xff]
    %v851 = vld [vmem:[#allocation5 + $0x1580] sm:$0xff]
    %v852 = vld [vmem:[#allocation5 + $0x1588] sm:$0xff]
    %v853 = vld [vmem:[#allocation5 + $0x1590] sm:$0xff]
    %v854 = vld [vmem:[#allocation5 + $0x1598] sm:$0xff]
    %v855 = vld [vmem:[#allocation5 + $0x15a0] sm:$0xff]
    %v856 = vld [vmem:[#allocation5 + $0x15a8] sm:$0xff]
    %v857 = vld [vmem:[#allocation5 + $0x15b0] sm:$0xff]
    %v858 = vld [vmem:[#allocation5 + $0x15b8] sm:$0xff]
    %v859 = vld [vmem:[#allocation5 + $0x15c0] sm:$0xff]
    %v860 = vld [vmem:[#allocation5 + $0x15c8] sm:$0xff]
    %v861 = vld [vmem:[#allocation5 + $0x15d0] sm:$0xff]
    %v862 = vld [vmem:[#allocation5 + $0x15d8] sm:$0xff]
    %v863 = vld [vmem:[#allocation5 + $0x15e0] sm:$0xff]
    %v864 = vld [vmem:[#allocation5 + $0x15e8] sm:$0xff]
    %v865 = vld [vmem:[#allocation5 + $0x15f0] sm:$0xff]
    %v866 = vld [vmem:[#allocation5 + $0x15f8] sm:$0xff]
    %v867 = vld [vmem:[#allocation5 + $0x1600] sm:$0xff]
    %v868 = vld [vmem:[#allocation5 + $0x1608] sm:$0xff]
    %v869 = vld [vmem:[#allocation5 + $0x1610] sm:$0xff]
    %v870 = vld [vmem:[#allocation5 + $0x1618] sm:$0xff]
    %v871 = vld [vmem:[#allocation5 + $0x1620] sm:$0xff]
    %v872 = vld [vmem:[#allocation5 + $0x1628] sm:$0xff]
    %v873 = vld [vmem:[#allocation5 + $0x1630] sm:$0xff]
    %v874 = vld [vmem:[#allocation5 + $0x1638] sm:$0xff]
    %v875 = vld [vmem:[#allocation5 + $0x1640] sm:$0xff]
    %v876 = vld [vmem:[#allocation5 + $0x1648] sm:$0xff]
    %v877 = vld [vmem:[#allocation5 + $0x1650] sm:$0xff]
    %v878 = vld [vmem:[#allocation5 + $0x1658] sm:$0xff]
    %v879 = vld [vmem:[#allocation5 + $0x1660] sm:$0xff]
    %v880 = vld [vmem:[#allocation5 + $0x1668] sm:$0xff]
    %v881 = vld [vmem:[#allocation5 + $0x1670] sm:$0xff]
    %v882 = vld [vmem:[#allocation5 + $0x1678] sm:$0xff]
    %v883 = vld [vmem:[#allocation5 + $0x1680] sm:$0xff]
    %v884 = vld [vmem:[#allocation5 + $0x1688] sm:$0xff]
    %v885 = vld [vmem:[#allocation5 + $0x1690] sm:$0xff]
    %v886 = vld [vmem:[#allocation5 + $0x1698] sm:$0xff]
    %v887 = vld [vmem:[#allocation5 + $0x16a0] sm:$0xff]
    %v888 = vld [vmem:[#allocation5 + $0x16a8] sm:$0xff]
    %v889 = vld [vmem:[#allocation5 + $0x16b0] sm:$0xff]
    %v890 = vld [vmem:[#allocation5 + $0x16b8] sm:$0xff]
    %v891 = vld [vmem:[#allocation5 + $0x16c0] sm:$0xff]
    %v892 = vld [vmem:[#allocation5 + $0x16c8] sm:$0xff]
    %v893 = vld [vmem:[#allocation5 + $0x16d0] sm:$0xff]
    %v894 = vld [vmem:[#allocation5 + $0x16d8] sm:$0xff]
    %v895 = vld [vmem:[#allocation5 + $0x16e0] sm:$0xff]
    %v896 = vld [vmem:[#allocation5 + $0x16e8] sm:$0xff]
    %v897 = vld [vmem:[#allocation5 + $0x16f0] sm:$0xff]
    %v898 = vld [vmem:[#allocation5 + $0x16f8] sm:$0xff]
    %v899 = vld [vmem:[#allocation5 + $0x1700] sm:$0xff]
    %v900 = vld [vmem:[#allocation5 + $0x1708] sm:$0xff]
    %v901 = vld [vmem:[#allocation5 + $0x1710] sm:$0xff]
    %v902 = vld [vmem:[#allocation5 + $0x1718] sm:$0xff]
    %v903 = vld [vmem:[#allocation5 + $0x1720] sm:$0xff]
    %v904 = vld [vmem:[#allocation5 + $0x1728] sm:$0xff]
    %v905 = vld [vmem:[#allocation5 + $0x1730] sm:$0xff]
    %v906 = vld [vmem:[#allocation5 + $0x1738] sm:$0xff]
    %v907 = vld [vmem:[#allocation5 + $0x1740] sm:$0xff]
    %v908 = vld [vmem:[#allocation5 + $0x1748] sm:$0xff]
    %v909 = vld [vmem:[#allocation5 + $0x1750] sm:$0xff]
    %v910 = vld [vmem:[#allocation5 + $0x1758] sm:$0xff]
    %v911 = vld [vmem:[#allocation5 + $0x1760] sm:$0xff]
    %v912 = vld [vmem:[#allocation5 + $0x1768] sm:$0xff]
    %v913 = vld [vmem:[#allocation5 + $0x1770] sm:$0xff]
    %v914 = vld [vmem:[#allocation5 + $0x1778] sm:$0xff]
    %v915 = vld [vmem:[#allocation5 + $0x1780] sm:$0xff]
    %v916 = vld [vmem:[#allocation5 + $0x1788] sm:$0xff]
    %v917 = vld [vmem:[#allocation5 + $0x1790] sm:$0xff]
    %v918 = vld [vmem:[#allocation5 + $0x1798] sm:$0xff]
    %v919 = vld [vmem:[#allocation5 + $0x17a0] sm:$0xff]
    %v920 = vld [vmem:[#allocation5 + $0x17a8] sm:$0xff]
    %v921 = vld [vmem:[#allocation5 + $0x17b0] sm:$0xff]
    %v922 = vld [vmem:[#allocation5 + $0x17b8] sm:$0xff]
    %v923 = vld [vmem:[#allocation5 + $0x17c0] sm:$0xff]
    %v924 = vld [vmem:[#allocation5 + $0x17c8] sm:$0xff]
    %v925 = vld [vmem:[#allocation5 + $0x17d0] sm:$0xff]
    %v926 = vld [vmem:[#allocation5 + $0x17d8] sm:$0xff]
    %v927 = vld [vmem:[#allocation5 + $0x17e0] sm:$0xff]
    %v928 = vld [vmem:[#allocation5 + $0x17e8] sm:$0xff]
    %v929 = vld [vmem:[#allocation5 + $0x17f0] sm:$0xff]
    %v930 = vld [vmem:[#allocation5 + $0x17f8] sm:$0xff]
    %v931 = vld [vmem:[#allocation5 + $0x1800] sm:$0xff]
    %v932 = vld [vmem:[#allocation5 + $0x1808] sm:$0xff]
    %v933 = vld [vmem:[#allocation5 + $0x1810] sm:$0xff]
    %v934 = vld [vmem:[#allocation5 + $0x1818] sm:$0xff]
    %v935 = vld [vmem:[#allocation5 + $0x1820] sm:$0xff]
    %v936 = vld [vmem:[#allocation5 + $0x1828] sm:$0xff]
    %v937 = vld [vmem:[#allocation5 + $0x1830] sm:$0xff]
    %v938 = vld [vmem:[#allocation5 + $0x1838] sm:$0xff]
    %v939 = vld [vmem:[#allocation5 + $0x1840] sm:$0xff]
    %v940 = vld [vmem:[#allocation5 + $0x1848] sm:$0xff]
    %v941 = vld [vmem:[#allocation5 + $0x1850] sm:$0xff]
    %v942 = vld [vmem:[#allocation5 + $0x1858] sm:$0xff]
    %v943 = vld [vmem:[#allocation5 + $0x1860] sm:$0xff]
    %v944 = vld [vmem:[#allocation5 + $0x1868] sm:$0xff]
    %v945 = vld [vmem:[#allocation5 + $0x1870] sm:$0xff]
    %v946 = vld [vmem:[#allocation5 + $0x1878] sm:$0xff]
    %v947 = vld [vmem:[#allocation5 + $0x1880] sm:$0xff]
    %v948 = vld [vmem:[#allocation5 + $0x1888] sm:$0xff]
    %v949 = vld [vmem:[#allocation5 + $0x1890] sm:$0xff]
    %v950 = vld [vmem:[#allocation5 + $0x1898] sm:$0xff]
    %v951 = vld [vmem:[#allocation5 + $0x18a0] sm:$0xff]
    %v952 = vld [vmem:[#allocation5 + $0x18a8] sm:$0xff]
    %v953 = vld [vmem:[#allocation5 + $0x18b0] sm:$0xff]
    %v954 = vld [vmem:[#allocation5 + $0x18b8] sm:$0xff]
    %v955 = vld [vmem:[#allocation5 + $0x18c0] sm:$0xff]
    %v956 = vld [vmem:[#allocation5 + $0x18c8] sm:$0xff]
    %v957 = vld [vmem:[#allocation5 + $0x18d0] sm:$0xff]
    %v958 = vld [vmem:[#allocation5 + $0x18d8] sm:$0xff]
    %v959 = vld [vmem:[#allocation5 + $0x18e0] sm:$0xff]
    %v960 = vld [vmem:[#allocation5 + $0x18e8] sm:$0xff]
    %v961 = vld [vmem:[#allocation5 + $0x18f0] sm:$0xff]
    %v962 = vld [vmem:[#allocation5 + $0x18f8] sm:$0xff]
    %v963 = vld [vmem:[#allocation5 + $0x1900] sm:$0xff]
    %v964 = vld [vmem:[#allocation5 + $0x1908] sm:$0xff]
    %v965 = vld [vmem:[#allocation5 + $0x1910] sm:$0xff]
    %v966 = vld [vmem:[#allocation5 + $0x1918] sm:$0xff]
    %v967 = vld [vmem:[#allocation5 + $0x1920] sm:$0xff]
    %v968 = vld [vmem:[#allocation5 + $0x1928] sm:$0xff]
    %v969 = vld [vmem:[#allocation5 + $0x1930] sm:$0xff]
    %v970 = vld [vmem:[#allocation5 + $0x1938] sm:$0xff]
    %v971 = vld [vmem:[#allocation5 + $0x1940] sm:$0xff]
    %v972 = vld [vmem:[#allocation5 + $0x1948] sm:$0xff]
    %v973 = vld [vmem:[#allocation5 + $0x1950] sm:$0xff]
    %v974 = vld [vmem:[#allocation5 + $0x1958] sm:$0xff]
    %v975 = vld [vmem:[#allocation5 + $0x1960] sm:$0xff]
    %v976 = vld [vmem:[#allocation5 + $0x1968] sm:$0xff]
    %v977 = vld [vmem:[#allocation5 + $0x1970] sm:$0xff]
    %v978 = vld [vmem:[#allocation5 + $0x1978] sm:$0xff]
    %v979 = vld [vmem:[#allocation5 + $0x1980] sm:$0xff]
    %v980 = vld [vmem:[#allocation5 + $0x1988] sm:$0xff]
    %v981 = vld [vmem:[#allocation5 + $0x1990] sm:$0xff]
    %v982 = vld [vmem:[#allocation5 + $0x1998] sm:$0xff]
    %v983 = vld [vmem:[#allocation5 + $0x19a0] sm:$0xff]
    %v984 = vld [vmem:[#allocation5 + $0x19a8] sm:$0xff]
    %v985 = vld [vmem:[#allocation5 + $0x19b0] sm:$0xff]
    %v986 = vld [vmem:[#allocation5 + $0x19b8] sm:$0xff]
    %v987 = vld [vmem:[#allocation5 + $0x19c0] sm:$0xff]
    %v988 = vld [vmem:[#allocation5 + $0x19c8] sm:$0xff]
    %v989 = vld [vmem:[#allocation5 + $0x19d0] sm:$0xff]
    %v990 = vld [vmem:[#allocation5 + $0x19d8] sm:$0xff]
    %v991 = vld [vmem:[#allocation5 + $0x19e0] sm:$0xff]
    %v992 = vld [vmem:[#allocation5 + $0x19e8] sm:$0xff]
    %v993 = vld [vmem:[#allocation5 + $0x19f0] sm:$0xff]
    %v994 = vld [vmem:[#allocation5 + $0x19f8] sm:$0xff]
    %v995 = vld [vmem:[#allocation5 + $0x1a00] sm:$0xff]
    %v996 = vld [vmem:[#allocation5 + $0x1a08] sm:$0xff]
    %v997 = vld [vmem:[#allocation5 + $0x1a10] sm:$0xff]
    %v998 = vld [vmem:[#allocation5 + $0x1a18] sm:$0xff]
    %v999 = vld [vmem:[#allocation5 + $0x1a20] sm:$0xff]
    %v1000 = vld [vmem:[#allocation5 + $0x1a28] sm:$0xff]
    %v1001 = vld [vmem:[#allocation5 + $0x1a30] sm:$0xff]
    %v1002 = vld [vmem:[#allocation5 + $0x1a38] sm:$0xff]
    %v1003 = vld [vmem:[#allocation5 + $0x1a40] sm:$0xff]
    %v1004 = vld [vmem:[#allocation5 + $0x1a48] sm:$0xff]
    %v1005 = vld [vmem:[#allocation5 + $0x1a50] sm:$0xff]
    %v1006 = vld [vmem:[#allocation5 + $0x1a58] sm:$0xff]
    %v1007 = vld [vmem:[#allocation5 + $0x1a60] sm:$0xff]
    %v1008 = vld [vmem:[#allocation5 + $0x1a68] sm:$0xff]
    %v1009 = vld [vmem:[#allocation5 + $0x1a70] sm:$0xff]
    %v1010 = vld [vmem:[#allocation5 + $0x1a78] sm:$0xff]
    %v1011 = vld [vmem:[#allocation5 + $0x1a80] sm:$0xff]
    %v1012 = vld [vmem:[#allocation5 + $0x1a88] sm:$0xff]
    %v1013 = vld [vmem:[#allocation5 + $0x1a90] sm:$0xff]
    %v1014 = vld [vmem:[#allocation5 + $0x1a98] sm:$0xff]
    %v1015 = vld [vmem:[#allocation5 + $0x1aa0] sm:$0xff]
    %v1016 = vld [vmem:[#allocation5 + $0x1aa8] sm:$0xff]
    %v1017 = vld [vmem:[#allocation5 + $0x1ab0] sm:$0xff]
    %v1018 = vld [vmem:[#allocation5 + $0x1ab8] sm:$0xff]
    %v1019 = vld [vmem:[#allocation5 + $0x1ac0] sm:$0xff]
    %v1020 = vld [vmem:[#allocation5 + $0x1ac8] sm:$0xff]
    %v1021 = vld [vmem:[#allocation5 + $0x1ad0] sm:$0xff]
    %v1022 = vld [vmem:[#allocation5 + $0x1ad8] sm:$0xff]
    %v1023 = vld [vmem:[#allocation5 + $0x1ae0] sm:$0xff]
    %v1024 = vld [vmem:[#allocation5 + $0x1ae8] sm:$0xff]
    %v1025 = vld [vmem:[#allocation5 + $0x1af0] sm:$0xff]
    %v1026 = vld [vmem:[#allocation5 + $0x1af8] sm:$0xff]
    %v1027 = vld [vmem:[#allocation5 + $0x1b00] sm:$0xff]
    %v1028 = vld [vmem:[#allocation5 + $0x1b08] sm:$0xff]
    %v1029 = vld [vmem:[#allocation5 + $0x1b10] sm:$0xff]
    %v1030 = vld [vmem:[#allocation5 + $0x1b18] sm:$0xff]
    %v1031 = vld [vmem:[#allocation5 + $0x1b20] sm:$0xff]
    %v1032 = vld [vmem:[#allocation5 + $0x1b28] sm:$0xff]
    %v1033 = vld [vmem:[#allocation5 + $0x1b30] sm:$0xff]
    %v1034 = vld [vmem:[#allocation5 + $0x1b38] sm:$0xff]
    %v1035 = vld [vmem:[#allocation5 + $0x1b40] sm:$0xff]
    %v1036 = vld [vmem:[#allocation5 + $0x1b48] sm:$0xff]
    %v1037 = vld [vmem:[#allocation5 + $0x1b50] sm:$0xff]
    %v1038 = vld [vmem:[#allocation5 + $0x1b58] sm:$0xff]
    %v1039 = vld [vmem:[#allocation5 + $0x1b60] sm:$0xff]
    %v1040 = vld [vmem:[#allocation5 + $0x1b68] sm:$0xff]
    %v1041 = vld [vmem:[#allocation5 + $0x1b70] sm:$0xff]
    %v1042 = vld [vmem:[#allocation5 + $0x1b78] sm:$0xff]
    %v1043 = vld [vmem:[#allocation5 + $0x1b80] sm:$0xff]
    %v1044 = vld [vmem:[#allocation5 + $0x1b88] sm:$0xff]
    %v1045 = vld [vmem:[#allocation5 + $0x1b90] sm:$0xff]
    %v1046 = vld [vmem:[#allocation5 + $0x1b98] sm:$0xff]
    %v1047 = vld [vmem:[#allocation5 + $0x1ba0] sm:$0xff]
    %v1048 = vld [vmem:[#allocation5 + $0x1ba8] sm:$0xff]
    %v1049 = vld [vmem:[#allocation5 + $0x1bb0] sm:$0xff]
    %v1050 = vld [vmem:[#allocation5 + $0x1bb8] sm:$0xff]
    %v1051 = vld [vmem:[#allocation5 + $0x1bc0] sm:$0xff]
    %v1052 = vld [vmem:[#allocation5 + $0x1bc8] sm:$0xff]
    %v1053 = vld [vmem:[#allocation5 + $0x1bd0] sm:$0xff]
    %v1054 = vld [vmem:[#allocation5 + $0x1bd8] sm:$0xff]
    %v1055 = vld [vmem:[#allocation5 + $0x1be0] sm:$0xff]
    %v1056 = vld [vmem:[#allocation5 + $0x1be8] sm:$0xff]
    %v1057 = vld [vmem:[#allocation5 + $0x1bf0] sm:$0xff]
    %v1058 = vld [vmem:[#allocation5 + $0x1bf8] sm:$0xff]
    %v1059 = vld [vmem:[#allocation5 + $0x1c00] sm:$0xff]
    %v1060 = vld [vmem:[#allocation5 + $0x1c08] sm:$0xff]
    %v1061 = vld [vmem:[#allocation5 + $0x1c10] sm:$0xff]
    %v1062 = vld [vmem:[#allocation5 + $0x1c18] sm:$0xff]
    %v1063 = vld [vmem:[#allocation5 + $0x1c20] sm:$0xff]
    %v1064 = vld [vmem:[#allocation5 + $0x1c28] sm:$0xff]
    %v1065 = vld [vmem:[#allocation5 + $0x1c30] sm:$0xff]
    %v1066 = vld [vmem:[#allocation5 + $0x1c38] sm:$0xff]
    %v1067 = vld [vmem:[#allocation5 + $0x1c40] sm:$0xff]
    %v1068 = vld [vmem:[#allocation5 + $0x1c48] sm:$0xff]
    %v1069 = vld [vmem:[#allocation5 + $0x1c50] sm:$0xff]
    %v1070 = vld [vmem:[#allocation5 + $0x1c58] sm:$0xff]
    %v1071 = vld [vmem:[#allocation5 + $0x1c60] sm:$0xff]
    %v1072 = vld [vmem:[#allocation5 + $0x1c68] sm:$0xff]
    %v1073 = vld [vmem:[#allocation5 + $0x1c70] sm:$0xff]
    %v1074 = vld [vmem:[#allocation5 + $0x1c78] sm:$0xff]
    %v1075 = vld [vmem:[#allocation5 + $0x1c80] sm:$0xff]
    %v1076 = vld [vmem:[#allocation5 + $0x1c88] sm:$0xff]
    %v1077 = vld [vmem:[#allocation5 + $0x1c90] sm:$0xff]
    %v1078 = vld [vmem:[#allocation5 + $0x1c98] sm:$0xff]
    %v1079 = vld [vmem:[#allocation5 + $0x1ca0] sm:$0xff]
    %v1080 = vld [vmem:[#allocation5 + $0x1ca8] sm:$0xff]
    %v1081 = vld [vmem:[#allocation5 + $0x1cb0] sm:$0xff]
    %v1082 = vld [vmem:[#allocation5 + $0x1cb8] sm:$0xff]
    %v1083 = vld [vmem:[#allocation5 + $0x1cc0] sm:$0xff]
    %v1084 = vld [vmem:[#allocation5 + $0x1cc8] sm:$0xff]
    %v1085 = vld [vmem:[#allocation5 + $0x1cd0] sm:$0xff]
    %v1086 = vld [vmem:[#allocation5 + $0x1cd8] sm:$0xff]
    %v1087 = vld [vmem:[#allocation5 + $0x1ce0] sm:$0xff]
    %v1088 = vld [vmem:[#allocation5 + $0x1ce8] sm:$0xff]
    %v1089 = vld [vmem:[#allocation5 + $0x1cf0] sm:$0xff]
    %v1090 = vld [vmem:[#allocation5 + $0x1cf8] sm:$0xff]
    %v1091 = vld [vmem:[#allocation5 + $0x1d00] sm:$0xff]
    %v1092 = vld [vmem:[#allocation5 + $0x1d08] sm:$0xff]
    %v1093 = vld [vmem:[#allocation5 + $0x1d10] sm:$0xff]
    %v1094 = vld [vmem:[#allocation5 + $0x1d18] sm:$0xff]
    %v1095 = vld [vmem:[#allocation5 + $0x1d20] sm:$0xff]
    %v1096 = vld [vmem:[#allocation5 + $0x1d28] sm:$0xff]
    %v1097 = vld [vmem:[#allocation5 + $0x1d30] sm:$0xff]
    %v1098 = vld [vmem:[#allocation5 + $0x1d38] sm:$0xff]
    %v1099 = vld [vmem:[#allocation5 + $0x1d40] sm:$0xff]
    %v1100 = vld [vmem:[#allocation5 + $0x1d48] sm:$0xff]
    %v1101 = vld [vmem:[#allocation5 + $0x1d50] sm:$0xff]
    %v1102 = vld [vmem:[#allocation5 + $0x1d58] sm:$0xff]
    %v1103 = vld [vmem:[#allocation5 + $0x1d60] sm:$0xff]
    %v1104 = vld [vmem:[#allocation5 + $0x1d68] sm:$0xff]
    %v1105 = vld [vmem:[#allocation5 + $0x1d70] sm:$0xff]
    %v1106 = vld [vmem:[#allocation5 + $0x1d78] sm:$0xff]
    %v1107 = vld [vmem:[#allocation5 + $0x1d80] sm:$0xff]
    %v1108 = vld [vmem:[#allocation5 + $0x1d88] sm:$0xff]
    %v1109 = vld [vmem:[#allocation5 + $0x1d90] sm:$0xff]
    %v1110 = vld [vmem:[#allocation5 + $0x1d98] sm:$0xff]
    %v1111 = vld [vmem:[#allocation5 + $0x1da0] sm:$0xff]
    %v1112 = vld [vmem:[#allocation5 + $0x1da8] sm:$0xff]
    %v1113 = vld [vmem:[#allocation5 + $0x1db0] sm:$0xff]
    %v1114 = vld [vmem:[#allocation5 + $0x1db8] sm:$0xff]
    %v1115 = vld [vmem:[#allocation5 + $0x1dc0] sm:$0xff]
    %v1116 = vld [vmem:[#allocation5 + $0x1dc8] sm:$0xff]
    %v1117 = vld [vmem:[#allocation5 + $0x1dd0] sm:$0xff]
    %v1118 = vld [vmem:[#allocation5 + $0x1dd8] sm:$0xff]
    %v1119 = vld [vmem:[#allocation5 + $0x1de0] sm:$0xff]
    %v1120 = vld [vmem:[#allocation5 + $0x1de8] sm:$0xff]
    %v1121 = vld [vmem:[#allocation5 + $0x1df0] sm:$0xff]
    %v1122 = vld [vmem:[#allocation5 + $0x1df8] sm:$0xff]
    %v1123 = vld [vmem:[#allocation5 + $0x1e00] sm:$0xff]
    %v1124 = vld [vmem:[#allocation5 + $0x1e08] sm:$0xff]
    %v1125 = vld [vmem:[#allocation5 + $0x1e10] sm:$0xff]
    %v1126 = vld [vmem:[#allocation5 + $0x1e18] sm:$0xff]
    %v1127 = vld [vmem:[#allocation5 + $0x1e20] sm:$0xff]
    %v1128 = vld [vmem:[#allocation5 + $0x1e28] sm:$0xff]
    %v1129 = vld [vmem:[#allocation5 + $0x1e30] sm:$0xff]
    %v1130 = vld [vmem:[#allocation5 + $0x1e38] sm:$0xff]
    %v1131 = vld [vmem:[#allocation5 + $0x1e40] sm:$0xff]
    %v1132 = vld [vmem:[#allocation5 + $0x1e48] sm:$0xff]
    %v1133 = vld [vmem:[#allocation5 + $0x1e50] sm:$0xff]
    %v1134 = vld [vmem:[#allocation5 + $0x1e58] sm:$0xff]
    %v1135 = vld [vmem:[#allocation5 + $0x1e60] sm:$0xff]
    %v1136 = vld [vmem:[#allocation5 + $0x1e68] sm:$0xff]
    %v1137 = vld [vmem:[#allocation5 + $0x1e70] sm:$0xff]
    %v1138 = vld [vmem:[#allocation5 + $0x1e78] sm:$0xff]
    %v1139 = vld [vmem:[#allocation5 + $0x1e80] sm:$0xff]
    %v1140 = vld [vmem:[#allocation5 + $0x1e88] sm:$0xff]
    %v1141 = vld [vmem:[#allocation5 + $0x1e90] sm:$0xff]
    %v1142 = vld [vmem:[#allocation5 + $0x1e98] sm:$0xff]
    %v1143 = vld [vmem:[#allocation5 + $0x1ea0] sm:$0xff]
    %v1144 = vld [vmem:[#allocation5 + $0x1ea8] sm:$0xff]
    %v1145 = vld [vmem:[#allocation5 + $0x1eb0] sm:$0xff]
    %v1146 = vld [vmem:[#allocation5 + $0x1eb8] sm:$0xff]
    %v1147 = vld [vmem:[#allocation5 + $0x1ec0] sm:$0xff]
    %v1148 = vld [vmem:[#allocation5 + $0x1ec8] sm:$0xff]
    %v1149 = vld [vmem:[#allocation5 + $0x1ed0] sm:$0xff]
    %v1150 = vld [vmem:[#allocation5 + $0x1ed8] sm:$0xff]
    %v1151 = vld [vmem:[#allocation5 + $0x1ee0] sm:$0xff]
    %v1152 = vld [vmem:[#allocation5 + $0x1ee8] sm:$0xff]
    %v1153 = vld [vmem:[#allocation5 + $0x1ef0] sm:$0xff]
    %v1154 = vld [vmem:[#allocation5 + $0x1ef8] sm:$0xff]
    %v1155 = vld [vmem:[#allocation5 + $0x1f00] sm:$0xff]
    %v1156 = vld [vmem:[#allocation5 + $0x1f08] sm:$0xff]
    %v1157 = vld [vmem:[#allocation5 + $0x1f10] sm:$0xff]
    %v1158 = vld [vmem:[#allocation5 + $0x1f18] sm:$0xff]
    %v1159 = vld [vmem:[#allocation5 + $0x1f20] sm:$0xff]
    %v1160 = vld [vmem:[#allocation5 + $0x1f28] sm:$0xff]
    %v1161 = vld [vmem:[#allocation5 + $0x1f30] sm:$0xff]
    %v1162 = vld [vmem:[#allocation5 + $0x1f38] sm:$0xff]
    %v1163 = vld [vmem:[#allocation5 + $0x1f40] sm:$0xff]
    %v1164 = vld [vmem:[#allocation5 + $0x1f48] sm:$0xff]
    %v1165 = vld [vmem:[#allocation5 + $0x1f50] sm:$0xff]
    %v1166 = vld [vmem:[#allocation5 + $0x1f58] sm:$0xff]
    %v1167 = vld [vmem:[#allocation5 + $0x1f60] sm:$0xff]
    %v1168 = vld [vmem:[#allocation5 + $0x1f68] sm:$0xff]
    %v1169 = vld [vmem:[#allocation5 + $0x1f70] sm:$0xff]
    %v1170 = vld [vmem:[#allocation5 + $0x1f78] sm:$0xff]
    %v1171 = vld [vmem:[#allocation5 + $0x1f80] sm:$0xff]
    %v1172 = vld [vmem:[#allocation5 + $0x1f88] sm:$0xff]
    %v1173 = vld [vmem:[#allocation5 + $0x1f90] sm:$0xff]
    %v1174 = vld [vmem:[#allocation5 + $0x1f98] sm:$0xff]
    %v1175 = vld [vmem:[#allocation5 + $0x1fa0] sm:$0xff]
    %v1176 = vld [vmem:[#allocation5 + $0x1fa8] sm:$0xff]
    %v1177 = vld [vmem:[#allocation5 + $0x1fb0] sm:$0xff]
    %v1178 = vld [vmem:[#allocation5 + $0x1fb8] sm:$0xff]
    %v1179 = vld [vmem:[#allocation5 + $0x1fc0] sm:$0xff]
    %v1180 = vld [vmem:[#allocation5 + $0x1fc8] sm:$0xff]
    %v1181 = vld [vmem:[#allocation5 + $0x1fd0] sm:$0xff]
    %v1182 = vld [vmem:[#allocation5 + $0x1fd8] sm:$0xff]
    %v1183 = vld [vmem:[#allocation5 + $0x1fe0] sm:$0xff]
    %v1184 = vld [vmem:[#allocation5 + $0x1fe8] sm:$0xff]
    %v1185 = vld [vmem:[#allocation5 + $0x1ff0] sm:$0xff]
    %v1186 = vld [vmem:[#allocation5 + $0x1ff8] sm:$0xff]
    %v1187 = vld [vmem:[#allocation5 + $0x2000] sm:$0xff]
    %v1188 = vld [vmem:[#allocation5 + $0x2008] sm:$0xff]
    %v1189 = vld [vmem:[#allocation5 + $0x2010] sm:$0xff]
    %v1190 = vld [vmem:[#allocation5 + $0x2018] sm:$0xff]
    %v1191 = vld [vmem:[#allocation5 + $0x2020] sm:$0xff]
    %v1192 = vld [vmem:[#allocation5 + $0x2028] sm:$0xff]
    %v1193 = vld [vmem:[#allocation5 + $0x2030] sm:$0xff]
    %v1194 = vld [vmem:[#allocation5 + $0x2038] sm:$0xff]
    %v1195 = vld [vmem:[#allocation5 + $0x2040] sm:$0xff]
    %v1196 = vld [vmem:[#allocation5 + $0x2048] sm:$0xff]
    %v1197 = vld [vmem:[#allocation5 + $0x2050] sm:$0xff]
    %v1198 = vld [vmem:[#allocation5 + $0x2058] sm:$0xff]
    %v1199 = vld [vmem:[#allocation5 + $0x2060] sm:$0xff]
    %v1200 = vld [vmem:[#allocation5 + $0x2068] sm:$0xff]
    %v1201 = vld [vmem:[#allocation5 + $0x2070] sm:$0xff]
    %v1202 = vld [vmem:[#allocation5 + $0x2078] sm:$0xff]
    %v1203 = vld [vmem:[#allocation5 + $0x2080] sm:$0xff]
    %v1204 = vld [vmem:[#allocation5 + $0x2088] sm:$0xff]
    %v1205 = vld [vmem:[#allocation5 + $0x2090] sm:$0xff]
    %v1206 = vld [vmem:[#allocation5 + $0x2098] sm:$0xff]
    %v1207 = vld [vmem:[#allocation5 + $0x20a0] sm:$0xff]
    %v1208 = vld [vmem:[#allocation5 + $0x20a8] sm:$0xff]
    %v1209 = vld [vmem:[#allocation5 + $0x20b0] sm:$0xff]
    %v1210 = vld [vmem:[#allocation5 + $0x20b8] sm:$0xff]
    %v1211 = vld [vmem:[#allocation5 + $0x20c0] sm:$0xff]
    %v1212 = vld [vmem:[#allocation5 + $0x20c8] sm:$0xff]
    %v1213 = vld [vmem:[#allocation5 + $0x20d0] sm:$0xff]
    %v1214 = vld [vmem:[#allocation5 + $0x20d8] sm:$0xff]
    %v1215 = vld [vmem:[#allocation5 + $0x20e0] sm:$0xff]
    %v1216 = vld [vmem:[#allocation5 + $0x20e8] sm:$0xff]
    %v1217 = vld [vmem:[#allocation5 + $0x20f0] sm:$0xff]
    %v1218 = vld [vmem:[#allocation5 + $0x20f8] sm:$0xff]
    %v1219 = vld [vmem:[#allocation5 + $0x2100] sm:$0xff]
    %v1220 = vld [vmem:[#allocation5 + $0x2108] sm:$0xff]
    %v1221 = vld [vmem:[#allocation5 + $0x2110] sm:$0xff]
    %v1222 = vld [vmem:[#allocation5 + $0x2118] sm:$0xff]
    %v1223 = vld [vmem:[#allocation5 + $0x2120] sm:$0xff]
    %v1224 = vld [vmem:[#allocation5 + $0x2128] sm:$0xff]
    %v1225 = vld [vmem:[#allocation5 + $0x2130] sm:$0xff]
    %v1226 = vld [vmem:[#allocation5 + $0x2138] sm:$0xff]
    %v1227 = vld [vmem:[#allocation5 + $0x2140] sm:$0xff]
    %v1228 = vld [vmem:[#allocation5 + $0x2148] sm:$0xff]
    %v1229 = vld [vmem:[#allocation5 + $0x2150] sm:$0xff]
    %v1230 = vld [vmem:[#allocation5 + $0x2158] sm:$0xff]
    %v1231 = vld [vmem:[#allocation5 + $0x2160] sm:$0xff]
    %v1232 = vld [vmem:[#allocation5 + $0x2168] sm:$0xff]
    %v1233 = vld [vmem:[#allocation5 + $0x2170] sm:$0xff]
    %v1234 = vld [vmem:[#allocation5 + $0x2178] sm:$0xff]
    %v1235 = vld [vmem:[#allocation5 + $0x2180] sm:$0xff]
    %v1236 = vld [vmem:[#allocation5 + $0x2188] sm:$0xff]
    %v1237 = vld [vmem:[#allocation5 + $0x2190] sm:$0xff]
    %v1238 = vld [vmem:[#allocation5 + $0x2198] sm:$0xff]
    %v1239 = vld [vmem:[#allocation5 + $0x21a0] sm:$0xff]
    %v1240 = vld [vmem:[#allocation5 + $0x21a8] sm:$0xff]
    %v1241 = vld [vmem:[#allocation5 + $0x21b0] sm:$0xff]
    %v1242 = vld [vmem:[#allocation5 + $0x21b8] sm:$0xff]
    %v1243 = vld [vmem:[#allocation5 + $0x21c0] sm:$0xff]
    %v1244 = vld [vmem:[#allocation5 + $0x21c8] sm:$0xff]
    %v1245 = vld [vmem:[#allocation5 + $0x21d0] sm:$0xff]
    %v1246 = vld [vmem:[#allocation5 + $0x21d8] sm:$0xff]
    %v1247 = vld [vmem:[#allocation5 + $0x21e0] sm:$0xff]
    %v1248 = vld [vmem:[#allocation5 + $0x21e8] sm:$0xff]
    %v1249 = vld [vmem:[#allocation5 + $0x21f0] sm:$0xff]
    %v1250 = vld [vmem:[#allocation5 + $0x21f8] sm:$0xff]
    %v1251 = vld [vmem:[#allocation5 + $0x2200] sm:$0xff]
    %v1252 = vld [vmem:[#allocation5 + $0x2208] sm:$0xff]
    %v1253 = vld [vmem:[#allocation5 + $0x2210] sm:$0xff]
    %v1254 = vld [vmem:[#allocation5 + $0x2218] sm:$0xff]
    %v1255 = vld [vmem:[#allocation5 + $0x2220] sm:$0xff]
    %v1256 = vld [vmem:[#allocation5 + $0x2228] sm:$0xff]
    %v1257 = vld [vmem:[#allocation5 + $0x2230] sm:$0xff]
    %v1258 = vld [vmem:[#allocation5 + $0x2238] sm:$0xff]
    %v1259 = vld [vmem:[#allocation5 + $0x2240] sm:$0xff]
    %v1260 = vld [vmem:[#allocation5 + $0x2248] sm:$0xff]
    %v1261 = vld [vmem:[#allocation5 + $0x2250] sm:$0xff]
    %v1262 = vld [vmem:[#allocation5 + $0x2258] sm:$0xff]
    %v1263 = vld [vmem:[#allocation5 + $0x2260] sm:$0xff]
    %v1264 = vld [vmem:[#allocation5 + $0x2268] sm:$0xff]
    %v1265 = vld [vmem:[#allocation5 + $0x2270] sm:$0xff]
    %v1266 = vld [vmem:[#allocation5 + $0x2278] sm:$0xff]
    %v1267 = vld [vmem:[#allocation5 + $0x2280] sm:$0xff]
    %v1268 = vld [vmem:[#allocation5 + $0x2288] sm:$0xff]
    %v1269 = vld [vmem:[#allocation5 + $0x2290] sm:$0xff]
    %v1270 = vld [vmem:[#allocation5 + $0x2298] sm:$0xff]
    %v1271 = vld [vmem:[#allocation5 + $0x22a0] sm:$0xff]
    %v1272 = vld [vmem:[#allocation5 + $0x22a8] sm:$0xff]
    %v1273 = vld [vmem:[#allocation5 + $0x22b0] sm:$0xff]
    %v1274 = vld [vmem:[#allocation5 + $0x22b8] sm:$0xff]
    %v1275 = vld [vmem:[#allocation5 + $0x22c0] sm:$0xff]
    %v1276 = vld [vmem:[#allocation5 + $0x22c8] sm:$0xff]
    %v1277 = vld [vmem:[#allocation5 + $0x22d0] sm:$0xff]
    %v1278 = vld [vmem:[#allocation5 + $0x22d8] sm:$0xff]
    %v1279 = vld [vmem:[#allocation5 + $0x22e0] sm:$0xff]
    %v1280 = vld [vmem:[#allocation5 + $0x22e8] sm:$0xff]
    %v1281 = vld [vmem:[#allocation5 + $0x22f0] sm:$0xff]
    %v1282 = vld [vmem:[#allocation5 + $0x22f8] sm:$0xff]
    %v1283 = vld [vmem:[#allocation5 + $0x2300] sm:$0xff]
    %v1284 = vld [vmem:[#allocation5 + $0x2308] sm:$0xff]
    %v1285 = vld [vmem:[#allocation5 + $0x2310] sm:$0xff]
    %v1286 = vld [vmem:[#allocation5 + $0x2318] sm:$0xff]
    %v1287 = vld [vmem:[#allocation5 + $0x2320] sm:$0xff]
    %v1288 = vld [vmem:[#allocation5 + $0x2328] sm:$0xff]
    %v1289 = vld [vmem:[#allocation5 + $0x2330] sm:$0xff]
    %v1290 = vld [vmem:[#allocation5 + $0x2338] sm:$0xff]
    %v1291 = vld [vmem:[#allocation5 + $0x2340] sm:$0xff]
    %v1292 = vld [vmem:[#allocation5 + $0x2348] sm:$0xff]
    %v1293 = vld [vmem:[#allocation5 + $0x2350] sm:$0xff]
    %v1294 = vld [vmem:[#allocation5 + $0x2358] sm:$0xff]
    %v1295 = vld [vmem:[#allocation5 + $0x2360] sm:$0xff]
    %v1296 = vld [vmem:[#allocation5 + $0x2368] sm:$0xff]
    %v1297 = vld [vmem:[#allocation5 + $0x2370] sm:$0xff]
    %v1298 = vld [vmem:[#allocation5 + $0x2378] sm:$0xff]
    %v1299 = vld [vmem:[#allocation5 + $0x2380] sm:$0xff]
    %v1300 = vld [vmem:[#allocation5 + $0x2388] sm:$0xff]
    %v1301 = vld [vmem:[#allocation5 + $0x2390] sm:$0xff]
    %v1302 = vld [vmem:[#allocation5 + $0x2398] sm:$0xff]
    %v1303 = vld [vmem:[#allocation5 + $0x23a0] sm:$0xff]
    %v1304 = vld [vmem:[#allocation5 + $0x23a8] sm:$0xff]
    %v1305 = vld [vmem:[#allocation5 + $0x23b0] sm:$0xff]
    %v1306 = vld [vmem:[#allocation5 + $0x23b8] sm:$0xff]
    %v1307 = vld [vmem:[#allocation5 + $0x23c0] sm:$0xff]
    %v1308 = vld [vmem:[#allocation5 + $0x23c8] sm:$0xff]
    %v1309 = vld [vmem:[#allocation5 + $0x23d0] sm:$0xff]
    %v1310 = vld [vmem:[#allocation5 + $0x23d8] sm:$0xff]
    %v1311 = vld [vmem:[#allocation5 + $0x23e0] sm:$0xff]
    %v1312 = vld [vmem:[#allocation5 + $0x23e8] sm:$0xff]
    %v1313 = vld [vmem:[#allocation5 + $0x23f0] sm:$0xff]
    %v1314 = vld [vmem:[#allocation5 + $0x23f8] sm:$0xff]
    %v1315 = vld [vmem:[#allocation5 + $0x2400] sm:$0xff]
    %v1316 = vld [vmem:[#allocation5 + $0x2408] sm:$0xff]
    %v1317 = vld [vmem:[#allocation5 + $0x2410] sm:$0xff]
    %v1318 = vld [vmem:[#allocation5 + $0x2418] sm:$0xff]
    %v1319 = vld [vmem:[#allocation5 + $0x2420] sm:$0xff]
    %v1320 = vld [vmem:[#allocation5 + $0x2428] sm:$0xff]
    %v1321 = vld [vmem:[#allocation5 + $0x2430] sm:$0xff]
    %v1322 = vld [vmem:[#allocation5 + $0x2438] sm:$0xff]
    %v1323 = vld [vmem:[#allocation5 + $0x2440] sm:$0xff]
    %v1324 = vld [vmem:[#allocation5 + $0x2448] sm:$0xff]
    %v1325 = vld [vmem:[#allocation5 + $0x2450] sm:$0xff]
    %v1326 = vld [vmem:[#allocation5 + $0x2458] sm:$0xff]
    %v1327 = vld [vmem:[#allocation5 + $0x2460] sm:$0xff]
    %v1328 = vld [vmem:[#allocation5 + $0x2468] sm:$0xff]
    %v1329 = vld [vmem:[#allocation5 + $0x2470] sm:$0xff]
    %v1330 = vld [vmem:[#allocation5 + $0x2478] sm:$0xff]
    %v1331 = vld [vmem:[#allocation5 + $0x2480] sm:$0xff]
    %v1332 = vld [vmem:[#allocation5 + $0x2488] sm:$0xff]
    %v1333 = vld [vmem:[#allocation5 + $0x2490] sm:$0xff]
    %v1334 = vld [vmem:[#allocation5 + $0x2498] sm:$0xff]
    %v1335 = vld [vmem:[#allocation5 + $0x24a0] sm:$0xff]
    %v1336 = vld [vmem:[#allocation5 + $0x24a8] sm:$0xff]
    %v1337 = vld [vmem:[#allocation5 + $0x24b0] sm:$0xff]
    %v1338 = vld [vmem:[#allocation5 + $0x24b8] sm:$0xff]
    %v1339 = vld [vmem:[#allocation5 + $0x24c0] sm:$0xff]
    %v1340 = vld [vmem:[#allocation5 + $0x24c8] sm:$0xff]
    %v1341 = vld [vmem:[#allocation5 + $0x24d0] sm:$0xff]
    %v1342 = vld [vmem:[#allocation5 + $0x24d8] sm:$0xff]
    %v1343 = vld [vmem:[#allocation5 + $0x24e0] sm:$0xff]
    %v1344 = vld [vmem:[#allocation5 + $0x24e8] sm:$0xff]
    %v1345 = vld [vmem:[#allocation5 + $0x24f0] sm:$0xff]
    %v1346 = vld [vmem:[#allocation5 + $0x24f8] sm:$0xff]
    %v1347 = vld [vmem:[#allocation5 + $0x2500] sm:$0xff]
    %v1348 = vld [vmem:[#allocation5 + $0x2508] sm:$0xff]
    %v1349 = vld [vmem:[#allocation5 + $0x2510] sm:$0xff]
    %v1350 = vld [vmem:[#allocation5 + $0x2518] sm:$0xff]
    %v1351 = vld [vmem:[#allocation5 + $0x2520] sm:$0xff]
    %v1352 = vld [vmem:[#allocation5 + $0x2528] sm:$0xff]
    %v1353 = vld [vmem:[#allocation5 + $0x2530] sm:$0xff]
    %v1354 = vld [vmem:[#allocation5 + $0x2538] sm:$0xff]
    %v1355 = vld [vmem:[#allocation5 + $0x2540] sm:$0xff]
    %v1356 = vld [vmem:[#allocation5 + $0x2548] sm:$0xff]
    %v1357 = vld [vmem:[#allocation5 + $0x2550] sm:$0xff]
    %v1358 = vld [vmem:[#allocation5 + $0x2558] sm:$0xff]
    %v1359 = vld [vmem:[#allocation5 + $0x2560] sm:$0xff]
    %v1360 = vld [vmem:[#allocation5 + $0x2568] sm:$0xff]
    %v1361 = vld [vmem:[#allocation5 + $0x2570] sm:$0xff]
    %v1362 = vld [vmem:[#allocation5 + $0x2578] sm:$0xff]
    %v1363 = vld [vmem:[#allocation5 + $0x2580] sm:$0xff]
    %v1364 = vld [vmem:[#allocation5 + $0x2588] sm:$0xff]
    %v1365 = vld [vmem:[#allocation5 + $0x2590] sm:$0xff]
    %v1366 = vld [vmem:[#allocation5 + $0x2598] sm:$0xff]
    %v1367 = vld [vmem:[#allocation5 + $0x25a0] sm:$0xff]
    %v1368 = vld [vmem:[#allocation5 + $0x25a8] sm:$0xff]
    %v1369 = vld [vmem:[#allocation5 + $0x25b0] sm:$0xff]
    %v1370 = vld [vmem:[#allocation5 + $0x25b8] sm:$0xff]
    %v1371 = vld [vmem:[#allocation5 + $0x25c0] sm:$0xff]
    %v1372 = vld [vmem:[#allocation5 + $0x25c8] sm:$0xff]
    %v1373 = vld [vmem:[#allocation5 + $0x25d0] sm:$0xff]
    %v1374 = vld [vmem:[#allocation5 + $0x25d8] sm:$0xff]
    %v1375 = vld [vmem:[#allocation5 + $0x25e0] sm:$0xff]
    %v1376 = vld [vmem:[#allocation5 + $0x25e8] sm:$0xff]
    %v1377 = vld [vmem:[#allocation5 + $0x25f0] sm:$0xff]
    %v1378 = vld [vmem:[#allocation5 + $0x25f8] sm:$0xff]
    %v1379 = vld [vmem:[#allocation5 + $0x2600] sm:$0xff]
    %v1380 = vld [vmem:[#allocation5 + $0x2608] sm:$0xff]
    %v1381 = vld [vmem:[#allocation5 + $0x2610] sm:$0xff]
    %v1382 = vld [vmem:[#allocation5 + $0x2618] sm:$0xff]
    %v1383 = vld [vmem:[#allocation5 + $0x2620] sm:$0xff]
    %v1384 = vld [vmem:[#allocation5 + $0x2628] sm:$0xff]
    %v1385 = vld [vmem:[#allocation5 + $0x2630] sm:$0xff]
    %v1386 = vld [vmem:[#allocation5 + $0x2638] sm:$0xff]
    %v1387 = vld [vmem:[#allocation5 + $0x2640] sm:$0xff]
    %v1388 = vld [vmem:[#allocation5 + $0x2648] sm:$0xff]
    %v1389 = vld [vmem:[#allocation5 + $0x2650] sm:$0xff]
    %v1390 = vld [vmem:[#allocation5 + $0x2658] sm:$0xff]
    %v1391 = vld [vmem:[#allocation5 + $0x2660] sm:$0xff]
    %v1392 = vld [vmem:[#allocation5 + $0x2668] sm:$0xff]
    %v1393 = vld [vmem:[#allocation5 + $0x2670] sm:$0xff]
    %v1394 = vld [vmem:[#allocation5 + $0x2678] sm:$0xff]
    %v1395 = vld [vmem:[#allocation5 + $0x2680] sm:$0xff]
    %v1396 = vld [vmem:[#allocation5 + $0x2688] sm:$0xff]
    %v1397 = vld [vmem:[#allocation5 + $0x2690] sm:$0xff]
    %v1398 = vld [vmem:[#allocation5 + $0x2698] sm:$0xff]
    %v1399 = vld [vmem:[#allocation5 + $0x26a0] sm:$0xff]
    %v1400 = vld [vmem:[#allocation5 + $0x26a8] sm:$0xff]
    %v1401 = vld [vmem:[#allocation5 + $0x26b0] sm:$0xff]
    %v1402 = vld [vmem:[#allocation5 + $0x26b8] sm:$0xff]
    %v1403 = vld [vmem:[#allocation5 + $0x26c0] sm:$0xff]
    %v1404 = vld [vmem:[#allocation5 + $0x26c8] sm:$0xff]
    %v1405 = vld [vmem:[#allocation5 + $0x26d0] sm:$0xff]
    %v1406 = vld [vmem:[#allocation5 + $0x26d8] sm:$0xff]
    %v1407 = vld [vmem:[#allocation5 + $0x26e0] sm:$0xff]
    %v1408 = vld [vmem:[#allocation5 + $0x26e8] sm:$0xff]
    %v1409 = vld [vmem:[#allocation5 + $0x26f0] sm:$0xff]
    %v1410 = vld [vmem:[#allocation5 + $0x26f8] sm:$0xff]
    %v1411 = vld [vmem:[#allocation5 + $0x2700] sm:$0xff]
    %v1412 = vld [vmem:[#allocation5 + $0x2708] sm:$0xff]
    %v1413 = vld [vmem:[#allocation5 + $0x2710] sm:$0xff]
    %v1414 = vld [vmem:[#allocation5 + $0x2718] sm:$0xff]
    %v1415 = vld [vmem:[#allocation5 + $0x2720] sm:$0xff]
    %v1416 = vld [vmem:[#allocation5 + $0x2728] sm:$0xff]
    %v1417 = vld [vmem:[#allocation5 + $0x2730] sm:$0xff]
    %v1418 = vld [vmem:[#allocation5 + $0x2738] sm:$0xff]
    %v1419 = vld [vmem:[#allocation5 + $0x2740] sm:$0xff]
    %v1420 = vld [vmem:[#allocation5 + $0x2748] sm:$0xff]
    %v1421 = vld [vmem:[#allocation5 + $0x2750] sm:$0xff]
    %v1422 = vld [vmem:[#allocation5 + $0x2758] sm:$0xff]
    %v1423 = vld [vmem:[#allocation5 + $0x2760] sm:$0xff]
    %v1424 = vld [vmem:[#allocation5 + $0x2768] sm:$0xff]
    %v1425 = vld [vmem:[#allocation5 + $0x2770] sm:$0xff]
    %v1426 = vld [vmem:[#allocation5 + $0x2778] sm:$0xff]
    %v1427 = vld [vmem:[#allocation5 + $0x2780] sm:$0xff]
    %v1428 = vld [vmem:[#allocation5 + $0x2788] sm:$0xff]
    %v1429 = vld [vmem:[#allocation5 + $0x2790] sm:$0xff]
    %v1430 = vld [vmem:[#allocation5 + $0x2798] sm:$0xff]
    %v1431 = vld [vmem:[#allocation5 + $0x27a0] sm:$0xff]
    %v1432 = vld [vmem:[#allocation5 + $0x27a8] sm:$0xff]
    %v1433 = vld [vmem:[#allocation5 + $0x27b0] sm:$0xff]
    %v1434 = vld [vmem:[#allocation5 + $0x27b8] sm:$0xff]
    %v1435 = vld [vmem:[#allocation5 + $0x27c0] sm:$0xff]
    %v1436 = vld [vmem:[#allocation5 + $0x27c8] sm:$0xff]
    %v1437 = vld [vmem:[#allocation5 + $0x27d0] sm:$0xff]
    %v1438 = vld [vmem:[#allocation5 + $0x27d8] sm:$0xff]
    %v1439 = vld [vmem:[#allocation5 + $0x27e0] sm:$0xff]
    %v1440 = vld [vmem:[#allocation5 + $0x27e8] sm:$0xff]
    %v1441 = vld [vmem:[#allocation5 + $0x27f0] sm:$0xff]
    %v1442 = vld [vmem:[#allocation5 + $0x27f8] sm:$0xff]
    %v1443 = vld [vmem:[#allocation5 + $0x2800] sm:$0xff]
    %v1444 = vld [vmem:[#allocation5 + $0x2808] sm:$0xff]
    %v1445 = vld [vmem:[#allocation5 + $0x2810] sm:$0xff]
    %v1446 = vld [vmem:[#allocation5 + $0x2818] sm:$0xff]
    %v1447 = vld [vmem:[#allocation5 + $0x2820] sm:$0xff]
    %v1448 = vld [vmem:[#allocation5 + $0x2828] sm:$0xff]
    %v1449 = vld [vmem:[#allocation5 + $0x2830] sm:$0xff]
    %v1450 = vld [vmem:[#allocation5 + $0x2838] sm:$0xff]
    %v1451 = vld [vmem:[#allocation5 + $0x2840] sm:$0xff]
    %v1452 = vld [vmem:[#allocation5 + $0x2848] sm:$0xff]
    %v1453 = vld [vmem:[#allocation5 + $0x2850] sm:$0xff]
    %v1454 = vld [vmem:[#allocation5 + $0x2858] sm:$0xff]
    %v1455 = vld [vmem:[#allocation5 + $0x2860] sm:$0xff]
    %v1456 = vld [vmem:[#allocation5 + $0x2868] sm:$0xff]
    %v1457 = vld [vmem:[#allocation5 + $0x2870] sm:$0xff]
    %v1458 = vld [vmem:[#allocation5 + $0x2878] sm:$0xff]
    %v1459 = vld [vmem:[#allocation5 + $0x2880] sm:$0xff]
    %v1460 = vld [vmem:[#allocation5 + $0x2888] sm:$0xff]
    %v1461 = vld [vmem:[#allocation5 + $0x2890] sm:$0xff]
    %v1462 = vld [vmem:[#allocation5 + $0x2898] sm:$0xff]
    %v1463 = vld [vmem:[#allocation5 + $0x28a0] sm:$0xff]
    %v1464 = vld [vmem:[#allocation5 + $0x28a8] sm:$0xff]
    %v1465 = vld [vmem:[#allocation5 + $0x28b0] sm:$0xff]
    %v1466 = vld [vmem:[#allocation5 + $0x28b8] sm:$0xff]
    %v1467 = vld [vmem:[#allocation5 + $0x28c0] sm:$0xff]
    %v1468 = vld [vmem:[#allocation5 + $0x28c8] sm:$0xff]
    %v1469 = vld [vmem:[#allocation5 + $0x28d0] sm:$0xff]
    %v1470 = vld [vmem:[#allocation5 + $0x28d8] sm:$0xff]
    %v1471 = vld [vmem:[#allocation5 + $0x28e0] sm:$0xff]
    %v1472 = vld [vmem:[#allocation5 + $0x28e8] sm:$0xff]
    %v1473 = vld [vmem:[#allocation5 + $0x28f0] sm:$0xff]
    %v1474 = vld [vmem:[#allocation5 + $0x28f8] sm:$0xff]
    %v1475 = vld [vmem:[#allocation5 + $0x2900] sm:$0xff]
    %v1476 = vld [vmem:[#allocation5 + $0x2908] sm:$0xff]
    %v1477 = vld [vmem:[#allocation5 + $0x2910] sm:$0xff]
    %v1478 = vld [vmem:[#allocation5 + $0x2918] sm:$0xff]
    %v1479 = vld [vmem:[#allocation5 + $0x2920] sm:$0xff]
    %v1480 = vld [vmem:[#allocation5 + $0x2928] sm:$0xff]
    %v1481 = vld [vmem:[#allocation5 + $0x2930] sm:$0xff]
    %v1482 = vld [vmem:[#allocation5 + $0x2938] sm:$0xff]
    %v1483 = vld [vmem:[#allocation5 + $0x2940] sm:$0xff]
    %v1484 = vld [vmem:[#allocation5 + $0x2948] sm:$0xff]
    %v1485 = vld [vmem:[#allocation5 + $0x2950] sm:$0xff]
    %v1486 = vld [vmem:[#allocation5 + $0x2958] sm:$0xff]
    %v1487 = vld [vmem:[#allocation5 + $0x2960] sm:$0xff]
    %v1488 = vld [vmem:[#allocation5 + $0x2968] sm:$0xff]
    %v1489 = vld [vmem:[#allocation5 + $0x2970] sm:$0xff]
    %v1490 = vld [vmem:[#allocation5 + $0x2978] sm:$0xff]
    %v1491 = vld [vmem:[#allocation5 + $0x2980] sm:$0xff]
    %v1492 = vld [vmem:[#allocation5 + $0x2988] sm:$0xff]
    %v1493 = vld [vmem:[#allocation5 + $0x2990] sm:$0xff]
    %v1494 = vld [vmem:[#allocation5 + $0x2998] sm:$0xff]
    %v1495 = vld [vmem:[#allocation5 + $0x29a0] sm:$0xff]
    %v1496 = vld [vmem:[#allocation5 + $0x29a8] sm:$0xff]
    %v1497 = vld [vmem:[#allocation5 + $0x29b0] sm:$0xff]
    %v1498 = vld [vmem:[#allocation5 + $0x29b8] sm:$0xff]
    %v1499 = vld [vmem:[#allocation5 + $0x29c0] sm:$0xff]
    %v1500 = vld [vmem:[#allocation5 + $0x29c8] sm:$0xff]
    %v1501 = vld [vmem:[#allocation5 + $0x29d0] sm:$0xff]
    %v1502 = vld [vmem:[#allocation5 + $0x29d8] sm:$0xff]
    %v1503 = vld [vmem:[#allocation5 + $0x29e0] sm:$0xff]
    %v1504 = vld [vmem:[#allocation5 + $0x29e8] sm:$0xff]
    %v1505 = vld [vmem:[#allocation5 + $0x29f0] sm:$0xff]
    %v1506 = vld [vmem:[#allocation5 + $0x29f8] sm:$0xff]
    %v1507 = vld [vmem:[#allocation5 + $0x2a00] sm:$0xff]
    %v1508 = vld [vmem:[#allocation5 + $0x2a08] sm:$0xff]
    %v1509 = vld [vmem:[#allocation5 + $0x2a10] sm:$0xff]
    %v1510 = vld [vmem:[#allocation5 + $0x2a18] sm:$0xff]
    %v1511 = vld [vmem:[#allocation5 + $0x2a20] sm:$0xff]
    %v1512 = vld [vmem:[#allocation5 + $0x2a28] sm:$0xff]
    %v1513 = vld [vmem:[#allocation5 + $0x2a30] sm:$0xff]
    %v1514 = vld [vmem:[#allocation5 + $0x2a38] sm:$0xff]
    %v1515 = vld [vmem:[#allocation5 + $0x2a40] sm:$0xff]
    %v1516 = vld [vmem:[#allocation5 + $0x2a48] sm:$0xff]
    %v1517 = vld [vmem:[#allocation5 + $0x2a50] sm:$0xff]
    %v1518 = vld [vmem:[#allocation5 + $0x2a58] sm:$0xff]
    %v1519 = vld [vmem:[#allocation5 + $0x2a60] sm:$0xff]
    %v1520 = vld [vmem:[#allocation5 + $0x2a68] sm:$0xff]
    %v1521 = vld [vmem:[#allocation5 + $0x2a70] sm:$0xff]
    %v1522 = vld [vmem:[#allocation5 + $0x2a78] sm:$0xff]
    %v1523 = vld [vmem:[#allocation5 + $0x2a80] sm:$0xff]
    %v1524 = vld [vmem:[#allocation5 + $0x2a88] sm:$0xff]
    %v1525 = vld [vmem:[#allocation5 + $0x2a90] sm:$0xff]
    %v1526 = vld [vmem:[#allocation5 + $0x2a98] sm:$0xff]
    %v1527 = vld [vmem:[#allocation5 + $0x2aa0] sm:$0xff]
    %v1528 = vld [vmem:[#allocation5 + $0x2aa8] sm:$0xff]
    %v1529 = vld [vmem:[#allocation5 + $0x2ab0] sm:$0xff]
    %v1530 = vld [vmem:[#allocation5 + $0x2ab8] sm:$0xff]
    %v1531 = vld [vmem:[#allocation5 + $0x2ac0] sm:$0xff]
    %v1532 = vld [vmem:[#allocation5 + $0x2ac8] sm:$0xff]
    %v1533 = vld [vmem:[#allocation5 + $0x2ad0] sm:$0xff]
    %v1534 = vld [vmem:[#allocation5 + $0x2ad8] sm:$0xff]
    %v1535 = vld [vmem:[#allocation5 + $0x2ae0] sm:$0xff]
    %v1536 = vld [vmem:[#allocation5 + $0x2ae8] sm:$0xff]
    %v1537 = vld [vmem:[#allocation5 + $0x2af0] sm:$0xff]
    %v1538 = vld [vmem:[#allocation5 + $0x2af8] sm:$0xff]
    %v1539 = vld [vmem:[#allocation5 + $0x2b00] sm:$0xff]
    %v1540 = vld [vmem:[#allocation5 + $0x2b08] sm:$0xff]
    %v1541 = vld [vmem:[#allocation5 + $0x2b10] sm:$0xff]
    %v1542 = vld [vmem:[#allocation5 + $0x2b18] sm:$0xff]
    %v1543 = vld [vmem:[#allocation5 + $0x2b20] sm:$0xff]
    %v1544 = vld [vmem:[#allocation5 + $0x2b28] sm:$0xff]
    %v1545 = vld [vmem:[#allocation5 + $0x2b30] sm:$0xff]
    %v1546 = vld [vmem:[#allocation5 + $0x2b38] sm:$0xff]
    %v1547 = vld [vmem:[#allocation5 + $0x2b40] sm:$0xff]
    %v1548 = vld [vmem:[#allocation5 + $0x2b48] sm:$0xff]
    %v1549 = vld [vmem:[#allocation5 + $0x2b50] sm:$0xff]
    %v1550 = vld [vmem:[#allocation5 + $0x2b58] sm:$0xff]
    %v1551 = vld [vmem:[#allocation5 + $0x2b60] sm:$0xff]
    %v1552 = vld [vmem:[#allocation5 + $0x2b68] sm:$0xff]
    %v1553 = vld [vmem:[#allocation5 + $0x2b70] sm:$0xff]
    %v1554 = vld [vmem:[#allocation5 + $0x2b78] sm:$0xff]
    %v1555 = vld [vmem:[#allocation5 + $0x2b80] sm:$0xff]
    %v1556 = vld [vmem:[#allocation5 + $0x2b88] sm:$0xff]
    %v1557 = vld [vmem:[#allocation5 + $0x2b90] sm:$0xff]
    %v1558 = vld [vmem:[#allocation5 + $0x2b98] sm:$0xff]
    %v1559 = vld [vmem:[#allocation5 + $0x2ba0] sm:$0xff]
    %v1560 = vld [vmem:[#allocation5 + $0x2ba8] sm:$0xff]
    %v1561 = vld [vmem:[#allocation5 + $0x2bb0] sm:$0xff]
    %v1562 = vld [vmem:[#allocation5 + $0x2bb8] sm:$0xff]
    %v1563 = vld [vmem:[#allocation5 + $0x2bc0] sm:$0xff]
    %v1564 = vld [vmem:[#allocation5 + $0x2bc8] sm:$0xff]
    %v1565 = vld [vmem:[#allocation5 + $0x2bd0] sm:$0xff]
    %v1566 = vld [vmem:[#allocation5 + $0x2bd8] sm:$0xff]
    %v1567 = vld [vmem:[#allocation5 + $0x2be0] sm:$0xff]
    %v1568 = vld [vmem:[#allocation5 + $0x2be8] sm:$0xff]
    %v1569 = vld [vmem:[#allocation5 + $0x2bf0] sm:$0xff]
    %v1570 = vld [vmem:[#allocation5 + $0x2bf8] sm:$0xff]
    %v1571 = vld [vmem:[#allocation5 + $0x2c00] sm:$0xff]
    %v1572 = vld [vmem:[#allocation5 + $0x2c08] sm:$0xff]
    %v1573 = vld [vmem:[#allocation5 + $0x2c10] sm:$0xff]
    %v1574 = vld [vmem:[#allocation5 + $0x2c18] sm:$0xff]
    %v1575 = vld [vmem:[#allocation5 + $0x2c20] sm:$0xff]
    %v1576 = vld [vmem:[#allocation5 + $0x2c28] sm:$0xff]
    %v1577 = vld [vmem:[#allocation5 + $0x2c30] sm:$0xff]
    %v1578 = vld [vmem:[#allocation5 + $0x2c38] sm:$0xff]
    %v1579 = vld [vmem:[#allocation5 + $0x2c40] sm:$0xff]
    %v1580 = vld [vmem:[#allocation5 + $0x2c48] sm:$0xff]
    %v1581 = vld [vmem:[#allocation5 + $0x2c50] sm:$0xff]
    %v1582 = vld [vmem:[#allocation5 + $0x2c58] sm:$0xff]
    %v1583 = vld [vmem:[#allocation5 + $0x2c60] sm:$0xff]
    %v1584 = vld [vmem:[#allocation5 + $0x2c68] sm:$0xff]
    %v1585 = vld [vmem:[#allocation5 + $0x2c70] sm:$0xff]
    %v1586 = vld [vmem:[#allocation5 + $0x2c78] sm:$0xff]
    %v1587 = vld [vmem:[#allocation5 + $0x2c80] sm:$0xff]
    %v1588 = vld [vmem:[#allocation5 + $0x2c88] sm:$0xff]
    %v1589 = vld [vmem:[#allocation5 + $0x2c90] sm:$0xff]
    %v1590 = vld [vmem:[#allocation5 + $0x2c98] sm:$0xff]
    %v1591 = vld [vmem:[#allocation5 + $0x2ca0] sm:$0xff]
    %v1592 = vld [vmem:[#allocation5 + $0x2ca8] sm:$0xff]
    %v1593 = vld [vmem:[#allocation5 + $0x2cb0] sm:$0xff]
    %v1594 = vld [vmem:[#allocation5 + $0x2cb8] sm:$0xff]
    %v1595 = vld [vmem:[#allocation5 + $0x2cc0] sm:$0xff]
    %v1596 = vld [vmem:[#allocation5 + $0x2cc8] sm:$0xff]
    %v1597 = vld [vmem:[#allocation5 + $0x2cd0] sm:$0xff]
    %v1598 = vld [vmem:[#allocation5 + $0x2cd8] sm:$0xff]
    %v1599 = vld [vmem:[#allocation5 + $0x2ce0] sm:$0xff]
    %v1600 = vld [vmem:[#allocation5 + $0x2ce8] sm:$0xff]
    %v1601 = vld [vmem:[#allocation5 + $0x2cf0] sm:$0xff]
    %v1602 = vld [vmem:[#allocation5 + $0x2cf8] sm:$0xff]
    %v1603 = vld [vmem:[#allocation5 + $0x2d00] sm:$0xff]
    %v1604 = vld [vmem:[#allocation5 + $0x2d08] sm:$0xff]
    %v1605 = vld [vmem:[#allocation5 + $0x2d10] sm:$0xff]
    %v1606 = vld [vmem:[#allocation5 + $0x2d18] sm:$0xff]
    %v1607 = vld [vmem:[#allocation5 + $0x2d20] sm:$0xff]
    %v1608 = vld [vmem:[#allocation5 + $0x2d28] sm:$0xff]
    %v1609 = vld [vmem:[#allocation5 + $0x2d30] sm:$0xff]
    %v1610 = vld [vmem:[#allocation5 + $0x2d38] sm:$0xff]
    %v1611 = vld [vmem:[#allocation5 + $0x2d40] sm:$0xff]
    %v1612 = vld [vmem:[#allocation5 + $0x2d48] sm:$0xff]
    %v1613 = vld [vmem:[#allocation5 + $0x2d50] sm:$0xff]
    %v1614 = vld [vmem:[#allocation5 + $0x2d58] sm:$0xff]
    %v1615 = vld [vmem:[#allocation5 + $0x2d60] sm:$0xff]
    %v1616 = vld [vmem:[#allocation5 + $0x2d68] sm:$0xff]
    %v1617 = vld [vmem:[#allocation5 + $0x2d70] sm:$0xff]
    %v1618 = vld [vmem:[#allocation5 + $0x2d78] sm:$0xff]
    %v1619 = vld [vmem:[#allocation5 + $0x2d80] sm:$0xff]
    %v1620 = vld [vmem:[#allocation5 + $0x2d88] sm:$0xff]
    %v1621 = vld [vmem:[#allocation5 + $0x2d90] sm:$0xff]
    %v1622 = vld [vmem:[#allocation5 + $0x2d98] sm:$0xff]
    %v1623 = vld [vmem:[#allocation5 + $0x2da0] sm:$0xff]
    %v1624 = vld [vmem:[#allocation5 + $0x2da8] sm:$0xff]
    %v1625 = vld [vmem:[#allocation5 + $0x2db0] sm:$0xff]
    %v1626 = vld [vmem:[#allocation5 + $0x2db8] sm:$0xff]
    %v1627 = vld [vmem:[#allocation5 + $0x2dc0] sm:$0xff]
    %v1628 = vld [vmem:[#allocation5 + $0x2dc8] sm:$0xff]
    %v1629 = vld [vmem:[#allocation5 + $0x2dd0] sm:$0xff]
    %v1630 = vld [vmem:[#allocation5 + $0x2dd8] sm:$0xff]
    %v1631 = vld [vmem:[#allocation5 + $0x2de0] sm:$0xff]
    %v1632 = vld [vmem:[#allocation5 + $0x2de8] sm:$0xff]
    %v1633 = vld [vmem:[#allocation5 + $0x2df0] sm:$0xff]
    %v1634 = vld [vmem:[#allocation5 + $0x2df8] sm:$0xff]
    %v1635 = vld [vmem:[#allocation5 + $0x2e00] sm:$0xff]
    %v1636 = vld [vmem:[#allocation5 + $0x2e08] sm:$0xff]
    %v1637 = vld [vmem:[#allocation5 + $0x2e10] sm:$0xff]
    %v1638 = vld [vmem:[#allocation5 + $0x2e18] sm:$0xff]
    %v1639 = vld [vmem:[#allocation5 + $0x2e20] sm:$0xff]
    %v1640 = vld [vmem:[#allocation5 + $0x2e28] sm:$0xff]
    %v1641 = vld [vmem:[#allocation5 + $0x2e30] sm:$0xff]
    %v1642 = vld [vmem:[#allocation5 + $0x2e38] sm:$0xff]
    %v1643 = vld [vmem:[#allocation5 + $0x2e40] sm:$0xff]
    %v1644 = vld [vmem:[#allocation5 + $0x2e48] sm:$0xff]
    %v1645 = vld [vmem:[#allocation5 + $0x2e50] sm:$0xff]
    %v1646 = vld [vmem:[#allocation5 + $0x2e58] sm:$0xff]
    %v1647 = vld [vmem:[#allocation5 + $0x2e60] sm:$0xff]
    %v1648 = vld [vmem:[#allocation5 + $0x2e68] sm:$0xff]
    %v1649 = vld [vmem:[#allocation5 + $0x2e70] sm:$0xff]
    %v1650 = vld [vmem:[#allocation5 + $0x2e78] sm:$0xff]
    %v1651 = vld [vmem:[#allocation5 + $0x2e80] sm:$0xff]
    %v1652 = vld [vmem:[#allocation5 + $0x2e88] sm:$0xff]
    %v1653 = vld [vmem:[#allocation5 + $0x2e90] sm:$0xff]
    %v1654 = vld [vmem:[#allocation5 + $0x2e98] sm:$0xff]
    %v1655 = vld [vmem:[#allocation5 + $0x2ea0] sm:$0xff]
    %v1656 = vld [vmem:[#allocation5 + $0x2ea8] sm:$0xff]
    %v1657 = vld [vmem:[#allocation5 + $0x2eb0] sm:$0xff]
    %v1658 = vld [vmem:[#allocation5 + $0x2eb8] sm:$0xff]
    %v1659 = vld [vmem:[#allocation5 + $0x2ec0] sm:$0xff]
    %v1660 = vld [vmem:[#allocation5 + $0x2ec8] sm:$0xff]
    %v1661 = vld [vmem:[#allocation5 + $0x2ed0] sm:$0xff]
    %v1662 = vld [vmem:[#allocation5 + $0x2ed8] sm:$0xff]
    %v1663 = vld [vmem:[#allocation5 + $0x2ee0] sm:$0xff]
    %v1664 = vld [vmem:[#allocation5 + $0x2ee8] sm:$0xff]
    %v1665 = vld [vmem:[#allocation5 + $0x2ef0] sm:$0xff]
    %v1666 = vld [vmem:[#allocation5 + $0x2ef8] sm:$0xff]
    %v1667 = vld [vmem:[#allocation5 + $0x2f00] sm:$0xff]
    %v1668 = vld [vmem:[#allocation5 + $0x2f08] sm:$0xff]
    %v1669 = vld [vmem:[#allocation5 + $0x2f10] sm:$0xff]
    %v1670 = vld [vmem:[#allocation5 + $0x2f18] sm:$0xff]
    %v1671 = vld [vmem:[#allocation5 + $0x2f20] sm:$0xff]
    %v1672 = vld [vmem:[#allocation5 + $0x2f28] sm:$0xff]
    %v1673 = vld [vmem:[#allocation5 + $0x2f30] sm:$0xff]
    %v1674 = vld [vmem:[#allocation5 + $0x2f38] sm:$0xff]
    %v1675 = vld [vmem:[#allocation5 + $0x2f40] sm:$0xff]
    %v1676 = vld [vmem:[#allocation5 + $0x2f48] sm:$0xff]
    %v1677 = vld [vmem:[#allocation5 + $0x2f50] sm:$0xff]
    %v1678 = vld [vmem:[#allocation5 + $0x2f58] sm:$0xff]
    %v1679 = vld [vmem:[#allocation5 + $0x2f60] sm:$0xff]
    %v1680 = vld [vmem:[#allocation5 + $0x2f68] sm:$0xff]
    %v1681 = vld [vmem:[#allocation5 + $0x2f70] sm:$0xff]
    %v1682 = vld [vmem:[#allocation5 + $0x2f78] sm:$0xff]
    %v1683 = vld [vmem:[#allocation5 + $0x2f80] sm:$0xff]
    %v1684 = vld [vmem:[#allocation5 + $0x2f88] sm:$0xff]
    %v1685 = vld [vmem:[#allocation5 + $0x2f90] sm:$0xff]
    %v1686 = vld [vmem:[#allocation5 + $0x2f98] sm:$0xff]
    %v1687 = vld [vmem:[#allocation5 + $0x2fa0] sm:$0xff]
    %v1688 = vld [vmem:[#allocation5 + $0x2fa8] sm:$0xff]
    %v1689 = vld [vmem:[#allocation5 + $0x2fb0] sm:$0xff]
    %v1690 = vld [vmem:[#allocation5 + $0x2fb8] sm:$0xff]
    %v1691 = vld [vmem:[#allocation5 + $0x2fc0] sm:$0xff]
    %v1692 = vld [vmem:[#allocation5 + $0x2fc8] sm:$0xff]
    %v1693 = vld [vmem:[#allocation5 + $0x2fd0] sm:$0xff]
    %v1694 = vld [vmem:[#allocation5 + $0x2fd8] sm:$0xff]
    %v1695 = vld [vmem:[#allocation5 + $0x2fe0] sm:$0xff]
    %v1696 = vld [vmem:[#allocation5 + $0x2fe8] sm:$0xff]
    %v1697 = vld [vmem:[#allocation5 + $0x2ff0] sm:$0xff]
    %v1698 = vld [vmem:[#allocation5 + $0x2ff8] sm:$0xff]
    %v1699 = vld [vmem:[#allocation5 + $0x3000] sm:$0xff]
    %v1700 = vld [vmem:[#allocation5 + $0x3008] sm:$0xff]
    %v1701 = vld [vmem:[#allocation5 + $0x3010] sm:$0xff]
    %v1702 = vld [vmem:[#allocation5 + $0x3018] sm:$0xff]
    %v1703 = vld [vmem:[#allocation5 + $0x3020] sm:$0xff]
    %v1704 = vld [vmem:[#allocation5 + $0x3028] sm:$0xff]
    %v1705 = vld [vmem:[#allocation5 + $0x3030] sm:$0xff]
    %v1706 = vld [vmem:[#allocation5 + $0x3038] sm:$0xff]
    %v1707 = vld [vmem:[#allocation5 + $0x3040] sm:$0xff]
    %v1708 = vld [vmem:[#allocation5 + $0x3048] sm:$0xff]
    %v1709 = vld [vmem:[#allocation5 + $0x3050] sm:$0xff]
    %v1710 = vld [vmem:[#allocation5 + $0x3058] sm:$0xff]
    %v1711 = vld [vmem:[#allocation5 + $0x3060] sm:$0xff]
    %v1712 = vld [vmem:[#allocation5 + $0x3068] sm:$0xff]
    %v1713 = vld [vmem:[#allocation5 + $0x3070] sm:$0xff]
    %v1714 = vld [vmem:[#allocation5 + $0x3078] sm:$0xff]
    %v1715 = vld [vmem:[#allocation5 + $0x3080] sm:$0xff]
    %v1716 = vld [vmem:[#allocation5 + $0x3088] sm:$0xff]
    %v1717 = vld [vmem:[#allocation5 + $0x3090] sm:$0xff]
    %v1718 = vld [vmem:[#allocation5 + $0x3098] sm:$0xff]
    %v1719 = vld [vmem:[#allocation5 + $0x30a0] sm:$0xff]
    %v1720 = vld [vmem:[#allocation5 + $0x30a8] sm:$0xff]
    %v1721 = vld [vmem:[#allocation5 + $0x30b0] sm:$0xff]
    %v1722 = vld [vmem:[#allocation5 + $0x30b8] sm:$0xff]
    %v1723 = vld [vmem:[#allocation5 + $0x30c0] sm:$0xff]
    %v1724 = vld [vmem:[#allocation5 + $0x30c8] sm:$0xff]
    %v1725 = vld [vmem:[#allocation5 + $0x30d0] sm:$0xff]
    %v1726 = vld [vmem:[#allocation5 + $0x30d8] sm:$0xff]
    %v1727 = vld [vmem:[#allocation5 + $0x30e0] sm:$0xff]
    %v1728 = vld [vmem:[#allocation5 + $0x30e8] sm:$0xff]
    %v1729 = vld [vmem:[#allocation5 + $0x30f0] sm:$0xff]
    %v1730 = vld [vmem:[#allocation5 + $0x30f8] sm:$0xff]
    %v1731 = vld [vmem:[#allocation7] sm:$0xff]
    %v1733 = vperm.slane %v1731, 0
    %v1734 = vperm.slane %v1731, 1
    %v1735 = vperm.slane %v1731, 2
    %v1736 = vperm.slane %v1731, 3
    %v1737 = vperm.slane %v1731, 4
    %v1738 = vperm.slane %v1731, 5
    %v1739 = vperm.slane %v1731, 6
    %v1740 = vperm.slane %v1731, 7
    %v3317 = vunpack.c.l.b16 %v163
    %v3318 = vunpack.c.h.b16 %v163
    %v3319 = vunpack.c.l.b16 %v164
    %v3320 = vunpack.c.h.b16 %v164
    %v3321 = vunpack.c.l.b16 %v165
    %v3322 = vunpack.c.h.b16 %v165
    %v3323 = vunpack.c.l.b16 %v166
    %v3324 = vunpack.c.h.b16 %v166
    %v3325 = vunpack.c.l.b16 %v167
    %v3326 = vunpack.c.h.b16 %v167
    %v3327 = vunpack.c.l.b16 %v168
    %v3328 = vunpack.c.h.b16 %v168
    %v3329 = vunpack.c.l.b16 %v169
    %v3330 = vunpack.c.h.b16 %v169
    %v3331 = vunpack.c.l.b16 %v170
    %v3332 = vunpack.c.h.b16 %v170
    %v3333 = vunpack.c.l.b16 %v171
    %v3334 = vunpack.c.h.b16 %v171
    %v3335 = vunpack.c.l.b16 %v172
    %v3336 = vunpack.c.h.b16 %v172
    %v3337 = vunpack.c.l.b16 %v173
    %v3338 = vunpack.c.h.b16 %v173
    %v3339 = vunpack.c.l.b16 %v174
    %v3340 = vunpack.c.h.b16 %v174
    %v3341 = vunpack.c.l.b16 %v175
    %v3342 = vunpack.c.h.b16 %v175
    %v3343 = vunpack.c.l.b16 %v176
    %v3344 = vunpack.c.h.b16 %v176
    %v3345 = vunpack.c.l.b16 %v177
    %v3346 = vunpack.c.h.b16 %v177
    %v3347 = vunpack.c.l.b16 %v178
    %v3348 = vunpack.c.h.b16 %v178
    %v3349 = vunpack.c.l.b16 %v179
    %v3350 = vunpack.c.h.b16 %v179
    %v3351 = vunpack.c.l.b16 %v180
    %v3352 = vunpack.c.h.b16 %v180
    %v3353 = vunpack.c.l.b16 %v181
    %v3354 = vunpack.c.h.b16 %v181
    %v3355 = vunpack.c.l.b16 %v182
    %v3356 = vunpack.c.h.b16 %v182
    %v3357 = vunpack.c.l.b16 %v183
    %v3358 = vunpack.c.h.b16 %v183
    %v3359 = vunpack.c.l.b16 %v184
    %v3360 = vunpack.c.h.b16 %v184
    %v3361 = vunpack.c.l.b16 %v185
    %v3362 = vunpack.c.h.b16 %v185
    %v3363 = vunpack.c.l.b16 %v186
    %v3364 = vunpack.c.h.b16 %v186
    %v3365 = vunpack.c.l.b16 %v187
    %v3366 = vunpack.c.h.b16 %v187
    %v3367 = vunpack.c.l.b16 %v188
    %v3368 = vunpack.c.h.b16 %v188
    %v3369 = vunpack.c.l.b16 %v189
    %v3370 = vunpack.c.h.b16 %v189
    %v3371 = vunpack.c.l.b16 %v190
    %v3372 = vunpack.c.h.b16 %v190
    %v3373 = vunpack.c.l.b16 %v191
    %v3374 = vunpack.c.h.b16 %v191
    %v3375 = vunpack.c.l.b16 %v192
    %v3376 = vunpack.c.h.b16 %v192
    %v3377 = vunpack.c.l.b16 %v193
    %v3378 = vunpack.c.h.b16 %v193
    %v3379 = vunpack.c.l.b16 %v194
    %v3380 = vunpack.c.h.b16 %v194
    %v3381 = vunpack.c.l.b16 %v195
    %v3382 = vunpack.c.h.b16 %v195
    %v3383 = vunpack.c.l.b16 %v196
    %v3384 = vunpack.c.h.b16 %v196
    %v3385 = vunpack.c.l.b16 %v197
    %v3386 = vunpack.c.h.b16 %v197
    %v3387 = vunpack.c.l.b16 %v198
    %v3388 = vunpack.c.h.b16 %v198
    %v3389 = vunpack.c.l.b16 %v199
    %v3390 = vunpack.c.h.b16 %v199
    %v3391 = vunpack.c.l.b16 %v200
    %v3392 = vunpack.c.h.b16 %v200
    %v3393 = vunpack.c.l.b16 %v201
    %v3394 = vunpack.c.h.b16 %v201
    %v3395 = vunpack.c.l.b16 %v202
    %v3396 = vunpack.c.h.b16 %v202
    %v3397 = vunpack.c.l.b16 %v203
    %v3398 = vunpack.c.h.b16 %v203
    %v3399 = vunpack.c.l.b16 %v204
    %v3400 = vunpack.c.h.b16 %v204
    %v3401 = vunpack.c.l.b16 %v205
    %v3402 = vunpack.c.h.b16 %v205
    %v3403 = vunpack.c.l.b16 %v206
    %v3404 = vunpack.c.h.b16 %v206
    %v3405 = vunpack.c.l.b16 %v207
    %v3406 = vunpack.c.h.b16 %v207
    %v3407 = vunpack.c.l.b16 %v208
    %v3408 = vunpack.c.h.b16 %v208
    %v3409 = vunpack.c.l.b16 %v209
    %v3410 = vunpack.c.h.b16 %v209
    %v3411 = vunpack.c.l.b16 %v210
    %v3412 = vunpack.c.h.b16 %v210
    %v3413 = vunpack.c.l.b16 %v211
    %v3414 = vunpack.c.h.b16 %v211
    %v3415 = vunpack.c.l.b16 %v212
    %v3416 = vunpack.c.h.b16 %v212
    %v3417 = vunpack.c.l.b16 %v213
    %v3418 = vunpack.c.h.b16 %v213
    %v3419 = vunpack.c.l.b16 %v214
    %v3420 = vunpack.c.h.b16 %v214
    %v3421 = vunpack.c.l.b16 %v215
    %v3422 = vunpack.c.h.b16 %v215
    %v3423 = vunpack.c.l.b16 %v216
    %v3424 = vunpack.c.h.b16 %v216
    %v3425 = vunpack.c.l.b16 %v217
    %v3426 = vunpack.c.h.b16 %v217
    %v3427 = vunpack.c.l.b16 %v218
    %v3428 = vunpack.c.h.b16 %v218
    %v3429 = vunpack.c.l.b16 %v219
    %v3430 = vunpack.c.h.b16 %v219
    %v3431 = vunpack.c.l.b16 %v220
    %v3432 = vunpack.c.h.b16 %v220
    %v3433 = vunpack.c.l.b16 %v221
    %v3434 = vunpack.c.h.b16 %v221
    %v3435 = vunpack.c.l.b16 %v222
    %v3436 = vunpack.c.h.b16 %v222
    %v3437 = vunpack.c.l.b16 %v223
    %v3438 = vunpack.c.h.b16 %v223
    %v3439 = vunpack.c.l.b16 %v224
    %v3440 = vunpack.c.h.b16 %v224
    %v3441 = vunpack.c.l.b16 %v225
    %v3442 = vunpack.c.h.b16 %v225
    %v3443 = vunpack.c.l.b16 %v226
    %v3444 = vunpack.c.h.b16 %v226
    %v3445 = vunpack.c.l.b16 %v227
    %v3446 = vunpack.c.h.b16 %v227
    %v3447 = vunpack.c.l.b16 %v228
    %v3448 = vunpack.c.h.b16 %v228
    %v3449 = vunpack.c.l.b16 %v229
    %v3450 = vunpack.c.h.b16 %v229
    %v3451 = vunpack.c.l.b16 %v230
    %v3452 = vunpack.c.h.b16 %v230
    %v3453 = vunpack.c.l.b16 %v231
    %v3454 = vunpack.c.h.b16 %v231
    %v3455 = vunpack.c.l.b16 %v232
    %v3456 = vunpack.c.h.b16 %v232
    %v3457 = vunpack.c.l.b16 %v233
    %v3458 = vunpack.c.h.b16 %v233
    %v3459 = vunpack.c.l.b16 %v234
    %v3460 = vunpack.c.h.b16 %v234
    %v3461 = vunpack.c.l.b16 %v235
    %v3462 = vunpack.c.h.b16 %v235
    %v3463 = vunpack.c.l.b16 %v236
    %v3464 = vunpack.c.h.b16 %v236
    %v3465 = vunpack.c.l.b16 %v237
    %v3466 = vunpack.c.h.b16 %v237
    %v3467 = vunpack.c.l.b16 %v238
    %v3468 = vunpack.c.h.b16 %v238
    %v3469 = vunpack.c.l.b16 %v239
    %v3470 = vunpack.c.h.b16 %v239
    %v3471 = vunpack.c.l.b16 %v240
    %v3472 = vunpack.c.h.b16 %v240
    %v3473 = vunpack.c.l.b16 %v241
    %v3474 = vunpack.c.h.b16 %v241
    %v3475 = vunpack.c.l.b16 %v242
    %v3476 = vunpack.c.h.b16 %v242
    %v3477 = vunpack.c.l.b16 %v243
    %v3478 = vunpack.c.h.b16 %v243
    %v3479 = vunpack.c.l.b16 %v244
    %v3480 = vunpack.c.h.b16 %v244
    %v3481 = vunpack.c.l.b16 %v245
    %v3482 = vunpack.c.h.b16 %v245
    %v3483 = vunpack.c.l.b16 %v246
    %v3484 = vunpack.c.h.b16 %v246
    %v3485 = vunpack.c.l.b16 %v247
    %v3486 = vunpack.c.h.b16 %v247
    %v3487 = vunpack.c.l.b16 %v248
    %v3488 = vunpack.c.h.b16 %v248
    %v3489 = vunpack.c.l.b16 %v249
    %v3490 = vunpack.c.h.b16 %v249
    %v3491 = vunpack.c.l.b16 %v250
    %v3492 = vunpack.c.h.b16 %v250
    %v3493 = vunpack.c.l.b16 %v251
    %v3494 = vunpack.c.h.b16 %v251
    %v3495 = vunpack.c.l.b16 %v252
    %v3496 = vunpack.c.h.b16 %v252
    %v3497 = vunpack.c.l.b16 %v253
    %v3498 = vunpack.c.h.b16 %v253
    %v3499 = vunpack.c.l.b16 %v254
    %v3500 = vunpack.c.h.b16 %v254
    %v3501 = vunpack.c.l.b16 %v255
    %v3502 = vunpack.c.h.b16 %v255
    %v3503 = vunpack.c.l.b16 %v256
    %v3504 = vunpack.c.h.b16 %v256
    %v3505 = vunpack.c.l.b16 %v257
    %v3506 = vunpack.c.h.b16 %v257
    %v3507 = vunpack.c.l.b16 %v258
    %v3508 = vunpack.c.h.b16 %v258
    %v3509 = vunpack.c.l.b16 %v259
    %v3510 = vunpack.c.h.b16 %v259
    %v3511 = vunpack.c.l.b16 %v260
    %v3512 = vunpack.c.h.b16 %v260
    %v3513 = vunpack.c.l.b16 %v261
    %v3514 = vunpack.c.h.b16 %v261
    %v3515 = vunpack.c.l.b16 %v262
    %v3516 = vunpack.c.h.b16 %v262
    %v3517 = vunpack.c.l.b16 %v263
    %v3518 = vunpack.c.h.b16 %v263
    %v3519 = vunpack.c.l.b16 %v264
    %v3520 = vunpack.c.h.b16 %v264
    %v3521 = vunpack.c.l.b16 %v265
    %v3522 = vunpack.c.h.b16 %v265
    %v3523 = vunpack.c.l.b16 %v266
    %v3524 = vunpack.c.h.b16 %v266
    %v3525 = vunpack.c.l.b16 %v267
    %v3526 = vunpack.c.h.b16 %v267
    %v3527 = vunpack.c.l.b16 %v268
    %v3528 = vunpack.c.h.b16 %v268
    %v3529 = vunpack.c.l.b16 %v269
    %v3530 = vunpack.c.h.b16 %v269
    %v3531 = vunpack.c.l.b16 %v270
    %v3532 = vunpack.c.h.b16 %v270
    %v3533 = vunpack.c.l.b16 %v271
    %v3534 = vunpack.c.h.b16 %v271
    %v3535 = vunpack.c.l.b16 %v272
    %v3536 = vunpack.c.h.b16 %v272
    %v3537 = vunpack.c.l.b16 %v273
    %v3538 = vunpack.c.h.b16 %v273
    %v3539 = vunpack.c.l.b16 %v274
    %v3540 = vunpack.c.h.b16 %v274
    %v3541 = vunpack.c.l.b16 %v275
    %v3542 = vunpack.c.h.b16 %v275
    %v3543 = vunpack.c.l.b16 %v276
    %v3544 = vunpack.c.h.b16 %v276
    %v3545 = vunpack.c.l.b16 %v277
    %v3546 = vunpack.c.h.b16 %v277
    %v3547 = vunpack.c.l.b16 %v278
    %v3548 = vunpack.c.h.b16 %v278
    %v3549 = vunpack.c.l.b16 %v279
    %v3550 = vunpack.c.h.b16 %v279
    %v3551 = vunpack.c.l.b16 %v280
    %v3552 = vunpack.c.h.b16 %v280
    %v3553 = vunpack.c.l.b16 %v281
    %v3554 = vunpack.c.h.b16 %v281
    %v3555 = vunpack.c.l.b16 %v282
    %v3556 = vunpack.c.h.b16 %v282
    %v3557 = vunpack.c.l.b16 %v283
    %v3558 = vunpack.c.h.b16 %v283
    %v3559 = vunpack.c.l.b16 %v284
    %v3560 = vunpack.c.h.b16 %v284
    %v3561 = vunpack.c.l.b16 %v285
    %v3562 = vunpack.c.h.b16 %v285
    %v3563 = vunpack.c.l.b16 %v286
    %v3564 = vunpack.c.h.b16 %v286
    %v3565 = vunpack.c.l.b16 %v287
    %v3566 = vunpack.c.h.b16 %v287
    %v3567 = vunpack.c.l.b16 %v288
    %v3568 = vunpack.c.h.b16 %v288
    %v3569 = vunpack.c.l.b16 %v289
    %v3570 = vunpack.c.h.b16 %v289
    %v3571 = vunpack.c.l.b16 %v290
    %v3572 = vunpack.c.h.b16 %v290
    %v3573 = vunpack.c.l.b16 %v291
    %v3574 = vunpack.c.h.b16 %v291
    %v3575 = vunpack.c.l.b16 %v292
    %v3576 = vunpack.c.h.b16 %v292
    %v3577 = vunpack.c.l.b16 %v293
    %v3578 = vunpack.c.h.b16 %v293
    %v3579 = vunpack.c.l.b16 %v294
    %v3580 = vunpack.c.h.b16 %v294
    %v3581 = vunpack.c.l.b16 %v295
    %v3582 = vunpack.c.h.b16 %v295
    %v3583 = vunpack.c.l.b16 %v296
    %v3584 = vunpack.c.h.b16 %v296
    %v3585 = vunpack.c.l.b16 %v297
    %v3586 = vunpack.c.h.b16 %v297
    %v3587 = vunpack.c.l.b16 %v298
    %v3588 = vunpack.c.h.b16 %v298
    %v3589 = vunpack.c.l.b16 %v299
    %v3590 = vunpack.c.h.b16 %v299
    %v3591 = vunpack.c.l.b16 %v300
    %v3592 = vunpack.c.h.b16 %v300
    %v3593 = vunpack.c.l.b16 %v301
    %v3594 = vunpack.c.h.b16 %v301
    %v3595 = vunpack.c.l.b16 %v302
    %v3596 = vunpack.c.h.b16 %v302
    %v3597 = vunpack.c.l.b16 %v303
    %v3598 = vunpack.c.h.b16 %v303
    %v3599 = vunpack.c.l.b16 %v304
    %v3600 = vunpack.c.h.b16 %v304
    %v3601 = vunpack.c.l.b16 %v305
    %v3602 = vunpack.c.h.b16 %v305
    %v3603 = vunpack.c.l.b16 %v306
    %v3604 = vunpack.c.h.b16 %v306
    %v3605 = vunpack.c.l.b16 %v307
    %v3606 = vunpack.c.h.b16 %v307
    %v3607 = vunpack.c.l.b16 %v308
    %v3608 = vunpack.c.h.b16 %v308
    %v3609 = vunpack.c.l.b16 %v309
    %v3610 = vunpack.c.h.b16 %v309
    %v3611 = vunpack.c.l.b16 %v310
    %v3612 = vunpack.c.h.b16 %v310
    %v3613 = vunpack.c.l.b16 %v311
    %v3614 = vunpack.c.h.b16 %v311
    %v3615 = vunpack.c.l.b16 %v312
    %v3616 = vunpack.c.h.b16 %v312
    %v3617 = vunpack.c.l.b16 %v313
    %v3618 = vunpack.c.h.b16 %v313
    %v3619 = vunpack.c.l.b16 %v314
    %v3620 = vunpack.c.h.b16 %v314
    %v3621 = vunpack.c.l.b16 %v315
    %v3622 = vunpack.c.h.b16 %v315
    %v3623 = vunpack.c.l.b16 %v316
    %v3624 = vunpack.c.h.b16 %v316
    %v3625 = vunpack.c.l.b16 %v317
    %v3626 = vunpack.c.h.b16 %v317
    %v3627 = vunpack.c.l.b16 %v318
    %v3628 = vunpack.c.h.b16 %v318
    %v3629 = vunpack.c.l.b16 %v319
    %v3630 = vunpack.c.h.b16 %v319
    %v3631 = vunpack.c.l.b16 %v320
    %v3632 = vunpack.c.h.b16 %v320
    %v3633 = vunpack.c.l.b16 %v321
    %v3634 = vunpack.c.h.b16 %v321
    %v3635 = vunpack.c.l.b16 %v322
    %v3636 = vunpack.c.h.b16 %v322
    %v3637 = vunpack.c.l.b16 %v323
    %v3638 = vunpack.c.h.b16 %v323
    %v3639 = vunpack.c.l.b16 %v324
    %v3640 = vunpack.c.h.b16 %v324
    %v3641 = vunpack.c.l.b16 %v325
    %v3642 = vunpack.c.h.b16 %v325
    %v3643 = vunpack.c.l.b16 %v326
    %v3644 = vunpack.c.h.b16 %v326
    %v3645 = vunpack.c.l.b16 %v327
    %v3646 = vunpack.c.h.b16 %v327
    %v3647 = vunpack.c.l.b16 %v328
    %v3648 = vunpack.c.h.b16 %v328
    %v3649 = vunpack.c.l.b16 %v329
    %v3650 = vunpack.c.h.b16 %v329
    %v3651 = vunpack.c.l.b16 %v330
    %v3652 = vunpack.c.h.b16 %v330
    %v3653 = vunpack.c.l.b16 %v331
    %v3654 = vunpack.c.h.b16 %v331
    %v3655 = vunpack.c.l.b16 %v332
    %v3656 = vunpack.c.h.b16 %v332
    %v3657 = vunpack.c.l.b16 %v333
    %v3658 = vunpack.c.h.b16 %v333
    %v3659 = vunpack.c.l.b16 %v334
    %v3660 = vunpack.c.h.b16 %v334
    %v3661 = vunpack.c.l.b16 %v335
    %v3662 = vunpack.c.h.b16 %v335
    %v3663 = vunpack.c.l.b16 %v336
    %v3664 = vunpack.c.h.b16 %v336
    %v3665 = vunpack.c.l.b16 %v337
    %v3666 = vunpack.c.h.b16 %v337
    %v3667 = vunpack.c.l.b16 %v338
    %v3668 = vunpack.c.h.b16 %v338
    %v3669 = vunpack.c.l.b16 %v339
    %v3670 = vunpack.c.h.b16 %v339
    %v3671 = vunpack.c.l.b16 %v340
    %v3672 = vunpack.c.h.b16 %v340
    %v3673 = vunpack.c.l.b16 %v341
    %v3674 = vunpack.c.h.b16 %v341
    %v3675 = vunpack.c.l.b16 %v342
    %v3676 = vunpack.c.h.b16 %v342
    %v3677 = vunpack.c.l.b16 %v343
    %v3678 = vunpack.c.h.b16 %v343
    %v3679 = vunpack.c.l.b16 %v344
    %v3680 = vunpack.c.h.b16 %v344
    %v3681 = vunpack.c.l.b16 %v345
    %v3682 = vunpack.c.h.b16 %v345
    %v3683 = vunpack.c.l.b16 %v346
    %v3684 = vunpack.c.h.b16 %v346
    %v3685 = vunpack.c.l.b16 %v347
    %v3686 = vunpack.c.h.b16 %v347
    %v3687 = vunpack.c.l.b16 %v348
    %v3688 = vunpack.c.h.b16 %v348
    %v3689 = vunpack.c.l.b16 %v349
    %v3690 = vunpack.c.h.b16 %v349
    %v3691 = vunpack.c.l.b16 %v350
    %v3692 = vunpack.c.h.b16 %v350
    %v3693 = vunpack.c.l.b16 %v351
    %v3694 = vunpack.c.h.b16 %v351
    %v3695 = vunpack.c.l.b16 %v352
    %v3696 = vunpack.c.h.b16 %v352
    %v3697 = vunpack.c.l.b16 %v353
    %v3698 = vunpack.c.h.b16 %v353
    %v3699 = vunpack.c.l.b16 %v354
    %v3700 = vunpack.c.h.b16 %v354
    %v3701 = vunpack.c.l.b16 %v355
    %v3702 = vunpack.c.h.b16 %v355
    %v3703 = vunpack.c.l.b16 %v356
    %v3704 = vunpack.c.h.b16 %v356
    %v3705 = vunpack.c.l.b16 %v357
    %v3706 = vunpack.c.h.b16 %v357
    %v3707 = vunpack.c.l.b16 %v358
    %v3708 = vunpack.c.h.b16 %v358
    %v3709 = vunpack.c.l.b16 %v359
    %v3710 = vunpack.c.h.b16 %v359
    %v3711 = vunpack.c.l.b16 %v360
    %v3712 = vunpack.c.h.b16 %v360
    %v3713 = vunpack.c.l.b16 %v361
    %v3714 = vunpack.c.h.b16 %v361
    %v3715 = vunpack.c.l.b16 %v362
    %v3716 = vunpack.c.h.b16 %v362
    %v3717 = vunpack.c.l.b16 %v363
    %v3718 = vunpack.c.h.b16 %v363
    %v3719 = vunpack.c.l.b16 %v364
    %v3720 = vunpack.c.h.b16 %v364
    %v3721 = vunpack.c.l.b16 %v365
    %v3722 = vunpack.c.h.b16 %v365
    %v3723 = vunpack.c.l.b16 %v366
    %v3724 = vunpack.c.h.b16 %v366
    %v3725 = vunpack.c.l.b16 %v367
    %v3726 = vunpack.c.h.b16 %v367
    %v3727 = vunpack.c.l.b16 %v368
    %v3728 = vunpack.c.h.b16 %v368
    %v3729 = vunpack.c.l.b16 %v369
    %v3730 = vunpack.c.h.b16 %v369
    %v3731 = vunpack.c.l.b16 %v370
    %v3732 = vunpack.c.h.b16 %v370
    %v3733 = vunpack.c.l.b16 %v371
    %v3734 = vunpack.c.h.b16 %v371
    %v3735 = vunpack.c.l.b16 %v372
    %v3736 = vunpack.c.h.b16 %v372
    %v3737 = vunpack.c.l.b16 %v373
    %v3738 = vunpack.c.h.b16 %v373
    %v3739 = vunpack.c.l.b16 %v374
    %v3740 = vunpack.c.h.b16 %v374
    %v3741 = vunpack.c.l.b16 %v375
    %v3742 = vunpack.c.h.b16 %v375
    %v3743 = vunpack.c.l.b16 %v376
    %v3744 = vunpack.c.h.b16 %v376
    %v3745 = vunpack.c.l.b16 %v377
    %v3746 = vunpack.c.h.b16 %v377
    %v3747 = vunpack.c.l.b16 %v378
    %v3748 = vunpack.c.h.b16 %v378
    %v3749 = vunpack.c.l.b16 %v379
    %v3750 = vunpack.c.h.b16 %v379
    %v3751 = vunpack.c.l.b16 %v380
    %v3752 = vunpack.c.h.b16 %v380
    %v3753 = vunpack.c.l.b16 %v381
    %v3754 = vunpack.c.h.b16 %v381
    %v3755 = vunpack.c.l.b16 %v382
    %v3756 = vunpack.c.h.b16 %v382
    %v3757 = vunpack.c.l.b16 %v383
    %v3758 = vunpack.c.h.b16 %v383
    %v3759 = vunpack.c.l.b16 %v384
    %v3760 = vunpack.c.h.b16 %v384
    %v3761 = vunpack.c.l.b16 %v385
    %v3762 = vunpack.c.h.b16 %v385
    %v3763 = vunpack.c.l.b16 %v386
    %v3764 = vunpack.c.h.b16 %v386
    %v3765 = vunpack.c.l.b16 %v387
    %v3766 = vunpack.c.h.b16 %v387
    %v3767 = vunpack.c.l.b16 %v388
    %v3768 = vunpack.c.h.b16 %v388
    %v3769 = vunpack.c.l.b16 %v389
    %v3770 = vunpack.c.h.b16 %v389
    %v3771 = vunpack.c.l.b16 %v390
    %v3772 = vunpack.c.h.b16 %v390
    %v3773 = vunpack.c.l.b16 %v391
    %v3774 = vunpack.c.h.b16 %v391
    %v3775 = vunpack.c.l.b16 %v392
    %v3776 = vunpack.c.h.b16 %v392
    %v3777 = vunpack.c.l.b16 %v393
    %v3778 = vunpack.c.h.b16 %v393
    %v3779 = vunpack.c.l.b16 %v394
    %v3780 = vunpack.c.h.b16 %v394
    %v3781 = vunpack.c.l.b16 %v395
    %v3782 = vunpack.c.h.b16 %v395
    %v3783 = vunpack.c.l.b16 %v396
    %v3784 = vunpack.c.h.b16 %v396
    %v3785 = vunpack.c.l.b16 %v397
    %v3786 = vunpack.c.h.b16 %v397
    %v3787 = vunpack.c.l.b16 %v398
    %v3788 = vunpack.c.h.b16 %v398
    %v3789 = vunpack.c.l.b16 %v399
    %v3790 = vunpack.c.h.b16 %v399
    %v3791 = vunpack.c.l.b16 %v400
    %v3792 = vunpack.c.h.b16 %v400
    %v3793 = vunpack.c.l.b16 %v401
    %v3794 = vunpack.c.h.b16 %v401
    %v3795 = vunpack.c.l.b16 %v402
    %v3796 = vunpack.c.h.b16 %v402
    %v3797 = vunpack.c.l.b16 %v403
    %v3798 = vunpack.c.h.b16 %v403
    %v3799 = vunpack.c.l.b16 %v404
    %v3800 = vunpack.c.h.b16 %v404
    %v3801 = vunpack.c.l.b16 %v405
    %v3802 = vunpack.c.h.b16 %v405
    %v3803 = vunpack.c.l.b16 %v406
    %v3804 = vunpack.c.h.b16 %v406
    %v3805 = vunpack.c.l.b16 %v407
    %v3806 = vunpack.c.h.b16 %v407
    %v3807 = vunpack.c.l.b16 %v408
    %v3808 = vunpack.c.h.b16 %v408
    %v3809 = vunpack.c.l.b16 %v409
    %v3810 = vunpack.c.h.b16 %v409
    %v3811 = vunpack.c.l.b16 %v410
    %v3812 = vunpack.c.h.b16 %v410
    %v3813 = vunpack.c.l.b16 %v411
    %v3814 = vunpack.c.h.b16 %v411
    %v3815 = vunpack.c.l.b16 %v412
    %v3816 = vunpack.c.h.b16 %v412
    %v3817 = vunpack.c.l.b16 %v413
    %v3818 = vunpack.c.h.b16 %v413
    %v3819 = vunpack.c.l.b16 %v414
    %v3820 = vunpack.c.h.b16 %v414
    %v3821 = vunpack.c.l.b16 %v415
    %v3822 = vunpack.c.h.b16 %v415
    %v3823 = vunpack.c.l.b16 %v416
    %v3824 = vunpack.c.h.b16 %v416
    %v3825 = vunpack.c.l.b16 %v417
    %v3826 = vunpack.c.h.b16 %v417
    %v3827 = vunpack.c.l.b16 %v418
    %v3828 = vunpack.c.h.b16 %v418
    %v3829 = vunpack.c.l.b16 %v419
    %v3830 = vunpack.c.h.b16 %v419
    %v3831 = vunpack.c.l.b16 %v420
    %v3832 = vunpack.c.h.b16 %v420
    %v3833 = vunpack.c.l.b16 %v421
    %v3834 = vunpack.c.h.b16 %v421
    %v3835 = vunpack.c.l.b16 %v422
    %v3836 = vunpack.c.h.b16 %v422
    %v3837 = vunpack.c.l.b16 %v423
    %v3838 = vunpack.c.h.b16 %v423
    %v3839 = vunpack.c.l.b16 %v424
    %v3840 = vunpack.c.h.b16 %v424
    %v3841 = vunpack.c.l.b16 %v425
    %v3842 = vunpack.c.h.b16 %v425
    %v3843 = vunpack.c.l.b16 %v426
    %v3844 = vunpack.c.h.b16 %v426
    %v3845 = vunpack.c.l.b16 %v427
    %v3846 = vunpack.c.h.b16 %v427
    %v3847 = vunpack.c.l.b16 %v428
    %v3848 = vunpack.c.h.b16 %v428
    %v3849 = vunpack.c.l.b16 %v429
    %v3850 = vunpack.c.h.b16 %v429
    %v3851 = vunpack.c.l.b16 %v430
    %v3852 = vunpack.c.h.b16 %v430
    %v3853 = vunpack.c.l.b16 %v431
    %v3854 = vunpack.c.h.b16 %v431
    %v3855 = vunpack.c.l.b16 %v432
    %v3856 = vunpack.c.h.b16 %v432
    %v3857 = vunpack.c.l.b16 %v433
    %v3858 = vunpack.c.h.b16 %v433
    %v3859 = vunpack.c.l.b16 %v434
    %v3860 = vunpack.c.h.b16 %v434
    %v3861 = vunpack.c.l.b16 %v435
    %v3862 = vunpack.c.h.b16 %v435
    %v3863 = vunpack.c.l.b16 %v436
    %v3864 = vunpack.c.h.b16 %v436
    %v3865 = vunpack.c.l.b16 %v437
    %v3866 = vunpack.c.h.b16 %v437
    %v3867 = vunpack.c.l.b16 %v438
    %v3868 = vunpack.c.h.b16 %v438
    %v3869 = vunpack.c.l.b16 %v439
    %v3870 = vunpack.c.h.b16 %v439
    %v3871 = vunpack.c.l.b16 %v440
    %v3872 = vunpack.c.h.b16 %v440
    %v3873 = vunpack.c.l.b16 %v441
    %v3874 = vunpack.c.h.b16 %v441
    %v3875 = vunpack.c.l.b16 %v442
    %v3876 = vunpack.c.h.b16 %v442
    %v3877 = vunpack.c.l.b16 %v443
    %v3878 = vunpack.c.h.b16 %v443
    %v3879 = vunpack.c.l.b16 %v444
    %v3880 = vunpack.c.h.b16 %v444
    %v3881 = vunpack.c.l.b16 %v445
    %v3882 = vunpack.c.h.b16 %v445
    %v3883 = vunpack.c.l.b16 %v446
    %v3884 = vunpack.c.h.b16 %v446
    %v3885 = vunpack.c.l.b16 %v447
    %v3886 = vunpack.c.h.b16 %v447
    %v3887 = vunpack.c.l.b16 %v448
    %v3888 = vunpack.c.h.b16 %v448
    %v3889 = vunpack.c.l.b16 %v449
    %v3890 = vunpack.c.h.b16 %v449
    %v3891 = vunpack.c.l.b16 %v450
    %v3892 = vunpack.c.h.b16 %v450
    %v3893 = vunpack.c.l.b16 %v451
    %v3894 = vunpack.c.h.b16 %v451
    %v3895 = vunpack.c.l.b16 %v452
    %v3896 = vunpack.c.h.b16 %v452
    %v3897 = vunpack.c.l.b16 %v453
    %v3898 = vunpack.c.h.b16 %v453
    %v3899 = vunpack.c.l.b16 %v454
    %v3900 = vunpack.c.h.b16 %v454
    %v3901 = vunpack.c.l.b16 %v455
    %v3902 = vunpack.c.h.b16 %v455
    %v3903 = vunpack.c.l.b16 %v456
    %v3904 = vunpack.c.h.b16 %v456
    %v3905 = vunpack.c.l.b16 %v457
    %v3906 = vunpack.c.h.b16 %v457
    %v3907 = vunpack.c.l.b16 %v458
    %v3908 = vunpack.c.h.b16 %v458
    %v3909 = vunpack.c.l.b16 %v459
    %v3910 = vunpack.c.h.b16 %v459
    %v3911 = vunpack.c.l.b16 %v460
    %v3912 = vunpack.c.h.b16 %v460
    %v3913 = vunpack.c.l.b16 %v461
    %v3914 = vunpack.c.h.b16 %v461
    %v3915 = vunpack.c.l.b16 %v462
    %v3916 = vunpack.c.h.b16 %v462
    %v3917 = vunpack.c.l.b16 %v463
    %v3918 = vunpack.c.h.b16 %v463
    %v3919 = vunpack.c.l.b16 %v464
    %v3920 = vunpack.c.h.b16 %v464
    %v3921 = vunpack.c.l.b16 %v465
    %v3922 = vunpack.c.h.b16 %v465
    %v3923 = vunpack.c.l.b16 %v466
    %v3924 = vunpack.c.h.b16 %v466
    %v3925 = vunpack.c.l.b16 %v467
    %v3926 = vunpack.c.h.b16 %v467
    %v3927 = vunpack.c.l.b16 %v468
    %v3928 = vunpack.c.h.b16 %v468
    %v3929 = vunpack.c.l.b16 %v469
    %v3930 = vunpack.c.h.b16 %v469
    %v3931 = vunpack.c.l.b16 %v470
    %v3932 = vunpack.c.h.b16 %v470
    %v3933 = vunpack.c.l.b16 %v471
    %v3934 = vunpack.c.h.b16 %v471
    %v3935 = vunpack.c.l.b16 %v472
    %v3936 = vunpack.c.h.b16 %v472
    %v3937 = vunpack.c.l.b16 %v473
    %v3938 = vunpack.c.h.b16 %v473
    %v3939 = vunpack.c.l.b16 %v474
    %v3940 = vunpack.c.h.b16 %v474
    %v3941 = vunpack.c.l.b16 %v475
    %v3942 = vunpack.c.h.b16 %v475
    %v3943 = vunpack.c.l.b16 %v476
    %v3944 = vunpack.c.h.b16 %v476
    %v3945 = vunpack.c.l.b16 %v477
    %v3946 = vunpack.c.h.b16 %v477
    %v3947 = vunpack.c.l.b16 %v478
    %v3948 = vunpack.c.h.b16 %v478
    %v3949 = vunpack.c.l.b16 %v479
    %v3950 = vunpack.c.h.b16 %v479
    %v3951 = vunpack.c.l.b16 %v480
    %v3952 = vunpack.c.h.b16 %v480
    %v3953 = vunpack.c.l.b16 %v481
    %v3954 = vunpack.c.h.b16 %v481
    %v3955 = vunpack.c.l.b16 %v482
    %v3956 = vunpack.c.h.b16 %v482
    %v3957 = vunpack.c.l.b16 %v483
    %v3958 = vunpack.c.h.b16 %v483
    %v3959 = vunpack.c.l.b16 %v484
    %v3960 = vunpack.c.h.b16 %v484
    %v3961 = vunpack.c.l.b16 %v485
    %v3962 = vunpack.c.h.b16 %v485
    %v3963 = vunpack.c.l.b16 %v486
    %v3964 = vunpack.c.h.b16 %v486
    %v3965 = vunpack.c.l.b16 %v487
    %v3966 = vunpack.c.h.b16 %v487
    %v3967 = vunpack.c.l.b16 %v488
    %v3968 = vunpack.c.h.b16 %v488
    %v3969 = vunpack.c.l.b16 %v489
    %v3970 = vunpack.c.h.b16 %v489
    %v3971 = vunpack.c.l.b16 %v490
    %v3972 = vunpack.c.h.b16 %v490
    %v3973 = vunpack.c.l.b16 %v491
    %v3974 = vunpack.c.h.b16 %v491
    %v3975 = vunpack.c.l.b16 %v492
    %v3976 = vunpack.c.h.b16 %v492
    %v3977 = vunpack.c.l.b16 %v493
    %v3978 = vunpack.c.h.b16 %v493
    %v3979 = vunpack.c.l.b16 %v494
    %v3980 = vunpack.c.h.b16 %v494
    %v3981 = vunpack.c.l.b16 %v495
    %v3982 = vunpack.c.h.b16 %v495
    %v3983 = vunpack.c.l.b16 %v496
    %v3984 = vunpack.c.h.b16 %v496
    %v3985 = vunpack.c.l.b16 %v497
    %v3986 = vunpack.c.h.b16 %v497
    %v3987 = vunpack.c.l.b16 %v498
    %v3988 = vunpack.c.h.b16 %v498
    %v3989 = vunpack.c.l.b16 %v499
    %v3990 = vunpack.c.h.b16 %v499
    %v3991 = vunpack.c.l.b16 %v500
    %v3992 = vunpack.c.h.b16 %v500
    %v3993 = vunpack.c.l.b16 %v501
    %v3994 = vunpack.c.h.b16 %v501
    %v3995 = vunpack.c.l.b16 %v502
    %v3996 = vunpack.c.h.b16 %v502
    %v3997 = vunpack.c.l.b16 %v503
    %v3998 = vunpack.c.h.b16 %v503
    %v3999 = vunpack.c.l.b16 %v504
    %v4000 = vunpack.c.h.b16 %v504
    %v4001 = vunpack.c.l.b16 %v505
    %v4002 = vunpack.c.h.b16 %v505
    %v4003 = vunpack.c.l.b16 %v506
    %v4004 = vunpack.c.h.b16 %v506
    %v4005 = vunpack.c.l.b16 %v507
    %v4006 = vunpack.c.h.b16 %v507
    %v4007 = vunpack.c.l.b16 %v508
    %v4008 = vunpack.c.h.b16 %v508
    %v4009 = vunpack.c.l.b16 %v509
    %v4010 = vunpack.c.h.b16 %v509
    %v4011 = vunpack.c.l.b16 %v510
    %v4012 = vunpack.c.h.b16 %v510
    %v4013 = vunpack.c.l.b16 %v511
    %v4014 = vunpack.c.h.b16 %v511
    %v4015 = vunpack.c.l.b16 %v512
    %v4016 = vunpack.c.h.b16 %v512
    %v4017 = vunpack.c.l.b16 %v513
    %v4018 = vunpack.c.h.b16 %v513
    %v4019 = vunpack.c.l.b16 %v514
    %v4020 = vunpack.c.h.b16 %v514
    %v4021 = vunpack.c.l.b16 %v515
    %v4022 = vunpack.c.h.b16 %v515
    %v4023 = vunpack.c.l.b16 %v516
    %v4024 = vunpack.c.h.b16 %v516
    %v4025 = vunpack.c.l.b16 %v517
    %v4026 = vunpack.c.h.b16 %v517
    %v4027 = vunpack.c.l.b16 %v518
    %v4028 = vunpack.c.h.b16 %v518
    %v4029 = vunpack.c.l.b16 %v519
    %v4030 = vunpack.c.h.b16 %v519
    %v4031 = vunpack.c.l.b16 %v520
    %v4032 = vunpack.c.h.b16 %v520
    %v4033 = vunpack.c.l.b16 %v521
    %v4034 = vunpack.c.h.b16 %v521
    %v4035 = vunpack.c.l.b16 %v522
    %v4036 = vunpack.c.h.b16 %v522
    %v4037 = vunpack.c.l.b16 %v523
    %v4038 = vunpack.c.h.b16 %v523
    %v4039 = vunpack.c.l.b16 %v524
    %v4040 = vunpack.c.h.b16 %v524
    %v4041 = vunpack.c.l.b16 %v525
    %v4042 = vunpack.c.h.b16 %v525
    %v4043 = vunpack.c.l.b16 %v526
    %v4044 = vunpack.c.h.b16 %v526
    %v4045 = vunpack.c.l.b16 %v527
    %v4046 = vunpack.c.h.b16 %v527
    %v4047 = vunpack.c.l.b16 %v528
    %v4048 = vunpack.c.h.b16 %v528
    %v4049 = vunpack.c.l.b16 %v529
    %v4050 = vunpack.c.h.b16 %v529
    %v4051 = vunpack.c.l.b16 %v530
    %v4052 = vunpack.c.h.b16 %v530
    %v4053 = vunpack.c.l.b16 %v531
    %v4054 = vunpack.c.h.b16 %v531
    %v4055 = vunpack.c.l.b16 %v532
    %v4056 = vunpack.c.h.b16 %v532
    %v4057 = vunpack.c.l.b16 %v533
    %v4058 = vunpack.c.h.b16 %v533
    %v4059 = vunpack.c.l.b16 %v534
    %v4060 = vunpack.c.h.b16 %v534
    %v4061 = vunpack.c.l.b16 %v535
    %v4062 = vunpack.c.h.b16 %v535
    %v4063 = vunpack.c.l.b16 %v536
    %v4064 = vunpack.c.h.b16 %v536
    %v4065 = vunpack.c.l.b16 %v537
    %v4066 = vunpack.c.h.b16 %v537
    %v4067 = vunpack.c.l.b16 %v538
    %v4068 = vunpack.c.h.b16 %v538
    %v4069 = vunpack.c.l.b16 %v539
    %v4070 = vunpack.c.h.b16 %v539
    %v4071 = vunpack.c.l.b16 %v540
    %v4072 = vunpack.c.h.b16 %v540
    %v4073 = vunpack.c.l.b16 %v541
    %v4074 = vunpack.c.h.b16 %v541
    %v4075 = vunpack.c.l.b16 %v542
    %v4076 = vunpack.c.h.b16 %v542
    %v4077 = vunpack.c.l.b16 %v543
    %v4078 = vunpack.c.h.b16 %v543
    %v4079 = vunpack.c.l.b16 %v544
    %v4080 = vunpack.c.h.b16 %v544
    %v4081 = vunpack.c.l.b16 %v545
    %v4082 = vunpack.c.h.b16 %v545
    %v4083 = vunpack.c.l.b16 %v546
    %v4084 = vunpack.c.h.b16 %v546
    %v4085 = vunpack.c.l.b16 %v547
    %v4086 = vunpack.c.h.b16 %v547
    %v4087 = vunpack.c.l.b16 %v548
    %v4088 = vunpack.c.h.b16 %v548
    %v4089 = vunpack.c.l.b16 %v549
    %v4090 = vunpack.c.h.b16 %v549
    %v4091 = vunpack.c.l.b16 %v550
    %v4092 = vunpack.c.h.b16 %v550
    %v4093 = vunpack.c.l.b16 %v551
    %v4094 = vunpack.c.h.b16 %v551
    %v4095 = vunpack.c.l.b16 %v552
    %v4096 = vunpack.c.h.b16 %v552
    %v4097 = vunpack.c.l.b16 %v553
    %v4098 = vunpack.c.h.b16 %v553
    %v4099 = vunpack.c.l.b16 %v554
    %v4100 = vunpack.c.h.b16 %v554
    %v4101 = vunpack.c.l.b16 %v555
    %v4102 = vunpack.c.h.b16 %v555
    %v4103 = vunpack.c.l.b16 %v556
    %v4104 = vunpack.c.h.b16 %v556
    %v4105 = vunpack.c.l.b16 %v557
    %v4106 = vunpack.c.h.b16 %v557
    %v4107 = vunpack.c.l.b16 %v558
    %v4108 = vunpack.c.h.b16 %v558
    %v4109 = vunpack.c.l.b16 %v559
    %v4110 = vunpack.c.h.b16 %v559
    %v4111 = vunpack.c.l.b16 %v560
    %v4112 = vunpack.c.h.b16 %v560
    %v4113 = vunpack.c.l.b16 %v561
    %v4114 = vunpack.c.h.b16 %v561
    %v4115 = vunpack.c.l.b16 %v562
    %v4116 = vunpack.c.h.b16 %v562
    %v4117 = vunpack.c.l.b16 %v563
    %v4118 = vunpack.c.h.b16 %v563
    %v4119 = vunpack.c.l.b16 %v564
    %v4120 = vunpack.c.h.b16 %v564
    %v4121 = vunpack.c.l.b16 %v565
    %v4122 = vunpack.c.h.b16 %v565
    %v4123 = vunpack.c.l.b16 %v566
    %v4124 = vunpack.c.h.b16 %v566
    %v4125 = vunpack.c.l.b16 %v567
    %v4126 = vunpack.c.h.b16 %v567
    %v4127 = vunpack.c.l.b16 %v568
    %v4128 = vunpack.c.h.b16 %v568
    %v4129 = vunpack.c.l.b16 %v569
    %v4130 = vunpack.c.h.b16 %v569
    %v4131 = vunpack.c.l.b16 %v570
    %v4132 = vunpack.c.h.b16 %v570
    %v4133 = vunpack.c.l.b16 %v571
    %v4134 = vunpack.c.h.b16 %v571
    %v4135 = vunpack.c.l.b16 %v572
    %v4136 = vunpack.c.h.b16 %v572
    %v4137 = vunpack.c.l.b16 %v573
    %v4138 = vunpack.c.h.b16 %v573
    %v4139 = vunpack.c.l.b16 %v574
    %v4140 = vunpack.c.h.b16 %v574
    %v4141 = vunpack.c.l.b16 %v575
    %v4142 = vunpack.c.h.b16 %v575
    %v4143 = vunpack.c.l.b16 %v576
    %v4144 = vunpack.c.h.b16 %v576
    %v4145 = vunpack.c.l.b16 %v577
    %v4146 = vunpack.c.h.b16 %v577
    %v4147 = vunpack.c.l.b16 %v578
    %v4148 = vunpack.c.h.b16 %v578
    %v4149 = vunpack.c.l.b16 %v579
    %v4150 = vunpack.c.h.b16 %v579
    %v4151 = vunpack.c.l.b16 %v580
    %v4152 = vunpack.c.h.b16 %v580
    %v4153 = vunpack.c.l.b16 %v581
    %v4154 = vunpack.c.h.b16 %v581
    %v4155 = vunpack.c.l.b16 %v582
    %v4156 = vunpack.c.h.b16 %v582
    %v4157 = vunpack.c.l.b16 %v583
    %v4158 = vunpack.c.h.b16 %v583
    %v4159 = vunpack.c.l.b16 %v584
    %v4160 = vunpack.c.h.b16 %v584
    %v4161 = vunpack.c.l.b16 %v585
    %v4162 = vunpack.c.h.b16 %v585
    %v4163 = vunpack.c.l.b16 %v586
    %v4164 = vunpack.c.h.b16 %v586
    %v4165 = vunpack.c.l.b16 %v587
    %v4166 = vunpack.c.h.b16 %v587
    %v4167 = vunpack.c.l.b16 %v588
    %v4168 = vunpack.c.h.b16 %v588
    %v4169 = vunpack.c.l.b16 %v589
    %v4170 = vunpack.c.h.b16 %v589
    %v4171 = vunpack.c.l.b16 %v590
    %v4172 = vunpack.c.h.b16 %v590
    %v4173 = vunpack.c.l.b16 %v591
    %v4174 = vunpack.c.h.b16 %v591
    %v4175 = vunpack.c.l.b16 %v592
    %v4176 = vunpack.c.h.b16 %v592
    %v4177 = vunpack.c.l.b16 %v593
    %v4178 = vunpack.c.h.b16 %v593
    %v4179 = vunpack.c.l.b16 %v594
    %v4180 = vunpack.c.h.b16 %v594
    %v4181 = vunpack.c.l.b16 %v595
    %v4182 = vunpack.c.h.b16 %v595
    %v4183 = vunpack.c.l.b16 %v596
    %v4184 = vunpack.c.h.b16 %v596
    %v4185 = vunpack.c.l.b16 %v597
    %v4186 = vunpack.c.h.b16 %v597
    %v4187 = vunpack.c.l.b16 %v598
    %v4188 = vunpack.c.h.b16 %v598
    %v4189 = vunpack.c.l.b16 %v599
    %v4190 = vunpack.c.h.b16 %v599
    %v4191 = vunpack.c.l.b16 %v600
    %v4192 = vunpack.c.h.b16 %v600
    %v4193 = vunpack.c.l.b16 %v601
    %v4194 = vunpack.c.h.b16 %v601
    %v4195 = vunpack.c.l.b16 %v602
    %v4196 = vunpack.c.h.b16 %v602
    %v4197 = vunpack.c.l.b16 %v603
    %v4198 = vunpack.c.h.b16 %v603
    %v4199 = vunpack.c.l.b16 %v604
    %v4200 = vunpack.c.h.b16 %v604
    %v4201 = vunpack.c.l.b16 %v605
    %v4202 = vunpack.c.h.b16 %v605
    %v4203 = vunpack.c.l.b16 %v606
    %v4204 = vunpack.c.h.b16 %v606
    %v4205 = vunpack.c.l.b16 %v607
    %v4206 = vunpack.c.h.b16 %v607
    %v4207 = vunpack.c.l.b16 %v608
    %v4208 = vunpack.c.h.b16 %v608
    %v4209 = vunpack.c.l.b16 %v609
    %v4210 = vunpack.c.h.b16 %v609
    %v4211 = vunpack.c.l.b16 %v610
    %v4212 = vunpack.c.h.b16 %v610
    %v4213 = vunpack.c.l.b16 %v611
    %v4214 = vunpack.c.h.b16 %v611
    %v4215 = vunpack.c.l.b16 %v612
    %v4216 = vunpack.c.h.b16 %v612
    %v4217 = vunpack.c.l.b16 %v613
    %v4218 = vunpack.c.h.b16 %v613
    %v4219 = vunpack.c.l.b16 %v614
    %v4220 = vunpack.c.h.b16 %v614
    %v4221 = vunpack.c.l.b16 %v615
    %v4222 = vunpack.c.h.b16 %v615
    %v4223 = vunpack.c.l.b16 %v616
    %v4224 = vunpack.c.h.b16 %v616
    %v4225 = vunpack.c.l.b16 %v617
    %v4226 = vunpack.c.h.b16 %v617
    %v4227 = vunpack.c.l.b16 %v618
    %v4228 = vunpack.c.h.b16 %v618
    %v4229 = vunpack.c.l.b16 %v619
    %v4230 = vunpack.c.h.b16 %v619
    %v4231 = vunpack.c.l.b16 %v620
    %v4232 = vunpack.c.h.b16 %v620
    %v4233 = vunpack.c.l.b16 %v621
    %v4234 = vunpack.c.h.b16 %v621
    %v4235 = vunpack.c.l.b16 %v622
    %v4236 = vunpack.c.h.b16 %v622
    %v4237 = vunpack.c.l.b16 %v623
    %v4238 = vunpack.c.h.b16 %v623
    %v4239 = vunpack.c.l.b16 %v624
    %v4240 = vunpack.c.h.b16 %v624
    %v4241 = vunpack.c.l.b16 %v625
    %v4242 = vunpack.c.h.b16 %v625
    %v4243 = vunpack.c.l.b16 %v626
    %v4244 = vunpack.c.h.b16 %v626
    %v4245 = vunpack.c.l.b16 %v627
    %v4246 = vunpack.c.h.b16 %v627
    %v4247 = vunpack.c.l.b16 %v628
    %v4248 = vunpack.c.h.b16 %v628
    %v4249 = vunpack.c.l.b16 %v629
    %v4250 = vunpack.c.h.b16 %v629
    %v4251 = vunpack.c.l.b16 %v630
    %v4252 = vunpack.c.h.b16 %v630
    %v4253 = vunpack.c.l.b16 %v631
    %v4254 = vunpack.c.h.b16 %v631
    %v4255 = vunpack.c.l.b16 %v632
    %v4256 = vunpack.c.h.b16 %v632
    %v4257 = vunpack.c.l.b16 %v633
    %v4258 = vunpack.c.h.b16 %v633
    %v4259 = vunpack.c.l.b16 %v634
    %v4260 = vunpack.c.h.b16 %v634
    %v4261 = vunpack.c.l.b16 %v635
    %v4262 = vunpack.c.h.b16 %v635
    %v4263 = vunpack.c.l.b16 %v636
    %v4264 = vunpack.c.h.b16 %v636
    %v4265 = vunpack.c.l.b16 %v637
    %v4266 = vunpack.c.h.b16 %v637
    %v4267 = vunpack.c.l.b16 %v638
    %v4268 = vunpack.c.h.b16 %v638
    %v4269 = vunpack.c.l.b16 %v639
    %v4270 = vunpack.c.h.b16 %v639
    %v4271 = vunpack.c.l.b16 %v640
    %v4272 = vunpack.c.h.b16 %v640
    %v4273 = vunpack.c.l.b16 %v641
    %v4274 = vunpack.c.h.b16 %v641
    %v4275 = vunpack.c.l.b16 %v642
    %v4276 = vunpack.c.h.b16 %v642
    %v4277 = vunpack.c.l.b16 %v643
    %v4278 = vunpack.c.h.b16 %v643
    %v4279 = vunpack.c.l.b16 %v644
    %v4280 = vunpack.c.h.b16 %v644
    %v4281 = vunpack.c.l.b16 %v645
    %v4282 = vunpack.c.h.b16 %v645
    %v4283 = vunpack.c.l.b16 %v646
    %v4284 = vunpack.c.h.b16 %v646
    %v4285 = vunpack.c.l.b16 %v647
    %v4286 = vunpack.c.h.b16 %v647
    %v4287 = vunpack.c.l.b16 %v648
    %v4288 = vunpack.c.h.b16 %v648
    %v4289 = vunpack.c.l.b16 %v649
    %v4290 = vunpack.c.h.b16 %v649
    %v4291 = vunpack.c.l.b16 %v650
    %v4292 = vunpack.c.h.b16 %v650
    %v4293 = vunpack.c.l.b16 %v651
    %v4294 = vunpack.c.h.b16 %v651
    %v4295 = vunpack.c.l.b16 %v652
    %v4296 = vunpack.c.h.b16 %v652
    %v4297 = vunpack.c.l.b16 %v653
    %v4298 = vunpack.c.h.b16 %v653
    %v4299 = vunpack.c.l.b16 %v654
    %v4300 = vunpack.c.h.b16 %v654
    %v4301 = vunpack.c.l.b16 %v655
    %v4302 = vunpack.c.h.b16 %v655
    %v4303 = vunpack.c.l.b16 %v656
    %v4304 = vunpack.c.h.b16 %v656
    %v4305 = vunpack.c.l.b16 %v657
    %v4306 = vunpack.c.h.b16 %v657
    %v4307 = vunpack.c.l.b16 %v658
    %v4308 = vunpack.c.h.b16 %v658
    %v4309 = vunpack.c.l.b16 %v659
    %v4310 = vunpack.c.h.b16 %v659
    %v4311 = vunpack.c.l.b16 %v660
    %v4312 = vunpack.c.h.b16 %v660
    %v4313 = vunpack.c.l.b16 %v661
    %v4314 = vunpack.c.h.b16 %v661
    %v4315 = vunpack.c.l.b16 %v662
    %v4316 = vunpack.c.h.b16 %v662
    %v4317 = vunpack.c.l.b16 %v663
    %v4318 = vunpack.c.h.b16 %v663
    %v4319 = vunpack.c.l.b16 %v664
    %v4320 = vunpack.c.h.b16 %v664
    %v4321 = vunpack.c.l.b16 %v665
    %v4322 = vunpack.c.h.b16 %v665
    %v4323 = vunpack.c.l.b16 %v666
    %v4324 = vunpack.c.h.b16 %v666
    %v4325 = vunpack.c.l.b16 %v667
    %v4326 = vunpack.c.h.b16 %v667
    %v4327 = vunpack.c.l.b16 %v668
    %v4328 = vunpack.c.h.b16 %v668
    %v4329 = vunpack.c.l.b16 %v669
    %v4330 = vunpack.c.h.b16 %v669
    %v4331 = vunpack.c.l.b16 %v670
    %v4332 = vunpack.c.h.b16 %v670
    %v4333 = vunpack.c.l.b16 %v671
    %v4334 = vunpack.c.h.b16 %v671
    %v4335 = vunpack.c.l.b16 %v672
    %v4336 = vunpack.c.h.b16 %v672
    %v4337 = vunpack.c.l.b16 %v673
    %v4338 = vunpack.c.h.b16 %v673
    %v4339 = vunpack.c.l.b16 %v674
    %v4340 = vunpack.c.h.b16 %v674
    %v4341 = vunpack.c.l.b16 %v675
    %v4342 = vunpack.c.h.b16 %v675
    %v4343 = vunpack.c.l.b16 %v676
    %v4344 = vunpack.c.h.b16 %v676
    %v4345 = vunpack.c.l.b16 %v677
    %v4346 = vunpack.c.h.b16 %v677
    %v4347 = vunpack.c.l.b16 %v678
    %v4348 = vunpack.c.h.b16 %v678
    %v4349 = vunpack.c.l.b16 %v679
    %v4350 = vunpack.c.h.b16 %v679
    %v4351 = vunpack.c.l.b16 %v680
    %v4352 = vunpack.c.h.b16 %v680
    %v4353 = vunpack.c.l.b16 %v681
    %v4354 = vunpack.c.h.b16 %v681
    %v4355 = vunpack.c.l.b16 %v682
    %v4356 = vunpack.c.h.b16 %v682
    %v4357 = vunpack.c.l.b16 %v683
    %v4358 = vunpack.c.h.b16 %v683
    %v4359 = vunpack.c.l.b16 %v684
    %v4360 = vunpack.c.h.b16 %v684
    %v4361 = vunpack.c.l.b16 %v685
    %v4362 = vunpack.c.h.b16 %v685
    %v4363 = vunpack.c.l.b16 %v686
    %v4364 = vunpack.c.h.b16 %v686
    %v4365 = vunpack.c.l.b16 %v687
    %v4366 = vunpack.c.h.b16 %v687
    %v4367 = vunpack.c.l.b16 %v688
    %v4368 = vunpack.c.h.b16 %v688
    %v4369 = vunpack.c.l.b16 %v689
    %v4370 = vunpack.c.h.b16 %v689
    %v4371 = vunpack.c.l.b16 %v690
    %v4372 = vunpack.c.h.b16 %v690
    %v4373 = vunpack.c.l.b16 %v691
    %v4374 = vunpack.c.h.b16 %v691
    %v4375 = vunpack.c.l.b16 %v692
    %v4376 = vunpack.c.h.b16 %v692
    %v4377 = vunpack.c.l.b16 %v693
    %v4378 = vunpack.c.h.b16 %v693
    %v4379 = vunpack.c.l.b16 %v694
    %v4380 = vunpack.c.h.b16 %v694
    %v4381 = vunpack.c.l.b16 %v695
    %v4382 = vunpack.c.h.b16 %v695
    %v4383 = vunpack.c.l.b16 %v696
    %v4384 = vunpack.c.h.b16 %v696
    %v4385 = vunpack.c.l.b16 %v697
    %v4386 = vunpack.c.h.b16 %v697
    %v4387 = vunpack.c.l.b16 %v698
    %v4388 = vunpack.c.h.b16 %v698
    %v4389 = vunpack.c.l.b16 %v699
    %v4390 = vunpack.c.h.b16 %v699
    %v4391 = vunpack.c.l.b16 %v700
    %v4392 = vunpack.c.h.b16 %v700
    %v4393 = vunpack.c.l.b16 %v701
    %v4394 = vunpack.c.h.b16 %v701
    %v4395 = vunpack.c.l.b16 %v702
    %v4396 = vunpack.c.h.b16 %v702
    %v4397 = vunpack.c.l.b16 %v703
    %v4398 = vunpack.c.h.b16 %v703
    %v4399 = vunpack.c.l.b16 %v704
    %v4400 = vunpack.c.h.b16 %v704
    %v4401 = vunpack.c.l.b16 %v705
    %v4402 = vunpack.c.h.b16 %v705
    %v4403 = vunpack.c.l.b16 %v706
    %v4404 = vunpack.c.h.b16 %v706
    %v4405 = vunpack.c.l.b16 %v707
    %v4406 = vunpack.c.h.b16 %v707
    %v4407 = vunpack.c.l.b16 %v708
    %v4408 = vunpack.c.h.b16 %v708
    %v4409 = vunpack.c.l.b16 %v709
    %v4410 = vunpack.c.h.b16 %v709
    %v4411 = vunpack.c.l.b16 %v710
    %v4412 = vunpack.c.h.b16 %v710
    %v4413 = vunpack.c.l.b16 %v711
    %v4414 = vunpack.c.h.b16 %v711
    %v4415 = vunpack.c.l.b16 %v712
    %v4416 = vunpack.c.h.b16 %v712
    %v4417 = vunpack.c.l.b16 %v713
    %v4418 = vunpack.c.h.b16 %v713
    %v4419 = vunpack.c.l.b16 %v714
    %v4420 = vunpack.c.h.b16 %v714
    %v4421 = vunpack.c.l.b16 %v715
    %v4422 = vunpack.c.h.b16 %v715
    %v4423 = vunpack.c.l.b16 %v716
    %v4424 = vunpack.c.h.b16 %v716
    %v4425 = vunpack.c.l.b16 %v717
    %v4426 = vunpack.c.h.b16 %v717
    %v4427 = vunpack.c.l.b16 %v718
    %v4428 = vunpack.c.h.b16 %v718
    %v4429 = vunpack.c.l.b16 %v719
    %v4430 = vunpack.c.h.b16 %v719
    %v4431 = vunpack.c.l.b16 %v720
    %v4432 = vunpack.c.h.b16 %v720
    %v4433 = vunpack.c.l.b16 %v721
    %v4434 = vunpack.c.h.b16 %v721
    %v4435 = vunpack.c.l.b16 %v722
    %v4436 = vunpack.c.h.b16 %v722
    %v4437 = vunpack.c.l.b16 %v723
    %v4438 = vunpack.c.h.b16 %v723
    %v4439 = vunpack.c.l.b16 %v724
    %v4440 = vunpack.c.h.b16 %v724
    %v4441 = vunpack.c.l.b16 %v725
    %v4442 = vunpack.c.h.b16 %v725
    %v4443 = vunpack.c.l.b16 %v726
    %v4444 = vunpack.c.h.b16 %v726
    %v4445 = vunpack.c.l.b16 %v727
    %v4446 = vunpack.c.h.b16 %v727
    %v4447 = vunpack.c.l.b16 %v728
    %v4448 = vunpack.c.h.b16 %v728
    %v4449 = vunpack.c.l.b16 %v729
    %v4450 = vunpack.c.h.b16 %v729
    %v4451 = vunpack.c.l.b16 %v730
    %v4452 = vunpack.c.h.b16 %v730
    %v4453 = vunpack.c.l.b16 %v731
    %v4454 = vunpack.c.h.b16 %v731
    %v4455 = vunpack.c.l.b16 %v732
    %v4456 = vunpack.c.h.b16 %v732
    %v4457 = vunpack.c.l.b16 %v733
    %v4458 = vunpack.c.h.b16 %v733
    %v4459 = vunpack.c.l.b16 %v734
    %v4460 = vunpack.c.h.b16 %v734
    %v4461 = vunpack.c.l.b16 %v735
    %v4462 = vunpack.c.h.b16 %v735
    %v4463 = vunpack.c.l.b16 %v736
    %v4464 = vunpack.c.h.b16 %v736
    %v4465 = vunpack.c.l.b16 %v737
    %v4466 = vunpack.c.h.b16 %v737
    %v4467 = vunpack.c.l.b16 %v738
    %v4468 = vunpack.c.h.b16 %v738
    %v4469 = vunpack.c.l.b16 %v739
    %v4470 = vunpack.c.h.b16 %v739
    %v4471 = vunpack.c.l.b16 %v740
    %v4472 = vunpack.c.h.b16 %v740
    %v4473 = vunpack.c.l.b16 %v741
    %v4474 = vunpack.c.h.b16 %v741
    %v4475 = vunpack.c.l.b16 %v742
    %v4476 = vunpack.c.h.b16 %v742
    %v4477 = vunpack.c.l.b16 %v743
    %v4478 = vunpack.c.h.b16 %v743
    %v4479 = vunpack.c.l.b16 %v744
    %v4480 = vunpack.c.h.b16 %v744
    %v4481 = vunpack.c.l.b16 %v745
    %v4482 = vunpack.c.h.b16 %v745
    %v4483 = vunpack.c.l.b16 %v746
    %v4484 = vunpack.c.h.b16 %v746
    %v4485 = vunpack.c.l.b16 %v747
    %v4486 = vunpack.c.h.b16 %v747
    %v4487 = vunpack.c.l.b16 %v748
    %v4488 = vunpack.c.h.b16 %v748
    %v4489 = vunpack.c.l.b16 %v749
    %v4490 = vunpack.c.h.b16 %v749
    %v4491 = vunpack.c.l.b16 %v750
    %v4492 = vunpack.c.h.b16 %v750
    %v4493 = vunpack.c.l.b16 %v751
    %v4494 = vunpack.c.h.b16 %v751
    %v4495 = vunpack.c.l.b16 %v752
    %v4496 = vunpack.c.h.b16 %v752
    %v4497 = vunpack.c.l.b16 %v753
    %v4498 = vunpack.c.h.b16 %v753
    %v4499 = vunpack.c.l.b16 %v754
    %v4500 = vunpack.c.h.b16 %v754
    %v4501 = vunpack.c.l.b16 %v755
    %v4502 = vunpack.c.h.b16 %v755
    %v4503 = vunpack.c.l.b16 %v756
    %v4504 = vunpack.c.h.b16 %v756
    %v4505 = vunpack.c.l.b16 %v757
    %v4506 = vunpack.c.h.b16 %v757
    %v4507 = vunpack.c.l.b16 %v758
    %v4508 = vunpack.c.h.b16 %v758
    %v4509 = vunpack.c.l.b16 %v759
    %v4510 = vunpack.c.h.b16 %v759
    %v4511 = vunpack.c.l.b16 %v760
    %v4512 = vunpack.c.h.b16 %v760
    %v4513 = vunpack.c.l.b16 %v761
    %v4514 = vunpack.c.h.b16 %v761
    %v4515 = vunpack.c.l.b16 %v762
    %v4516 = vunpack.c.h.b16 %v762
    %v4517 = vunpack.c.l.b16 %v763
    %v4518 = vunpack.c.h.b16 %v763
    %v4519 = vunpack.c.l.b16 %v764
    %v4520 = vunpack.c.h.b16 %v764
    %v4521 = vunpack.c.l.b16 %v765
    %v4522 = vunpack.c.h.b16 %v765
    %v4523 = vunpack.c.l.b16 %v766
    %v4524 = vunpack.c.h.b16 %v766
    %v4525 = vunpack.c.l.b16 %v767
    %v4526 = vunpack.c.h.b16 %v767
    %v4527 = vunpack.c.l.b16 %v768
    %v4528 = vunpack.c.h.b16 %v768
    %v4529 = vunpack.c.l.b16 %v769
    %v4530 = vunpack.c.h.b16 %v769
    %v4531 = vunpack.c.l.b16 %v770
    %v4532 = vunpack.c.h.b16 %v770
    %v4533 = vunpack.c.l.b16 %v771
    %v4534 = vunpack.c.h.b16 %v771
    %v4535 = vunpack.c.l.b16 %v772
    %v4536 = vunpack.c.h.b16 %v772
    %v4537 = vunpack.c.l.b16 %v773
    %v4538 = vunpack.c.h.b16 %v773
    %v4539 = vunpack.c.l.b16 %v774
    %v4540 = vunpack.c.h.b16 %v774
    %v4541 = vunpack.c.l.b16 %v775
    %v4542 = vunpack.c.h.b16 %v775
    %v4543 = vunpack.c.l.b16 %v776
    %v4544 = vunpack.c.h.b16 %v776
    %v4545 = vunpack.c.l.b16 %v777
    %v4546 = vunpack.c.h.b16 %v777
    %v4547 = vunpack.c.l.b16 %v778
    %v4548 = vunpack.c.h.b16 %v778
    %v4549 = vunpack.c.l.b16 %v779
    %v4550 = vunpack.c.h.b16 %v779
    %v4551 = vunpack.c.l.b16 %v780
    %v4552 = vunpack.c.h.b16 %v780
    %v4553 = vunpack.c.l.b16 %v781
    %v4554 = vunpack.c.h.b16 %v781
    %v4555 = vunpack.c.l.b16 %v782
    %v4556 = vunpack.c.h.b16 %v782
    %v4557 = vunpack.c.l.b16 %v783
    %v4558 = vunpack.c.h.b16 %v783
    %v4559 = vunpack.c.l.b16 %v784
    %v4560 = vunpack.c.h.b16 %v784
    %v4561 = vunpack.c.l.b16 %v785
    %v4562 = vunpack.c.h.b16 %v785
    %v4563 = vunpack.c.l.b16 %v786
    %v4564 = vunpack.c.h.b16 %v786
    %v4565 = vunpack.c.l.b16 %v787
    %v4566 = vunpack.c.h.b16 %v787
    %v4567 = vunpack.c.l.b16 %v788
    %v4568 = vunpack.c.h.b16 %v788
    %v4569 = vunpack.c.l.b16 %v789
    %v4570 = vunpack.c.h.b16 %v789
    %v4571 = vunpack.c.l.b16 %v790
    %v4572 = vunpack.c.h.b16 %v790
    %v4573 = vunpack.c.l.b16 %v791
    %v4574 = vunpack.c.h.b16 %v791
    %v4575 = vunpack.c.l.b16 %v792
    %v4576 = vunpack.c.h.b16 %v792
    %v4577 = vunpack.c.l.b16 %v793
    %v4578 = vunpack.c.h.b16 %v793
    %v4579 = vunpack.c.l.b16 %v794
    %v4580 = vunpack.c.h.b16 %v794
    %v4581 = vunpack.c.l.b16 %v795
    %v4582 = vunpack.c.h.b16 %v795
    %v4583 = vunpack.c.l.b16 %v796
    %v4584 = vunpack.c.h.b16 %v796
    %v4585 = vunpack.c.l.b16 %v797
    %v4586 = vunpack.c.h.b16 %v797
    %v4587 = vunpack.c.l.b16 %v798
    %v4588 = vunpack.c.h.b16 %v798
    %v4589 = vunpack.c.l.b16 %v799
    %v4590 = vunpack.c.h.b16 %v799
    %v4591 = vunpack.c.l.b16 %v800
    %v4592 = vunpack.c.h.b16 %v800
    %v4593 = vunpack.c.l.b16 %v801
    %v4594 = vunpack.c.h.b16 %v801
    %v4595 = vunpack.c.l.b16 %v802
    %v4596 = vunpack.c.h.b16 %v802
    %v4597 = vunpack.c.l.b16 %v803
    %v4598 = vunpack.c.h.b16 %v803
    %v4599 = vunpack.c.l.b16 %v804
    %v4600 = vunpack.c.h.b16 %v804
    %v4601 = vunpack.c.l.b16 %v805
    %v4602 = vunpack.c.h.b16 %v805
    %v4603 = vunpack.c.l.b16 %v806
    %v4604 = vunpack.c.h.b16 %v806
    %v4605 = vunpack.c.l.b16 %v807
    %v4606 = vunpack.c.h.b16 %v807
    %v4607 = vunpack.c.l.b16 %v808
    %v4608 = vunpack.c.h.b16 %v808
    %v4609 = vunpack.c.l.b16 %v809
    %v4610 = vunpack.c.h.b16 %v809
    %v4611 = vunpack.c.l.b16 %v810
    %v4612 = vunpack.c.h.b16 %v810
    %v4613 = vunpack.c.l.b16 %v811
    %v4614 = vunpack.c.h.b16 %v811
    %v4615 = vunpack.c.l.b16 %v812
    %v4616 = vunpack.c.h.b16 %v812
    %v4617 = vunpack.c.l.b16 %v813
    %v4618 = vunpack.c.h.b16 %v813
    %v4619 = vunpack.c.l.b16 %v814
    %v4620 = vunpack.c.h.b16 %v814
    %v4621 = vunpack.c.l.b16 %v815
    %v4622 = vunpack.c.h.b16 %v815
    %v4623 = vunpack.c.l.b16 %v816
    %v4624 = vunpack.c.h.b16 %v816
    %v4625 = vunpack.c.l.b16 %v817
    %v4626 = vunpack.c.h.b16 %v817
    %v4627 = vunpack.c.l.b16 %v818
    %v4628 = vunpack.c.h.b16 %v818
    %v4629 = vunpack.c.l.b16 %v819
    %v4630 = vunpack.c.h.b16 %v819
    %v4631 = vunpack.c.l.b16 %v820
    %v4632 = vunpack.c.h.b16 %v820
    %v4633 = vunpack.c.l.b16 %v821
    %v4634 = vunpack.c.h.b16 %v821
    %v4635 = vunpack.c.l.b16 %v822
    %v4636 = vunpack.c.h.b16 %v822
    %v4637 = vunpack.c.l.b16 %v823
    %v4638 = vunpack.c.h.b16 %v823
    %v4639 = vunpack.c.l.b16 %v824
    %v4640 = vunpack.c.h.b16 %v824
    %v4641 = vunpack.c.l.b16 %v825
    %v4642 = vunpack.c.h.b16 %v825
    %v4643 = vunpack.c.l.b16 %v826
    %v4644 = vunpack.c.h.b16 %v826
    %v4645 = vunpack.c.l.b16 %v827
    %v4646 = vunpack.c.h.b16 %v827
    %v4647 = vunpack.c.l.b16 %v828
    %v4648 = vunpack.c.h.b16 %v828
    %v4649 = vunpack.c.l.b16 %v829
    %v4650 = vunpack.c.h.b16 %v829
    %v4651 = vunpack.c.l.b16 %v830
    %v4652 = vunpack.c.h.b16 %v830
    %v4653 = vunpack.c.l.b16 %v831
    %v4654 = vunpack.c.h.b16 %v831
    %v4655 = vunpack.c.l.b16 %v832
    %v4656 = vunpack.c.h.b16 %v832
    %v4657 = vunpack.c.l.b16 %v833
    %v4658 = vunpack.c.h.b16 %v833
    %v4659 = vunpack.c.l.b16 %v834
    %v4660 = vunpack.c.h.b16 %v834
    %v4661 = vunpack.c.l.b16 %v835
    %v4662 = vunpack.c.h.b16 %v835
    %v4663 = vunpack.c.l.b16 %v836
    %v4664 = vunpack.c.h.b16 %v836
    %v4665 = vunpack.c.l.b16 %v837
    %v4666 = vunpack.c.h.b16 %v837
    %v4667 = vunpack.c.l.b16 %v838
    %v4668 = vunpack.c.h.b16 %v838
    %v4669 = vunpack.c.l.b16 %v839
    %v4670 = vunpack.c.h.b16 %v839
    %v4671 = vunpack.c.l.b16 %v840
    %v4672 = vunpack.c.h.b16 %v840
    %v4673 = vunpack.c.l.b16 %v841
    %v4674 = vunpack.c.h.b16 %v841
    %v4675 = vunpack.c.l.b16 %v842
    %v4676 = vunpack.c.h.b16 %v842
    %v4677 = vunpack.c.l.b16 %v843
    %v4678 = vunpack.c.h.b16 %v843
    %v4679 = vunpack.c.l.b16 %v844
    %v4680 = vunpack.c.h.b16 %v844
    %v4681 = vunpack.c.l.b16 %v845
    %v4682 = vunpack.c.h.b16 %v845
    %v4683 = vunpack.c.l.b16 %v846
    %v4684 = vunpack.c.h.b16 %v846
    %v4685 = vunpack.c.l.b16 %v847
    %v4686 = vunpack.c.h.b16 %v847
    %v4687 = vunpack.c.l.b16 %v848
    %v4688 = vunpack.c.h.b16 %v848
    %v4689 = vunpack.c.l.b16 %v849
    %v4690 = vunpack.c.h.b16 %v849
    %v4691 = vunpack.c.l.b16 %v850
    %v4692 = vunpack.c.h.b16 %v850
    %v4693 = vunpack.c.l.b16 %v851
    %v4694 = vunpack.c.h.b16 %v851
    %v4695 = vunpack.c.l.b16 %v852
    %v4696 = vunpack.c.h.b16 %v852
    %v4697 = vunpack.c.l.b16 %v853
    %v4698 = vunpack.c.h.b16 %v853
    %v4699 = vunpack.c.l.b16 %v854
    %v4700 = vunpack.c.h.b16 %v854
    %v4701 = vunpack.c.l.b16 %v855
    %v4702 = vunpack.c.h.b16 %v855
    %v4703 = vunpack.c.l.b16 %v856
    %v4704 = vunpack.c.h.b16 %v856
    %v4705 = vunpack.c.l.b16 %v857
    %v4706 = vunpack.c.h.b16 %v857
    %v4707 = vunpack.c.l.b16 %v858
    %v4708 = vunpack.c.h.b16 %v858
    %v4709 = vunpack.c.l.b16 %v859
    %v4710 = vunpack.c.h.b16 %v859
    %v4711 = vunpack.c.l.b16 %v860
    %v4712 = vunpack.c.h.b16 %v860
    %v4713 = vunpack.c.l.b16 %v861
    %v4714 = vunpack.c.h.b16 %v861
    %v4715 = vunpack.c.l.b16 %v862
    %v4716 = vunpack.c.h.b16 %v862
    %v4717 = vunpack.c.l.b16 %v863
    %v4718 = vunpack.c.h.b16 %v863
    %v4719 = vunpack.c.l.b16 %v864
    %v4720 = vunpack.c.h.b16 %v864
    %v4721 = vunpack.c.l.b16 %v865
    %v4722 = vunpack.c.h.b16 %v865
    %v4723 = vunpack.c.l.b16 %v866
    %v4724 = vunpack.c.h.b16 %v866
    %v4725 = vunpack.c.l.b16 %v867
    %v4726 = vunpack.c.h.b16 %v867
    %v4727 = vunpack.c.l.b16 %v868
    %v4728 = vunpack.c.h.b16 %v868
    %v4729 = vunpack.c.l.b16 %v869
    %v4730 = vunpack.c.h.b16 %v869
    %v4731 = vunpack.c.l.b16 %v870
    %v4732 = vunpack.c.h.b16 %v870
    %v4733 = vunpack.c.l.b16 %v871
    %v4734 = vunpack.c.h.b16 %v871
    %v4735 = vunpack.c.l.b16 %v872
    %v4736 = vunpack.c.h.b16 %v872
    %v4737 = vunpack.c.l.b16 %v873
    %v4738 = vunpack.c.h.b16 %v873
    %v4739 = vunpack.c.l.b16 %v874
    %v4740 = vunpack.c.h.b16 %v874
    %v4741 = vunpack.c.l.b16 %v875
    %v4742 = vunpack.c.h.b16 %v875
    %v4743 = vunpack.c.l.b16 %v876
    %v4744 = vunpack.c.h.b16 %v876
    %v4745 = vunpack.c.l.b16 %v877
    %v4746 = vunpack.c.h.b16 %v877
    %v4747 = vunpack.c.l.b16 %v878
    %v4748 = vunpack.c.h.b16 %v878
    %v4749 = vunpack.c.l.b16 %v879
    %v4750 = vunpack.c.h.b16 %v879
    %v4751 = vunpack.c.l.b16 %v880
    %v4752 = vunpack.c.h.b16 %v880
    %v4753 = vunpack.c.l.b16 %v881
    %v4754 = vunpack.c.h.b16 %v881
    %v4755 = vunpack.c.l.b16 %v882
    %v4756 = vunpack.c.h.b16 %v882
    %v4757 = vunpack.c.l.b16 %v883
    %v4758 = vunpack.c.h.b16 %v883
    %v4759 = vunpack.c.l.b16 %v884
    %v4760 = vunpack.c.h.b16 %v884
    %v4761 = vunpack.c.l.b16 %v885
    %v4762 = vunpack.c.h.b16 %v885
    %v4763 = vunpack.c.l.b16 %v886
    %v4764 = vunpack.c.h.b16 %v886
    %v4765 = vunpack.c.l.b16 %v887
    %v4766 = vunpack.c.h.b16 %v887
    %v4767 = vunpack.c.l.b16 %v888
    %v4768 = vunpack.c.h.b16 %v888
    %v4769 = vunpack.c.l.b16 %v889
    %v4770 = vunpack.c.h.b16 %v889
    %v4771 = vunpack.c.l.b16 %v890
    %v4772 = vunpack.c.h.b16 %v890
    %v4773 = vunpack.c.l.b16 %v891
    %v4774 = vunpack.c.h.b16 %v891
    %v4775 = vunpack.c.l.b16 %v892
    %v4776 = vunpack.c.h.b16 %v892
    %v4777 = vunpack.c.l.b16 %v893
    %v4778 = vunpack.c.h.b16 %v893
    %v4779 = vunpack.c.l.b16 %v894
    %v4780 = vunpack.c.h.b16 %v894
    %v4781 = vunpack.c.l.b16 %v895
    %v4782 = vunpack.c.h.b16 %v895
    %v4783 = vunpack.c.l.b16 %v896
    %v4784 = vunpack.c.h.b16 %v896
    %v4785 = vunpack.c.l.b16 %v897
    %v4786 = vunpack.c.h.b16 %v897
    %v4787 = vunpack.c.l.b16 %v898
    %v4788 = vunpack.c.h.b16 %v898
    %v4789 = vunpack.c.l.b16 %v899
    %v4790 = vunpack.c.h.b16 %v899
    %v4791 = vunpack.c.l.b16 %v900
    %v4792 = vunpack.c.h.b16 %v900
    %v4793 = vunpack.c.l.b16 %v901
    %v4794 = vunpack.c.h.b16 %v901
    %v4795 = vunpack.c.l.b16 %v902
    %v4796 = vunpack.c.h.b16 %v902
    %v4797 = vunpack.c.l.b16 %v903
    %v4798 = vunpack.c.h.b16 %v903
    %v4799 = vunpack.c.l.b16 %v904
    %v4800 = vunpack.c.h.b16 %v904
    %v4801 = vunpack.c.l.b16 %v905
    %v4802 = vunpack.c.h.b16 %v905
    %v4803 = vunpack.c.l.b16 %v906
    %v4804 = vunpack.c.h.b16 %v906
    %v4805 = vunpack.c.l.b16 %v907
    %v4806 = vunpack.c.h.b16 %v907
    %v4807 = vunpack.c.l.b16 %v908
    %v4808 = vunpack.c.h.b16 %v908
    %v4809 = vunpack.c.l.b16 %v909
    %v4810 = vunpack.c.h.b16 %v909
    %v4811 = vunpack.c.l.b16 %v910
    %v4812 = vunpack.c.h.b16 %v910
    %v4813 = vunpack.c.l.b16 %v911
    %v4814 = vunpack.c.h.b16 %v911
    %v4815 = vunpack.c.l.b16 %v912
    %v4816 = vunpack.c.h.b16 %v912
    %v4817 = vunpack.c.l.b16 %v913
    %v4818 = vunpack.c.h.b16 %v913
    %v4819 = vunpack.c.l.b16 %v914
    %v4820 = vunpack.c.h.b16 %v914
    %v4821 = vunpack.c.l.b16 %v915
    %v4822 = vunpack.c.h.b16 %v915
    %v4823 = vunpack.c.l.b16 %v916
    %v4824 = vunpack.c.h.b16 %v916
    %v4825 = vunpack.c.l.b16 %v917
    %v4826 = vunpack.c.h.b16 %v917
    %v4827 = vunpack.c.l.b16 %v918
    %v4828 = vunpack.c.h.b16 %v918
    %v4829 = vunpack.c.l.b16 %v919
    %v4830 = vunpack.c.h.b16 %v919
    %v4831 = vunpack.c.l.b16 %v920
    %v4832 = vunpack.c.h.b16 %v920
    %v4833 = vunpack.c.l.b16 %v921
    %v4834 = vunpack.c.h.b16 %v921
    %v4835 = vunpack.c.l.b16 %v922
    %v4836 = vunpack.c.h.b16 %v922
    %v4837 = vunpack.c.l.b16 %v923
    %v4838 = vunpack.c.h.b16 %v923
    %v4839 = vunpack.c.l.b16 %v924
    %v4840 = vunpack.c.h.b16 %v924
    %v4841 = vunpack.c.l.b16 %v925
    %v4842 = vunpack.c.h.b16 %v925
    %v4843 = vunpack.c.l.b16 %v926
    %v4844 = vunpack.c.h.b16 %v926
    %v4845 = vunpack.c.l.b16 %v927
    %v4846 = vunpack.c.h.b16 %v927
    %v4847 = vunpack.c.l.b16 %v928
    %v4848 = vunpack.c.h.b16 %v928
    %v4849 = vunpack.c.l.b16 %v929
    %v4850 = vunpack.c.h.b16 %v929
    %v4851 = vunpack.c.l.b16 %v930
    %v4852 = vunpack.c.h.b16 %v930
    %v4853 = vunpack.c.l.b16 %v931
    %v4854 = vunpack.c.h.b16 %v931
    %v4855 = vunpack.c.l.b16 %v932
    %v4856 = vunpack.c.h.b16 %v932
    %v4857 = vunpack.c.l.b16 %v933
    %v4858 = vunpack.c.h.b16 %v933
    %v4859 = vunpack.c.l.b16 %v934
    %v4860 = vunpack.c.h.b16 %v934
    %v4861 = vunpack.c.l.b16 %v935
    %v4862 = vunpack.c.h.b16 %v935
    %v4863 = vunpack.c.l.b16 %v936
    %v4864 = vunpack.c.h.b16 %v936
    %v4865 = vunpack.c.l.b16 %v937
    %v4866 = vunpack.c.h.b16 %v937
    %v4867 = vunpack.c.l.b16 %v938
    %v4868 = vunpack.c.h.b16 %v938
    %v4869 = vunpack.c.l.b16 %v939
    %v4870 = vunpack.c.h.b16 %v939
    %v4871 = vunpack.c.l.b16 %v940
    %v4872 = vunpack.c.h.b16 %v940
    %v4873 = vunpack.c.l.b16 %v941
    %v4874 = vunpack.c.h.b16 %v941
    %v4875 = vunpack.c.l.b16 %v942
    %v4876 = vunpack.c.h.b16 %v942
    %v4877 = vunpack.c.l.b16 %v943
    %v4878 = vunpack.c.h.b16 %v943
    %v4879 = vunpack.c.l.b16 %v944
    %v4880 = vunpack.c.h.b16 %v944
    %v4881 = vunpack.c.l.b16 %v945
    %v4882 = vunpack.c.h.b16 %v945
    %v4883 = vunpack.c.l.b16 %v946
    %v4884 = vunpack.c.h.b16 %v946
    %v4885 = vunpack.c.l.b16 %v947
    %v4886 = vunpack.c.h.b16 %v947
    %v4887 = vunpack.c.l.b16 %v948
    %v4888 = vunpack.c.h.b16 %v948
    %v4889 = vunpack.c.l.b16 %v949
    %v4890 = vunpack.c.h.b16 %v949
    %v4891 = vunpack.c.l.b16 %v950
    %v4892 = vunpack.c.h.b16 %v950
    %v4893 = vunpack.c.l.b16 %v951
    %v4894 = vunpack.c.h.b16 %v951
    %v4895 = vunpack.c.l.b16 %v952
    %v4896 = vunpack.c.h.b16 %v952
    %v4897 = vunpack.c.l.b16 %v953
    %v4898 = vunpack.c.h.b16 %v953
    %v4899 = vunpack.c.l.b16 %v954
    %v4900 = vunpack.c.h.b16 %v954
    %v4901 = vunpack.c.l.b16 %v955
    %v4902 = vunpack.c.h.b16 %v955
    %v4903 = vunpack.c.l.b16 %v956
    %v4904 = vunpack.c.h.b16 %v956
    %v4905 = vunpack.c.l.b16 %v957
    %v4906 = vunpack.c.h.b16 %v957
    %v4907 = vunpack.c.l.b16 %v958
    %v4908 = vunpack.c.h.b16 %v958
    %v4909 = vunpack.c.l.b16 %v959
    %v4910 = vunpack.c.h.b16 %v959
    %v4911 = vunpack.c.l.b16 %v960
    %v4912 = vunpack.c.h.b16 %v960
    %v4913 = vunpack.c.l.b16 %v961
    %v4914 = vunpack.c.h.b16 %v961
    %v4915 = vunpack.c.l.b16 %v962
    %v4916 = vunpack.c.h.b16 %v962
    %v4917 = vunpack.c.l.b16 %v963
    %v4918 = vunpack.c.h.b16 %v963
    %v4919 = vunpack.c.l.b16 %v964
    %v4920 = vunpack.c.h.b16 %v964
    %v4921 = vunpack.c.l.b16 %v965
    %v4922 = vunpack.c.h.b16 %v965
    %v4923 = vunpack.c.l.b16 %v966
    %v4924 = vunpack.c.h.b16 %v966
    %v4925 = vunpack.c.l.b16 %v967
    %v4926 = vunpack.c.h.b16 %v967
    %v4927 = vunpack.c.l.b16 %v968
    %v4928 = vunpack.c.h.b16 %v968
    %v4929 = vunpack.c.l.b16 %v969
    %v4930 = vunpack.c.h.b16 %v969
    %v4931 = vunpack.c.l.b16 %v970
    %v4932 = vunpack.c.h.b16 %v970
    %v4933 = vunpack.c.l.b16 %v971
    %v4934 = vunpack.c.h.b16 %v971
    %v4935 = vunpack.c.l.b16 %v972
    %v4936 = vunpack.c.h.b16 %v972
    %v4937 = vunpack.c.l.b16 %v973
    %v4938 = vunpack.c.h.b16 %v973
    %v4939 = vunpack.c.l.b16 %v974
    %v4940 = vunpack.c.h.b16 %v974
    %v4941 = vunpack.c.l.b16 %v975
    %v4942 = vunpack.c.h.b16 %v975
    %v4943 = vunpack.c.l.b16 %v976
    %v4944 = vunpack.c.h.b16 %v976
    %v4945 = vunpack.c.l.b16 %v977
    %v4946 = vunpack.c.h.b16 %v977
    %v4947 = vunpack.c.l.b16 %v978
    %v4948 = vunpack.c.h.b16 %v978
    %v4949 = vunpack.c.l.b16 %v979
    %v4950 = vunpack.c.h.b16 %v979
    %v4951 = vunpack.c.l.b16 %v980
    %v4952 = vunpack.c.h.b16 %v980
    %v4953 = vunpack.c.l.b16 %v981
    %v4954 = vunpack.c.h.b16 %v981
    %v4955 = vunpack.c.l.b16 %v982
    %v4956 = vunpack.c.h.b16 %v982
    %v4957 = vunpack.c.l.b16 %v983
    %v4958 = vunpack.c.h.b16 %v983
    %v4959 = vunpack.c.l.b16 %v984
    %v4960 = vunpack.c.h.b16 %v984
    %v4961 = vunpack.c.l.b16 %v985
    %v4962 = vunpack.c.h.b16 %v985
    %v4963 = vunpack.c.l.b16 %v986
    %v4964 = vunpack.c.h.b16 %v986
    %v4965 = vunpack.c.l.b16 %v987
    %v4966 = vunpack.c.h.b16 %v987
    %v4967 = vunpack.c.l.b16 %v988
    %v4968 = vunpack.c.h.b16 %v988
    %v4969 = vunpack.c.l.b16 %v989
    %v4970 = vunpack.c.h.b16 %v989
    %v4971 = vunpack.c.l.b16 %v990
    %v4972 = vunpack.c.h.b16 %v990
    %v4973 = vunpack.c.l.b16 %v991
    %v4974 = vunpack.c.h.b16 %v991
    %v4975 = vunpack.c.l.b16 %v992
    %v4976 = vunpack.c.h.b16 %v992
    %v4977 = vunpack.c.l.b16 %v993
    %v4978 = vunpack.c.h.b16 %v993
    %v4979 = vunpack.c.l.b16 %v994
    %v4980 = vunpack.c.h.b16 %v994
    %v4981 = vunpack.c.l.b16 %v995
    %v4982 = vunpack.c.h.b16 %v995
    %v4983 = vunpack.c.l.b16 %v996
    %v4984 = vunpack.c.h.b16 %v996
    %v4985 = vunpack.c.l.b16 %v997
    %v4986 = vunpack.c.h.b16 %v997
    %v4987 = vunpack.c.l.b16 %v998
    %v4988 = vunpack.c.h.b16 %v998
    %v4989 = vunpack.c.l.b16 %v999
    %v4990 = vunpack.c.h.b16 %v999
    %v4991 = vunpack.c.l.b16 %v1000
    %v4992 = vunpack.c.h.b16 %v1000
    %v4993 = vunpack.c.l.b16 %v1001
    %v4994 = vunpack.c.h.b16 %v1001
    %v4995 = vunpack.c.l.b16 %v1002
    %v4996 = vunpack.c.h.b16 %v1002
    %v4997 = vunpack.c.l.b16 %v1003
    %v4998 = vunpack.c.h.b16 %v1003
    %v4999 = vunpack.c.l.b16 %v1004
    %v5000 = vunpack.c.h.b16 %v1004
    %v5001 = vunpack.c.l.b16 %v1005
    %v5002 = vunpack.c.h.b16 %v1005
    %v5003 = vunpack.c.l.b16 %v1006
    %v5004 = vunpack.c.h.b16 %v1006
    %v5005 = vunpack.c.l.b16 %v1007
    %v5006 = vunpack.c.h.b16 %v1007
    %v5007 = vunpack.c.l.b16 %v1008
    %v5008 = vunpack.c.h.b16 %v1008
    %v5009 = vunpack.c.l.b16 %v1009
    %v5010 = vunpack.c.h.b16 %v1009
    %v5011 = vunpack.c.l.b16 %v1010
    %v5012 = vunpack.c.h.b16 %v1010
    %v5013 = vunpack.c.l.b16 %v1011
    %v5014 = vunpack.c.h.b16 %v1011
    %v5015 = vunpack.c.l.b16 %v1012
    %v5016 = vunpack.c.h.b16 %v1012
    %v5017 = vunpack.c.l.b16 %v1013
    %v5018 = vunpack.c.h.b16 %v1013
    %v5019 = vunpack.c.l.b16 %v1014
    %v5020 = vunpack.c.h.b16 %v1014
    %v5021 = vunpack.c.l.b16 %v1015
    %v5022 = vunpack.c.h.b16 %v1015
    %v5023 = vunpack.c.l.b16 %v1016
    %v5024 = vunpack.c.h.b16 %v1016
    %v5025 = vunpack.c.l.b16 %v1017
    %v5026 = vunpack.c.h.b16 %v1017
    %v5027 = vunpack.c.l.b16 %v1018
    %v5028 = vunpack.c.h.b16 %v1018
    %v5029 = vunpack.c.l.b16 %v1019
    %v5030 = vunpack.c.h.b16 %v1019
    %v5031 = vunpack.c.l.b16 %v1020
    %v5032 = vunpack.c.h.b16 %v1020
    %v5033 = vunpack.c.l.b16 %v1021
    %v5034 = vunpack.c.h.b16 %v1021
    %v5035 = vunpack.c.l.b16 %v1022
    %v5036 = vunpack.c.h.b16 %v1022
    %v5037 = vunpack.c.l.b16 %v1023
    %v5038 = vunpack.c.h.b16 %v1023
    %v5039 = vunpack.c.l.b16 %v1024
    %v5040 = vunpack.c.h.b16 %v1024
    %v5041 = vunpack.c.l.b16 %v1025
    %v5042 = vunpack.c.h.b16 %v1025
    %v5043 = vunpack.c.l.b16 %v1026
    %v5044 = vunpack.c.h.b16 %v1026
    %v5045 = vunpack.c.l.b16 %v1027
    %v5046 = vunpack.c.h.b16 %v1027
    %v5047 = vunpack.c.l.b16 %v1028
    %v5048 = vunpack.c.h.b16 %v1028
    %v5049 = vunpack.c.l.b16 %v1029
    %v5050 = vunpack.c.h.b16 %v1029
    %v5051 = vunpack.c.l.b16 %v1030
    %v5052 = vunpack.c.h.b16 %v1030
    %v5053 = vunpack.c.l.b16 %v1031
    %v5054 = vunpack.c.h.b16 %v1031
    %v5055 = vunpack.c.l.b16 %v1032
    %v5056 = vunpack.c.h.b16 %v1032
    %v5057 = vunpack.c.l.b16 %v1033
    %v5058 = vunpack.c.h.b16 %v1033
    %v5059 = vunpack.c.l.b16 %v1034
    %v5060 = vunpack.c.h.b16 %v1034
    %v5061 = vunpack.c.l.b16 %v1035
    %v5062 = vunpack.c.h.b16 %v1035
    %v5063 = vunpack.c.l.b16 %v1036
    %v5064 = vunpack.c.h.b16 %v1036
    %v5065 = vunpack.c.l.b16 %v1037
    %v5066 = vunpack.c.h.b16 %v1037
    %v5067 = vunpack.c.l.b16 %v1038
    %v5068 = vunpack.c.h.b16 %v1038
    %v5069 = vunpack.c.l.b16 %v1039
    %v5070 = vunpack.c.h.b16 %v1039
    %v5071 = vunpack.c.l.b16 %v1040
    %v5072 = vunpack.c.h.b16 %v1040
    %v5073 = vunpack.c.l.b16 %v1041
    %v5074 = vunpack.c.h.b16 %v1041
    %v5075 = vunpack.c.l.b16 %v1042
    %v5076 = vunpack.c.h.b16 %v1042
    %v5077 = vunpack.c.l.b16 %v1043
    %v5078 = vunpack.c.h.b16 %v1043
    %v5079 = vunpack.c.l.b16 %v1044
    %v5080 = vunpack.c.h.b16 %v1044
    %v5081 = vunpack.c.l.b16 %v1045
    %v5082 = vunpack.c.h.b16 %v1045
    %v5083 = vunpack.c.l.b16 %v1046
    %v5084 = vunpack.c.h.b16 %v1046
    %v5085 = vunpack.c.l.b16 %v1047
    %v5086 = vunpack.c.h.b16 %v1047
    %v5087 = vunpack.c.l.b16 %v1048
    %v5088 = vunpack.c.h.b16 %v1048
    %v5089 = vunpack.c.l.b16 %v1049
    %v5090 = vunpack.c.h.b16 %v1049
    %v5091 = vunpack.c.l.b16 %v1050
    %v5092 = vunpack.c.h.b16 %v1050
    %v5093 = vunpack.c.l.b16 %v1051
    %v5094 = vunpack.c.h.b16 %v1051
    %v5095 = vunpack.c.l.b16 %v1052
    %v5096 = vunpack.c.h.b16 %v1052
    %v5097 = vunpack.c.l.b16 %v1053
    %v5098 = vunpack.c.h.b16 %v1053
    %v5099 = vunpack.c.l.b16 %v1054
    %v5100 = vunpack.c.h.b16 %v1054
    %v5101 = vunpack.c.l.b16 %v1055
    %v5102 = vunpack.c.h.b16 %v1055
    %v5103 = vunpack.c.l.b16 %v1056
    %v5104 = vunpack.c.h.b16 %v1056
    %v5105 = vunpack.c.l.b16 %v1057
    %v5106 = vunpack.c.h.b16 %v1057
    %v5107 = vunpack.c.l.b16 %v1058
    %v5108 = vunpack.c.h.b16 %v1058
    %v5109 = vunpack.c.l.b16 %v1059
    %v5110 = vunpack.c.h.b16 %v1059
    %v5111 = vunpack.c.l.b16 %v1060
    %v5112 = vunpack.c.h.b16 %v1060
    %v5113 = vunpack.c.l.b16 %v1061
    %v5114 = vunpack.c.h.b16 %v1061
    %v5115 = vunpack.c.l.b16 %v1062
    %v5116 = vunpack.c.h.b16 %v1062
    %v5117 = vunpack.c.l.b16 %v1063
    %v5118 = vunpack.c.h.b16 %v1063
    %v5119 = vunpack.c.l.b16 %v1064
    %v5120 = vunpack.c.h.b16 %v1064
    %v5121 = vunpack.c.l.b16 %v1065
    %v5122 = vunpack.c.h.b16 %v1065
    %v5123 = vunpack.c.l.b16 %v1066
    %v5124 = vunpack.c.h.b16 %v1066
    %v5125 = vunpack.c.l.b16 %v1067
    %v5126 = vunpack.c.h.b16 %v1067
    %v5127 = vunpack.c.l.b16 %v1068
    %v5128 = vunpack.c.h.b16 %v1068
    %v5129 = vunpack.c.l.b16 %v1069
    %v5130 = vunpack.c.h.b16 %v1069
    %v5131 = vunpack.c.l.b16 %v1070
    %v5132 = vunpack.c.h.b16 %v1070
    %v5133 = vunpack.c.l.b16 %v1071
    %v5134 = vunpack.c.h.b16 %v1071
    %v5135 = vunpack.c.l.b16 %v1072
    %v5136 = vunpack.c.h.b16 %v1072
    %v5137 = vunpack.c.l.b16 %v1073
    %v5138 = vunpack.c.h.b16 %v1073
    %v5139 = vunpack.c.l.b16 %v1074
    %v5140 = vunpack.c.h.b16 %v1074
    %v5141 = vunpack.c.l.b16 %v1075
    %v5142 = vunpack.c.h.b16 %v1075
    %v5143 = vunpack.c.l.b16 %v1076
    %v5144 = vunpack.c.h.b16 %v1076
    %v5145 = vunpack.c.l.b16 %v1077
    %v5146 = vunpack.c.h.b16 %v1077
    %v5147 = vunpack.c.l.b16 %v1078
    %v5148 = vunpack.c.h.b16 %v1078
    %v5149 = vunpack.c.l.b16 %v1079
    %v5150 = vunpack.c.h.b16 %v1079
    %v5151 = vunpack.c.l.b16 %v1080
    %v5152 = vunpack.c.h.b16 %v1080
    %v5153 = vunpack.c.l.b16 %v1081
    %v5154 = vunpack.c.h.b16 %v1081
    %v5155 = vunpack.c.l.b16 %v1082
    %v5156 = vunpack.c.h.b16 %v1082
    %v5157 = vunpack.c.l.b16 %v1083
    %v5158 = vunpack.c.h.b16 %v1083
    %v5159 = vunpack.c.l.b16 %v1084
    %v5160 = vunpack.c.h.b16 %v1084
    %v5161 = vunpack.c.l.b16 %v1085
    %v5162 = vunpack.c.h.b16 %v1085
    %v5163 = vunpack.c.l.b16 %v1086
    %v5164 = vunpack.c.h.b16 %v1086
    %v5165 = vunpack.c.l.b16 %v1087
    %v5166 = vunpack.c.h.b16 %v1087
    %v5167 = vunpack.c.l.b16 %v1088
    %v5168 = vunpack.c.h.b16 %v1088
    %v5169 = vunpack.c.l.b16 %v1089
    %v5170 = vunpack.c.h.b16 %v1089
    %v5171 = vunpack.c.l.b16 %v1090
    %v5172 = vunpack.c.h.b16 %v1090
    %v5173 = vunpack.c.l.b16 %v1091
    %v5174 = vunpack.c.h.b16 %v1091
    %v5175 = vunpack.c.l.b16 %v1092
    %v5176 = vunpack.c.h.b16 %v1092
    %v5177 = vunpack.c.l.b16 %v1093
    %v5178 = vunpack.c.h.b16 %v1093
    %v5179 = vunpack.c.l.b16 %v1094
    %v5180 = vunpack.c.h.b16 %v1094
    %v5181 = vunpack.c.l.b16 %v1095
    %v5182 = vunpack.c.h.b16 %v1095
    %v5183 = vunpack.c.l.b16 %v1096
    %v5184 = vunpack.c.h.b16 %v1096
    %v5185 = vunpack.c.l.b16 %v1097
    %v5186 = vunpack.c.h.b16 %v1097
    %v5187 = vunpack.c.l.b16 %v1098
    %v5188 = vunpack.c.h.b16 %v1098
    %v5189 = vunpack.c.l.b16 %v1099
    %v5190 = vunpack.c.h.b16 %v1099
    %v5191 = vunpack.c.l.b16 %v1100
    %v5192 = vunpack.c.h.b16 %v1100
    %v5193 = vunpack.c.l.b16 %v1101
    %v5194 = vunpack.c.h.b16 %v1101
    %v5195 = vunpack.c.l.b16 %v1102
    %v5196 = vunpack.c.h.b16 %v1102
    %v5197 = vunpack.c.l.b16 %v1103
    %v5198 = vunpack.c.h.b16 %v1103
    %v5199 = vunpack.c.l.b16 %v1104
    %v5200 = vunpack.c.h.b16 %v1104
    %v5201 = vunpack.c.l.b16 %v1105
    %v5202 = vunpack.c.h.b16 %v1105
    %v5203 = vunpack.c.l.b16 %v1106
    %v5204 = vunpack.c.h.b16 %v1106
    %v5205 = vunpack.c.l.b16 %v1107
    %v5206 = vunpack.c.h.b16 %v1107
    %v5207 = vunpack.c.l.b16 %v1108
    %v5208 = vunpack.c.h.b16 %v1108
    %v5209 = vunpack.c.l.b16 %v1109
    %v5210 = vunpack.c.h.b16 %v1109
    %v5211 = vunpack.c.l.b16 %v1110
    %v5212 = vunpack.c.h.b16 %v1110
    %v5213 = vunpack.c.l.b16 %v1111
    %v5214 = vunpack.c.h.b16 %v1111
    %v5215 = vunpack.c.l.b16 %v1112
    %v5216 = vunpack.c.h.b16 %v1112
    %v5217 = vunpack.c.l.b16 %v1113
    %v5218 = vunpack.c.h.b16 %v1113
    %v5219 = vunpack.c.l.b16 %v1114
    %v5220 = vunpack.c.h.b16 %v1114
    %v5221 = vunpack.c.l.b16 %v1115
    %v5222 = vunpack.c.h.b16 %v1115
    %v5223 = vunpack.c.l.b16 %v1116
    %v5224 = vunpack.c.h.b16 %v1116
    %v5225 = vunpack.c.l.b16 %v1117
    %v5226 = vunpack.c.h.b16 %v1117
    %v5227 = vunpack.c.l.b16 %v1118
    %v5228 = vunpack.c.h.b16 %v1118
    %v5229 = vunpack.c.l.b16 %v1119
    %v5230 = vunpack.c.h.b16 %v1119
    %v5231 = vunpack.c.l.b16 %v1120
    %v5232 = vunpack.c.h.b16 %v1120
    %v5233 = vunpack.c.l.b16 %v1121
    %v5234 = vunpack.c.h.b16 %v1121
    %v5235 = vunpack.c.l.b16 %v1122
    %v5236 = vunpack.c.h.b16 %v1122
    %v5237 = vunpack.c.l.b16 %v1123
    %v5238 = vunpack.c.h.b16 %v1123
    %v5239 = vunpack.c.l.b16 %v1124
    %v5240 = vunpack.c.h.b16 %v1124
    %v5241 = vunpack.c.l.b16 %v1125
    %v5242 = vunpack.c.h.b16 %v1125
    %v5243 = vunpack.c.l.b16 %v1126
    %v5244 = vunpack.c.h.b16 %v1126
    %v5245 = vunpack.c.l.b16 %v1127
    %v5246 = vunpack.c.h.b16 %v1127
    %v5247 = vunpack.c.l.b16 %v1128
    %v5248 = vunpack.c.h.b16 %v1128
    %v5249 = vunpack.c.l.b16 %v1129
    %v5250 = vunpack.c.h.b16 %v1129
    %v5251 = vunpack.c.l.b16 %v1130
    %v5252 = vunpack.c.h.b16 %v1130
    %v5253 = vunpack.c.l.b16 %v1131
    %v5254 = vunpack.c.h.b16 %v1131
    %v5255 = vunpack.c.l.b16 %v1132
    %v5256 = vunpack.c.h.b16 %v1132
    %v5257 = vunpack.c.l.b16 %v1133
    %v5258 = vunpack.c.h.b16 %v1133
    %v5259 = vunpack.c.l.b16 %v1134
    %v5260 = vunpack.c.h.b16 %v1134
    %v5261 = vunpack.c.l.b16 %v1135
    %v5262 = vunpack.c.h.b16 %v1135
    %v5263 = vunpack.c.l.b16 %v1136
    %v5264 = vunpack.c.h.b16 %v1136
    %v5265 = vunpack.c.l.b16 %v1137
    %v5266 = vunpack.c.h.b16 %v1137
    %v5267 = vunpack.c.l.b16 %v1138
    %v5268 = vunpack.c.h.b16 %v1138
    %v5269 = vunpack.c.l.b16 %v1139
    %v5270 = vunpack.c.h.b16 %v1139
    %v5271 = vunpack.c.l.b16 %v1140
    %v5272 = vunpack.c.h.b16 %v1140
    %v5273 = vunpack.c.l.b16 %v1141
    %v5274 = vunpack.c.h.b16 %v1141
    %v5275 = vunpack.c.l.b16 %v1142
    %v5276 = vunpack.c.h.b16 %v1142
    %v5277 = vunpack.c.l.b16 %v1143
    %v5278 = vunpack.c.h.b16 %v1143
    %v5279 = vunpack.c.l.b16 %v1144
    %v5280 = vunpack.c.h.b16 %v1144
    %v5281 = vunpack.c.l.b16 %v1145
    %v5282 = vunpack.c.h.b16 %v1145
    %v5283 = vunpack.c.l.b16 %v1146
    %v5284 = vunpack.c.h.b16 %v1146
    %v5285 = vunpack.c.l.b16 %v1147
    %v5286 = vunpack.c.h.b16 %v1147
    %v5287 = vunpack.c.l.b16 %v1148
    %v5288 = vunpack.c.h.b16 %v1148
    %v5289 = vunpack.c.l.b16 %v1149
    %v5290 = vunpack.c.h.b16 %v1149
    %v5291 = vunpack.c.l.b16 %v1150
    %v5292 = vunpack.c.h.b16 %v1150
    %v5293 = vunpack.c.l.b16 %v1151
    %v5294 = vunpack.c.h.b16 %v1151
    %v5295 = vunpack.c.l.b16 %v1152
    %v5296 = vunpack.c.h.b16 %v1152
    %v5297 = vunpack.c.l.b16 %v1153
    %v5298 = vunpack.c.h.b16 %v1153
    %v5299 = vunpack.c.l.b16 %v1154
    %v5300 = vunpack.c.h.b16 %v1154
    %v5301 = vunpack.c.l.b16 %v1155
    %v5302 = vunpack.c.h.b16 %v1155
    %v5303 = vunpack.c.l.b16 %v1156
    %v5304 = vunpack.c.h.b16 %v1156
    %v5305 = vunpack.c.l.b16 %v1157
    %v5306 = vunpack.c.h.b16 %v1157
    %v5307 = vunpack.c.l.b16 %v1158
    %v5308 = vunpack.c.h.b16 %v1158
    %v5309 = vunpack.c.l.b16 %v1159
    %v5310 = vunpack.c.h.b16 %v1159
    %v5311 = vunpack.c.l.b16 %v1160
    %v5312 = vunpack.c.h.b16 %v1160
    %v5313 = vunpack.c.l.b16 %v1161
    %v5314 = vunpack.c.h.b16 %v1161
    %v5315 = vunpack.c.l.b16 %v1162
    %v5316 = vunpack.c.h.b16 %v1162
    %v5317 = vunpack.c.l.b16 %v1163
    %v5318 = vunpack.c.h.b16 %v1163
    %v5319 = vunpack.c.l.b16 %v1164
    %v5320 = vunpack.c.h.b16 %v1164
    %v5321 = vunpack.c.l.b16 %v1165
    %v5322 = vunpack.c.h.b16 %v1165
    %v5323 = vunpack.c.l.b16 %v1166
    %v5324 = vunpack.c.h.b16 %v1166
    %v5325 = vunpack.c.l.b16 %v1167
    %v5326 = vunpack.c.h.b16 %v1167
    %v5327 = vunpack.c.l.b16 %v1168
    %v5328 = vunpack.c.h.b16 %v1168
    %v5329 = vunpack.c.l.b16 %v1169
    %v5330 = vunpack.c.h.b16 %v1169
    %v5331 = vunpack.c.l.b16 %v1170
    %v5332 = vunpack.c.h.b16 %v1170
    %v5333 = vunpack.c.l.b16 %v1171
    %v5334 = vunpack.c.h.b16 %v1171
    %v5335 = vunpack.c.l.b16 %v1172
    %v5336 = vunpack.c.h.b16 %v1172
    %v5337 = vunpack.c.l.b16 %v1173
    %v5338 = vunpack.c.h.b16 %v1173
    %v5339 = vunpack.c.l.b16 %v1174
    %v5340 = vunpack.c.h.b16 %v1174
    %v5341 = vunpack.c.l.b16 %v1175
    %v5342 = vunpack.c.h.b16 %v1175
    %v5343 = vunpack.c.l.b16 %v1176
    %v5344 = vunpack.c.h.b16 %v1176
    %v5345 = vunpack.c.l.b16 %v1177
    %v5346 = vunpack.c.h.b16 %v1177
    %v5347 = vunpack.c.l.b16 %v1178
    %v5348 = vunpack.c.h.b16 %v1178
    %v5349 = vunpack.c.l.b16 %v1179
    %v5350 = vunpack.c.h.b16 %v1179
    %v5351 = vunpack.c.l.b16 %v1180
    %v5352 = vunpack.c.h.b16 %v1180
    %v5353 = vunpack.c.l.b16 %v1181
    %v5354 = vunpack.c.h.b16 %v1181
    %v5355 = vunpack.c.l.b16 %v1182
    %v5356 = vunpack.c.h.b16 %v1182
    %v5357 = vunpack.c.l.b16 %v1183
    %v5358 = vunpack.c.h.b16 %v1183
    %v5359 = vunpack.c.l.b16 %v1184
    %v5360 = vunpack.c.h.b16 %v1184
    %v5361 = vunpack.c.l.b16 %v1185
    %v5362 = vunpack.c.h.b16 %v1185
    %v5363 = vunpack.c.l.b16 %v1186
    %v5364 = vunpack.c.h.b16 %v1186
    %v5365 = vunpack.c.l.b16 %v1187
    %v5366 = vunpack.c.h.b16 %v1187
    %v5367 = vunpack.c.l.b16 %v1188
    %v5368 = vunpack.c.h.b16 %v1188
    %v5369 = vunpack.c.l.b16 %v1189
    %v5370 = vunpack.c.h.b16 %v1189
    %v5371 = vunpack.c.l.b16 %v1190
    %v5372 = vunpack.c.h.b16 %v1190
    %v5373 = vunpack.c.l.b16 %v1191
    %v5374 = vunpack.c.h.b16 %v1191
    %v5375 = vunpack.c.l.b16 %v1192
    %v5376 = vunpack.c.h.b16 %v1192
    %v5377 = vunpack.c.l.b16 %v1193
    %v5378 = vunpack.c.h.b16 %v1193
    %v5379 = vunpack.c.l.b16 %v1194
    %v5380 = vunpack.c.h.b16 %v1194
    %v5381 = vunpack.c.l.b16 %v1195
    %v5382 = vunpack.c.h.b16 %v1195
    %v5383 = vunpack.c.l.b16 %v1196
    %v5384 = vunpack.c.h.b16 %v1196
    %v5385 = vunpack.c.l.b16 %v1197
    %v5386 = vunpack.c.h.b16 %v1197
    %v5387 = vunpack.c.l.b16 %v1198
    %v5388 = vunpack.c.h.b16 %v1198
    %v5389 = vunpack.c.l.b16 %v1199
    %v5390 = vunpack.c.h.b16 %v1199
    %v5391 = vunpack.c.l.b16 %v1200
    %v5392 = vunpack.c.h.b16 %v1200
    %v5393 = vunpack.c.l.b16 %v1201
    %v5394 = vunpack.c.h.b16 %v1201
    %v5395 = vunpack.c.l.b16 %v1202
    %v5396 = vunpack.c.h.b16 %v1202
    %v5397 = vunpack.c.l.b16 %v1203
    %v5398 = vunpack.c.h.b16 %v1203
    %v5399 = vunpack.c.l.b16 %v1204
    %v5400 = vunpack.c.h.b16 %v1204
    %v5401 = vunpack.c.l.b16 %v1205
    %v5402 = vunpack.c.h.b16 %v1205
    %v5403 = vunpack.c.l.b16 %v1206
    %v5404 = vunpack.c.h.b16 %v1206
    %v5405 = vunpack.c.l.b16 %v1207
    %v5406 = vunpack.c.h.b16 %v1207
    %v5407 = vunpack.c.l.b16 %v1208
    %v5408 = vunpack.c.h.b16 %v1208
    %v5409 = vunpack.c.l.b16 %v1209
    %v5410 = vunpack.c.h.b16 %v1209
    %v5411 = vunpack.c.l.b16 %v1210
    %v5412 = vunpack.c.h.b16 %v1210
    %v5413 = vunpack.c.l.b16 %v1211
    %v5414 = vunpack.c.h.b16 %v1211
    %v5415 = vunpack.c.l.b16 %v1212
    %v5416 = vunpack.c.h.b16 %v1212
    %v5417 = vunpack.c.l.b16 %v1213
    %v5418 = vunpack.c.h.b16 %v1213
    %v5419 = vunpack.c.l.b16 %v1214
    %v5420 = vunpack.c.h.b16 %v1214
    %v5421 = vunpack.c.l.b16 %v1215
    %v5422 = vunpack.c.h.b16 %v1215
    %v5423 = vunpack.c.l.b16 %v1216
    %v5424 = vunpack.c.h.b16 %v1216
    %v5425 = vunpack.c.l.b16 %v1217
    %v5426 = vunpack.c.h.b16 %v1217
    %v5427 = vunpack.c.l.b16 %v1218
    %v5428 = vunpack.c.h.b16 %v1218
    %v5429 = vunpack.c.l.b16 %v1219
    %v5430 = vunpack.c.h.b16 %v1219
    %v5431 = vunpack.c.l.b16 %v1220
    %v5432 = vunpack.c.h.b16 %v1220
    %v5433 = vunpack.c.l.b16 %v1221
    %v5434 = vunpack.c.h.b16 %v1221
    %v5435 = vunpack.c.l.b16 %v1222
    %v5436 = vunpack.c.h.b16 %v1222
    %v5437 = vunpack.c.l.b16 %v1223
    %v5438 = vunpack.c.h.b16 %v1223
    %v5439 = vunpack.c.l.b16 %v1224
    %v5440 = vunpack.c.h.b16 %v1224
    %v5441 = vunpack.c.l.b16 %v1225
    %v5442 = vunpack.c.h.b16 %v1225
    %v5443 = vunpack.c.l.b16 %v1226
    %v5444 = vunpack.c.h.b16 %v1226
    %v5445 = vunpack.c.l.b16 %v1227
    %v5446 = vunpack.c.h.b16 %v1227
    %v5447 = vunpack.c.l.b16 %v1228
    %v5448 = vunpack.c.h.b16 %v1228
    %v5449 = vunpack.c.l.b16 %v1229
    %v5450 = vunpack.c.h.b16 %v1229
    %v5451 = vunpack.c.l.b16 %v1230
    %v5452 = vunpack.c.h.b16 %v1230
    %v5453 = vunpack.c.l.b16 %v1231
    %v5454 = vunpack.c.h.b16 %v1231
    %v5455 = vunpack.c.l.b16 %v1232
    %v5456 = vunpack.c.h.b16 %v1232
    %v5457 = vunpack.c.l.b16 %v1233
    %v5458 = vunpack.c.h.b16 %v1233
    %v5459 = vunpack.c.l.b16 %v1234
    %v5460 = vunpack.c.h.b16 %v1234
    %v5461 = vunpack.c.l.b16 %v1235
    %v5462 = vunpack.c.h.b16 %v1235
    %v5463 = vunpack.c.l.b16 %v1236
    %v5464 = vunpack.c.h.b16 %v1236
    %v5465 = vunpack.c.l.b16 %v1237
    %v5466 = vunpack.c.h.b16 %v1237
    %v5467 = vunpack.c.l.b16 %v1238
    %v5468 = vunpack.c.h.b16 %v1238
    %v5469 = vunpack.c.l.b16 %v1239
    %v5470 = vunpack.c.h.b16 %v1239
    %v5471 = vunpack.c.l.b16 %v1240
    %v5472 = vunpack.c.h.b16 %v1240
    %v5473 = vunpack.c.l.b16 %v1241
    %v5474 = vunpack.c.h.b16 %v1241
    %v5475 = vunpack.c.l.b16 %v1242
    %v5476 = vunpack.c.h.b16 %v1242
    %v5477 = vunpack.c.l.b16 %v1243
    %v5478 = vunpack.c.h.b16 %v1243
    %v5479 = vunpack.c.l.b16 %v1244
    %v5480 = vunpack.c.h.b16 %v1244
    %v5481 = vunpack.c.l.b16 %v1245
    %v5482 = vunpack.c.h.b16 %v1245
    %v5483 = vunpack.c.l.b16 %v1246
    %v5484 = vunpack.c.h.b16 %v1246
    %v5485 = vunpack.c.l.b16 %v1247
    %v5486 = vunpack.c.h.b16 %v1247
    %v5487 = vunpack.c.l.b16 %v1248
    %v5488 = vunpack.c.h.b16 %v1248
    %v5489 = vunpack.c.l.b16 %v1249
    %v5490 = vunpack.c.h.b16 %v1249
    %v5491 = vunpack.c.l.b16 %v1250
    %v5492 = vunpack.c.h.b16 %v1250
    %v5493 = vunpack.c.l.b16 %v1251
    %v5494 = vunpack.c.h.b16 %v1251
    %v5495 = vunpack.c.l.b16 %v1252
    %v5496 = vunpack.c.h.b16 %v1252
    %v5497 = vunpack.c.l.b16 %v1253
    %v5498 = vunpack.c.h.b16 %v1253
    %v5499 = vunpack.c.l.b16 %v1254
    %v5500 = vunpack.c.h.b16 %v1254
    %v5501 = vunpack.c.l.b16 %v1255
    %v5502 = vunpack.c.h.b16 %v1255
    %v5503 = vunpack.c.l.b16 %v1256
    %v5504 = vunpack.c.h.b16 %v1256
    %v5505 = vunpack.c.l.b16 %v1257
    %v5506 = vunpack.c.h.b16 %v1257
    %v5507 = vunpack.c.l.b16 %v1258
    %v5508 = vunpack.c.h.b16 %v1258
    %v5509 = vunpack.c.l.b16 %v1259
    %v5510 = vunpack.c.h.b16 %v1259
    %v5511 = vunpack.c.l.b16 %v1260
    %v5512 = vunpack.c.h.b16 %v1260
    %v5513 = vunpack.c.l.b16 %v1261
    %v5514 = vunpack.c.h.b16 %v1261
    %v5515 = vunpack.c.l.b16 %v1262
    %v5516 = vunpack.c.h.b16 %v1262
    %v5517 = vunpack.c.l.b16 %v1263
    %v5518 = vunpack.c.h.b16 %v1263
    %v5519 = vunpack.c.l.b16 %v1264
    %v5520 = vunpack.c.h.b16 %v1264
    %v5521 = vunpack.c.l.b16 %v1265
    %v5522 = vunpack.c.h.b16 %v1265
    %v5523 = vunpack.c.l.b16 %v1266
    %v5524 = vunpack.c.h.b16 %v1266
    %v5525 = vunpack.c.l.b16 %v1267
    %v5526 = vunpack.c.h.b16 %v1267
    %v5527 = vunpack.c.l.b16 %v1268
    %v5528 = vunpack.c.h.b16 %v1268
    %v5529 = vunpack.c.l.b16 %v1269
    %v5530 = vunpack.c.h.b16 %v1269
    %v5531 = vunpack.c.l.b16 %v1270
    %v5532 = vunpack.c.h.b16 %v1270
    %v5533 = vunpack.c.l.b16 %v1271
    %v5534 = vunpack.c.h.b16 %v1271
    %v5535 = vunpack.c.l.b16 %v1272
    %v5536 = vunpack.c.h.b16 %v1272
    %v5537 = vunpack.c.l.b16 %v1273
    %v5538 = vunpack.c.h.b16 %v1273
    %v5539 = vunpack.c.l.b16 %v1274
    %v5540 = vunpack.c.h.b16 %v1274
    %v5541 = vunpack.c.l.b16 %v1275
    %v5542 = vunpack.c.h.b16 %v1275
    %v5543 = vunpack.c.l.b16 %v1276
    %v5544 = vunpack.c.h.b16 %v1276
    %v5545 = vunpack.c.l.b16 %v1277
    %v5546 = vunpack.c.h.b16 %v1277
    %v5547 = vunpack.c.l.b16 %v1278
    %v5548 = vunpack.c.h.b16 %v1278
    %v5549 = vunpack.c.l.b16 %v1279
    %v5550 = vunpack.c.h.b16 %v1279
    %v5551 = vunpack.c.l.b16 %v1280
    %v5552 = vunpack.c.h.b16 %v1280
    %v5553 = vunpack.c.l.b16 %v1281
    %v5554 = vunpack.c.h.b16 %v1281
    %v5555 = vunpack.c.l.b16 %v1282
    %v5556 = vunpack.c.h.b16 %v1282
    %v5557 = vunpack.c.l.b16 %v1283
    %v5558 = vunpack.c.h.b16 %v1283
    %v5559 = vunpack.c.l.b16 %v1284
    %v5560 = vunpack.c.h.b16 %v1284
    %v5561 = vunpack.c.l.b16 %v1285
    %v5562 = vunpack.c.h.b16 %v1285
    %v5563 = vunpack.c.l.b16 %v1286
    %v5564 = vunpack.c.h.b16 %v1286
    %v5565 = vunpack.c.l.b16 %v1287
    %v5566 = vunpack.c.h.b16 %v1287
    %v5567 = vunpack.c.l.b16 %v1288
    %v5568 = vunpack.c.h.b16 %v1288
    %v5569 = vunpack.c.l.b16 %v1289
    %v5570 = vunpack.c.h.b16 %v1289
    %v5571 = vunpack.c.l.b16 %v1290
    %v5572 = vunpack.c.h.b16 %v1290
    %v5573 = vunpack.c.l.b16 %v1291
    %v5574 = vunpack.c.h.b16 %v1291
    %v5575 = vunpack.c.l.b16 %v1292
    %v5576 = vunpack.c.h.b16 %v1292
    %v5577 = vunpack.c.l.b16 %v1293
    %v5578 = vunpack.c.h.b16 %v1293
    %v5579 = vunpack.c.l.b16 %v1294
    %v5580 = vunpack.c.h.b16 %v1294
    %v5581 = vunpack.c.l.b16 %v1295
    %v5582 = vunpack.c.h.b16 %v1295
    %v5583 = vunpack.c.l.b16 %v1296
    %v5584 = vunpack.c.h.b16 %v1296
    %v5585 = vunpack.c.l.b16 %v1297
    %v5586 = vunpack.c.h.b16 %v1297
    %v5587 = vunpack.c.l.b16 %v1298
    %v5588 = vunpack.c.h.b16 %v1298
    %v5589 = vunpack.c.l.b16 %v1299
    %v5590 = vunpack.c.h.b16 %v1299
    %v5591 = vunpack.c.l.b16 %v1300
    %v5592 = vunpack.c.h.b16 %v1300
    %v5593 = vunpack.c.l.b16 %v1301
    %v5594 = vunpack.c.h.b16 %v1301
    %v5595 = vunpack.c.l.b16 %v1302
    %v5596 = vunpack.c.h.b16 %v1302
    %v5597 = vunpack.c.l.b16 %v1303
    %v5598 = vunpack.c.h.b16 %v1303
    %v5599 = vunpack.c.l.b16 %v1304
    %v5600 = vunpack.c.h.b16 %v1304
    %v5601 = vunpack.c.l.b16 %v1305
    %v5602 = vunpack.c.h.b16 %v1305
    %v5603 = vunpack.c.l.b16 %v1306
    %v5604 = vunpack.c.h.b16 %v1306
    %v5605 = vunpack.c.l.b16 %v1307
    %v5606 = vunpack.c.h.b16 %v1307
    %v5607 = vunpack.c.l.b16 %v1308
    %v5608 = vunpack.c.h.b16 %v1308
    %v5609 = vunpack.c.l.b16 %v1309
    %v5610 = vunpack.c.h.b16 %v1309
    %v5611 = vunpack.c.l.b16 %v1310
    %v5612 = vunpack.c.h.b16 %v1310
    %v5613 = vunpack.c.l.b16 %v1311
    %v5614 = vunpack.c.h.b16 %v1311
    %v5615 = vunpack.c.l.b16 %v1312
    %v5616 = vunpack.c.h.b16 %v1312
    %v5617 = vunpack.c.l.b16 %v1313
    %v5618 = vunpack.c.h.b16 %v1313
    %v5619 = vunpack.c.l.b16 %v1314
    %v5620 = vunpack.c.h.b16 %v1314
    %v5621 = vunpack.c.l.b16 %v1315
    %v5622 = vunpack.c.h.b16 %v1315
    %v5623 = vunpack.c.l.b16 %v1316
    %v5624 = vunpack.c.h.b16 %v1316
    %v5625 = vunpack.c.l.b16 %v1317
    %v5626 = vunpack.c.h.b16 %v1317
    %v5627 = vunpack.c.l.b16 %v1318
    %v5628 = vunpack.c.h.b16 %v1318
    %v5629 = vunpack.c.l.b16 %v1319
    %v5630 = vunpack.c.h.b16 %v1319
    %v5631 = vunpack.c.l.b16 %v1320
    %v5632 = vunpack.c.h.b16 %v1320
    %v5633 = vunpack.c.l.b16 %v1321
    %v5634 = vunpack.c.h.b16 %v1321
    %v5635 = vunpack.c.l.b16 %v1322
    %v5636 = vunpack.c.h.b16 %v1322
    %v5637 = vunpack.c.l.b16 %v1323
    %v5638 = vunpack.c.h.b16 %v1323
    %v5639 = vunpack.c.l.b16 %v1324
    %v5640 = vunpack.c.h.b16 %v1324
    %v5641 = vunpack.c.l.b16 %v1325
    %v5642 = vunpack.c.h.b16 %v1325
    %v5643 = vunpack.c.l.b16 %v1326
    %v5644 = vunpack.c.h.b16 %v1326
    %v5645 = vunpack.c.l.b16 %v1327
    %v5646 = vunpack.c.h.b16 %v1327
    %v5647 = vunpack.c.l.b16 %v1328
    %v5648 = vunpack.c.h.b16 %v1328
    %v5649 = vunpack.c.l.b16 %v1329
    %v5650 = vunpack.c.h.b16 %v1329
    %v5651 = vunpack.c.l.b16 %v1330
    %v5652 = vunpack.c.h.b16 %v1330
    %v5653 = vunpack.c.l.b16 %v1331
    %v5654 = vunpack.c.h.b16 %v1331
    %v5655 = vunpack.c.l.b16 %v1332
    %v5656 = vunpack.c.h.b16 %v1332
    %v5657 = vunpack.c.l.b16 %v1333
    %v5658 = vunpack.c.h.b16 %v1333
    %v5659 = vunpack.c.l.b16 %v1334
    %v5660 = vunpack.c.h.b16 %v1334
    %v5661 = vunpack.c.l.b16 %v1335
    %v5662 = vunpack.c.h.b16 %v1335
    %v5663 = vunpack.c.l.b16 %v1336
    %v5664 = vunpack.c.h.b16 %v1336
    %v5665 = vunpack.c.l.b16 %v1337
    %v5666 = vunpack.c.h.b16 %v1337
    %v5667 = vunpack.c.l.b16 %v1338
    %v5668 = vunpack.c.h.b16 %v1338
    %v5669 = vunpack.c.l.b16 %v1339
    %v5670 = vunpack.c.h.b16 %v1339
    %v5671 = vunpack.c.l.b16 %v1340
    %v5672 = vunpack.c.h.b16 %v1340
    %v5673 = vunpack.c.l.b16 %v1341
    %v5674 = vunpack.c.h.b16 %v1341
    %v5675 = vunpack.c.l.b16 %v1342
    %v5676 = vunpack.c.h.b16 %v1342
    %v5677 = vunpack.c.l.b16 %v1343
    %v5678 = vunpack.c.h.b16 %v1343
    %v5679 = vunpack.c.l.b16 %v1344
    %v5680 = vunpack.c.h.b16 %v1344
    %v5681 = vunpack.c.l.b16 %v1345
    %v5682 = vunpack.c.h.b16 %v1345
    %v5683 = vunpack.c.l.b16 %v1346
    %v5684 = vunpack.c.h.b16 %v1346
    %v5685 = vunpack.c.l.b16 %v1347
    %v5686 = vunpack.c.h.b16 %v1347
    %v5687 = vunpack.c.l.b16 %v1348
    %v5688 = vunpack.c.h.b16 %v1348
    %v5689 = vunpack.c.l.b16 %v1349
    %v5690 = vunpack.c.h.b16 %v1349
    %v5691 = vunpack.c.l.b16 %v1350
    %v5692 = vunpack.c.h.b16 %v1350
    %v5693 = vunpack.c.l.b16 %v1351
    %v5694 = vunpack.c.h.b16 %v1351
    %v5695 = vunpack.c.l.b16 %v1352
    %v5696 = vunpack.c.h.b16 %v1352
    %v5697 = vunpack.c.l.b16 %v1353
    %v5698 = vunpack.c.h.b16 %v1353
    %v5699 = vunpack.c.l.b16 %v1354
    %v5700 = vunpack.c.h.b16 %v1354
    %v5701 = vunpack.c.l.b16 %v1355
    %v5702 = vunpack.c.h.b16 %v1355
    %v5703 = vunpack.c.l.b16 %v1356
    %v5704 = vunpack.c.h.b16 %v1356
    %v5705 = vunpack.c.l.b16 %v1357
    %v5706 = vunpack.c.h.b16 %v1357
    %v5707 = vunpack.c.l.b16 %v1358
    %v5708 = vunpack.c.h.b16 %v1358
    %v5709 = vunpack.c.l.b16 %v1359
    %v5710 = vunpack.c.h.b16 %v1359
    %v5711 = vunpack.c.l.b16 %v1360
    %v5712 = vunpack.c.h.b16 %v1360
    %v5713 = vunpack.c.l.b16 %v1361
    %v5714 = vunpack.c.h.b16 %v1361
    %v5715 = vunpack.c.l.b16 %v1362
    %v5716 = vunpack.c.h.b16 %v1362
    %v5717 = vunpack.c.l.b16 %v1363
    %v5718 = vunpack.c.h.b16 %v1363
    %v5719 = vunpack.c.l.b16 %v1364
    %v5720 = vunpack.c.h.b16 %v1364
    %v5721 = vunpack.c.l.b16 %v1365
    %v5722 = vunpack.c.h.b16 %v1365
    %v5723 = vunpack.c.l.b16 %v1366
    %v5724 = vunpack.c.h.b16 %v1366
    %v5725 = vunpack.c.l.b16 %v1367
    %v5726 = vunpack.c.h.b16 %v1367
    %v5727 = vunpack.c.l.b16 %v1368
    %v5728 = vunpack.c.h.b16 %v1368
    %v5729 = vunpack.c.l.b16 %v1369
    %v5730 = vunpack.c.h.b16 %v1369
    %v5731 = vunpack.c.l.b16 %v1370
    %v5732 = vunpack.c.h.b16 %v1370
    %v5733 = vunpack.c.l.b16 %v1371
    %v5734 = vunpack.c.h.b16 %v1371
    %v5735 = vunpack.c.l.b16 %v1372
    %v5736 = vunpack.c.h.b16 %v1372
    %v5737 = vunpack.c.l.b16 %v1373
    %v5738 = vunpack.c.h.b16 %v1373
    %v5739 = vunpack.c.l.b16 %v1374
    %v5740 = vunpack.c.h.b16 %v1374
    %v5741 = vunpack.c.l.b16 %v1375
    %v5742 = vunpack.c.h.b16 %v1375
    %v5743 = vunpack.c.l.b16 %v1376
    %v5744 = vunpack.c.h.b16 %v1376
    %v5745 = vunpack.c.l.b16 %v1377
    %v5746 = vunpack.c.h.b16 %v1377
    %v5747 = vunpack.c.l.b16 %v1378
    %v5748 = vunpack.c.h.b16 %v1378
    %v5749 = vunpack.c.l.b16 %v1379
    %v5750 = vunpack.c.h.b16 %v1379
    %v5751 = vunpack.c.l.b16 %v1380
    %v5752 = vunpack.c.h.b16 %v1380
    %v5753 = vunpack.c.l.b16 %v1381
    %v5754 = vunpack.c.h.b16 %v1381
    %v5755 = vunpack.c.l.b16 %v1382
    %v5756 = vunpack.c.h.b16 %v1382
    %v5757 = vunpack.c.l.b16 %v1383
    %v5758 = vunpack.c.h.b16 %v1383
    %v5759 = vunpack.c.l.b16 %v1384
    %v5760 = vunpack.c.h.b16 %v1384
    %v5761 = vunpack.c.l.b16 %v1385
    %v5762 = vunpack.c.h.b16 %v1385
    %v5763 = vunpack.c.l.b16 %v1386
    %v5764 = vunpack.c.h.b16 %v1386
    %v5765 = vunpack.c.l.b16 %v1387
    %v5766 = vunpack.c.h.b16 %v1387
    %v5767 = vunpack.c.l.b16 %v1388
    %v5768 = vunpack.c.h.b16 %v1388
    %v5769 = vunpack.c.l.b16 %v1389
    %v5770 = vunpack.c.h.b16 %v1389
    %v5771 = vunpack.c.l.b16 %v1390
    %v5772 = vunpack.c.h.b16 %v1390
    %v5773 = vunpack.c.l.b16 %v1391
    %v5774 = vunpack.c.h.b16 %v1391
    %v5775 = vunpack.c.l.b16 %v1392
    %v5776 = vunpack.c.h.b16 %v1392
    %v5777 = vunpack.c.l.b16 %v1393
    %v5778 = vunpack.c.h.b16 %v1393
    %v5779 = vunpack.c.l.b16 %v1394
    %v5780 = vunpack.c.h.b16 %v1394
    %v5781 = vunpack.c.l.b16 %v1395
    %v5782 = vunpack.c.h.b16 %v1395
    %v5783 = vunpack.c.l.b16 %v1396
    %v5784 = vunpack.c.h.b16 %v1396
    %v5785 = vunpack.c.l.b16 %v1397
    %v5786 = vunpack.c.h.b16 %v1397
    %v5787 = vunpack.c.l.b16 %v1398
    %v5788 = vunpack.c.h.b16 %v1398
    %v5789 = vunpack.c.l.b16 %v1399
    %v5790 = vunpack.c.h.b16 %v1399
    %v5791 = vunpack.c.l.b16 %v1400
    %v5792 = vunpack.c.h.b16 %v1400
    %v5793 = vunpack.c.l.b16 %v1401
    %v5794 = vunpack.c.h.b16 %v1401
    %v5795 = vunpack.c.l.b16 %v1402
    %v5796 = vunpack.c.h.b16 %v1402
    %v5797 = vunpack.c.l.b16 %v1403
    %v5798 = vunpack.c.h.b16 %v1403
    %v5799 = vunpack.c.l.b16 %v1404
    %v5800 = vunpack.c.h.b16 %v1404
    %v5801 = vunpack.c.l.b16 %v1405
    %v5802 = vunpack.c.h.b16 %v1405
    %v5803 = vunpack.c.l.b16 %v1406
    %v5804 = vunpack.c.h.b16 %v1406
    %v5805 = vunpack.c.l.b16 %v1407
    %v5806 = vunpack.c.h.b16 %v1407
    %v5807 = vunpack.c.l.b16 %v1408
    %v5808 = vunpack.c.h.b16 %v1408
    %v5809 = vunpack.c.l.b16 %v1409
    %v5810 = vunpack.c.h.b16 %v1409
    %v5811 = vunpack.c.l.b16 %v1410
    %v5812 = vunpack.c.h.b16 %v1410
    %v5813 = vunpack.c.l.b16 %v1411
    %v5814 = vunpack.c.h.b16 %v1411
    %v5815 = vunpack.c.l.b16 %v1412
    %v5816 = vunpack.c.h.b16 %v1412
    %v5817 = vunpack.c.l.b16 %v1413
    %v5818 = vunpack.c.h.b16 %v1413
    %v5819 = vunpack.c.l.b16 %v1414
    %v5820 = vunpack.c.h.b16 %v1414
    %v5821 = vunpack.c.l.b16 %v1415
    %v5822 = vunpack.c.h.b16 %v1415
    %v5823 = vunpack.c.l.b16 %v1416
    %v5824 = vunpack.c.h.b16 %v1416
    %v5825 = vunpack.c.l.b16 %v1417
    %v5826 = vunpack.c.h.b16 %v1417
    %v5827 = vunpack.c.l.b16 %v1418
    %v5828 = vunpack.c.h.b16 %v1418
    %v5829 = vunpack.c.l.b16 %v1419
    %v5830 = vunpack.c.h.b16 %v1419
    %v5831 = vunpack.c.l.b16 %v1420
    %v5832 = vunpack.c.h.b16 %v1420
    %v5833 = vunpack.c.l.b16 %v1421
    %v5834 = vunpack.c.h.b16 %v1421
    %v5835 = vunpack.c.l.b16 %v1422
    %v5836 = vunpack.c.h.b16 %v1422
    %v5837 = vunpack.c.l.b16 %v1423
    %v5838 = vunpack.c.h.b16 %v1423
    %v5839 = vunpack.c.l.b16 %v1424
    %v5840 = vunpack.c.h.b16 %v1424
    %v5841 = vunpack.c.l.b16 %v1425
    %v5842 = vunpack.c.h.b16 %v1425
    %v5843 = vunpack.c.l.b16 %v1426
    %v5844 = vunpack.c.h.b16 %v1426
    %v5845 = vunpack.c.l.b16 %v1427
    %v5846 = vunpack.c.h.b16 %v1427
    %v5847 = vunpack.c.l.b16 %v1428
    %v5848 = vunpack.c.h.b16 %v1428
    %v5849 = vunpack.c.l.b16 %v1429
    %v5850 = vunpack.c.h.b16 %v1429
    %v5851 = vunpack.c.l.b16 %v1430
    %v5852 = vunpack.c.h.b16 %v1430
    %v5853 = vunpack.c.l.b16 %v1431
    %v5854 = vunpack.c.h.b16 %v1431
    %v5855 = vunpack.c.l.b16 %v1432
    %v5856 = vunpack.c.h.b16 %v1432
    %v5857 = vunpack.c.l.b16 %v1433
    %v5858 = vunpack.c.h.b16 %v1433
    %v5859 = vunpack.c.l.b16 %v1434
    %v5860 = vunpack.c.h.b16 %v1434
    %v5861 = vunpack.c.l.b16 %v1435
    %v5862 = vunpack.c.h.b16 %v1435
    %v5863 = vunpack.c.l.b16 %v1436
    %v5864 = vunpack.c.h.b16 %v1436
    %v5865 = vunpack.c.l.b16 %v1437
    %v5866 = vunpack.c.h.b16 %v1437
    %v5867 = vunpack.c.l.b16 %v1438
    %v5868 = vunpack.c.h.b16 %v1438
    %v5869 = vunpack.c.l.b16 %v1439
    %v5870 = vunpack.c.h.b16 %v1439
    %v5871 = vunpack.c.l.b16 %v1440
    %v5872 = vunpack.c.h.b16 %v1440
    %v5873 = vunpack.c.l.b16 %v1441
    %v5874 = vunpack.c.h.b16 %v1441
    %v5875 = vunpack.c.l.b16 %v1442
    %v5876 = vunpack.c.h.b16 %v1442
    %v5877 = vunpack.c.l.b16 %v1443
    %v5878 = vunpack.c.h.b16 %v1443
    %v5879 = vunpack.c.l.b16 %v1444
    %v5880 = vunpack.c.h.b16 %v1444
    %v5881 = vunpack.c.l.b16 %v1445
    %v5882 = vunpack.c.h.b16 %v1445
    %v5883 = vunpack.c.l.b16 %v1446
    %v5884 = vunpack.c.h.b16 %v1446
    %v5885 = vunpack.c.l.b16 %v1447
    %v5886 = vunpack.c.h.b16 %v1447
    %v5887 = vunpack.c.l.b16 %v1448
    %v5888 = vunpack.c.h.b16 %v1448
    %v5889 = vunpack.c.l.b16 %v1449
    %v5890 = vunpack.c.h.b16 %v1449
    %v5891 = vunpack.c.l.b16 %v1450
    %v5892 = vunpack.c.h.b16 %v1450
    %v5893 = vunpack.c.l.b16 %v1451
    %v5894 = vunpack.c.h.b16 %v1451
    %v5895 = vunpack.c.l.b16 %v1452
    %v5896 = vunpack.c.h.b16 %v1452
    %v5897 = vunpack.c.l.b16 %v1453
    %v5898 = vunpack.c.h.b16 %v1453
    %v5899 = vunpack.c.l.b16 %v1454
    %v5900 = vunpack.c.h.b16 %v1454
    %v5901 = vunpack.c.l.b16 %v1455
    %v5902 = vunpack.c.h.b16 %v1455
    %v5903 = vunpack.c.l.b16 %v1456
    %v5904 = vunpack.c.h.b16 %v1456
    %v5905 = vunpack.c.l.b16 %v1457
    %v5906 = vunpack.c.h.b16 %v1457
    %v5907 = vunpack.c.l.b16 %v1458
    %v5908 = vunpack.c.h.b16 %v1458
    %v5909 = vunpack.c.l.b16 %v1459
    %v5910 = vunpack.c.h.b16 %v1459
    %v5911 = vunpack.c.l.b16 %v1460
    %v5912 = vunpack.c.h.b16 %v1460
    %v5913 = vunpack.c.l.b16 %v1461
    %v5914 = vunpack.c.h.b16 %v1461
    %v5915 = vunpack.c.l.b16 %v1462
    %v5916 = vunpack.c.h.b16 %v1462
    %v5917 = vunpack.c.l.b16 %v1463
    %v5918 = vunpack.c.h.b16 %v1463
    %v5919 = vunpack.c.l.b16 %v1464
    %v5920 = vunpack.c.h.b16 %v1464
    %v5921 = vunpack.c.l.b16 %v1465
    %v5922 = vunpack.c.h.b16 %v1465
    %v5923 = vunpack.c.l.b16 %v1466
    %v5924 = vunpack.c.h.b16 %v1466
    %v5925 = vunpack.c.l.b16 %v1467
    %v5926 = vunpack.c.h.b16 %v1467
    %v5927 = vunpack.c.l.b16 %v1468
    %v5928 = vunpack.c.h.b16 %v1468
    %v5929 = vunpack.c.l.b16 %v1469
    %v5930 = vunpack.c.h.b16 %v1469
    %v5931 = vunpack.c.l.b16 %v1470
    %v5932 = vunpack.c.h.b16 %v1470
    %v5933 = vunpack.c.l.b16 %v1471
    %v5934 = vunpack.c.h.b16 %v1471
    %v5935 = vunpack.c.l.b16 %v1472
    %v5936 = vunpack.c.h.b16 %v1472
    %v5937 = vunpack.c.l.b16 %v1473
    %v5938 = vunpack.c.h.b16 %v1473
    %v5939 = vunpack.c.l.b16 %v1474
    %v5940 = vunpack.c.h.b16 %v1474
    %v5941 = vunpack.c.l.b16 %v1475
    %v5942 = vunpack.c.h.b16 %v1475
    %v5943 = vunpack.c.l.b16 %v1476
    %v5944 = vunpack.c.h.b16 %v1476
    %v5945 = vunpack.c.l.b16 %v1477
    %v5946 = vunpack.c.h.b16 %v1477
    %v5947 = vunpack.c.l.b16 %v1478
    %v5948 = vunpack.c.h.b16 %v1478
    %v5949 = vunpack.c.l.b16 %v1479
    %v5950 = vunpack.c.h.b16 %v1479
    %v5951 = vunpack.c.l.b16 %v1480
    %v5952 = vunpack.c.h.b16 %v1480
    %v5953 = vunpack.c.l.b16 %v1481
    %v5954 = vunpack.c.h.b16 %v1481
    %v5955 = vunpack.c.l.b16 %v1482
    %v5956 = vunpack.c.h.b16 %v1482
    %v5957 = vunpack.c.l.b16 %v1483
    %v5958 = vunpack.c.h.b16 %v1483
    %v5959 = vunpack.c.l.b16 %v1484
    %v5960 = vunpack.c.h.b16 %v1484
    %v5961 = vunpack.c.l.b16 %v1485
    %v5962 = vunpack.c.h.b16 %v1485
    %v5963 = vunpack.c.l.b16 %v1486
    %v5964 = vunpack.c.h.b16 %v1486
    %v5965 = vunpack.c.l.b16 %v1487
    %v5966 = vunpack.c.h.b16 %v1487
    %v5967 = vunpack.c.l.b16 %v1488
    %v5968 = vunpack.c.h.b16 %v1488
    %v5969 = vunpack.c.l.b16 %v1489
    %v5970 = vunpack.c.h.b16 %v1489
    %v5971 = vunpack.c.l.b16 %v1490
    %v5972 = vunpack.c.h.b16 %v1490
    %v5973 = vunpack.c.l.b16 %v1491
    %v5974 = vunpack.c.h.b16 %v1491
    %v5975 = vunpack.c.l.b16 %v1492
    %v5976 = vunpack.c.h.b16 %v1492
    %v5977 = vunpack.c.l.b16 %v1493
    %v5978 = vunpack.c.h.b16 %v1493
    %v5979 = vunpack.c.l.b16 %v1494
    %v5980 = vunpack.c.h.b16 %v1494
    %v5981 = vunpack.c.l.b16 %v1495
    %v5982 = vunpack.c.h.b16 %v1495
    %v5983 = vunpack.c.l.b16 %v1496
    %v5984 = vunpack.c.h.b16 %v1496
    %v5985 = vunpack.c.l.b16 %v1497
    %v5986 = vunpack.c.h.b16 %v1497
    %v5987 = vunpack.c.l.b16 %v1498
    %v5988 = vunpack.c.h.b16 %v1498
    %v5989 = vunpack.c.l.b16 %v1499
    %v5990 = vunpack.c.h.b16 %v1499
    %v5991 = vunpack.c.l.b16 %v1500
    %v5992 = vunpack.c.h.b16 %v1500
    %v5993 = vunpack.c.l.b16 %v1501
    %v5994 = vunpack.c.h.b16 %v1501
    %v5995 = vunpack.c.l.b16 %v1502
    %v5996 = vunpack.c.h.b16 %v1502
    %v5997 = vunpack.c.l.b16 %v1503
    %v5998 = vunpack.c.h.b16 %v1503
    %v5999 = vunpack.c.l.b16 %v1504
    %v6000 = vunpack.c.h.b16 %v1504
    %v6001 = vunpack.c.l.b16 %v1505
    %v6002 = vunpack.c.h.b16 %v1505
    %v6003 = vunpack.c.l.b16 %v1506
    %v6004 = vunpack.c.h.b16 %v1506
    %v6005 = vunpack.c.l.b16 %v1507
    %v6006 = vunpack.c.h.b16 %v1507
    %v6007 = vunpack.c.l.b16 %v1508
    %v6008 = vunpack.c.h.b16 %v1508
    %v6009 = vunpack.c.l.b16 %v1509
    %v6010 = vunpack.c.h.b16 %v1509
    %v6011 = vunpack.c.l.b16 %v1510
    %v6012 = vunpack.c.h.b16 %v1510
    %v6013 = vunpack.c.l.b16 %v1511
    %v6014 = vunpack.c.h.b16 %v1511
    %v6015 = vunpack.c.l.b16 %v1512
    %v6016 = vunpack.c.h.b16 %v1512
    %v6017 = vunpack.c.l.b16 %v1513
    %v6018 = vunpack.c.h.b16 %v1513
    %v6019 = vunpack.c.l.b16 %v1514
    %v6020 = vunpack.c.h.b16 %v1514
    %v6021 = vunpack.c.l.b16 %v1515
    %v6022 = vunpack.c.h.b16 %v1515
    %v6023 = vunpack.c.l.b16 %v1516
    %v6024 = vunpack.c.h.b16 %v1516
    %v6025 = vunpack.c.l.b16 %v1517
    %v6026 = vunpack.c.h.b16 %v1517
    %v6027 = vunpack.c.l.b16 %v1518
    %v6028 = vunpack.c.h.b16 %v1518
    %v6029 = vunpack.c.l.b16 %v1519
    %v6030 = vunpack.c.h.b16 %v1519
    %v6031 = vunpack.c.l.b16 %v1520
    %v6032 = vunpack.c.h.b16 %v1520
    %v6033 = vunpack.c.l.b16 %v1521
    %v6034 = vunpack.c.h.b16 %v1521
    %v6035 = vunpack.c.l.b16 %v1522
    %v6036 = vunpack.c.h.b16 %v1522
    %v6037 = vunpack.c.l.b16 %v1523
    %v6038 = vunpack.c.h.b16 %v1523
    %v6039 = vunpack.c.l.b16 %v1524
    %v6040 = vunpack.c.h.b16 %v1524
    %v6041 = vunpack.c.l.b16 %v1525
    %v6042 = vunpack.c.h.b16 %v1525
    %v6043 = vunpack.c.l.b16 %v1526
    %v6044 = vunpack.c.h.b16 %v1526
    %v6045 = vunpack.c.l.b16 %v1527
    %v6046 = vunpack.c.h.b16 %v1527
    %v6047 = vunpack.c.l.b16 %v1528
    %v6048 = vunpack.c.h.b16 %v1528
    %v6049 = vunpack.c.l.b16 %v1529
    %v6050 = vunpack.c.h.b16 %v1529
    %v6051 = vunpack.c.l.b16 %v1530
    %v6052 = vunpack.c.h.b16 %v1530
    %v6053 = vunpack.c.l.b16 %v1531
    %v6054 = vunpack.c.h.b16 %v1531
    %v6055 = vunpack.c.l.b16 %v1532
    %v6056 = vunpack.c.h.b16 %v1532
    %v6057 = vunpack.c.l.b16 %v1533
    %v6058 = vunpack.c.h.b16 %v1533
    %v6059 = vunpack.c.l.b16 %v1534
    %v6060 = vunpack.c.h.b16 %v1534
    %v6061 = vunpack.c.l.b16 %v1535
    %v6062 = vunpack.c.h.b16 %v1535
    %v6063 = vunpack.c.l.b16 %v1536
    %v6064 = vunpack.c.h.b16 %v1536
    %v6065 = vunpack.c.l.b16 %v1537
    %v6066 = vunpack.c.h.b16 %v1537
    %v6067 = vunpack.c.l.b16 %v1538
    %v6068 = vunpack.c.h.b16 %v1538
    %v6069 = vunpack.c.l.b16 %v1539
    %v6070 = vunpack.c.h.b16 %v1539
    %v6071 = vunpack.c.l.b16 %v1540
    %v6072 = vunpack.c.h.b16 %v1540
    %v6073 = vunpack.c.l.b16 %v1541
    %v6074 = vunpack.c.h.b16 %v1541
    %v6075 = vunpack.c.l.b16 %v1542
    %v6076 = vunpack.c.h.b16 %v1542
    %v6077 = vunpack.c.l.b16 %v1543
    %v6078 = vunpack.c.h.b16 %v1543
    %v6079 = vunpack.c.l.b16 %v1544
    %v6080 = vunpack.c.h.b16 %v1544
    %v6081 = vunpack.c.l.b16 %v1545
    %v6082 = vunpack.c.h.b16 %v1545
    %v6083 = vunpack.c.l.b16 %v1546
    %v6084 = vunpack.c.h.b16 %v1546
    %v6085 = vunpack.c.l.b16 %v1547
    %v6086 = vunpack.c.h.b16 %v1547
    %v6087 = vunpack.c.l.b16 %v1548
    %v6088 = vunpack.c.h.b16 %v1548
    %v6089 = vunpack.c.l.b16 %v1549
    %v6090 = vunpack.c.h.b16 %v1549
    %v6091 = vunpack.c.l.b16 %v1550
    %v6092 = vunpack.c.h.b16 %v1550
    %v6093 = vunpack.c.l.b16 %v1551
    %v6094 = vunpack.c.h.b16 %v1551
    %v6095 = vunpack.c.l.b16 %v1552
    %v6096 = vunpack.c.h.b16 %v1552
    %v6097 = vunpack.c.l.b16 %v1553
    %v6098 = vunpack.c.h.b16 %v1553
    %v6099 = vunpack.c.l.b16 %v1554
    %v6100 = vunpack.c.h.b16 %v1554
    %v6101 = vunpack.c.l.b16 %v1555
    %v6102 = vunpack.c.h.b16 %v1555
    %v6103 = vunpack.c.l.b16 %v1556
    %v6104 = vunpack.c.h.b16 %v1556
    %v6105 = vunpack.c.l.b16 %v1557
    %v6106 = vunpack.c.h.b16 %v1557
    %v6107 = vunpack.c.l.b16 %v1558
    %v6108 = vunpack.c.h.b16 %v1558
    %v6109 = vunpack.c.l.b16 %v1559
    %v6110 = vunpack.c.h.b16 %v1559
    %v6111 = vunpack.c.l.b16 %v1560
    %v6112 = vunpack.c.h.b16 %v1560
    %v6113 = vunpack.c.l.b16 %v1561
    %v6114 = vunpack.c.h.b16 %v1561
    %v6115 = vunpack.c.l.b16 %v1562
    %v6116 = vunpack.c.h.b16 %v1562
    %v6117 = vunpack.c.l.b16 %v1563
    %v6118 = vunpack.c.h.b16 %v1563
    %v6119 = vunpack.c.l.b16 %v1564
    %v6120 = vunpack.c.h.b16 %v1564
    %v6121 = vunpack.c.l.b16 %v1565
    %v6122 = vunpack.c.h.b16 %v1565
    %v6123 = vunpack.c.l.b16 %v1566
    %v6124 = vunpack.c.h.b16 %v1566
    %v6125 = vunpack.c.l.b16 %v1567
    %v6126 = vunpack.c.h.b16 %v1567
    %v6127 = vunpack.c.l.b16 %v1568
    %v6128 = vunpack.c.h.b16 %v1568
    %v6129 = vunpack.c.l.b16 %v1569
    %v6130 = vunpack.c.h.b16 %v1569
    %v6131 = vunpack.c.l.b16 %v1570
    %v6132 = vunpack.c.h.b16 %v1570
    %v6133 = vunpack.c.l.b16 %v1571
    %v6134 = vunpack.c.h.b16 %v1571
    %v6135 = vunpack.c.l.b16 %v1572
    %v6136 = vunpack.c.h.b16 %v1572
    %v6137 = vunpack.c.l.b16 %v1573
    %v6138 = vunpack.c.h.b16 %v1573
    %v6139 = vunpack.c.l.b16 %v1574
    %v6140 = vunpack.c.h.b16 %v1574
    %v6141 = vunpack.c.l.b16 %v1575
    %v6142 = vunpack.c.h.b16 %v1575
    %v6143 = vunpack.c.l.b16 %v1576
    %v6144 = vunpack.c.h.b16 %v1576
    %v6145 = vunpack.c.l.b16 %v1577
    %v6146 = vunpack.c.h.b16 %v1577
    %v6147 = vunpack.c.l.b16 %v1578
    %v6148 = vunpack.c.h.b16 %v1578
    %v6149 = vunpack.c.l.b16 %v1579
    %v6150 = vunpack.c.h.b16 %v1579
    %v6151 = vunpack.c.l.b16 %v1580
    %v6152 = vunpack.c.h.b16 %v1580
    %v6153 = vunpack.c.l.b16 %v1581
    %v6154 = vunpack.c.h.b16 %v1581
    %v6155 = vunpack.c.l.b16 %v1582
    %v6156 = vunpack.c.h.b16 %v1582
    %v6157 = vunpack.c.l.b16 %v1583
    %v6158 = vunpack.c.h.b16 %v1583
    %v6159 = vunpack.c.l.b16 %v1584
    %v6160 = vunpack.c.h.b16 %v1584
    %v6161 = vunpack.c.l.b16 %v1585
    %v6162 = vunpack.c.h.b16 %v1585
    %v6163 = vunpack.c.l.b16 %v1586
    %v6164 = vunpack.c.h.b16 %v1586
    %v6165 = vunpack.c.l.b16 %v1587
    %v6166 = vunpack.c.h.b16 %v1587
    %v6167 = vunpack.c.l.b16 %v1588
    %v6168 = vunpack.c.h.b16 %v1588
    %v6169 = vunpack.c.l.b16 %v1589
    %v6170 = vunpack.c.h.b16 %v1589
    %v6171 = vunpack.c.l.b16 %v1590
    %v6172 = vunpack.c.h.b16 %v1590
    %v6173 = vunpack.c.l.b16 %v1591
    %v6174 = vunpack.c.h.b16 %v1591
    %v6175 = vunpack.c.l.b16 %v1592
    %v6176 = vunpack.c.h.b16 %v1592
    %v6177 = vunpack.c.l.b16 %v1593
    %v6178 = vunpack.c.h.b16 %v1593
    %v6179 = vunpack.c.l.b16 %v1594
    %v6180 = vunpack.c.h.b16 %v1594
    %v6181 = vunpack.c.l.b16 %v1595
    %v6182 = vunpack.c.h.b16 %v1595
    %v6183 = vunpack.c.l.b16 %v1596
    %v6184 = vunpack.c.h.b16 %v1596
    %v6185 = vunpack.c.l.b16 %v1597
    %v6186 = vunpack.c.h.b16 %v1597
    %v6187 = vunpack.c.l.b16 %v1598
    %v6188 = vunpack.c.h.b16 %v1598
    %v6189 = vunpack.c.l.b16 %v1599
    %v6190 = vunpack.c.h.b16 %v1599
    %v6191 = vunpack.c.l.b16 %v1600
    %v6192 = vunpack.c.h.b16 %v1600
    %v6193 = vunpack.c.l.b16 %v1601
    %v6194 = vunpack.c.h.b16 %v1601
    %v6195 = vunpack.c.l.b16 %v1602
    %v6196 = vunpack.c.h.b16 %v1602
    %v6197 = vunpack.c.l.b16 %v1603
    %v6198 = vunpack.c.h.b16 %v1603
    %v6199 = vunpack.c.l.b16 %v1604
    %v6200 = vunpack.c.h.b16 %v1604
    %v6201 = vunpack.c.l.b16 %v1605
    %v6202 = vunpack.c.h.b16 %v1605
    %v6203 = vunpack.c.l.b16 %v1606
    %v6204 = vunpack.c.h.b16 %v1606
    %v6205 = vunpack.c.l.b16 %v1607
    %v6206 = vunpack.c.h.b16 %v1607
    %v6207 = vunpack.c.l.b16 %v1608
    %v6208 = vunpack.c.h.b16 %v1608
    %v6209 = vunpack.c.l.b16 %v1609
    %v6210 = vunpack.c.h.b16 %v1609
    %v6211 = vunpack.c.l.b16 %v1610
    %v6212 = vunpack.c.h.b16 %v1610
    %v6213 = vunpack.c.l.b16 %v1611
    %v6214 = vunpack.c.h.b16 %v1611
    %v6215 = vunpack.c.l.b16 %v1612
    %v6216 = vunpack.c.h.b16 %v1612
    %v6217 = vunpack.c.l.b16 %v1613
    %v6218 = vunpack.c.h.b16 %v1613
    %v6219 = vunpack.c.l.b16 %v1614
    %v6220 = vunpack.c.h.b16 %v1614
    %v6221 = vunpack.c.l.b16 %v1615
    %v6222 = vunpack.c.h.b16 %v1615
    %v6223 = vunpack.c.l.b16 %v1616
    %v6224 = vunpack.c.h.b16 %v1616
    %v6225 = vunpack.c.l.b16 %v1617
    %v6226 = vunpack.c.h.b16 %v1617
    %v6227 = vunpack.c.l.b16 %v1618
    %v6228 = vunpack.c.h.b16 %v1618
    %v6229 = vunpack.c.l.b16 %v1619
    %v6230 = vunpack.c.h.b16 %v1619
    %v6231 = vunpack.c.l.b16 %v1620
    %v6232 = vunpack.c.h.b16 %v1620
    %v6233 = vunpack.c.l.b16 %v1621
    %v6234 = vunpack.c.h.b16 %v1621
    %v6235 = vunpack.c.l.b16 %v1622
    %v6236 = vunpack.c.h.b16 %v1622
    %v6237 = vunpack.c.l.b16 %v1623
    %v6238 = vunpack.c.h.b16 %v1623
    %v6239 = vunpack.c.l.b16 %v1624
    %v6240 = vunpack.c.h.b16 %v1624
    %v6241 = vunpack.c.l.b16 %v1625
    %v6242 = vunpack.c.h.b16 %v1625
    %v6243 = vunpack.c.l.b16 %v1626
    %v6244 = vunpack.c.h.b16 %v1626
    %v6245 = vunpack.c.l.b16 %v1627
    %v6246 = vunpack.c.h.b16 %v1627
    %v6247 = vunpack.c.l.b16 %v1628
    %v6248 = vunpack.c.h.b16 %v1628
    %v6249 = vunpack.c.l.b16 %v1629
    %v6250 = vunpack.c.h.b16 %v1629
    %v6251 = vunpack.c.l.b16 %v1630
    %v6252 = vunpack.c.h.b16 %v1630
    %v6253 = vunpack.c.l.b16 %v1631
    %v6254 = vunpack.c.h.b16 %v1631
    %v6255 = vunpack.c.l.b16 %v1632
    %v6256 = vunpack.c.h.b16 %v1632
    %v6257 = vunpack.c.l.b16 %v1633
    %v6258 = vunpack.c.h.b16 %v1633
    %v6259 = vunpack.c.l.b16 %v1634
    %v6260 = vunpack.c.h.b16 %v1634
    %v6261 = vunpack.c.l.b16 %v1635
    %v6262 = vunpack.c.h.b16 %v1635
    %v6263 = vunpack.c.l.b16 %v1636
    %v6264 = vunpack.c.h.b16 %v1636
    %v6265 = vunpack.c.l.b16 %v1637
    %v6266 = vunpack.c.h.b16 %v1637
    %v6267 = vunpack.c.l.b16 %v1638
    %v6268 = vunpack.c.h.b16 %v1638
    %v6269 = vunpack.c.l.b16 %v1639
    %v6270 = vunpack.c.h.b16 %v1639
    %v6271 = vunpack.c.l.b16 %v1640
    %v6272 = vunpack.c.h.b16 %v1640
    %v6273 = vunpack.c.l.b16 %v1641
    %v6274 = vunpack.c.h.b16 %v1641
    %v6275 = vunpack.c.l.b16 %v1642
    %v6276 = vunpack.c.h.b16 %v1642
    %v6277 = vunpack.c.l.b16 %v1643
    %v6278 = vunpack.c.h.b16 %v1643
    %v6279 = vunpack.c.l.b16 %v1644
    %v6280 = vunpack.c.h.b16 %v1644
    %v6281 = vunpack.c.l.b16 %v1645
    %v6282 = vunpack.c.h.b16 %v1645
    %v6283 = vunpack.c.l.b16 %v1646
    %v6284 = vunpack.c.h.b16 %v1646
    %v6285 = vunpack.c.l.b16 %v1647
    %v6286 = vunpack.c.h.b16 %v1647
    %v6287 = vunpack.c.l.b16 %v1648
    %v6288 = vunpack.c.h.b16 %v1648
    %v6289 = vunpack.c.l.b16 %v1649
    %v6290 = vunpack.c.h.b16 %v1649
    %v6291 = vunpack.c.l.b16 %v1650
    %v6292 = vunpack.c.h.b16 %v1650
    %v6293 = vunpack.c.l.b16 %v1651
    %v6294 = vunpack.c.h.b16 %v1651
    %v6295 = vunpack.c.l.b16 %v1652
    %v6296 = vunpack.c.h.b16 %v1652
    %v6297 = vunpack.c.l.b16 %v1653
    %v6298 = vunpack.c.h.b16 %v1653
    %v6299 = vunpack.c.l.b16 %v1654
    %v6300 = vunpack.c.h.b16 %v1654
    %v6301 = vunpack.c.l.b16 %v1655
    %v6302 = vunpack.c.h.b16 %v1655
    %v6303 = vunpack.c.l.b16 %v1656
    %v6304 = vunpack.c.h.b16 %v1656
    %v6305 = vunpack.c.l.b16 %v1657
    %v6306 = vunpack.c.h.b16 %v1657
    %v6307 = vunpack.c.l.b16 %v1658
    %v6308 = vunpack.c.h.b16 %v1658
    %v6309 = vunpack.c.l.b16 %v1659
    %v6310 = vunpack.c.h.b16 %v1659
    %v6311 = vunpack.c.l.b16 %v1660
    %v6312 = vunpack.c.h.b16 %v1660
    %v6313 = vunpack.c.l.b16 %v1661
    %v6314 = vunpack.c.h.b16 %v1661
    %v6315 = vunpack.c.l.b16 %v1662
    %v6316 = vunpack.c.h.b16 %v1662
    %v6317 = vunpack.c.l.b16 %v1663
    %v6318 = vunpack.c.h.b16 %v1663
    %v6319 = vunpack.c.l.b16 %v1664
    %v6320 = vunpack.c.h.b16 %v1664
    %v6321 = vunpack.c.l.b16 %v1665
    %v6322 = vunpack.c.h.b16 %v1665
    %v6323 = vunpack.c.l.b16 %v1666
    %v6324 = vunpack.c.h.b16 %v1666
    %v6325 = vunpack.c.l.b16 %v1667
    %v6326 = vunpack.c.h.b16 %v1667
    %v6327 = vunpack.c.l.b16 %v1668
    %v6328 = vunpack.c.h.b16 %v1668
    %v6329 = vunpack.c.l.b16 %v1669
    %v6330 = vunpack.c.h.b16 %v1669
    %v6331 = vunpack.c.l.b16 %v1670
    %v6332 = vunpack.c.h.b16 %v1670
    %v6333 = vunpack.c.l.b16 %v1671
    %v6334 = vunpack.c.h.b16 %v1671
    %v6335 = vunpack.c.l.b16 %v1672
    %v6336 = vunpack.c.h.b16 %v1672
    %v6337 = vunpack.c.l.b16 %v1673
    %v6338 = vunpack.c.h.b16 %v1673
    %v6339 = vunpack.c.l.b16 %v1674
    %v6340 = vunpack.c.h.b16 %v1674
    %v6341 = vunpack.c.l.b16 %v1675
    %v6342 = vunpack.c.h.b16 %v1675
    %v6343 = vunpack.c.l.b16 %v1676
    %v6344 = vunpack.c.h.b16 %v1676
    %v6345 = vunpack.c.l.b16 %v1677
    %v6346 = vunpack.c.h.b16 %v1677
    %v6347 = vunpack.c.l.b16 %v1678
    %v6348 = vunpack.c.h.b16 %v1678
    %v6349 = vunpack.c.l.b16 %v1679
    %v6350 = vunpack.c.h.b16 %v1679
    %v6351 = vunpack.c.l.b16 %v1680
    %v6352 = vunpack.c.h.b16 %v1680
    %v6353 = vunpack.c.l.b16 %v1681
    %v6354 = vunpack.c.h.b16 %v1681
    %v6355 = vunpack.c.l.b16 %v1682
    %v6356 = vunpack.c.h.b16 %v1682
    %v6357 = vunpack.c.l.b16 %v1683
    %v6358 = vunpack.c.h.b16 %v1683
    %v6359 = vunpack.c.l.b16 %v1684
    %v6360 = vunpack.c.h.b16 %v1684
    %v6361 = vunpack.c.l.b16 %v1685
    %v6362 = vunpack.c.h.b16 %v1685
    %v6363 = vunpack.c.l.b16 %v1686
    %v6364 = vunpack.c.h.b16 %v1686
    %v6365 = vunpack.c.l.b16 %v1687
    %v6366 = vunpack.c.h.b16 %v1687
    %v6367 = vunpack.c.l.b16 %v1688
    %v6368 = vunpack.c.h.b16 %v1688
    %v6369 = vunpack.c.l.b16 %v1689
    %v6370 = vunpack.c.h.b16 %v1689
    %v6371 = vunpack.c.l.b16 %v1690
    %v6372 = vunpack.c.h.b16 %v1690
    %v6373 = vunpack.c.l.b16 %v1691
    %v6374 = vunpack.c.h.b16 %v1691
    %v6375 = vunpack.c.l.b16 %v1692
    %v6376 = vunpack.c.h.b16 %v1692
    %v6377 = vunpack.c.l.b16 %v1693
    %v6378 = vunpack.c.h.b16 %v1693
    %v6379 = vunpack.c.l.b16 %v1694
    %v6380 = vunpack.c.h.b16 %v1694
    %v6381 = vunpack.c.l.b16 %v1695
    %v6382 = vunpack.c.h.b16 %v1695
    %v6383 = vunpack.c.l.b16 %v1696
    %v6384 = vunpack.c.h.b16 %v1696
    %v6385 = vunpack.c.l.b16 %v1697
    %v6386 = vunpack.c.h.b16 %v1697
    %v6387 = vunpack.c.l.b16 %v1698
    %v6388 = vunpack.c.h.b16 %v1698
    %v6389 = vunpack.c.l.b16 %v1699
    %v6390 = vunpack.c.h.b16 %v1699
    %v6391 = vunpack.c.l.b16 %v1700
    %v6392 = vunpack.c.h.b16 %v1700
    %v6393 = vunpack.c.l.b16 %v1701
    %v6394 = vunpack.c.h.b16 %v1701
    %v6395 = vunpack.c.l.b16 %v1702
    %v6396 = vunpack.c.h.b16 %v1702
    %v6397 = vunpack.c.l.b16 %v1703
    %v6398 = vunpack.c.h.b16 %v1703
    %v6399 = vunpack.c.l.b16 %v1704
    %v6400 = vunpack.c.h.b16 %v1704
    %v6401 = vunpack.c.l.b16 %v1705
    %v6402 = vunpack.c.h.b16 %v1705
    %v6403 = vunpack.c.l.b16 %v1706
    %v6404 = vunpack.c.h.b16 %v1706
    %v6405 = vunpack.c.l.b16 %v1707
    %v6406 = vunpack.c.h.b16 %v1707
    %v6407 = vunpack.c.l.b16 %v1708
    %v6408 = vunpack.c.h.b16 %v1708
    %v6409 = vunpack.c.l.b16 %v1709
    %v6410 = vunpack.c.h.b16 %v1709
    %v6411 = vunpack.c.l.b16 %v1710
    %v6412 = vunpack.c.h.b16 %v1710
    %v6413 = vunpack.c.l.b16 %v1711
    %v6414 = vunpack.c.h.b16 %v1711
    %v6415 = vunpack.c.l.b16 %v1712
    %v6416 = vunpack.c.h.b16 %v1712
    %v6417 = vunpack.c.l.b16 %v1713
    %v6418 = vunpack.c.h.b16 %v1713
    %v6419 = vunpack.c.l.b16 %v1714
    %v6420 = vunpack.c.h.b16 %v1714
    %v6421 = vunpack.c.l.b16 %v1715
    %v6422 = vunpack.c.h.b16 %v1715
    %v6423 = vunpack.c.l.b16 %v1716
    %v6424 = vunpack.c.h.b16 %v1716
    %v6425 = vunpack.c.l.b16 %v1717
    %v6426 = vunpack.c.h.b16 %v1717
    %v6427 = vunpack.c.l.b16 %v1718
    %v6428 = vunpack.c.h.b16 %v1718
    %v6429 = vunpack.c.l.b16 %v1719
    %v6430 = vunpack.c.h.b16 %v1719
    %v6431 = vunpack.c.l.b16 %v1720
    %v6432 = vunpack.c.h.b16 %v1720
    %v6433 = vunpack.c.l.b16 %v1721
    %v6434 = vunpack.c.h.b16 %v1721
    %v6435 = vunpack.c.l.b16 %v1722
    %v6436 = vunpack.c.h.b16 %v1722
    %v6437 = vunpack.c.l.b16 %v1723
    %v6438 = vunpack.c.h.b16 %v1723
    %v6439 = vunpack.c.l.b16 %v1724
    %v6440 = vunpack.c.h.b16 %v1724
    %v6441 = vunpack.c.l.b16 %v1725
    %v6442 = vunpack.c.h.b16 %v1725
    %v6443 = vunpack.c.l.b16 %v1726
    %v6444 = vunpack.c.h.b16 %v1726
    %v6445 = vunpack.c.l.b16 %v1727
    %v6446 = vunpack.c.h.b16 %v1727
    %v6447 = vunpack.c.l.b16 %v1728
    %v6448 = vunpack.c.h.b16 %v1728
    %v6449 = vunpack.c.l.b16 %v1729
    %v6450 = vunpack.c.h.b16 %v1729
    %v6451 = vunpack.c.l.b16 %v1730
    %v6452 = vunpack.c.h.b16 %v1730
    %v6453 = vpack.c.b16 %v3325, %v3317
    %v6454 = vpack.c.b16 %v3326, %v3318
    %v6455 = vpack.c.b16 %v3327, %v3319
    %v6456 = vpack.c.b16 %v3328, %v3320
    %v6457 = vpack.c.b16 %v3329, %v3321
    %v6458 = vpack.c.b16 %v3330, %v3322
    %v6459 = vpack.c.b16 %v3331, %v3323
    %v6460 = vpack.c.b16 %v3332, %v3324
    %v6461 = vpack.c.b16 %v3341, %v3333
    %v6462 = vpack.c.b16 %v3342, %v3334
    %v6463 = vpack.c.b16 %v3343, %v3335
    %v6464 = vpack.c.b16 %v3344, %v3336
    %v6465 = vpack.c.b16 %v3345, %v3337
    %v6466 = vpack.c.b16 %v3346, %v3338
    %v6467 = vpack.c.b16 %v3347, %v3339
    %v6468 = vpack.c.b16 %v3348, %v3340
    %v6469 = vpack.c.b16 %v3357, %v3349
    %v6470 = vpack.c.b16 %v3358, %v3350
    %v6471 = vpack.c.b16 %v3359, %v3351
    %v6472 = vpack.c.b16 %v3360, %v3352
    %v6473 = vpack.c.b16 %v3361, %v3353
    %v6474 = vpack.c.b16 %v3362, %v3354
    %v6475 = vpack.c.b16 %v3363, %v3355
    %v6476 = vpack.c.b16 %v3364, %v3356
    %v6477 = vpack.c.b16 %v3373, %v3365
    %v6478 = vpack.c.b16 %v3374, %v3366
    %v6479 = vpack.c.b16 %v3375, %v3367
    %v6480 = vpack.c.b16 %v3376, %v3368
    %v6481 = vpack.c.b16 %v3377, %v3369
    %v6482 = vpack.c.b16 %v3378, %v3370
    %v6483 = vpack.c.b16 %v3379, %v3371
    %v6484 = vpack.c.b16 %v3380, %v3372
    %v6485 = vpack.c.b16 %v3389, %v3381
    %v6486 = vpack.c.b16 %v3390, %v3382
    %v6487 = vpack.c.b16 %v3391, %v3383
    %v6488 = vpack.c.b16 %v3392, %v3384
    %v6489 = vpack.c.b16 %v3393, %v3385
    %v6490 = vpack.c.b16 %v3394, %v3386
    %v6491 = vpack.c.b16 %v3395, %v3387
    %v6492 = vpack.c.b16 %v3396, %v3388
    %v6493 = vpack.c.b16 %v3405, %v3397
    %v6494 = vpack.c.b16 %v3406, %v3398
    %v6495 = vpack.c.b16 %v3407, %v3399
    %v6496 = vpack.c.b16 %v3408, %v3400
    %v6497 = vpack.c.b16 %v3409, %v3401
    %v6498 = vpack.c.b16 %v3410, %v3402
    %v6499 = vpack.c.b16 %v3411, %v3403
    %v6500 = vpack.c.b16 %v3412, %v3404
    %v6501 = vpack.c.b16 %v3421, %v3413
    %v6502 = vpack.c.b16 %v3422, %v3414
    %v6503 = vpack.c.b16 %v3423, %v3415
    %v6504 = vpack.c.b16 %v3424, %v3416
    %v6505 = vpack.c.b16 %v3425, %v3417
    %v6506 = vpack.c.b16 %v3426, %v3418
    %v6507 = vpack.c.b16 %v3427, %v3419
    %v6508 = vpack.c.b16 %v3428, %v3420
    %v6509 = vpack.c.b16 %v3437, %v3429
    %v6510 = vpack.c.b16 %v3438, %v3430
    %v6511 = vpack.c.b16 %v3439, %v3431
    %v6512 = vpack.c.b16 %v3440, %v3432
    %v6513 = vpack.c.b16 %v3441, %v3433
    %v6514 = vpack.c.b16 %v3442, %v3434
    %v6515 = vpack.c.b16 %v3443, %v3435
    %v6516 = vpack.c.b16 %v3444, %v3436
    %v6517 = vpack.c.b16 %v3453, %v3445
    %v6518 = vpack.c.b16 %v3454, %v3446
    %v6519 = vpack.c.b16 %v3455, %v3447
    %v6520 = vpack.c.b16 %v3456, %v3448
    %v6521 = vpack.c.b16 %v3457, %v3449
    %v6522 = vpack.c.b16 %v3458, %v3450
    %v6523 = vpack.c.b16 %v3459, %v3451
    %v6524 = vpack.c.b16 %v3460, %v3452
    %v6525 = vpack.c.b16 %v3469, %v3461
    %v6526 = vpack.c.b16 %v3470, %v3462
    %v6527 = vpack.c.b16 %v3471, %v3463
    %v6528 = vpack.c.b16 %v3472, %v3464
    %v6529 = vpack.c.b16 %v3473, %v3465
    %v6530 = vpack.c.b16 %v3474, %v3466
    %v6531 = vpack.c.b16 %v3475, %v3467
    %v6532 = vpack.c.b16 %v3476, %v3468
    %v6533 = vpack.c.b16 %v3485, %v3477
    %v6534 = vpack.c.b16 %v3486, %v3478
    %v6535 = vpack.c.b16 %v3487, %v3479
    %v6536 = vpack.c.b16 %v3488, %v3480
    %v6537 = vpack.c.b16 %v3489, %v3481
    %v6538 = vpack.c.b16 %v3490, %v3482
    %v6539 = vpack.c.b16 %v3491, %v3483
    %v6540 = vpack.c.b16 %v3492, %v3484
    %v6541 = vpack.c.b16 %v3501, %v3493
    %v6542 = vpack.c.b16 %v3502, %v3494
    %v6543 = vpack.c.b16 %v3503, %v3495
    %v6544 = vpack.c.b16 %v3504, %v3496
    %v6545 = vpack.c.b16 %v3505, %v3497
    %v6546 = vpack.c.b16 %v3506, %v3498
    %v6547 = vpack.c.b16 %v3507, %v3499
    %v6548 = vpack.c.b16 %v3508, %v3500
    %v6549 = vpack.c.b16 %v3517, %v3509
    %v6550 = vpack.c.b16 %v3518, %v3510
    %v6551 = vpack.c.b16 %v3519, %v3511
    %v6552 = vpack.c.b16 %v3520, %v3512
    %v6553 = vpack.c.b16 %v3521, %v3513
    %v6554 = vpack.c.b16 %v3522, %v3514
    %v6555 = vpack.c.b16 %v3523, %v3515
    %v6556 = vpack.c.b16 %v3524, %v3516
    %v6557 = vpack.c.b16 %v3533, %v3525
    %v6558 = vpack.c.b16 %v3534, %v3526
    %v6559 = vpack.c.b16 %v3535, %v3527
    %v6560 = vpack.c.b16 %v3536, %v3528
    %v6561 = vpack.c.b16 %v3537, %v3529
    %v6562 = vpack.c.b16 %v3538, %v3530
    %v6563 = vpack.c.b16 %v3539, %v3531
    %v6564 = vpack.c.b16 %v3540, %v3532
    %v6565 = vpack.c.b16 %v3549, %v3541
    %v6566 = vpack.c.b16 %v3550, %v3542
    %v6567 = vpack.c.b16 %v3551, %v3543
    %v6568 = vpack.c.b16 %v3552, %v3544
    %v6569 = vpack.c.b16 %v3553, %v3545
    %v6570 = vpack.c.b16 %v3554, %v3546
    %v6571 = vpack.c.b16 %v3555, %v3547
    %v6572 = vpack.c.b16 %v3556, %v3548
    %v6573 = vpack.c.b16 %v3565, %v3557
    %v6574 = vpack.c.b16 %v3566, %v3558
    %v6575 = vpack.c.b16 %v3567, %v3559
    %v6576 = vpack.c.b16 %v3568, %v3560
    %v6577 = vpack.c.b16 %v3569, %v3561
    %v6578 = vpack.c.b16 %v3570, %v3562
    %v6579 = vpack.c.b16 %v3571, %v3563
    %v6580 = vpack.c.b16 %v3572, %v3564
    %v6581 = vpack.c.b16 %v3581, %v3573
    %v6582 = vpack.c.b16 %v3582, %v3574
    %v6583 = vpack.c.b16 %v3583, %v3575
    %v6584 = vpack.c.b16 %v3584, %v3576
    %v6585 = vpack.c.b16 %v3585, %v3577
    %v6586 = vpack.c.b16 %v3586, %v3578
    %v6587 = vpack.c.b16 %v3587, %v3579
    %v6588 = vpack.c.b16 %v3588, %v3580
    %v6589 = vpack.c.b16 %v3597, %v3589
    %v6590 = vpack.c.b16 %v3598, %v3590
    %v6591 = vpack.c.b16 %v3599, %v3591
    %v6592 = vpack.c.b16 %v3600, %v3592
    %v6593 = vpack.c.b16 %v3601, %v3593
    %v6594 = vpack.c.b16 %v3602, %v3594
    %v6595 = vpack.c.b16 %v3603, %v3595
    %v6596 = vpack.c.b16 %v3604, %v3596
    %v6597 = vpack.c.b16 %v3613, %v3605
    %v6598 = vpack.c.b16 %v3614, %v3606
    %v6599 = vpack.c.b16 %v3615, %v3607
    %v6600 = vpack.c.b16 %v3616, %v3608
    %v6601 = vpack.c.b16 %v3617, %v3609
    %v6602 = vpack.c.b16 %v3618, %v3610
    %v6603 = vpack.c.b16 %v3619, %v3611
    %v6604 = vpack.c.b16 %v3620, %v3612
    %v6605 = vpack.c.b16 %v3629, %v3621
    %v6606 = vpack.c.b16 %v3630, %v3622
    %v6607 = vpack.c.b16 %v3631, %v3623
    %v6608 = vpack.c.b16 %v3632, %v3624
    %v6609 = vpack.c.b16 %v3633, %v3625
    %v6610 = vpack.c.b16 %v3634, %v3626
    %v6611 = vpack.c.b16 %v3635, %v3627
    %v6612 = vpack.c.b16 %v3636, %v3628
    %v6613 = vpack.c.b16 %v3645, %v3637
    %v6614 = vpack.c.b16 %v3646, %v3638
    %v6615 = vpack.c.b16 %v3647, %v3639
    %v6616 = vpack.c.b16 %v3648, %v3640
    %v6617 = vpack.c.b16 %v3649, %v3641
    %v6618 = vpack.c.b16 %v3650, %v3642
    %v6619 = vpack.c.b16 %v3651, %v3643
    %v6620 = vpack.c.b16 %v3652, %v3644
    %v6621 = vpack.c.b16 %v3661, %v3653
    %v6622 = vpack.c.b16 %v3662, %v3654
    %v6623 = vpack.c.b16 %v3663, %v3655
    %v6624 = vpack.c.b16 %v3664, %v3656
    %v6625 = vpack.c.b16 %v3665, %v3657
    %v6626 = vpack.c.b16 %v3666, %v3658
    %v6627 = vpack.c.b16 %v3667, %v3659
    %v6628 = vpack.c.b16 %v3668, %v3660
    %v6629 = vpack.c.b16 %v3677, %v3669
    %v6630 = vpack.c.b16 %v3678, %v3670
    %v6631 = vpack.c.b16 %v3679, %v3671
    %v6632 = vpack.c.b16 %v3680, %v3672
    %v6633 = vpack.c.b16 %v3681, %v3673
    %v6634 = vpack.c.b16 %v3682, %v3674
    %v6635 = vpack.c.b16 %v3683, %v3675
    %v6636 = vpack.c.b16 %v3684, %v3676
    %v6637 = vpack.c.b16 %v3693, %v3685
    %v6638 = vpack.c.b16 %v3694, %v3686
    %v6639 = vpack.c.b16 %v3695, %v3687
    %v6640 = vpack.c.b16 %v3696, %v3688
    %v6641 = vpack.c.b16 %v3697, %v3689
    %v6642 = vpack.c.b16 %v3698, %v3690
    %v6643 = vpack.c.b16 %v3699, %v3691
    %v6644 = vpack.c.b16 %v3700, %v3692
    %v6645 = vpack.c.b16 %v3709, %v3701
    %v6646 = vpack.c.b16 %v3710, %v3702
    %v6647 = vpack.c.b16 %v3711, %v3703
    %v6648 = vpack.c.b16 %v3712, %v3704
    %v6649 = vpack.c.b16 %v3713, %v3705
    %v6650 = vpack.c.b16 %v3714, %v3706
    %v6651 = vpack.c.b16 %v3715, %v3707
    %v6652 = vpack.c.b16 %v3716, %v3708
    %v6653 = vpack.c.b16 %v3725, %v3717
    %v6654 = vpack.c.b16 %v3726, %v3718
    %v6655 = vpack.c.b16 %v3727, %v3719
    %v6656 = vpack.c.b16 %v3728, %v3720
    %v6657 = vpack.c.b16 %v3729, %v3721
    %v6658 = vpack.c.b16 %v3730, %v3722
    %v6659 = vpack.c.b16 %v3731, %v3723
    %v6660 = vpack.c.b16 %v3732, %v3724
    %v6661 = vpack.c.b16 %v3741, %v3733
    %v6662 = vpack.c.b16 %v3742, %v3734
    %v6663 = vpack.c.b16 %v3743, %v3735
    %v6664 = vpack.c.b16 %v3744, %v3736
    %v6665 = vpack.c.b16 %v3745, %v3737
    %v6666 = vpack.c.b16 %v3746, %v3738
    %v6667 = vpack.c.b16 %v3747, %v3739
    %v6668 = vpack.c.b16 %v3748, %v3740
    %v6669 = vpack.c.b16 %v3757, %v3749
    %v6670 = vpack.c.b16 %v3758, %v3750
    %v6671 = vpack.c.b16 %v3759, %v3751
    %v6672 = vpack.c.b16 %v3760, %v3752
    %v6673 = vpack.c.b16 %v3761, %v3753
    %v6674 = vpack.c.b16 %v3762, %v3754
    %v6675 = vpack.c.b16 %v3763, %v3755
    %v6676 = vpack.c.b16 %v3764, %v3756
    %v6677 = vpack.c.b16 %v3773, %v3765
    %v6678 = vpack.c.b16 %v3774, %v3766
    %v6679 = vpack.c.b16 %v3775, %v3767
    %v6680 = vpack.c.b16 %v3776, %v3768
    %v6681 = vpack.c.b16 %v3777, %v3769
    %v6682 = vpack.c.b16 %v3778, %v3770
    %v6683 = vpack.c.b16 %v3779, %v3771
    %v6684 = vpack.c.b16 %v3780, %v3772
    %v6685 = vpack.c.b16 %v3789, %v3781
    %v6686 = vpack.c.b16 %v3790, %v3782
    %v6687 = vpack.c.b16 %v3791, %v3783
    %v6688 = vpack.c.b16 %v3792, %v3784
    %v6689 = vpack.c.b16 %v3793, %v3785
    %v6690 = vpack.c.b16 %v3794, %v3786
    %v6691 = vpack.c.b16 %v3795, %v3787
    %v6692 = vpack.c.b16 %v3796, %v3788
    %v6693 = vpack.c.b16 %v3805, %v3797
    %v6694 = vpack.c.b16 %v3806, %v3798
    %v6695 = vpack.c.b16 %v3807, %v3799
    %v6696 = vpack.c.b16 %v3808, %v3800
    %v6697 = vpack.c.b16 %v3809, %v3801
    %v6698 = vpack.c.b16 %v3810, %v3802
    %v6699 = vpack.c.b16 %v3811, %v3803
    %v6700 = vpack.c.b16 %v3812, %v3804
    %v6701 = vpack.c.b16 %v3821, %v3813
    %v6702 = vpack.c.b16 %v3822, %v3814
    %v6703 = vpack.c.b16 %v3823, %v3815
    %v6704 = vpack.c.b16 %v3824, %v3816
    %v6705 = vpack.c.b16 %v3825, %v3817
    %v6706 = vpack.c.b16 %v3826, %v3818
    %v6707 = vpack.c.b16 %v3827, %v3819
    %v6708 = vpack.c.b16 %v3828, %v3820
    %v6709 = vpack.c.b16 %v3837, %v3829
    %v6710 = vpack.c.b16 %v3838, %v3830
    %v6711 = vpack.c.b16 %v3839, %v3831
    %v6712 = vpack.c.b16 %v3840, %v3832
    %v6713 = vpack.c.b16 %v3841, %v3833
    %v6714 = vpack.c.b16 %v3842, %v3834
    %v6715 = vpack.c.b16 %v3843, %v3835
    %v6716 = vpack.c.b16 %v3844, %v3836
    %v6717 = vpack.c.b16 %v3853, %v3845
    %v6718 = vpack.c.b16 %v3854, %v3846
    %v6719 = vpack.c.b16 %v3855, %v3847
    %v6720 = vpack.c.b16 %v3856, %v3848
    %v6721 = vpack.c.b16 %v3857, %v3849
    %v6722 = vpack.c.b16 %v3858, %v3850
    %v6723 = vpack.c.b16 %v3859, %v3851
    %v6724 = vpack.c.b16 %v3860, %v3852
    %v6725 = vpack.c.b16 %v3869, %v3861
    %v6726 = vpack.c.b16 %v3870, %v3862
    %v6727 = vpack.c.b16 %v3871, %v3863
    %v6728 = vpack.c.b16 %v3872, %v3864
    %v6729 = vpack.c.b16 %v3873, %v3865
    %v6730 = vpack.c.b16 %v3874, %v3866
    %v6731 = vpack.c.b16 %v3875, %v3867
    %v6732 = vpack.c.b16 %v3876, %v3868
    %v6733 = vpack.c.b16 %v3885, %v3877
    %v6734 = vpack.c.b16 %v3886, %v3878
    %v6735 = vpack.c.b16 %v3887, %v3879
    %v6736 = vpack.c.b16 %v3888, %v3880
    %v6737 = vpack.c.b16 %v3889, %v3881
    %v6738 = vpack.c.b16 %v3890, %v3882
    %v6739 = vpack.c.b16 %v3891, %v3883
    %v6740 = vpack.c.b16 %v3892, %v3884
    %v6741 = vpack.c.b16 %v3901, %v3893
    %v6742 = vpack.c.b16 %v3902, %v3894
    %v6743 = vpack.c.b16 %v3903, %v3895
    %v6744 = vpack.c.b16 %v3904, %v3896
    %v6745 = vpack.c.b16 %v3905, %v3897
    %v6746 = vpack.c.b16 %v3906, %v3898
    %v6747 = vpack.c.b16 %v3907, %v3899
    %v6748 = vpack.c.b16 %v3908, %v3900
    %v6749 = vpack.c.b16 %v3917, %v3909
    %v6750 = vpack.c.b16 %v3918, %v3910
    %v6751 = vpack.c.b16 %v3919, %v3911
    %v6752 = vpack.c.b16 %v3920, %v3912
    %v6753 = vpack.c.b16 %v3921, %v3913
    %v6754 = vpack.c.b16 %v3922, %v3914
    %v6755 = vpack.c.b16 %v3923, %v3915
    %v6756 = vpack.c.b16 %v3924, %v3916
    %v6757 = vpack.c.b16 %v3933, %v3925
    %v6758 = vpack.c.b16 %v3934, %v3926
    %v6759 = vpack.c.b16 %v3935, %v3927
    %v6760 = vpack.c.b16 %v3936, %v3928
    %v6761 = vpack.c.b16 %v3937, %v3929
    %v6762 = vpack.c.b16 %v3938, %v3930
    %v6763 = vpack.c.b16 %v3939, %v3931
    %v6764 = vpack.c.b16 %v3940, %v3932
    %v6765 = vpack.c.b16 %v3949, %v3941
    %v6766 = vpack.c.b16 %v3950, %v3942
    %v6767 = vpack.c.b16 %v3951, %v3943
    %v6768 = vpack.c.b16 %v3952, %v3944
    %v6769 = vpack.c.b16 %v3953, %v3945
    %v6770 = vpack.c.b16 %v3954, %v3946
    %v6771 = vpack.c.b16 %v3955, %v3947
    %v6772 = vpack.c.b16 %v3956, %v3948
    %v6773 = vpack.c.b16 %v3965, %v3957
    %v6774 = vpack.c.b16 %v3966, %v3958
    %v6775 = vpack.c.b16 %v3967, %v3959
    %v6776 = vpack.c.b16 %v3968, %v3960
    %v6777 = vpack.c.b16 %v3969, %v3961
    %v6778 = vpack.c.b16 %v3970, %v3962
    %v6779 = vpack.c.b16 %v3971, %v3963
    %v6780 = vpack.c.b16 %v3972, %v3964
    %v6781 = vpack.c.b16 %v3981, %v3973
    %v6782 = vpack.c.b16 %v3982, %v3974
    %v6783 = vpack.c.b16 %v3983, %v3975
    %v6784 = vpack.c.b16 %v3984, %v3976
    %v6785 = vpack.c.b16 %v3985, %v3977
    %v6786 = vpack.c.b16 %v3986, %v3978
    %v6787 = vpack.c.b16 %v3987, %v3979
    %v6788 = vpack.c.b16 %v3988, %v3980
    %v6789 = vpack.c.b16 %v3997, %v3989
    %v6790 = vpack.c.b16 %v3998, %v3990
    %v6791 = vpack.c.b16 %v3999, %v3991
    %v6792 = vpack.c.b16 %v4000, %v3992
    %v6793 = vpack.c.b16 %v4001, %v3993
    %v6794 = vpack.c.b16 %v4002, %v3994
    %v6795 = vpack.c.b16 %v4003, %v3995
    %v6796 = vpack.c.b16 %v4004, %v3996
    %v6797 = vpack.c.b16 %v4013, %v4005
    %v6798 = vpack.c.b16 %v4014, %v4006
    %v6799 = vpack.c.b16 %v4015, %v4007
    %v6800 = vpack.c.b16 %v4016, %v4008
    %v6801 = vpack.c.b16 %v4017, %v4009
    %v6802 = vpack.c.b16 %v4018, %v4010
    %v6803 = vpack.c.b16 %v4019, %v4011
    %v6804 = vpack.c.b16 %v4020, %v4012
    %v6805 = vpack.c.b16 %v4029, %v4021
    %v6806 = vpack.c.b16 %v4030, %v4022
    %v6807 = vpack.c.b16 %v4031, %v4023
    %v6808 = vpack.c.b16 %v4032, %v4024
    %v6809 = vpack.c.b16 %v4033, %v4025
    %v6810 = vpack.c.b16 %v4034, %v4026
    %v6811 = vpack.c.b16 %v4035, %v4027
    %v6812 = vpack.c.b16 %v4036, %v4028
    %v6813 = vpack.c.b16 %v4045, %v4037
    %v6814 = vpack.c.b16 %v4046, %v4038
    %v6815 = vpack.c.b16 %v4047, %v4039
    %v6816 = vpack.c.b16 %v4048, %v4040
    %v6817 = vpack.c.b16 %v4049, %v4041
    %v6818 = vpack.c.b16 %v4050, %v4042
    %v6819 = vpack.c.b16 %v4051, %v4043
    %v6820 = vpack.c.b16 %v4052, %v4044
    %v6821 = vpack.c.b16 %v4061, %v4053
    %v6822 = vpack.c.b16 %v4062, %v4054
    %v6823 = vpack.c.b16 %v4063, %v4055
    %v6824 = vpack.c.b16 %v4064, %v4056
    %v6825 = vpack.c.b16 %v4065, %v4057
    %v6826 = vpack.c.b16 %v4066, %v4058
    %v6827 = vpack.c.b16 %v4067, %v4059
    %v6828 = vpack.c.b16 %v4068, %v4060
    %v6829 = vpack.c.b16 %v4077, %v4069
    %v6830 = vpack.c.b16 %v4078, %v4070
    %v6831 = vpack.c.b16 %v4079, %v4071
    %v6832 = vpack.c.b16 %v4080, %v4072
    %v6833 = vpack.c.b16 %v4081, %v4073
    %v6834 = vpack.c.b16 %v4082, %v4074
    %v6835 = vpack.c.b16 %v4083, %v4075
    %v6836 = vpack.c.b16 %v4084, %v4076
    %v6837 = vpack.c.b16 %v4093, %v4085
    %v6838 = vpack.c.b16 %v4094, %v4086
    %v6839 = vpack.c.b16 %v4095, %v4087
    %v6840 = vpack.c.b16 %v4096, %v4088
    %v6841 = vpack.c.b16 %v4097, %v4089
    %v6842 = vpack.c.b16 %v4098, %v4090
    %v6843 = vpack.c.b16 %v4099, %v4091
    %v6844 = vpack.c.b16 %v4100, %v4092
    %v6845 = vpack.c.b16 %v4109, %v4101
    %v6846 = vpack.c.b16 %v4110, %v4102
    %v6847 = vpack.c.b16 %v4111, %v4103
    %v6848 = vpack.c.b16 %v4112, %v4104
    %v6849 = vpack.c.b16 %v4113, %v4105
    %v6850 = vpack.c.b16 %v4114, %v4106
    %v6851 = vpack.c.b16 %v4115, %v4107
    %v6852 = vpack.c.b16 %v4116, %v4108
    %v6853 = vpack.c.b16 %v4125, %v4117
    %v6854 = vpack.c.b16 %v4126, %v4118
    %v6855 = vpack.c.b16 %v4127, %v4119
    %v6856 = vpack.c.b16 %v4128, %v4120
    %v6857 = vpack.c.b16 %v4129, %v4121
    %v6858 = vpack.c.b16 %v4130, %v4122
    %v6859 = vpack.c.b16 %v4131, %v4123
    %v6860 = vpack.c.b16 %v4132, %v4124
    %v6861 = vpack.c.b16 %v4141, %v4133
    %v6862 = vpack.c.b16 %v4142, %v4134
    %v6863 = vpack.c.b16 %v4143, %v4135
    %v6864 = vpack.c.b16 %v4144, %v4136
    %v6865 = vpack.c.b16 %v4145, %v4137
    %v6866 = vpack.c.b16 %v4146, %v4138
    %v6867 = vpack.c.b16 %v4147, %v4139
    %v6868 = vpack.c.b16 %v4148, %v4140
    %v6869 = vpack.c.b16 %v4157, %v4149
    %v6870 = vpack.c.b16 %v4158, %v4150
    %v6871 = vpack.c.b16 %v4159, %v4151
    %v6872 = vpack.c.b16 %v4160, %v4152
    %v6873 = vpack.c.b16 %v4161, %v4153
    %v6874 = vpack.c.b16 %v4162, %v4154
    %v6875 = vpack.c.b16 %v4163, %v4155
    %v6876 = vpack.c.b16 %v4164, %v4156
    %v6877 = vpack.c.b16 %v4173, %v4165
    %v6878 = vpack.c.b16 %v4174, %v4166
    %v6879 = vpack.c.b16 %v4175, %v4167
    %v6880 = vpack.c.b16 %v4176, %v4168
    %v6881 = vpack.c.b16 %v4177, %v4169
    %v6882 = vpack.c.b16 %v4178, %v4170
    %v6883 = vpack.c.b16 %v4179, %v4171
    %v6884 = vpack.c.b16 %v4180, %v4172
    %v6885 = vpack.c.b16 %v4189, %v4181
    %v6886 = vpack.c.b16 %v4190, %v4182
    %v6887 = vpack.c.b16 %v4191, %v4183
    %v6888 = vpack.c.b16 %v4192, %v4184
    %v6889 = vpack.c.b16 %v4193, %v4185
    %v6890 = vpack.c.b16 %v4194, %v4186
    %v6891 = vpack.c.b16 %v4195, %v4187
    %v6892 = vpack.c.b16 %v4196, %v4188
    %v6893 = vpack.c.b16 %v4205, %v4197
    %v6894 = vpack.c.b16 %v4206, %v4198
    %v6895 = vpack.c.b16 %v4207, %v4199
    %v6896 = vpack.c.b16 %v4208, %v4200
    %v6897 = vpack.c.b16 %v4209, %v4201
    %v6898 = vpack.c.b16 %v4210, %v4202
    %v6899 = vpack.c.b16 %v4211, %v4203
    %v6900 = vpack.c.b16 %v4212, %v4204
    %v6901 = vpack.c.b16 %v4221, %v4213
    %v6902 = vpack.c.b16 %v4222, %v4214
    %v6903 = vpack.c.b16 %v4223, %v4215
    %v6904 = vpack.c.b16 %v4224, %v4216
    %v6905 = vpack.c.b16 %v4225, %v4217
    %v6906 = vpack.c.b16 %v4226, %v4218
    %v6907 = vpack.c.b16 %v4227, %v4219
    %v6908 = vpack.c.b16 %v4228, %v4220
    %v6909 = vpack.c.b16 %v4237, %v4229
    %v6910 = vpack.c.b16 %v4238, %v4230
    %v6911 = vpack.c.b16 %v4239, %v4231
    %v6912 = vpack.c.b16 %v4240, %v4232
    %v6913 = vpack.c.b16 %v4241, %v4233
    %v6914 = vpack.c.b16 %v4242, %v4234
    %v6915 = vpack.c.b16 %v4243, %v4235
    %v6916 = vpack.c.b16 %v4244, %v4236
    %v6917 = vpack.c.b16 %v4253, %v4245
    %v6918 = vpack.c.b16 %v4254, %v4246
    %v6919 = vpack.c.b16 %v4255, %v4247
    %v6920 = vpack.c.b16 %v4256, %v4248
    %v6921 = vpack.c.b16 %v4257, %v4249
    %v6922 = vpack.c.b16 %v4258, %v4250
    %v6923 = vpack.c.b16 %v4259, %v4251
    %v6924 = vpack.c.b16 %v4260, %v4252
    %v6925 = vpack.c.b16 %v4269, %v4261
    %v6926 = vpack.c.b16 %v4270, %v4262
    %v6927 = vpack.c.b16 %v4271, %v4263
    %v6928 = vpack.c.b16 %v4272, %v4264
    %v6929 = vpack.c.b16 %v4273, %v4265
    %v6930 = vpack.c.b16 %v4274, %v4266
    %v6931 = vpack.c.b16 %v4275, %v4267
    %v6932 = vpack.c.b16 %v4276, %v4268
    %v6933 = vpack.c.b16 %v4285, %v4277
    %v6934 = vpack.c.b16 %v4286, %v4278
    %v6935 = vpack.c.b16 %v4287, %v4279
    %v6936 = vpack.c.b16 %v4288, %v4280
    %v6937 = vpack.c.b16 %v4289, %v4281
    %v6938 = vpack.c.b16 %v4290, %v4282
    %v6939 = vpack.c.b16 %v4291, %v4283
    %v6940 = vpack.c.b16 %v4292, %v4284
    %v6941 = vpack.c.b16 %v4301, %v4293
    %v6942 = vpack.c.b16 %v4302, %v4294
    %v6943 = vpack.c.b16 %v4303, %v4295
    %v6944 = vpack.c.b16 %v4304, %v4296
    %v6945 = vpack.c.b16 %v4305, %v4297
    %v6946 = vpack.c.b16 %v4306, %v4298
    %v6947 = vpack.c.b16 %v4307, %v4299
    %v6948 = vpack.c.b16 %v4308, %v4300
    %v6949 = vpack.c.b16 %v4317, %v4309
    %v6950 = vpack.c.b16 %v4318, %v4310
    %v6951 = vpack.c.b16 %v4319, %v4311
    %v6952 = vpack.c.b16 %v4320, %v4312
    %v6953 = vpack.c.b16 %v4321, %v4313
    %v6954 = vpack.c.b16 %v4322, %v4314
    %v6955 = vpack.c.b16 %v4323, %v4315
    %v6956 = vpack.c.b16 %v4324, %v4316
    %v6957 = vpack.c.b16 %v4333, %v4325
    %v6958 = vpack.c.b16 %v4334, %v4326
    %v6959 = vpack.c.b16 %v4335, %v4327
    %v6960 = vpack.c.b16 %v4336, %v4328
    %v6961 = vpack.c.b16 %v4337, %v4329
    %v6962 = vpack.c.b16 %v4338, %v4330
    %v6963 = vpack.c.b16 %v4339, %v4331
    %v6964 = vpack.c.b16 %v4340, %v4332
    %v6965 = vpack.c.b16 %v4349, %v4341
    %v6966 = vpack.c.b16 %v4350, %v4342
    %v6967 = vpack.c.b16 %v4351, %v4343
    %v6968 = vpack.c.b16 %v4352, %v4344
    %v6969 = vpack.c.b16 %v4353, %v4345
    %v6970 = vpack.c.b16 %v4354, %v4346
    %v6971 = vpack.c.b16 %v4355, %v4347
    %v6972 = vpack.c.b16 %v4356, %v4348
    %v6973 = vpack.c.b16 %v4365, %v4357
    %v6974 = vpack.c.b16 %v4366, %v4358
    %v6975 = vpack.c.b16 %v4367, %v4359
    %v6976 = vpack.c.b16 %v4368, %v4360
    %v6977 = vpack.c.b16 %v4369, %v4361
    %v6978 = vpack.c.b16 %v4370, %v4362
    %v6979 = vpack.c.b16 %v4371, %v4363
    %v6980 = vpack.c.b16 %v4372, %v4364
    %v6981 = vpack.c.b16 %v4381, %v4373
    %v6982 = vpack.c.b16 %v4382, %v4374
    %v6983 = vpack.c.b16 %v4383, %v4375
    %v6984 = vpack.c.b16 %v4384, %v4376
    %v6985 = vpack.c.b16 %v4385, %v4377
    %v6986 = vpack.c.b16 %v4386, %v4378
    %v6987 = vpack.c.b16 %v4387, %v4379
    %v6988 = vpack.c.b16 %v4388, %v4380
    %v6989 = vpack.c.b16 %v4397, %v4389
    %v6990 = vpack.c.b16 %v4398, %v4390
    %v6991 = vpack.c.b16 %v4399, %v4391
    %v6992 = vpack.c.b16 %v4400, %v4392
    %v6993 = vpack.c.b16 %v4401, %v4393
    %v6994 = vpack.c.b16 %v4402, %v4394
    %v6995 = vpack.c.b16 %v4403, %v4395
    %v6996 = vpack.c.b16 %v4404, %v4396
    %v6997 = vpack.c.b16 %v4413, %v4405
    %v6998 = vpack.c.b16 %v4414, %v4406
    %v6999 = vpack.c.b16 %v4415, %v4407
    %v7000 = vpack.c.b16 %v4416, %v4408
    %v7001 = vpack.c.b16 %v4417, %v4409
    %v7002 = vpack.c.b16 %v4418, %v4410
    %v7003 = vpack.c.b16 %v4419, %v4411
    %v7004 = vpack.c.b16 %v4420, %v4412
    %v7005 = vpack.c.b16 %v4429, %v4421
    %v7006 = vpack.c.b16 %v4430, %v4422
    %v7007 = vpack.c.b16 %v4431, %v4423
    %v7008 = vpack.c.b16 %v4432, %v4424
    %v7009 = vpack.c.b16 %v4433, %v4425
    %v7010 = vpack.c.b16 %v4434, %v4426
    %v7011 = vpack.c.b16 %v4435, %v4427
    %v7012 = vpack.c.b16 %v4436, %v4428
    %v7013 = vpack.c.b16 %v4445, %v4437
    %v7014 = vpack.c.b16 %v4446, %v4438
    %v7015 = vpack.c.b16 %v4447, %v4439
    %v7016 = vpack.c.b16 %v4448, %v4440
    %v7017 = vpack.c.b16 %v4449, %v4441
    %v7018 = vpack.c.b16 %v4450, %v4442
    %v7019 = vpack.c.b16 %v4451, %v4443
    %v7020 = vpack.c.b16 %v4452, %v4444
    %v7021 = vpack.c.b16 %v4461, %v4453
    %v7022 = vpack.c.b16 %v4462, %v4454
    %v7023 = vpack.c.b16 %v4463, %v4455
    %v7024 = vpack.c.b16 %v4464, %v4456
    %v7025 = vpack.c.b16 %v4465, %v4457
    %v7026 = vpack.c.b16 %v4466, %v4458
    %v7027 = vpack.c.b16 %v4467, %v4459
    %v7028 = vpack.c.b16 %v4468, %v4460
    %v7029 = vpack.c.b16 %v4477, %v4469
    %v7030 = vpack.c.b16 %v4478, %v4470
    %v7031 = vpack.c.b16 %v4479, %v4471
    %v7032 = vpack.c.b16 %v4480, %v4472
    %v7033 = vpack.c.b16 %v4481, %v4473
    %v7034 = vpack.c.b16 %v4482, %v4474
    %v7035 = vpack.c.b16 %v4483, %v4475
    %v7036 = vpack.c.b16 %v4484, %v4476
    %v7037 = vpack.c.b16 %v4493, %v4485
    %v7038 = vpack.c.b16 %v4494, %v4486
    %v7039 = vpack.c.b16 %v4495, %v4487
    %v7040 = vpack.c.b16 %v4496, %v4488
    %v7041 = vpack.c.b16 %v4497, %v4489
    %v7042 = vpack.c.b16 %v4498, %v4490
    %v7043 = vpack.c.b16 %v4499, %v4491
    %v7044 = vpack.c.b16 %v4500, %v4492
    %v7045 = vpack.c.b16 %v4509, %v4501
    %v7046 = vpack.c.b16 %v4510, %v4502
    %v7047 = vpack.c.b16 %v4511, %v4503
    %v7048 = vpack.c.b16 %v4512, %v4504
    %v7049 = vpack.c.b16 %v4513, %v4505
    %v7050 = vpack.c.b16 %v4514, %v4506
    %v7051 = vpack.c.b16 %v4515, %v4507
    %v7052 = vpack.c.b16 %v4516, %v4508
    %v7053 = vpack.c.b16 %v4525, %v4517
    %v7054 = vpack.c.b16 %v4526, %v4518
    %v7055 = vpack.c.b16 %v4527, %v4519
    %v7056 = vpack.c.b16 %v4528, %v4520
    %v7057 = vpack.c.b16 %v4529, %v4521
    %v7058 = vpack.c.b16 %v4530, %v4522
    %v7059 = vpack.c.b16 %v4531, %v4523
    %v7060 = vpack.c.b16 %v4532, %v4524
    %v7061 = vpack.c.b16 %v4541, %v4533
    %v7062 = vpack.c.b16 %v4542, %v4534
    %v7063 = vpack.c.b16 %v4543, %v4535
    %v7064 = vpack.c.b16 %v4544, %v4536
    %v7065 = vpack.c.b16 %v4545, %v4537
    %v7066 = vpack.c.b16 %v4546, %v4538
    %v7067 = vpack.c.b16 %v4547, %v4539
    %v7068 = vpack.c.b16 %v4548, %v4540
    %v7069 = vpack.c.b16 %v4557, %v4549
    %v7070 = vpack.c.b16 %v4558, %v4550
    %v7071 = vpack.c.b16 %v4559, %v4551
    %v7072 = vpack.c.b16 %v4560, %v4552
    %v7073 = vpack.c.b16 %v4561, %v4553
    %v7074 = vpack.c.b16 %v4562, %v4554
    %v7075 = vpack.c.b16 %v4563, %v4555
    %v7076 = vpack.c.b16 %v4564, %v4556
    %v7077 = vpack.c.b16 %v4573, %v4565
    %v7078 = vpack.c.b16 %v4574, %v4566
    %v7079 = vpack.c.b16 %v4575, %v4567
    %v7080 = vpack.c.b16 %v4576, %v4568
    %v7081 = vpack.c.b16 %v4577, %v4569
    %v7082 = vpack.c.b16 %v4578, %v4570
    %v7083 = vpack.c.b16 %v4579, %v4571
    %v7084 = vpack.c.b16 %v4580, %v4572
    %v7085 = vpack.c.b16 %v4589, %v4581
    %v7086 = vpack.c.b16 %v4590, %v4582
    %v7087 = vpack.c.b16 %v4591, %v4583
    %v7088 = vpack.c.b16 %v4592, %v4584
    %v7089 = vpack.c.b16 %v4593, %v4585
    %v7090 = vpack.c.b16 %v4594, %v4586
    %v7091 = vpack.c.b16 %v4595, %v4587
    %v7092 = vpack.c.b16 %v4596, %v4588
    %v7093 = vpack.c.b16 %v4605, %v4597
    %v7094 = vpack.c.b16 %v4606, %v4598
    %v7095 = vpack.c.b16 %v4607, %v4599
    %v7096 = vpack.c.b16 %v4608, %v4600
    %v7097 = vpack.c.b16 %v4609, %v4601
    %v7098 = vpack.c.b16 %v4610, %v4602
    %v7099 = vpack.c.b16 %v4611, %v4603
    %v7100 = vpack.c.b16 %v4612, %v4604
    %v7101 = vpack.c.b16 %v4621, %v4613
    %v7102 = vpack.c.b16 %v4622, %v4614
    %v7103 = vpack.c.b16 %v4623, %v4615
    %v7104 = vpack.c.b16 %v4624, %v4616
    %v7105 = vpack.c.b16 %v4625, %v4617
    %v7106 = vpack.c.b16 %v4626, %v4618
    %v7107 = vpack.c.b16 %v4627, %v4619
    %v7108 = vpack.c.b16 %v4628, %v4620
    %v7109 = vpack.c.b16 %v4637, %v4629
    %v7110 = vpack.c.b16 %v4638, %v4630
    %v7111 = vpack.c.b16 %v4639, %v4631
    %v7112 = vpack.c.b16 %v4640, %v4632
    %v7113 = vpack.c.b16 %v4641, %v4633
    %v7114 = vpack.c.b16 %v4642, %v4634
    %v7115 = vpack.c.b16 %v4643, %v4635
    %v7116 = vpack.c.b16 %v4644, %v4636
    %v7117 = vpack.c.b16 %v4653, %v4645
    %v7118 = vpack.c.b16 %v4654, %v4646
    %v7119 = vpack.c.b16 %v4655, %v4647
    %v7120 = vpack.c.b16 %v4656, %v4648
    %v7121 = vpack.c.b16 %v4657, %v4649
    %v7122 = vpack.c.b16 %v4658, %v4650
    %v7123 = vpack.c.b16 %v4659, %v4651
    %v7124 = vpack.c.b16 %v4660, %v4652
    %v7125 = vpack.c.b16 %v4669, %v4661
    %v7126 = vpack.c.b16 %v4670, %v4662
    %v7127 = vpack.c.b16 %v4671, %v4663
    %v7128 = vpack.c.b16 %v4672, %v4664
    %v7129 = vpack.c.b16 %v4673, %v4665
    %v7130 = vpack.c.b16 %v4674, %v4666
    %v7131 = vpack.c.b16 %v4675, %v4667
    %v7132 = vpack.c.b16 %v4676, %v4668
    %v7133 = vpack.c.b16 %v4685, %v4677
    %v7134 = vpack.c.b16 %v4686, %v4678
    %v7135 = vpack.c.b16 %v4687, %v4679
    %v7136 = vpack.c.b16 %v4688, %v4680
    %v7137 = vpack.c.b16 %v4689, %v4681
    %v7138 = vpack.c.b16 %v4690, %v4682
    %v7139 = vpack.c.b16 %v4691, %v4683
    %v7140 = vpack.c.b16 %v4692, %v4684
    %v7141 = vpack.c.b16 %v4701, %v4693
    %v7142 = vpack.c.b16 %v4702, %v4694
    %v7143 = vpack.c.b16 %v4703, %v4695
    %v7144 = vpack.c.b16 %v4704, %v4696
    %v7145 = vpack.c.b16 %v4705, %v4697
    %v7146 = vpack.c.b16 %v4706, %v4698
    %v7147 = vpack.c.b16 %v4707, %v4699
    %v7148 = vpack.c.b16 %v4708, %v4700
    %v7149 = vpack.c.b16 %v4717, %v4709
    %v7150 = vpack.c.b16 %v4718, %v4710
    %v7151 = vpack.c.b16 %v4719, %v4711
    %v7152 = vpack.c.b16 %v4720, %v4712
    %v7153 = vpack.c.b16 %v4721, %v4713
    %v7154 = vpack.c.b16 %v4722, %v4714
    %v7155 = vpack.c.b16 %v4723, %v4715
    %v7156 = vpack.c.b16 %v4724, %v4716
    %v7157 = vpack.c.b16 %v4733, %v4725
    %v7158 = vpack.c.b16 %v4734, %v4726
    %v7159 = vpack.c.b16 %v4735, %v4727
    %v7160 = vpack.c.b16 %v4736, %v4728
    %v7161 = vpack.c.b16 %v4737, %v4729
    %v7162 = vpack.c.b16 %v4738, %v4730
    %v7163 = vpack.c.b16 %v4739, %v4731
    %v7164 = vpack.c.b16 %v4740, %v4732
    %v7165 = vpack.c.b16 %v4749, %v4741
    %v7166 = vpack.c.b16 %v4750, %v4742
    %v7167 = vpack.c.b16 %v4751, %v4743
    %v7168 = vpack.c.b16 %v4752, %v4744
    %v7169 = vpack.c.b16 %v4753, %v4745
    %v7170 = vpack.c.b16 %v4754, %v4746
    %v7171 = vpack.c.b16 %v4755, %v4747
    %v7172 = vpack.c.b16 %v4756, %v4748
    %v7173 = vpack.c.b16 %v4765, %v4757
    %v7174 = vpack.c.b16 %v4766, %v4758
    %v7175 = vpack.c.b16 %v4767, %v4759
    %v7176 = vpack.c.b16 %v4768, %v4760
    %v7177 = vpack.c.b16 %v4769, %v4761
    %v7178 = vpack.c.b16 %v4770, %v4762
    %v7179 = vpack.c.b16 %v4771, %v4763
    %v7180 = vpack.c.b16 %v4772, %v4764
    %v7181 = vpack.c.b16 %v4781, %v4773
    %v7182 = vpack.c.b16 %v4782, %v4774
    %v7183 = vpack.c.b16 %v4783, %v4775
    %v7184 = vpack.c.b16 %v4784, %v4776
    %v7185 = vpack.c.b16 %v4785, %v4777
    %v7186 = vpack.c.b16 %v4786, %v4778
    %v7187 = vpack.c.b16 %v4787, %v4779
    %v7188 = vpack.c.b16 %v4788, %v4780
    %v7189 = vpack.c.b16 %v4797, %v4789
    %v7190 = vpack.c.b16 %v4798, %v4790
    %v7191 = vpack.c.b16 %v4799, %v4791
    %v7192 = vpack.c.b16 %v4800, %v4792
    %v7193 = vpack.c.b16 %v4801, %v4793
    %v7194 = vpack.c.b16 %v4802, %v4794
    %v7195 = vpack.c.b16 %v4803, %v4795
    %v7196 = vpack.c.b16 %v4804, %v4796
    %v7197 = vpack.c.b16 %v4813, %v4805
    %v7198 = vpack.c.b16 %v4814, %v4806
    %v7199 = vpack.c.b16 %v4815, %v4807
    %v7200 = vpack.c.b16 %v4816, %v4808
    %v7201 = vpack.c.b16 %v4817, %v4809
    %v7202 = vpack.c.b16 %v4818, %v4810
    %v7203 = vpack.c.b16 %v4819, %v4811
    %v7204 = vpack.c.b16 %v4820, %v4812
    %v7205 = vpack.c.b16 %v4829, %v4821
    %v7206 = vpack.c.b16 %v4830, %v4822
    %v7207 = vpack.c.b16 %v4831, %v4823
    %v7208 = vpack.c.b16 %v4832, %v4824
    %v7209 = vpack.c.b16 %v4833, %v4825
    %v7210 = vpack.c.b16 %v4834, %v4826
    %v7211 = vpack.c.b16 %v4835, %v4827
    %v7212 = vpack.c.b16 %v4836, %v4828
    %v7213 = vpack.c.b16 %v4845, %v4837
    %v7214 = vpack.c.b16 %v4846, %v4838
    %v7215 = vpack.c.b16 %v4847, %v4839
    %v7216 = vpack.c.b16 %v4848, %v4840
    %v7217 = vpack.c.b16 %v4849, %v4841
    %v7218 = vpack.c.b16 %v4850, %v4842
    %v7219 = vpack.c.b16 %v4851, %v4843
    %v7220 = vpack.c.b16 %v4852, %v4844
    %v7221 = vpack.c.b16 %v4861, %v4853
    %v7222 = vpack.c.b16 %v4862, %v4854
    %v7223 = vpack.c.b16 %v4863, %v4855
    %v7224 = vpack.c.b16 %v4864, %v4856
    %v7225 = vpack.c.b16 %v4865, %v4857
    %v7226 = vpack.c.b16 %v4866, %v4858
    %v7227 = vpack.c.b16 %v4867, %v4859
    %v7228 = vpack.c.b16 %v4868, %v4860
    %v7229 = vpack.c.b16 %v4877, %v4869
    %v7230 = vpack.c.b16 %v4878, %v4870
    %v7231 = vpack.c.b16 %v4879, %v4871
    %v7232 = vpack.c.b16 %v4880, %v4872
    %v7233 = vpack.c.b16 %v4881, %v4873
    %v7234 = vpack.c.b16 %v4882, %v4874
    %v7235 = vpack.c.b16 %v4883, %v4875
    %v7236 = vpack.c.b16 %v4884, %v4876
    %v7237 = vpack.c.b16 %v4893, %v4885
    %v7238 = vpack.c.b16 %v4894, %v4886
    %v7239 = vpack.c.b16 %v4895, %v4887
    %v7240 = vpack.c.b16 %v4896, %v4888
    %v7241 = vpack.c.b16 %v4897, %v4889
    %v7242 = vpack.c.b16 %v4898, %v4890
    %v7243 = vpack.c.b16 %v4899, %v4891
    %v7244 = vpack.c.b16 %v4900, %v4892
    %v7245 = vpack.c.b16 %v4909, %v4901
    %v7246 = vpack.c.b16 %v4910, %v4902
    %v7247 = vpack.c.b16 %v4911, %v4903
    %v7248 = vpack.c.b16 %v4912, %v4904
    %v7249 = vpack.c.b16 %v4913, %v4905
    %v7250 = vpack.c.b16 %v4914, %v4906
    %v7251 = vpack.c.b16 %v4915, %v4907
    %v7252 = vpack.c.b16 %v4916, %v4908
    %v7253 = vpack.c.b16 %v4925, %v4917
    %v7254 = vpack.c.b16 %v4926, %v4918
    %v7255 = vpack.c.b16 %v4927, %v4919
    %v7256 = vpack.c.b16 %v4928, %v4920
    %v7257 = vpack.c.b16 %v4929, %v4921
    %v7258 = vpack.c.b16 %v4930, %v4922
    %v7259 = vpack.c.b16 %v4931, %v4923
    %v7260 = vpack.c.b16 %v4932, %v4924
    %v7261 = vpack.c.b16 %v4941, %v4933
    %v7262 = vpack.c.b16 %v4942, %v4934
    %v7263 = vpack.c.b16 %v4943, %v4935
    %v7264 = vpack.c.b16 %v4944, %v4936
    %v7265 = vpack.c.b16 %v4945, %v4937
    %v7266 = vpack.c.b16 %v4946, %v4938
    %v7267 = vpack.c.b16 %v4947, %v4939
    %v7268 = vpack.c.b16 %v4948, %v4940
    %v7269 = vpack.c.b16 %v4957, %v4949
    %v7270 = vpack.c.b16 %v4958, %v4950
    %v7271 = vpack.c.b16 %v4959, %v4951
    %v7272 = vpack.c.b16 %v4960, %v4952
    %v7273 = vpack.c.b16 %v4961, %v4953
    %v7274 = vpack.c.b16 %v4962, %v4954
    %v7275 = vpack.c.b16 %v4963, %v4955
    %v7276 = vpack.c.b16 %v4964, %v4956
    %v7277 = vpack.c.b16 %v4973, %v4965
    %v7278 = vpack.c.b16 %v4974, %v4966
    %v7279 = vpack.c.b16 %v4975, %v4967
    %v7280 = vpack.c.b16 %v4976, %v4968
    %v7281 = vpack.c.b16 %v4977, %v4969
    %v7282 = vpack.c.b16 %v4978, %v4970
    %v7283 = vpack.c.b16 %v4979, %v4971
    %v7284 = vpack.c.b16 %v4980, %v4972
    %v7285 = vpack.c.b16 %v4989, %v4981
    %v7286 = vpack.c.b16 %v4990, %v4982
    %v7287 = vpack.c.b16 %v4991, %v4983
    %v7288 = vpack.c.b16 %v4992, %v4984
    %v7289 = vpack.c.b16 %v4993, %v4985
    %v7290 = vpack.c.b16 %v4994, %v4986
    %v7291 = vpack.c.b16 %v4995, %v4987
    %v7292 = vpack.c.b16 %v4996, %v4988
    %v7293 = vpack.c.b16 %v5005, %v4997
    %v7294 = vpack.c.b16 %v5006, %v4998
    %v7295 = vpack.c.b16 %v5007, %v4999
    %v7296 = vpack.c.b16 %v5008, %v5000
    %v7297 = vpack.c.b16 %v5009, %v5001
    %v7298 = vpack.c.b16 %v5010, %v5002
    %v7299 = vpack.c.b16 %v5011, %v5003
    %v7300 = vpack.c.b16 %v5012, %v5004
    %v7301 = vpack.c.b16 %v5021, %v5013
    %v7302 = vpack.c.b16 %v5022, %v5014
    %v7303 = vpack.c.b16 %v5023, %v5015
    %v7304 = vpack.c.b16 %v5024, %v5016
    %v7305 = vpack.c.b16 %v5025, %v5017
    %v7306 = vpack.c.b16 %v5026, %v5018
    %v7307 = vpack.c.b16 %v5027, %v5019
    %v7308 = vpack.c.b16 %v5028, %v5020
    %v7309 = vpack.c.b16 %v5037, %v5029
    %v7310 = vpack.c.b16 %v5038, %v5030
    %v7311 = vpack.c.b16 %v5039, %v5031
    %v7312 = vpack.c.b16 %v5040, %v5032
    %v7313 = vpack.c.b16 %v5041, %v5033
    %v7314 = vpack.c.b16 %v5042, %v5034
    %v7315 = vpack.c.b16 %v5043, %v5035
    %v7316 = vpack.c.b16 %v5044, %v5036
    %v7317 = vpack.c.b16 %v5053, %v5045
    %v7318 = vpack.c.b16 %v5054, %v5046
    %v7319 = vpack.c.b16 %v5055, %v5047
    %v7320 = vpack.c.b16 %v5056, %v5048
    %v7321 = vpack.c.b16 %v5057, %v5049
    %v7322 = vpack.c.b16 %v5058, %v5050
    %v7323 = vpack.c.b16 %v5059, %v5051
    %v7324 = vpack.c.b16 %v5060, %v5052
    %v7325 = vpack.c.b16 %v5069, %v5061
    %v7326 = vpack.c.b16 %v5070, %v5062
    %v7327 = vpack.c.b16 %v5071, %v5063
    %v7328 = vpack.c.b16 %v5072, %v5064
    %v7329 = vpack.c.b16 %v5073, %v5065
    %v7330 = vpack.c.b16 %v5074, %v5066
    %v7331 = vpack.c.b16 %v5075, %v5067
    %v7332 = vpack.c.b16 %v5076, %v5068
    %v7333 = vpack.c.b16 %v5085, %v5077
    %v7334 = vpack.c.b16 %v5086, %v5078
    %v7335 = vpack.c.b16 %v5087, %v5079
    %v7336 = vpack.c.b16 %v5088, %v5080
    %v7337 = vpack.c.b16 %v5089, %v5081
    %v7338 = vpack.c.b16 %v5090, %v5082
    %v7339 = vpack.c.b16 %v5091, %v5083
    %v7340 = vpack.c.b16 %v5092, %v5084
    %v7341 = vpack.c.b16 %v5101, %v5093
    %v7342 = vpack.c.b16 %v5102, %v5094
    %v7343 = vpack.c.b16 %v5103, %v5095
    %v7344 = vpack.c.b16 %v5104, %v5096
    %v7345 = vpack.c.b16 %v5105, %v5097
    %v7346 = vpack.c.b16 %v5106, %v5098
    %v7347 = vpack.c.b16 %v5107, %v5099
    %v7348 = vpack.c.b16 %v5108, %v5100
    %v7349 = vpack.c.b16 %v5117, %v5109
    %v7350 = vpack.c.b16 %v5118, %v5110
    %v7351 = vpack.c.b16 %v5119, %v5111
    %v7352 = vpack.c.b16 %v5120, %v5112
    %v7353 = vpack.c.b16 %v5121, %v5113
    %v7354 = vpack.c.b16 %v5122, %v5114
    %v7355 = vpack.c.b16 %v5123, %v5115
    %v7356 = vpack.c.b16 %v5124, %v5116
    %v7357 = vpack.c.b16 %v5133, %v5125
    %v7358 = vpack.c.b16 %v5134, %v5126
    %v7359 = vpack.c.b16 %v5135, %v5127
    %v7360 = vpack.c.b16 %v5136, %v5128
    %v7361 = vpack.c.b16 %v5137, %v5129
    %v7362 = vpack.c.b16 %v5138, %v5130
    %v7363 = vpack.c.b16 %v5139, %v5131
    %v7364 = vpack.c.b16 %v5140, %v5132
    %v7365 = vpack.c.b16 %v5149, %v5141
    %v7366 = vpack.c.b16 %v5150, %v5142
    %v7367 = vpack.c.b16 %v5151, %v5143
    %v7368 = vpack.c.b16 %v5152, %v5144
    %v7369 = vpack.c.b16 %v5153, %v5145
    %v7370 = vpack.c.b16 %v5154, %v5146
    %v7371 = vpack.c.b16 %v5155, %v5147
    %v7372 = vpack.c.b16 %v5156, %v5148
    %v7373 = vpack.c.b16 %v5165, %v5157
    %v7374 = vpack.c.b16 %v5166, %v5158
    %v7375 = vpack.c.b16 %v5167, %v5159
    %v7376 = vpack.c.b16 %v5168, %v5160
    %v7377 = vpack.c.b16 %v5169, %v5161
    %v7378 = vpack.c.b16 %v5170, %v5162
    %v7379 = vpack.c.b16 %v5171, %v5163
    %v7380 = vpack.c.b16 %v5172, %v5164
    %v7381 = vpack.c.b16 %v5181, %v5173
    %v7382 = vpack.c.b16 %v5182, %v5174
    %v7383 = vpack.c.b16 %v5183, %v5175
    %v7384 = vpack.c.b16 %v5184, %v5176
    %v7385 = vpack.c.b16 %v5185, %v5177
    %v7386 = vpack.c.b16 %v5186, %v5178
    %v7387 = vpack.c.b16 %v5187, %v5179
    %v7388 = vpack.c.b16 %v5188, %v5180
    %v7389 = vpack.c.b16 %v5197, %v5189
    %v7390 = vpack.c.b16 %v5198, %v5190
    %v7391 = vpack.c.b16 %v5199, %v5191
    %v7392 = vpack.c.b16 %v5200, %v5192
    %v7393 = vpack.c.b16 %v5201, %v5193
    %v7394 = vpack.c.b16 %v5202, %v5194
    %v7395 = vpack.c.b16 %v5203, %v5195
    %v7396 = vpack.c.b16 %v5204, %v5196
    %v7397 = vpack.c.b16 %v5213, %v5205
    %v7398 = vpack.c.b16 %v5214, %v5206
    %v7399 = vpack.c.b16 %v5215, %v5207
    %v7400 = vpack.c.b16 %v5216, %v5208
    %v7401 = vpack.c.b16 %v5217, %v5209
    %v7402 = vpack.c.b16 %v5218, %v5210
    %v7403 = vpack.c.b16 %v5219, %v5211
    %v7404 = vpack.c.b16 %v5220, %v5212
    %v7405 = vpack.c.b16 %v5229, %v5221
    %v7406 = vpack.c.b16 %v5230, %v5222
    %v7407 = vpack.c.b16 %v5231, %v5223
    %v7408 = vpack.c.b16 %v5232, %v5224
    %v7409 = vpack.c.b16 %v5233, %v5225
    %v7410 = vpack.c.b16 %v5234, %v5226
    %v7411 = vpack.c.b16 %v5235, %v5227
    %v7412 = vpack.c.b16 %v5236, %v5228
    %v7413 = vpack.c.b16 %v5245, %v5237
    %v7414 = vpack.c.b16 %v5246, %v5238
    %v7415 = vpack.c.b16 %v5247, %v5239
    %v7416 = vpack.c.b16 %v5248, %v5240
    %v7417 = vpack.c.b16 %v5249, %v5241
    %v7418 = vpack.c.b16 %v5250, %v5242
    %v7419 = vpack.c.b16 %v5251, %v5243
    %v7420 = vpack.c.b16 %v5252, %v5244
    %v7421 = vpack.c.b16 %v5261, %v5253
    %v7422 = vpack.c.b16 %v5262, %v5254
    %v7423 = vpack.c.b16 %v5263, %v5255
    %v7424 = vpack.c.b16 %v5264, %v5256
    %v7425 = vpack.c.b16 %v5265, %v5257
    %v7426 = vpack.c.b16 %v5266, %v5258
    %v7427 = vpack.c.b16 %v5267, %v5259
    %v7428 = vpack.c.b16 %v5268, %v5260
    %v7429 = vpack.c.b16 %v5277, %v5269
    %v7430 = vpack.c.b16 %v5278, %v5270
    %v7431 = vpack.c.b16 %v5279, %v5271
    %v7432 = vpack.c.b16 %v5280, %v5272
    %v7433 = vpack.c.b16 %v5281, %v5273
    %v7434 = vpack.c.b16 %v5282, %v5274
    %v7435 = vpack.c.b16 %v5283, %v5275
    %v7436 = vpack.c.b16 %v5284, %v5276
    %v7437 = vpack.c.b16 %v5293, %v5285
    %v7438 = vpack.c.b16 %v5294, %v5286
    %v7439 = vpack.c.b16 %v5295, %v5287
    %v7440 = vpack.c.b16 %v5296, %v5288
    %v7441 = vpack.c.b16 %v5297, %v5289
    %v7442 = vpack.c.b16 %v5298, %v5290
    %v7443 = vpack.c.b16 %v5299, %v5291
    %v7444 = vpack.c.b16 %v5300, %v5292
    %v7445 = vpack.c.b16 %v5309, %v5301
    %v7446 = vpack.c.b16 %v5310, %v5302
    %v7447 = vpack.c.b16 %v5311, %v5303
    %v7448 = vpack.c.b16 %v5312, %v5304
    %v7449 = vpack.c.b16 %v5313, %v5305
    %v7450 = vpack.c.b16 %v5314, %v5306
    %v7451 = vpack.c.b16 %v5315, %v5307
    %v7452 = vpack.c.b16 %v5316, %v5308
    %v7453 = vpack.c.b16 %v5325, %v5317
    %v7454 = vpack.c.b16 %v5326, %v5318
    %v7455 = vpack.c.b16 %v5327, %v5319
    %v7456 = vpack.c.b16 %v5328, %v5320
    %v7457 = vpack.c.b16 %v5329, %v5321
    %v7458 = vpack.c.b16 %v5330, %v5322
    %v7459 = vpack.c.b16 %v5331, %v5323
    %v7460 = vpack.c.b16 %v5332, %v5324
    %v7461 = vpack.c.b16 %v5341, %v5333
    %v7462 = vpack.c.b16 %v5342, %v5334
    %v7463 = vpack.c.b16 %v5343, %v5335
    %v7464 = vpack.c.b16 %v5344, %v5336
    %v7465 = vpack.c.b16 %v5345, %v5337
    %v7466 = vpack.c.b16 %v5346, %v5338
    %v7467 = vpack.c.b16 %v5347, %v5339
    %v7468 = vpack.c.b16 %v5348, %v5340
    %v7469 = vpack.c.b16 %v5357, %v5349
    %v7470 = vpack.c.b16 %v5358, %v5350
    %v7471 = vpack.c.b16 %v5359, %v5351
    %v7472 = vpack.c.b16 %v5360, %v5352
    %v7473 = vpack.c.b16 %v5361, %v5353
    %v7474 = vpack.c.b16 %v5362, %v5354
    %v7475 = vpack.c.b16 %v5363, %v5355
    %v7476 = vpack.c.b16 %v5364, %v5356
    %v7477 = vpack.c.b16 %v5373, %v5365
    %v7478 = vpack.c.b16 %v5374, %v5366
    %v7479 = vpack.c.b16 %v5375, %v5367
    %v7480 = vpack.c.b16 %v5376, %v5368
    %v7481 = vpack.c.b16 %v5377, %v5369
    %v7482 = vpack.c.b16 %v5378, %v5370
    %v7483 = vpack.c.b16 %v5379, %v5371
    %v7484 = vpack.c.b16 %v5380, %v5372
    %v7485 = vpack.c.b16 %v5389, %v5381
    %v7486 = vpack.c.b16 %v5390, %v5382
    %v7487 = vpack.c.b16 %v5391, %v5383
    %v7488 = vpack.c.b16 %v5392, %v5384
    %v7489 = vpack.c.b16 %v5393, %v5385
    %v7490 = vpack.c.b16 %v5394, %v5386
    %v7491 = vpack.c.b16 %v5395, %v5387
    %v7492 = vpack.c.b16 %v5396, %v5388
    %v7493 = vpack.c.b16 %v5405, %v5397
    %v7494 = vpack.c.b16 %v5406, %v5398
    %v7495 = vpack.c.b16 %v5407, %v5399
    %v7496 = vpack.c.b16 %v5408, %v5400
    %v7497 = vpack.c.b16 %v5409, %v5401
    %v7498 = vpack.c.b16 %v5410, %v5402
    %v7499 = vpack.c.b16 %v5411, %v5403
    %v7500 = vpack.c.b16 %v5412, %v5404
    %v7501 = vpack.c.b16 %v5421, %v5413
    %v7502 = vpack.c.b16 %v5422, %v5414
    %v7503 = vpack.c.b16 %v5423, %v5415
    %v7504 = vpack.c.b16 %v5424, %v5416
    %v7505 = vpack.c.b16 %v5425, %v5417
    %v7506 = vpack.c.b16 %v5426, %v5418
    %v7507 = vpack.c.b16 %v5427, %v5419
    %v7508 = vpack.c.b16 %v5428, %v5420
    %v7509 = vpack.c.b16 %v5437, %v5429
    %v7510 = vpack.c.b16 %v5438, %v5430
    %v7511 = vpack.c.b16 %v5439, %v5431
    %v7512 = vpack.c.b16 %v5440, %v5432
    %v7513 = vpack.c.b16 %v5441, %v5433
    %v7514 = vpack.c.b16 %v5442, %v5434
    %v7515 = vpack.c.b16 %v5443, %v5435
    %v7516 = vpack.c.b16 %v5444, %v5436
    %v7517 = vpack.c.b16 %v5453, %v5445
    %v7518 = vpack.c.b16 %v5454, %v5446
    %v7519 = vpack.c.b16 %v5455, %v5447
    %v7520 = vpack.c.b16 %v5456, %v5448
    %v7521 = vpack.c.b16 %v5457, %v5449
    %v7522 = vpack.c.b16 %v5458, %v5450
    %v7523 = vpack.c.b16 %v5459, %v5451
    %v7524 = vpack.c.b16 %v5460, %v5452
    %v7525 = vpack.c.b16 %v5469, %v5461
    %v7526 = vpack.c.b16 %v5470, %v5462
    %v7527 = vpack.c.b16 %v5471, %v5463
    %v7528 = vpack.c.b16 %v5472, %v5464
    %v7529 = vpack.c.b16 %v5473, %v5465
    %v7530 = vpack.c.b16 %v5474, %v5466
    %v7531 = vpack.c.b16 %v5475, %v5467
    %v7532 = vpack.c.b16 %v5476, %v5468
    %v7533 = vpack.c.b16 %v5485, %v5477
    %v7534 = vpack.c.b16 %v5486, %v5478
    %v7535 = vpack.c.b16 %v5487, %v5479
    %v7536 = vpack.c.b16 %v5488, %v5480
    %v7537 = vpack.c.b16 %v5489, %v5481
    %v7538 = vpack.c.b16 %v5490, %v5482
    %v7539 = vpack.c.b16 %v5491, %v5483
    %v7540 = vpack.c.b16 %v5492, %v5484
    %v7541 = vpack.c.b16 %v5501, %v5493
    %v7542 = vpack.c.b16 %v5502, %v5494
    %v7543 = vpack.c.b16 %v5503, %v5495
    %v7544 = vpack.c.b16 %v5504, %v5496
    %v7545 = vpack.c.b16 %v5505, %v5497
    %v7546 = vpack.c.b16 %v5506, %v5498
    %v7547 = vpack.c.b16 %v5507, %v5499
    %v7548 = vpack.c.b16 %v5508, %v5500
    %v7549 = vpack.c.b16 %v5517, %v5509
    %v7550 = vpack.c.b16 %v5518, %v5510
    %v7551 = vpack.c.b16 %v5519, %v5511
    %v7552 = vpack.c.b16 %v5520, %v5512
    %v7553 = vpack.c.b16 %v5521, %v5513
    %v7554 = vpack.c.b16 %v5522, %v5514
    %v7555 = vpack.c.b16 %v5523, %v5515
    %v7556 = vpack.c.b16 %v5524, %v5516
    %v7557 = vpack.c.b16 %v5533, %v5525
    %v7558 = vpack.c.b16 %v5534, %v5526
    %v7559 = vpack.c.b16 %v5535, %v5527
    %v7560 = vpack.c.b16 %v5536, %v5528
    %v7561 = vpack.c.b16 %v5537, %v5529
    %v7562 = vpack.c.b16 %v5538, %v5530
    %v7563 = vpack.c.b16 %v5539, %v5531
    %v7564 = vpack.c.b16 %v5540, %v5532
    %v7565 = vpack.c.b16 %v5549, %v5541
    %v7566 = vpack.c.b16 %v5550, %v5542
    %v7567 = vpack.c.b16 %v5551, %v5543
    %v7568 = vpack.c.b16 %v5552, %v5544
    %v7569 = vpack.c.b16 %v5553, %v5545
    %v7570 = vpack.c.b16 %v5554, %v5546
    %v7571 = vpack.c.b16 %v5555, %v5547
    %v7572 = vpack.c.b16 %v5556, %v5548
    %v7573 = vpack.c.b16 %v5565, %v5557
    %v7574 = vpack.c.b16 %v5566, %v5558
    %v7575 = vpack.c.b16 %v5567, %v5559
    %v7576 = vpack.c.b16 %v5568, %v5560
    %v7577 = vpack.c.b16 %v5569, %v5561
    %v7578 = vpack.c.b16 %v5570, %v5562
    %v7579 = vpack.c.b16 %v5571, %v5563
    %v7580 = vpack.c.b16 %v5572, %v5564
    %v7581 = vpack.c.b16 %v5581, %v5573
    %v7582 = vpack.c.b16 %v5582, %v5574
    %v7583 = vpack.c.b16 %v5583, %v5575
    %v7584 = vpack.c.b16 %v5584, %v5576
    %v7585 = vpack.c.b16 %v5585, %v5577
    %v7586 = vpack.c.b16 %v5586, %v5578
    %v7587 = vpack.c.b16 %v5587, %v5579
    %v7588 = vpack.c.b16 %v5588, %v5580
    %v7589 = vpack.c.b16 %v5597, %v5589
    %v7590 = vpack.c.b16 %v5598, %v5590
    %v7591 = vpack.c.b16 %v5599, %v5591
    %v7592 = vpack.c.b16 %v5600, %v5592
    %v7593 = vpack.c.b16 %v5601, %v5593
    %v7594 = vpack.c.b16 %v5602, %v5594
    %v7595 = vpack.c.b16 %v5603, %v5595
    %v7596 = vpack.c.b16 %v5604, %v5596
    %v7597 = vpack.c.b16 %v5613, %v5605
    %v7598 = vpack.c.b16 %v5614, %v5606
    %v7599 = vpack.c.b16 %v5615, %v5607
    %v7600 = vpack.c.b16 %v5616, %v5608
    %v7601 = vpack.c.b16 %v5617, %v5609
    %v7602 = vpack.c.b16 %v5618, %v5610
    %v7603 = vpack.c.b16 %v5619, %v5611
    %v7604 = vpack.c.b16 %v5620, %v5612
    %v7605 = vpack.c.b16 %v5629, %v5621
    %v7606 = vpack.c.b16 %v5630, %v5622
    %v7607 = vpack.c.b16 %v5631, %v5623
    %v7608 = vpack.c.b16 %v5632, %v5624
    %v7609 = vpack.c.b16 %v5633, %v5625
    %v7610 = vpack.c.b16 %v5634, %v5626
    %v7611 = vpack.c.b16 %v5635, %v5627
    %v7612 = vpack.c.b16 %v5636, %v5628
    %v7613 = vpack.c.b16 %v5645, %v5637
    %v7614 = vpack.c.b16 %v5646, %v5638
    %v7615 = vpack.c.b16 %v5647, %v5639
    %v7616 = vpack.c.b16 %v5648, %v5640
    %v7617 = vpack.c.b16 %v5649, %v5641
    %v7618 = vpack.c.b16 %v5650, %v5642
    %v7619 = vpack.c.b16 %v5651, %v5643
    %v7620 = vpack.c.b16 %v5652, %v5644
    %v7621 = vpack.c.b16 %v5661, %v5653
    %v7622 = vpack.c.b16 %v5662, %v5654
    %v7623 = vpack.c.b16 %v5663, %v5655
    %v7624 = vpack.c.b16 %v5664, %v5656
    %v7625 = vpack.c.b16 %v5665, %v5657
    %v7626 = vpack.c.b16 %v5666, %v5658
    %v7627 = vpack.c.b16 %v5667, %v5659
    %v7628 = vpack.c.b16 %v5668, %v5660
    %v7629 = vpack.c.b16 %v5677, %v5669
    %v7630 = vpack.c.b16 %v5678, %v5670
    %v7631 = vpack.c.b16 %v5679, %v5671
    %v7632 = vpack.c.b16 %v5680, %v5672
    %v7633 = vpack.c.b16 %v5681, %v5673
    %v7634 = vpack.c.b16 %v5682, %v5674
    %v7635 = vpack.c.b16 %v5683, %v5675
    %v7636 = vpack.c.b16 %v5684, %v5676
    %v7637 = vpack.c.b16 %v5693, %v5685
    %v7638 = vpack.c.b16 %v5694, %v5686
    %v7639 = vpack.c.b16 %v5695, %v5687
    %v7640 = vpack.c.b16 %v5696, %v5688
    %v7641 = vpack.c.b16 %v5697, %v5689
    %v7642 = vpack.c.b16 %v5698, %v5690
    %v7643 = vpack.c.b16 %v5699, %v5691
    %v7644 = vpack.c.b16 %v5700, %v5692
    %v7645 = vpack.c.b16 %v5709, %v5701
    %v7646 = vpack.c.b16 %v5710, %v5702
    %v7647 = vpack.c.b16 %v5711, %v5703
    %v7648 = vpack.c.b16 %v5712, %v5704
    %v7649 = vpack.c.b16 %v5713, %v5705
    %v7650 = vpack.c.b16 %v5714, %v5706
    %v7651 = vpack.c.b16 %v5715, %v5707
    %v7652 = vpack.c.b16 %v5716, %v5708
    %v7653 = vpack.c.b16 %v5725, %v5717
    %v7654 = vpack.c.b16 %v5726, %v5718
    %v7655 = vpack.c.b16 %v5727, %v5719
    %v7656 = vpack.c.b16 %v5728, %v5720
    %v7657 = vpack.c.b16 %v5729, %v5721
    %v7658 = vpack.c.b16 %v5730, %v5722
    %v7659 = vpack.c.b16 %v5731, %v5723
    %v7660 = vpack.c.b16 %v5732, %v5724
    %v7661 = vpack.c.b16 %v5741, %v5733
    %v7662 = vpack.c.b16 %v5742, %v5734
    %v7663 = vpack.c.b16 %v5743, %v5735
    %v7664 = vpack.c.b16 %v5744, %v5736
    %v7665 = vpack.c.b16 %v5745, %v5737
    %v7666 = vpack.c.b16 %v5746, %v5738
    %v7667 = vpack.c.b16 %v5747, %v5739
    %v7668 = vpack.c.b16 %v5748, %v5740
    %v7669 = vpack.c.b16 %v5757, %v5749
    %v7670 = vpack.c.b16 %v5758, %v5750
    %v7671 = vpack.c.b16 %v5759, %v5751
    %v7672 = vpack.c.b16 %v5760, %v5752
    %v7673 = vpack.c.b16 %v5761, %v5753
    %v7674 = vpack.c.b16 %v5762, %v5754
    %v7675 = vpack.c.b16 %v5763, %v5755
    %v7676 = vpack.c.b16 %v5764, %v5756
    %v7677 = vpack.c.b16 %v5773, %v5765
    %v7678 = vpack.c.b16 %v5774, %v5766
    %v7679 = vpack.c.b16 %v5775, %v5767
    %v7680 = vpack.c.b16 %v5776, %v5768
    %v7681 = vpack.c.b16 %v5777, %v5769
    %v7682 = vpack.c.b16 %v5778, %v5770
    %v7683 = vpack.c.b16 %v5779, %v5771
    %v7684 = vpack.c.b16 %v5780, %v5772
    %v7685 = vpack.c.b16 %v5789, %v5781
    %v7686 = vpack.c.b16 %v5790, %v5782
    %v7687 = vpack.c.b16 %v5791, %v5783
    %v7688 = vpack.c.b16 %v5792, %v5784
    %v7689 = vpack.c.b16 %v5793, %v5785
    %v7690 = vpack.c.b16 %v5794, %v5786
    %v7691 = vpack.c.b16 %v5795, %v5787
    %v7692 = vpack.c.b16 %v5796, %v5788
    %v7693 = vpack.c.b16 %v5805, %v5797
    %v7694 = vpack.c.b16 %v5806, %v5798
    %v7695 = vpack.c.b16 %v5807, %v5799
    %v7696 = vpack.c.b16 %v5808, %v5800
    %v7697 = vpack.c.b16 %v5809, %v5801
    %v7698 = vpack.c.b16 %v5810, %v5802
    %v7699 = vpack.c.b16 %v5811, %v5803
    %v7700 = vpack.c.b16 %v5812, %v5804
    %v7701 = vpack.c.b16 %v5821, %v5813
    %v7702 = vpack.c.b16 %v5822, %v5814
    %v7703 = vpack.c.b16 %v5823, %v5815
    %v7704 = vpack.c.b16 %v5824, %v5816
    %v7705 = vpack.c.b16 %v5825, %v5817
    %v7706 = vpack.c.b16 %v5826, %v5818
    %v7707 = vpack.c.b16 %v5827, %v5819
    %v7708 = vpack.c.b16 %v5828, %v5820
    %v7709 = vpack.c.b16 %v5837, %v5829
    %v7710 = vpack.c.b16 %v5838, %v5830
    %v7711 = vpack.c.b16 %v5839, %v5831
    %v7712 = vpack.c.b16 %v5840, %v5832
    %v7713 = vpack.c.b16 %v5841, %v5833
    %v7714 = vpack.c.b16 %v5842, %v5834
    %v7715 = vpack.c.b16 %v5843, %v5835
    %v7716 = vpack.c.b16 %v5844, %v5836
    %v7717 = vpack.c.b16 %v5853, %v5845
    %v7718 = vpack.c.b16 %v5854, %v5846
    %v7719 = vpack.c.b16 %v5855, %v5847
    %v7720 = vpack.c.b16 %v5856, %v5848
    %v7721 = vpack.c.b16 %v5857, %v5849
    %v7722 = vpack.c.b16 %v5858, %v5850
    %v7723 = vpack.c.b16 %v5859, %v5851
    %v7724 = vpack.c.b16 %v5860, %v5852
    %v7725 = vpack.c.b16 %v5869, %v5861
    %v7726 = vpack.c.b16 %v5870, %v5862
    %v7727 = vpack.c.b16 %v5871, %v5863
    %v7728 = vpack.c.b16 %v5872, %v5864
    %v7729 = vpack.c.b16 %v5873, %v5865
    %v7730 = vpack.c.b16 %v5874, %v5866
    %v7731 = vpack.c.b16 %v5875, %v5867
    %v7732 = vpack.c.b16 %v5876, %v5868
    %v7733 = vpack.c.b16 %v5885, %v5877
    %v7734 = vpack.c.b16 %v5886, %v5878
    %v7735 = vpack.c.b16 %v5887, %v5879
    %v7736 = vpack.c.b16 %v5888, %v5880
    %v7737 = vpack.c.b16 %v5889, %v5881
    %v7738 = vpack.c.b16 %v5890, %v5882
    %v7739 = vpack.c.b16 %v5891, %v5883
    %v7740 = vpack.c.b16 %v5892, %v5884
    %v7741 = vpack.c.b16 %v5901, %v5893
    %v7742 = vpack.c.b16 %v5902, %v5894
    %v7743 = vpack.c.b16 %v5903, %v5895
    %v7744 = vpack.c.b16 %v5904, %v5896
    %v7745 = vpack.c.b16 %v5905, %v5897
    %v7746 = vpack.c.b16 %v5906, %v5898
    %v7747 = vpack.c.b16 %v5907, %v5899
    %v7748 = vpack.c.b16 %v5908, %v5900
    %v7749 = vpack.c.b16 %v5917, %v5909
    %v7750 = vpack.c.b16 %v5918, %v5910
    %v7751 = vpack.c.b16 %v5919, %v5911
    %v7752 = vpack.c.b16 %v5920, %v5912
    %v7753 = vpack.c.b16 %v5921, %v5913
    %v7754 = vpack.c.b16 %v5922, %v5914
    %v7755 = vpack.c.b16 %v5923, %v5915
    %v7756 = vpack.c.b16 %v5924, %v5916
    %v7757 = vpack.c.b16 %v5933, %v5925
    %v7758 = vpack.c.b16 %v5934, %v5926
    %v7759 = vpack.c.b16 %v5935, %v5927
    %v7760 = vpack.c.b16 %v5936, %v5928
    %v7761 = vpack.c.b16 %v5937, %v5929
    %v7762 = vpack.c.b16 %v5938, %v5930
    %v7763 = vpack.c.b16 %v5939, %v5931
    %v7764 = vpack.c.b16 %v5940, %v5932
    %v7765 = vpack.c.b16 %v5949, %v5941
    %v7766 = vpack.c.b16 %v5950, %v5942
    %v7767 = vpack.c.b16 %v5951, %v5943
    %v7768 = vpack.c.b16 %v5952, %v5944
    %v7769 = vpack.c.b16 %v5953, %v5945
    %v7770 = vpack.c.b16 %v5954, %v5946
    %v7771 = vpack.c.b16 %v5955, %v5947
    %v7772 = vpack.c.b16 %v5956, %v5948
    %v7773 = vpack.c.b16 %v5965, %v5957
    %v7774 = vpack.c.b16 %v5966, %v5958
    %v7775 = vpack.c.b16 %v5967, %v5959
    %v7776 = vpack.c.b16 %v5968, %v5960
    %v7777 = vpack.c.b16 %v5969, %v5961
    %v7778 = vpack.c.b16 %v5970, %v5962
    %v7779 = vpack.c.b16 %v5971, %v5963
    %v7780 = vpack.c.b16 %v5972, %v5964
    %v7781 = vpack.c.b16 %v5981, %v5973
    %v7782 = vpack.c.b16 %v5982, %v5974
    %v7783 = vpack.c.b16 %v5983, %v5975
    %v7784 = vpack.c.b16 %v5984, %v5976
    %v7785 = vpack.c.b16 %v5985, %v5977
    %v7786 = vpack.c.b16 %v5986, %v5978
    %v7787 = vpack.c.b16 %v5987, %v5979
    %v7788 = vpack.c.b16 %v5988, %v5980
    %v7789 = vpack.c.b16 %v5997, %v5989
    %v7790 = vpack.c.b16 %v5998, %v5990
    %v7791 = vpack.c.b16 %v5999, %v5991
    %v7792 = vpack.c.b16 %v6000, %v5992
    %v7793 = vpack.c.b16 %v6001, %v5993
    %v7794 = vpack.c.b16 %v6002, %v5994
    %v7795 = vpack.c.b16 %v6003, %v5995
    %v7796 = vpack.c.b16 %v6004, %v5996
    %v7797 = vpack.c.b16 %v6013, %v6005
    %v7798 = vpack.c.b16 %v6014, %v6006
    %v7799 = vpack.c.b16 %v6015, %v6007
    %v7800 = vpack.c.b16 %v6016, %v6008
    %v7801 = vpack.c.b16 %v6017, %v6009
    %v7802 = vpack.c.b16 %v6018, %v6010
    %v7803 = vpack.c.b16 %v6019, %v6011
    %v7804 = vpack.c.b16 %v6020, %v6012
    %v7805 = vpack.c.b16 %v6029, %v6021
    %v7806 = vpack.c.b16 %v6030, %v6022
    %v7807 = vpack.c.b16 %v6031, %v6023
    %v7808 = vpack.c.b16 %v6032, %v6024
    %v7809 = vpack.c.b16 %v6033, %v6025
    %v7810 = vpack.c.b16 %v6034, %v6026
    %v7811 = vpack.c.b16 %v6035, %v6027
    %v7812 = vpack.c.b16 %v6036, %v6028
    %v7813 = vpack.c.b16 %v6045, %v6037
    %v7814 = vpack.c.b16 %v6046, %v6038
    %v7815 = vpack.c.b16 %v6047, %v6039
    %v7816 = vpack.c.b16 %v6048, %v6040
    %v7817 = vpack.c.b16 %v6049, %v6041
    %v7818 = vpack.c.b16 %v6050, %v6042
    %v7819 = vpack.c.b16 %v6051, %v6043
    %v7820 = vpack.c.b16 %v6052, %v6044
    %v7821 = vpack.c.b16 %v6061, %v6053
    %v7822 = vpack.c.b16 %v6062, %v6054
    %v7823 = vpack.c.b16 %v6063, %v6055
    %v7824 = vpack.c.b16 %v6064, %v6056
    %v7825 = vpack.c.b16 %v6065, %v6057
    %v7826 = vpack.c.b16 %v6066, %v6058
    %v7827 = vpack.c.b16 %v6067, %v6059
    %v7828 = vpack.c.b16 %v6068, %v6060
    %v7829 = vpack.c.b16 %v6077, %v6069
    %v7830 = vpack.c.b16 %v6078, %v6070
    %v7831 = vpack.c.b16 %v6079, %v6071
    %v7832 = vpack.c.b16 %v6080, %v6072
    %v7833 = vpack.c.b16 %v6081, %v6073
    %v7834 = vpack.c.b16 %v6082, %v6074
    %v7835 = vpack.c.b16 %v6083, %v6075
    %v7836 = vpack.c.b16 %v6084, %v6076
    %v7837 = vpack.c.b16 %v6093, %v6085
    %v7838 = vpack.c.b16 %v6094, %v6086
    %v7839 = vpack.c.b16 %v6095, %v6087
    %v7840 = vpack.c.b16 %v6096, %v6088
    %v7841 = vpack.c.b16 %v6097, %v6089
    %v7842 = vpack.c.b16 %v6098, %v6090
    %v7843 = vpack.c.b16 %v6099, %v6091
    %v7844 = vpack.c.b16 %v6100, %v6092
    %v7845 = vpack.c.b16 %v6109, %v6101
    %v7846 = vpack.c.b16 %v6110, %v6102
    %v7847 = vpack.c.b16 %v6111, %v6103
    %v7848 = vpack.c.b16 %v6112, %v6104
    %v7849 = vpack.c.b16 %v6113, %v6105
    %v7850 = vpack.c.b16 %v6114, %v6106
    %v7851 = vpack.c.b16 %v6115, %v6107
    %v7852 = vpack.c.b16 %v6116, %v6108
    %v7853 = vpack.c.b16 %v6125, %v6117
    %v7854 = vpack.c.b16 %v6126, %v6118
    %v7855 = vpack.c.b16 %v6127, %v6119
    %v7856 = vpack.c.b16 %v6128, %v6120
    %v7857 = vpack.c.b16 %v6129, %v6121
    %v7858 = vpack.c.b16 %v6130, %v6122
    %v7859 = vpack.c.b16 %v6131, %v6123
    %v7860 = vpack.c.b16 %v6132, %v6124
    %v7861 = vpack.c.b16 %v6141, %v6133
    %v7862 = vpack.c.b16 %v6142, %v6134
    %v7863 = vpack.c.b16 %v6143, %v6135
    %v7864 = vpack.c.b16 %v6144, %v6136
    %v7865 = vpack.c.b16 %v6145, %v6137
    %v7866 = vpack.c.b16 %v6146, %v6138
    %v7867 = vpack.c.b16 %v6147, %v6139
    %v7868 = vpack.c.b16 %v6148, %v6140
    %v7869 = vpack.c.b16 %v6157, %v6149
    %v7870 = vpack.c.b16 %v6158, %v6150
    %v7871 = vpack.c.b16 %v6159, %v6151
    %v7872 = vpack.c.b16 %v6160, %v6152
    %v7873 = vpack.c.b16 %v6161, %v6153
    %v7874 = vpack.c.b16 %v6162, %v6154
    %v7875 = vpack.c.b16 %v6163, %v6155
    %v7876 = vpack.c.b16 %v6164, %v6156
    %v7877 = vpack.c.b16 %v6173, %v6165
    %v7878 = vpack.c.b16 %v6174, %v6166
    %v7879 = vpack.c.b16 %v6175, %v6167
    %v7880 = vpack.c.b16 %v6176, %v6168
    %v7881 = vpack.c.b16 %v6177, %v6169
    %v7882 = vpack.c.b16 %v6178, %v6170
    %v7883 = vpack.c.b16 %v6179, %v6171
    %v7884 = vpack.c.b16 %v6180, %v6172
    %v7885 = vpack.c.b16 %v6189, %v6181
    %v7886 = vpack.c.b16 %v6190, %v6182
    %v7887 = vpack.c.b16 %v6191, %v6183
    %v7888 = vpack.c.b16 %v6192, %v6184
    %v7889 = vpack.c.b16 %v6193, %v6185
    %v7890 = vpack.c.b16 %v6194, %v6186
    %v7891 = vpack.c.b16 %v6195, %v6187
    %v7892 = vpack.c.b16 %v6196, %v6188
    %v7893 = vpack.c.b16 %v6205, %v6197
    %v7894 = vpack.c.b16 %v6206, %v6198
    %v7895 = vpack.c.b16 %v6207, %v6199
    %v7896 = vpack.c.b16 %v6208, %v6200
    %v7897 = vpack.c.b16 %v6209, %v6201
    %v7898 = vpack.c.b16 %v6210, %v6202
    %v7899 = vpack.c.b16 %v6211, %v6203
    %v7900 = vpack.c.b16 %v6212, %v6204
    %v7901 = vpack.c.b16 %v6221, %v6213
    %v7902 = vpack.c.b16 %v6222, %v6214
    %v7903 = vpack.c.b16 %v6223, %v6215
    %v7904 = vpack.c.b16 %v6224, %v6216
    %v7905 = vpack.c.b16 %v6225, %v6217
    %v7906 = vpack.c.b16 %v6226, %v6218
    %v7907 = vpack.c.b16 %v6227, %v6219
    %v7908 = vpack.c.b16 %v6228, %v6220
    %v7909 = vpack.c.b16 %v6237, %v6229
    %v7910 = vpack.c.b16 %v6238, %v6230
    %v7911 = vpack.c.b16 %v6239, %v6231
    %v7912 = vpack.c.b16 %v6240, %v6232
    %v7913 = vpack.c.b16 %v6241, %v6233
    %v7914 = vpack.c.b16 %v6242, %v6234
    %v7915 = vpack.c.b16 %v6243, %v6235
    %v7916 = vpack.c.b16 %v6244, %v6236
    %v7917 = vpack.c.b16 %v6253, %v6245
    %v7918 = vpack.c.b16 %v6254, %v6246
    %v7919 = vpack.c.b16 %v6255, %v6247
    %v7920 = vpack.c.b16 %v6256, %v6248
    %v7921 = vpack.c.b16 %v6257, %v6249
    %v7922 = vpack.c.b16 %v6258, %v6250
    %v7923 = vpack.c.b16 %v6259, %v6251
    %v7924 = vpack.c.b16 %v6260, %v6252
    %v7925 = vpack.c.b16 %v6269, %v6261
    %v7926 = vpack.c.b16 %v6270, %v6262
    %v7927 = vpack.c.b16 %v6271, %v6263
    %v7928 = vpack.c.b16 %v6272, %v6264
    %v7929 = vpack.c.b16 %v6273, %v6265
    %v7930 = vpack.c.b16 %v6274, %v6266
    %v7931 = vpack.c.b16 %v6275, %v6267
    %v7932 = vpack.c.b16 %v6276, %v6268
    %v7933 = vpack.c.b16 %v6285, %v6277
    %v7934 = vpack.c.b16 %v6286, %v6278
    %v7935 = vpack.c.b16 %v6287, %v6279
    %v7936 = vpack.c.b16 %v6288, %v6280
    %v7937 = vpack.c.b16 %v6289, %v6281
    %v7938 = vpack.c.b16 %v6290, %v6282
    %v7939 = vpack.c.b16 %v6291, %v6283
    %v7940 = vpack.c.b16 %v6292, %v6284
    %v7941 = vpack.c.b16 %v6301, %v6293
    %v7942 = vpack.c.b16 %v6302, %v6294
    %v7943 = vpack.c.b16 %v6303, %v6295
    %v7944 = vpack.c.b16 %v6304, %v6296
    %v7945 = vpack.c.b16 %v6305, %v6297
    %v7946 = vpack.c.b16 %v6306, %v6298
    %v7947 = vpack.c.b16 %v6307, %v6299
    %v7948 = vpack.c.b16 %v6308, %v6300
    %v7949 = vpack.c.b16 %v6317, %v6309
    %v7950 = vpack.c.b16 %v6318, %v6310
    %v7951 = vpack.c.b16 %v6319, %v6311
    %v7952 = vpack.c.b16 %v6320, %v6312
    %v7953 = vpack.c.b16 %v6321, %v6313
    %v7954 = vpack.c.b16 %v6322, %v6314
    %v7955 = vpack.c.b16 %v6323, %v6315
    %v7956 = vpack.c.b16 %v6324, %v6316
    %v7957 = vpack.c.b16 %v6333, %v6325
    %v7958 = vpack.c.b16 %v6334, %v6326
    %v7959 = vpack.c.b16 %v6335, %v6327
    %v7960 = vpack.c.b16 %v6336, %v6328
    %v7961 = vpack.c.b16 %v6337, %v6329
    %v7962 = vpack.c.b16 %v6338, %v6330
    %v7963 = vpack.c.b16 %v6339, %v6331
    %v7964 = vpack.c.b16 %v6340, %v6332
    %v7965 = vpack.c.b16 %v6349, %v6341
    %v7966 = vpack.c.b16 %v6350, %v6342
    %v7967 = vpack.c.b16 %v6351, %v6343
    %v7968 = vpack.c.b16 %v6352, %v6344
    %v7969 = vpack.c.b16 %v6353, %v6345
    %v7970 = vpack.c.b16 %v6354, %v6346
    %v7971 = vpack.c.b16 %v6355, %v6347
    %v7972 = vpack.c.b16 %v6356, %v6348
    %v7973 = vpack.c.b16 %v6365, %v6357
    %v7974 = vpack.c.b16 %v6366, %v6358
    %v7975 = vpack.c.b16 %v6367, %v6359
    %v7976 = vpack.c.b16 %v6368, %v6360
    %v7977 = vpack.c.b16 %v6369, %v6361
    %v7978 = vpack.c.b16 %v6370, %v6362
    %v7979 = vpack.c.b16 %v6371, %v6363
    %v7980 = vpack.c.b16 %v6372, %v6364
    %v7981 = vpack.c.b16 %v6381, %v6373
    %v7982 = vpack.c.b16 %v6382, %v6374
    %v7983 = vpack.c.b16 %v6383, %v6375
    %v7984 = vpack.c.b16 %v6384, %v6376
    %v7985 = vpack.c.b16 %v6385, %v6377
    %v7986 = vpack.c.b16 %v6386, %v6378
    %v7987 = vpack.c.b16 %v6387, %v6379
    %v7988 = vpack.c.b16 %v6388, %v6380
    %v7989 = vpack.c.b16 %v6397, %v6389
    %v7990 = vpack.c.b16 %v6398, %v6390
    %v7991 = vpack.c.b16 %v6399, %v6391
    %v7992 = vpack.c.b16 %v6400, %v6392
    %v7993 = vpack.c.b16 %v6401, %v6393
    %v7994 = vpack.c.b16 %v6402, %v6394
    %v7995 = vpack.c.b16 %v6403, %v6395
    %v7996 = vpack.c.b16 %v6404, %v6396
    %v7997 = vpack.c.b16 %v6413, %v6405
    %v7998 = vpack.c.b16 %v6414, %v6406
    %v7999 = vpack.c.b16 %v6415, %v6407
    %v8000 = vpack.c.b16 %v6416, %v6408
    %v8001 = vpack.c.b16 %v6417, %v6409
    %v8002 = vpack.c.b16 %v6418, %v6410
    %v8003 = vpack.c.b16 %v6419, %v6411
    %v8004 = vpack.c.b16 %v6420, %v6412
    %v8005 = vpack.c.b16 %v6429, %v6421
    %v8006 = vpack.c.b16 %v6430, %v6422
    %v8007 = vpack.c.b16 %v6431, %v6423
    %v8008 = vpack.c.b16 %v6432, %v6424
    %v8009 = vpack.c.b16 %v6433, %v6425
    %v8010 = vpack.c.b16 %v6434, %v6426
    %v8011 = vpack.c.b16 %v6435, %v6427
    %v8012 = vpack.c.b16 %v6436, %v6428
    %v8013 = vpack.c.b16 %v6445, %v6437
    %v8014 = vpack.c.b16 %v6446, %v6438
    %v8015 = vpack.c.b16 %v6447, %v6439
    %v8016 = vpack.c.b16 %v6448, %v6440
    %v8017 = vpack.c.b16 %v6449, %v6441
    %v8018 = vpack.c.b16 %v6450, %v6442
    %v8019 = vpack.c.b16 %v6451, %v6443
    %v8020 = vpack.c.b16 %v6452, %v6444
    %vm9589 = vcmask 523264
    %v9591 = vsel %vm9589, %v162, 0
    %9593 = vmatpush.bf16.msra.mxu0 %v6509
    %9594 = vmatpush.bf16.msra.mxu0 %v6501
    %9595 = vmatpush.bf16.msra.mxu0 %v6493
    %9596 = vmatpush.bf16.msra.mxu0 %v6485
    %9597 = vmatpush.bf16.msra.mxu0 %v6477
    %9598 = vmatpush.bf16.msra.mxu0 %v6469
    %9599 = vmatpush.bf16.msra.mxu0 %v6461
    %9600 = vmatpush.bf16.msra.mxu0 %v6453
    %9601 = vmatmul.bf16.gmra.mxu0 %v138
    %v9602 = vpop.f32.mrf.mxu0
    %v9603 = vadd.f32 %v1733, %v9602
    %v9604 = vpop.f32.mrf.mxu0
    %v9605 = vadd.f32 %v1733, %v9604
    %9606 = vdwg.mxu0
    %9607 = vmatpush.bf16.msra.mxu0 %v6573
    %9608 = vmatpush.bf16.msra.mxu0 %v6565
    %9609 = vmatpush.bf16.msra.mxu0 %v6557
    %9610 = vmatpush.bf16.msra.mxu0 %v6549
    %9611 = vmatpush.bf16.msra.mxu0 %v6541
    %9612 = vmatpush.bf16.msra.mxu0 %v6533
    %9613 = vmatpush.bf16.msra.mxu0 %v6525
    %9614 = vmatpush.bf16.msra.mxu0 %v6517
    %9615 = vmatmul.bf16.gmra.mxu0 %v139
    %v9616 = vpop.f32.mrf.mxu0
    %v9617 = vadd.f32 %v9603, %v9616
    %v9618 = vpop.f32.mrf.mxu0
    %v9619 = vadd.f32 %v9605, %v9618
    %9620 = vdwg.mxu0
    %9621 = vmatpush.bf16.msra.mxu0 %v6637
    %9622 = vmatpush.bf16.msra.mxu0 %v6629
    %9623 = vmatpush.bf16.msra.mxu0 %v6621
    %9624 = vmatpush.bf16.msra.mxu0 %v6613
    %9625 = vmatpush.bf16.msra.mxu0 %v6605
    %9626 = vmatpush.bf16.msra.mxu0 %v6597
    %9627 = vmatpush.bf16.msra.mxu0 %v6589
    %9628 = vmatpush.bf16.msra.mxu0 %v6581
    %9629 = vmatmul.bf16.gmra.mxu0 %v140
    %v9630 = vpop.f32.mrf.mxu0
    %v9631 = vadd.f32 %v9617, %v9630
    %v9632 = vpop.f32.mrf.mxu0
    %v9633 = vadd.f32 %v9619, %v9632
    %9634 = vdwg.mxu0
    %9635 = vmatpush.bf16.msra.mxu0 %v6701
    %9636 = vmatpush.bf16.msra.mxu0 %v6693
    %9637 = vmatpush.bf16.msra.mxu0 %v6685
    %9638 = vmatpush.bf16.msra.mxu0 %v6677
    %9639 = vmatpush.bf16.msra.mxu0 %v6669
    %9640 = vmatpush.bf16.msra.mxu0 %v6661
    %9641 = vmatpush.bf16.msra.mxu0 %v6653
    %9642 = vmatpush.bf16.msra.mxu0 %v6645
    %9643 = vmatmul.bf16.gmra.mxu0 %v141
    %v9644 = vpop.f32.mrf.mxu0
    %v9645 = vadd.f32 %v9631, %v9644
    %v9646 = vpop.f32.mrf.mxu0
    %v9647 = vadd.f32 %v9633, %v9646
    %9648 = vdwg.mxu0
    %9649 = vmatpush.bf16.msra.mxu0 %v6765
    %9650 = vmatpush.bf16.msra.mxu0 %v6757
    %9651 = vmatpush.bf16.msra.mxu0 %v6749
    %9652 = vmatpush.bf16.msra.mxu0 %v6741
    %9653 = vmatpush.bf16.msra.mxu0 %v6733
    %9654 = vmatpush.bf16.msra.mxu0 %v6725
    %9655 = vmatpush.bf16.msra.mxu0 %v6717
    %9656 = vmatpush.bf16.msra.mxu0 %v6709
    %9657 = vmatmul.bf16.gmra.mxu0 %v142
    %v9658 = vpop.f32.mrf.mxu0
    %v9659 = vadd.f32 %v9645, %v9658
    %v9660 = vpop.f32.mrf.mxu0
    %v9661 = vadd.f32 %v9647, %v9660
    %9662 = vdwg.mxu0
    %9663 = vmatpush.bf16.msra.mxu0 %v6829
    %9664 = vmatpush.bf16.msra.mxu0 %v6821
    %9665 = vmatpush.bf16.msra.mxu0 %v6813
    %9666 = vmatpush.bf16.msra.mxu0 %v6805
    %9667 = vmatpush.bf16.msra.mxu0 %v6797
    %9668 = vmatpush.bf16.msra.mxu0 %v6789
    %9669 = vmatpush.bf16.msra.mxu0 %v6781
    %9670 = vmatpush.bf16.msra.mxu0 %v6773
    %9671 = vmatmul.bf16.gmra.mxu0 %v143
    %v9672 = vpop.f32.mrf.mxu0
    %v9673 = vadd.f32 %v9659, %v9672
    %v9674 = vpop.f32.mrf.mxu0
    %v9675 = vadd.f32 %v9661, %v9674
    %9676 = vdwg.mxu0
    %9677 = vmatpush.bf16.msra.mxu0 %v6893
    %9678 = vmatpush.bf16.msra.mxu0 %v6885
    %9679 = vmatpush.bf16.msra.mxu0 %v6877
    %9680 = vmatpush.bf16.msra.mxu0 %v6869
    %9681 = vmatpush.bf16.msra.mxu0 %v6861
    %9682 = vmatpush.bf16.msra.mxu0 %v6853
    %9683 = vmatpush.bf16.msra.mxu0 %v6845
    %9684 = vmatpush.bf16.msra.mxu0 %v6837
    %9685 = vmatmul.bf16.gmra.mxu0 %v144
    %v9686 = vpop.f32.mrf.mxu0
    %v9687 = vadd.f32 %v9673, %v9686
    %v9688 = vpop.f32.mrf.mxu0
    %v9689 = vadd.f32 %v9675, %v9688
    %9690 = vdwg.mxu0
    %9691 = vmatpush.bf16.msra.mxu0 %v6957
    %9692 = vmatpush.bf16.msra.mxu0 %v6949
    %9693 = vmatpush.bf16.msra.mxu0 %v6941
    %9694 = vmatpush.bf16.msra.mxu0 %v6933
    %9695 = vmatpush.bf16.msra.mxu0 %v6925
    %9696 = vmatpush.bf16.msra.mxu0 %v6917
    %9697 = vmatpush.bf16.msra.mxu0 %v6909
    %9698 = vmatpush.bf16.msra.mxu0 %v6901
    %9699 = vmatmul.bf16.gmra.mxu0 %v145
    %v9700 = vpop.f32.mrf.mxu0
    %v9701 = vadd.f32 %v9687, %v9700
    %v9702 = vpop.f32.mrf.mxu0
    %v9703 = vadd.f32 %v9689, %v9702
    %9704 = vdwg.mxu0
    %9705 = vmatpush.bf16.msra.mxu0 %v7021
    %9706 = vmatpush.bf16.msra.mxu0 %v7013
    %9707 = vmatpush.bf16.msra.mxu0 %v7005
    %9708 = vmatpush.bf16.msra.mxu0 %v6997
    %9709 = vmatpush.bf16.msra.mxu0 %v6989
    %9710 = vmatpush.bf16.msra.mxu0 %v6981
    %9711 = vmatpush.bf16.msra.mxu0 %v6973
    %9712 = vmatpush.bf16.msra.mxu0 %v6965
    %9713 = vmatmul.bf16.gmra.mxu0 %v146
    %v9714 = vpop.f32.mrf.mxu0
    %v9715 = vadd.f32 %v9701, %v9714
    %v9716 = vpop.f32.mrf.mxu0
    %v9717 = vadd.f32 %v9703, %v9716
    %9718 = vdwg.mxu0
    %9719 = vmatpush.bf16.msra.mxu0 %v7085
    %9720 = vmatpush.bf16.msra.mxu0 %v7077
    %9721 = vmatpush.bf16.msra.mxu0 %v7069
    %9722 = vmatpush.bf16.msra.mxu0 %v7061
    %9723 = vmatpush.bf16.msra.mxu0 %v7053
    %9724 = vmatpush.bf16.msra.mxu0 %v7045
    %9725 = vmatpush.bf16.msra.mxu0 %v7037
    %9726 = vmatpush.bf16.msra.mxu0 %v7029
    %9727 = vmatmul.bf16.gmra.mxu0 %v147
    %v9728 = vpop.f32.mrf.mxu0
    %v9729 = vadd.f32 %v9715, %v9728
    %v9730 = vpop.f32.mrf.mxu0
    %v9731 = vadd.f32 %v9717, %v9730
    %9732 = vdwg.mxu0
    %9733 = vmatpush.bf16.msra.mxu0 %v7149
    %9734 = vmatpush.bf16.msra.mxu0 %v7141
    %9735 = vmatpush.bf16.msra.mxu0 %v7133
    %9736 = vmatpush.bf16.msra.mxu0 %v7125
    %9737 = vmatpush.bf16.msra.mxu0 %v7117
    %9738 = vmatpush.bf16.msra.mxu0 %v7109
    %9739 = vmatpush.bf16.msra.mxu0 %v7101
    %9740 = vmatpush.bf16.msra.mxu0 %v7093
    %9741 = vmatmul.bf16.gmra.mxu0 %v148
    %v9742 = vpop.f32.mrf.mxu0
    %v9743 = vadd.f32 %v9729, %v9742
    %v9744 = vpop.f32.mrf.mxu0
    %v9745 = vadd.f32 %v9731, %v9744
    %9746 = vdwg.mxu0
    %9747 = vmatpush.bf16.msra.mxu0 %v7213
    %9748 = vmatpush.bf16.msra.mxu0 %v7205
    %9749 = vmatpush.bf16.msra.mxu0 %v7197
    %9750 = vmatpush.bf16.msra.mxu0 %v7189
    %9751 = vmatpush.bf16.msra.mxu0 %v7181
    %9752 = vmatpush.bf16.msra.mxu0 %v7173
    %9753 = vmatpush.bf16.msra.mxu0 %v7165
    %9754 = vmatpush.bf16.msra.mxu0 %v7157
    %9755 = vmatmul.bf16.gmra.mxu0 %v149
    %v9756 = vpop.f32.mrf.mxu0
    %v9757 = vadd.f32 %v9743, %v9756
    %v9758 = vpop.f32.mrf.mxu0
    %v9759 = vadd.f32 %v9745, %v9758
    %9760 = vdwg.mxu0
    %9761 = vmatpush.bf16.msra.mxu0 %v7277
    %9762 = vmatpush.bf16.msra.mxu0 %v7269
    %9763 = vmatpush.bf16.msra.mxu0 %v7261
    %9764 = vmatpush.bf16.msra.mxu0 %v7253
    %9765 = vmatpush.bf16.msra.mxu0 %v7245
    %9766 = vmatpush.bf16.msra.mxu0 %v7237
    %9767 = vmatpush.bf16.msra.mxu0 %v7229
    %9768 = vmatpush.bf16.msra.mxu0 %v7221
    %9769 = vmatmul.bf16.gmra.mxu0 %v150
    %v9770 = vpop.f32.mrf.mxu0
    %v9771 = vadd.f32 %v9757, %v9770
    %v9772 = vpop.f32.mrf.mxu0
    %v9773 = vadd.f32 %v9759, %v9772
    %9774 = vdwg.mxu0
    %9775 = vmatpush.bf16.msra.mxu0 %v7341
    %9776 = vmatpush.bf16.msra.mxu0 %v7333
    %9777 = vmatpush.bf16.msra.mxu0 %v7325
    %9778 = vmatpush.bf16.msra.mxu0 %v7317
    %9779 = vmatpush.bf16.msra.mxu0 %v7309
    %9780 = vmatpush.bf16.msra.mxu0 %v7301
    %9781 = vmatpush.bf16.msra.mxu0 %v7293
    %9782 = vmatpush.bf16.msra.mxu0 %v7285
    %9783 = vmatmul.bf16.gmra.mxu0 %v151
    %v9784 = vpop.f32.mrf.mxu0
    %v9785 = vadd.f32 %v9771, %v9784
    %v9786 = vpop.f32.mrf.mxu0
    %v9787 = vadd.f32 %v9773, %v9786
    %9788 = vdwg.mxu0
    %9789 = vmatpush.bf16.msra.mxu0 %v7405
    %9790 = vmatpush.bf16.msra.mxu0 %v7397
    %9791 = vmatpush.bf16.msra.mxu0 %v7389
    %9792 = vmatpush.bf16.msra.mxu0 %v7381
    %9793 = vmatpush.bf16.msra.mxu0 %v7373
    %9794 = vmatpush.bf16.msra.mxu0 %v7365
    %9795 = vmatpush.bf16.msra.mxu0 %v7357
    %9796 = vmatpush.bf16.msra.mxu0 %v7349
    %9797 = vmatmul.bf16.gmra.mxu0 %v152
    %v9798 = vpop.f32.mrf.mxu0
    %v9799 = vadd.f32 %v9785, %v9798
    %v9800 = vpop.f32.mrf.mxu0
    %v9801 = vadd.f32 %v9787, %v9800
    %9802 = vdwg.mxu0
    %9803 = vmatpush.bf16.msra.mxu0 %v7469
    %9804 = vmatpush.bf16.msra.mxu0 %v7461
    %9805 = vmatpush.bf16.msra.mxu0 %v7453
    %9806 = vmatpush.bf16.msra.mxu0 %v7445
    %9807 = vmatpush.bf16.msra.mxu0 %v7437
    %9808 = vmatpush.bf16.msra.mxu0 %v7429
    %9809 = vmatpush.bf16.msra.mxu0 %v7421
    %9810 = vmatpush.bf16.msra.mxu0 %v7413
    %9811 = vmatmul.bf16.gmra.mxu0 %v153
    %v9812 = vpop.f32.mrf.mxu0
    %v9813 = vadd.f32 %v9799, %v9812
    %v9814 = vpop.f32.mrf.mxu0
    %v9815 = vadd.f32 %v9801, %v9814
    %9816 = vdwg.mxu0
    %9817 = vmatpush.bf16.msra.mxu0 %v7533
    %9818 = vmatpush.bf16.msra.mxu0 %v7525
    %9819 = vmatpush.bf16.msra.mxu0 %v7517
    %9820 = vmatpush.bf16.msra.mxu0 %v7509
    %9821 = vmatpush.bf16.msra.mxu0 %v7501
    %9822 = vmatpush.bf16.msra.mxu0 %v7493
    %9823 = vmatpush.bf16.msra.mxu0 %v7485
    %9824 = vmatpush.bf16.msra.mxu0 %v7477
    %9825 = vmatmul.bf16.gmra.mxu0 %v154
    %v9826 = vpop.f32.mrf.mxu0
    %v9827 = vadd.f32 %v9813, %v9826
    %v9828 = vpop.f32.mrf.mxu0
    %v9829 = vadd.f32 %v9815, %v9828
    %9830 = vdwg.mxu0
    %9831 = vmatpush.bf16.msra.mxu0 %v7597
    %9832 = vmatpush.bf16.msra.mxu0 %v7589
    %9833 = vmatpush.bf16.msra.mxu0 %v7581
    %9834 = vmatpush.bf16.msra.mxu0 %v7573
    %9835 = vmatpush.bf16.msra.mxu0 %v7565
    %9836 = vmatpush.bf16.msra.mxu0 %v7557
    %9837 = vmatpush.bf16.msra.mxu0 %v7549
    %9838 = vmatpush.bf16.msra.mxu0 %v7541
    %9839 = vmatmul.bf16.gmra.mxu0 %v155
    %v9840 = vpop.f32.mrf.mxu0
    %v9841 = vadd.f32 %v9827, %v9840
    %v9842 = vpop.f32.mrf.mxu0
    %v9843 = vadd.f32 %v9829, %v9842
    %9844 = vdwg.mxu0
    %9845 = vmatpush.bf16.msra.mxu0 %v7661
    %9846 = vmatpush.bf16.msra.mxu0 %v7653
    %9847 = vmatpush.bf16.msra.mxu0 %v7645
    %9848 = vmatpush.bf16.msra.mxu0 %v7637
    %9849 = vmatpush.bf16.msra.mxu0 %v7629
    %9850 = vmatpush.bf16.msra.mxu0 %v7621
    %9851 = vmatpush.bf16.msra.mxu0 %v7613
    %9852 = vmatpush.bf16.msra.mxu0 %v7605
    %9853 = vmatmul.bf16.gmra.mxu0 %v156
    %v9854 = vpop.f32.mrf.mxu0
    %v9855 = vadd.f32 %v9841, %v9854
    %v9856 = vpop.f32.mrf.mxu0
    %v9857 = vadd.f32 %v9843, %v9856
    %9858 = vdwg.mxu0
    %9859 = vmatpush.bf16.msra.mxu0 %v7725
    %9860 = vmatpush.bf16.msra.mxu0 %v7717
    %9861 = vmatpush.bf16.msra.mxu0 %v7709
    %9862 = vmatpush.bf16.msra.mxu0 %v7701
    %9863 = vmatpush.bf16.msra.mxu0 %v7693
    %9864 = vmatpush.bf16.msra.mxu0 %v7685
    %9865 = vmatpush.bf16.msra.mxu0 %v7677
    %9866 = vmatpush.bf16.msra.mxu0 %v7669
    %9867 = vmatmul.bf16.gmra.mxu0 %v157
    %v9868 = vpop.f32.mrf.mxu0
    %v9869 = vadd.f32 %v9855, %v9868
    %v9870 = vpop.f32.mrf.mxu0
    %v9871 = vadd.f32 %v9857, %v9870
    %9872 = vdwg.mxu0
    %9873 = vmatpush.bf16.msra.mxu0 %v7789
    %9874 = vmatpush.bf16.msra.mxu0 %v7781
    %9875 = vmatpush.bf16.msra.mxu0 %v7773
    %9876 = vmatpush.bf16.msra.mxu0 %v7765
    %9877 = vmatpush.bf16.msra.mxu0 %v7757
    %9878 = vmatpush.bf16.msra.mxu0 %v7749
    %9879 = vmatpush.bf16.msra.mxu0 %v7741
    %9880 = vmatpush.bf16.msra.mxu0 %v7733
    %9881 = vmatmul.bf16.gmra.mxu0 %v158
    %v9882 = vpop.f32.mrf.mxu0
    %v9883 = vadd.f32 %v9869, %v9882
    %v9884 = vpop.f32.mrf.mxu0
    %v9885 = vadd.f32 %v9871, %v9884
    %9886 = vdwg.mxu0
    %9887 = vmatpush.bf16.msra.mxu0 %v7853
    %9888 = vmatpush.bf16.msra.mxu0 %v7845
    %9889 = vmatpush.bf16.msra.mxu0 %v7837
    %9890 = vmatpush.bf16.msra.mxu0 %v7829
    %9891 = vmatpush.bf16.msra.mxu0 %v7821
    %9892 = vmatpush.bf16.msra.mxu0 %v7813
    %9893 = vmatpush.bf16.msra.mxu0 %v7805
    %9894 = vmatpush.bf16.msra.mxu0 %v7797
    %9895 = vmatmul.bf16.gmra.mxu0 %v159
    %v9896 = vpop.f32.mrf.mxu0
    %v9897 = vadd.f32 %v9883, %v9896
    %v9898 = vpop.f32.mrf.mxu0
    %v9899 = vadd.f32 %v9885, %v9898
    %9900 = vdwg.mxu0
    %9901 = vmatpush.bf16.msra.mxu0 %v7917
    %9902 = vmatpush.bf16.msra.mxu0 %v7909
    %9903 = vmatpush.bf16.msra.mxu0 %v7901
    %9904 = vmatpush.bf16.msra.mxu0 %v7893
    %9905 = vmatpush.bf16.msra.mxu0 %v7885
    %9906 = vmatpush.bf16.msra.mxu0 %v7877
    %9907 = vmatpush.bf16.msra.mxu0 %v7869
    %9908 = vmatpush.bf16.msra.mxu0 %v7861
    %9909 = vmatmul.bf16.gmra.mxu0 %v160
    %v9910 = vpop.f32.mrf.mxu0
    %v9911 = vadd.f32 %v9897, %v9910
    %v9912 = vpop.f32.mrf.mxu0
    %v9913 = vadd.f32 %v9899, %v9912
    %9914 = vdwg.mxu0
    %9915 = vmatpush.bf16.msra.mxu0 %v7981
    %9916 = vmatpush.bf16.msra.mxu0 %v7973
    %9917 = vmatpush.bf16.msra.mxu0 %v7965
    %9918 = vmatpush.bf16.msra.mxu0 %v7957
    %9919 = vmatpush.bf16.msra.mxu0 %v7949
    %9920 = vmatpush.bf16.msra.mxu0 %v7941
    %9921 = vmatpush.bf16.msra.mxu0 %v7933
    %9922 = vmatpush.bf16.msra.mxu0 %v7925
    %9923 = vmatmul.bf16.gmra.mxu0 %v161
    %v9924 = vpop.f32.mrf.mxu0
    %v9925 = vadd.f32 %v9911, %v9924
    %v9926 = vpop.f32.mrf.mxu0
    %v9927 = vadd.f32 %v9913, %v9926
    %9928 = vdwg.mxu0
    %9929 = vmatpush.bf16.msra.mxu0 0
    %9930 = vmatpush.bf16.msra.mxu0 0
    %9931 = vmatpush.bf16.msra.mxu0 0
    %9932 = vmatpush.bf16.msra.mxu0 0
    %9933 = vmatpush.bf16.msra.mxu0 %v8013
    %9934 = vmatpush.bf16.msra.mxu0 %v8005
    %9935 = vmatpush.bf16.msra.mxu0 %v7997
    %9936 = vmatpush.bf16.msra.mxu0 %v7989
    %9937 = vmatmul.bf16.gmra.mxu0 %v9591
    %v9938 = vpop.f32.mrf.mxu0
    %v9939 = vadd.f32 %v9925, %v9938
    %v9940 = vpop.f32.mrf.mxu0
    %v9941 = vadd.f32 %v9927, %v9940
    %9942 = vdwg.mxu0
    %9943 = vmatpush.bf16.msra.mxu0 %v6510
    %9944 = vmatpush.bf16.msra.mxu0 %v6502
    %9945 = vmatpush.bf16.msra.mxu0 %v6494
    %9946 = vmatpush.bf16.msra.mxu0 %v6486
    %9947 = vmatpush.bf16.msra.mxu0 %v6478
    %9948 = vmatpush.bf16.msra.mxu0 %v6470
    %9949 = vmatpush.bf16.msra.mxu0 %v6462
    %9950 = vmatpush.bf16.msra.mxu0 %v6454
    %9951 = vmatmul.bf16.gmra.mxu0 %v138
    %v9952 = vpop.f32.mrf.mxu0
    %v9953 = vadd.f32 %v1734, %v9952
    %v9954 = vpop.f32.mrf.mxu0
    %v9955 = vadd.f32 %v1734, %v9954
    %9956 = vdwg.mxu0
    %9957 = vmatpush.bf16.msra.mxu0 %v6574
    %9958 = vmatpush.bf16.msra.mxu0 %v6566
    %9959 = vmatpush.bf16.msra.mxu0 %v6558
    %9960 = vmatpush.bf16.msra.mxu0 %v6550
    %9961 = vmatpush.bf16.msra.mxu0 %v6542
    %9962 = vmatpush.bf16.msra.mxu0 %v6534
    %9963 = vmatpush.bf16.msra.mxu0 %v6526
    %9964 = vmatpush.bf16.msra.mxu0 %v6518
    %9965 = vmatmul.bf16.gmra.mxu0 %v139
    %v9966 = vpop.f32.mrf.mxu0
    %v9967 = vadd.f32 %v9953, %v9966
    %v9968 = vpop.f32.mrf.mxu0
    %v9969 = vadd.f32 %v9955, %v9968
    %9970 = vdwg.mxu0
    %9971 = vmatpush.bf16.msra.mxu0 %v6638
    %9972 = vmatpush.bf16.msra.mxu0 %v6630
    %9973 = vmatpush.bf16.msra.mxu0 %v6622
    %9974 = vmatpush.bf16.msra.mxu0 %v6614
    %9975 = vmatpush.bf16.msra.mxu0 %v6606
    %9976 = vmatpush.bf16.msra.mxu0 %v6598
    %9977 = vmatpush.bf16.msra.mxu0 %v6590
    %9978 = vmatpush.bf16.msra.mxu0 %v6582
    %9979 = vmatmul.bf16.gmra.mxu0 %v140
    %v9980 = vpop.f32.mrf.mxu0
    %v9981 = vadd.f32 %v9967, %v9980
    %v9982 = vpop.f32.mrf.mxu0
    %v9983 = vadd.f32 %v9969, %v9982
    %9984 = vdwg.mxu0
    %9985 = vmatpush.bf16.msra.mxu0 %v6702
    %9986 = vmatpush.bf16.msra.mxu0 %v6694
    %9987 = vmatpush.bf16.msra.mxu0 %v6686
    %9988 = vmatpush.bf16.msra.mxu0 %v6678
    %9989 = vmatpush.bf16.msra.mxu0 %v6670
    %9990 = vmatpush.bf16.msra.mxu0 %v6662
    %9991 = vmatpush.bf16.msra.mxu0 %v6654
    %9992 = vmatpush.bf16.msra.mxu0 %v6646
    %9993 = vmatmul.bf16.gmra.mxu0 %v141
    %v9994 = vpop.f32.mrf.mxu0
    %v9995 = vadd.f32 %v9981, %v9994
    %v9996 = vpop.f32.mrf.mxu0
    %v9997 = vadd.f32 %v9983, %v9996
    %9998 = vdwg.mxu0
    %9999 = vmatpush.bf16.msra.mxu0 %v6766
    %10000 = vmatpush.bf16.msra.mxu0 %v6758
    %10001 = vmatpush.bf16.msra.mxu0 %v6750
    %10002 = vmatpush.bf16.msra.mxu0 %v6742
    %10003 = vmatpush.bf16.msra.mxu0 %v6734
    %10004 = vmatpush.bf16.msra.mxu0 %v6726
    %10005 = vmatpush.bf16.msra.mxu0 %v6718
    %10006 = vmatpush.bf16.msra.mxu0 %v6710
    %10007 = vmatmul.bf16.gmra.mxu0 %v142
    %v10008 = vpop.f32.mrf.mxu0
    %v10009 = vadd.f32 %v9995, %v10008
    %v10010 = vpop.f32.mrf.mxu0
    %v10011 = vadd.f32 %v9997, %v10010
    %10012 = vdwg.mxu0
    %10013 = vmatpush.bf16.msra.mxu0 %v6830
    %10014 = vmatpush.bf16.msra.mxu0 %v6822
    %10015 = vmatpush.bf16.msra.mxu0 %v6814
    %10016 = vmatpush.bf16.msra.mxu0 %v6806
    %10017 = vmatpush.bf16.msra.mxu0 %v6798
    %10018 = vmatpush.bf16.msra.mxu0 %v6790
    %10019 = vmatpush.bf16.msra.mxu0 %v6782
    %10020 = vmatpush.bf16.msra.mxu0 %v6774
    %10021 = vmatmul.bf16.gmra.mxu0 %v143
    %v10022 = vpop.f32.mrf.mxu0
    %v10023 = vadd.f32 %v10009, %v10022
    %v10024 = vpop.f32.mrf.mxu0
    %v10025 = vadd.f32 %v10011, %v10024
    %10026 = vdwg.mxu0
    %10027 = vmatpush.bf16.msra.mxu0 %v6894
    %10028 = vmatpush.bf16.msra.mxu0 %v6886
    %10029 = vmatpush.bf16.msra.mxu0 %v6878
    %10030 = vmatpush.bf16.msra.mxu0 %v6870
    %10031 = vmatpush.bf16.msra.mxu0 %v6862
    %10032 = vmatpush.bf16.msra.mxu0 %v6854
    %10033 = vmatpush.bf16.msra.mxu0 %v6846
    %10034 = vmatpush.bf16.msra.mxu0 %v6838
    %10035 = vmatmul.bf16.gmra.mxu0 %v144
    %v10036 = vpop.f32.mrf.mxu0
    %v10037 = vadd.f32 %v10023, %v10036
    %v10038 = vpop.f32.mrf.mxu0
    %v10039 = vadd.f32 %v10025, %v10038
    %10040 = vdwg.mxu0
    %10041 = vmatpush.bf16.msra.mxu0 %v6958
    %10042 = vmatpush.bf16.msra.mxu0 %v6950
    %10043 = vmatpush.bf16.msra.mxu0 %v6942
    %10044 = vmatpush.bf16.msra.mxu0 %v6934
    %10045 = vmatpush.bf16.msra.mxu0 %v6926
    %10046 = vmatpush.bf16.msra.mxu0 %v6918
    %10047 = vmatpush.bf16.msra.mxu0 %v6910
    %10048 = vmatpush.bf16.msra.mxu0 %v6902
    %10049 = vmatmul.bf16.gmra.mxu0 %v145
    %v10050 = vpop.f32.mrf.mxu0
    %v10051 = vadd.f32 %v10037, %v10050
    %v10052 = vpop.f32.mrf.mxu0
    %v10053 = vadd.f32 %v10039, %v10052
    %10054 = vdwg.mxu0
    %10055 = vmatpush.bf16.msra.mxu0 %v7022
    %10056 = vmatpush.bf16.msra.mxu0 %v7014
    %10057 = vmatpush.bf16.msra.mxu0 %v7006
    %10058 = vmatpush.bf16.msra.mxu0 %v6998
    %10059 = vmatpush.bf16.msra.mxu0 %v6990
    %10060 = vmatpush.bf16.msra.mxu0 %v6982
    %10061 = vmatpush.bf16.msra.mxu0 %v6974
    %10062 = vmatpush.bf16.msra.mxu0 %v6966
    %10063 = vmatmul.bf16.gmra.mxu0 %v146
    %v10064 = vpop.f32.mrf.mxu0
    %v10065 = vadd.f32 %v10051, %v10064
    %v10066 = vpop.f32.mrf.mxu0
    %v10067 = vadd.f32 %v10053, %v10066
    %10068 = vdwg.mxu0
    %10069 = vmatpush.bf16.msra.mxu0 %v7086
    %10070 = vmatpush.bf16.msra.mxu0 %v7078
    %10071 = vmatpush.bf16.msra.mxu0 %v7070
    %10072 = vmatpush.bf16.msra.mxu0 %v7062
    %10073 = vmatpush.bf16.msra.mxu0 %v7054
    %10074 = vmatpush.bf16.msra.mxu0 %v7046
    %10075 = vmatpush.bf16.msra.mxu0 %v7038
    %10076 = vmatpush.bf16.msra.mxu0 %v7030
    %10077 = vmatmul.bf16.gmra.mxu0 %v147
    %v10078 = vpop.f32.mrf.mxu0
    %v10079 = vadd.f32 %v10065, %v10078
    %v10080 = vpop.f32.mrf.mxu0
    %v10081 = vadd.f32 %v10067, %v10080
    %10082 = vdwg.mxu0
    %10083 = vmatpush.bf16.msra.mxu0 %v7150
    %10084 = vmatpush.bf16.msra.mxu0 %v7142
    %10085 = vmatpush.bf16.msra.mxu0 %v7134
    %10086 = vmatpush.bf16.msra.mxu0 %v7126
    %10087 = vmatpush.bf16.msra.mxu0 %v7118
    %10088 = vmatpush.bf16.msra.mxu0 %v7110
    %10089 = vmatpush.bf16.msra.mxu0 %v7102
    %10090 = vmatpush.bf16.msra.mxu0 %v7094
    %10091 = vmatmul.bf16.gmra.mxu0 %v148
    %v10092 = vpop.f32.mrf.mxu0
    %v10093 = vadd.f32 %v10079, %v10092
    %v10094 = vpop.f32.mrf.mxu0
    %v10095 = vadd.f32 %v10081, %v10094
    %10096 = vdwg.mxu0
    %10097 = vmatpush.bf16.msra.mxu0 %v7214
    %10098 = vmatpush.bf16.msra.mxu0 %v7206
    %10099 = vmatpush.bf16.msra.mxu0 %v7198
    %10100 = vmatpush.bf16.msra.mxu0 %v7190
    %10101 = vmatpush.bf16.msra.mxu0 %v7182
    %10102 = vmatpush.bf16.msra.mxu0 %v7174
    %10103 = vmatpush.bf16.msra.mxu0 %v7166
    %10104 = vmatpush.bf16.msra.mxu0 %v7158
    %10105 = vmatmul.bf16.gmra.mxu0 %v149
    %v10106 = vpop.f32.mrf.mxu0
    %v10107 = vadd.f32 %v10093, %v10106
    %v10108 = vpop.f32.mrf.mxu0
    %v10109 = vadd.f32 %v10095, %v10108
    %10110 = vdwg.mxu0
    %10111 = vmatpush.bf16.msra.mxu0 %v7278
    %10112 = vmatpush.bf16.msra.mxu0 %v7270
    %10113 = vmatpush.bf16.msra.mxu0 %v7262
    %10114 = vmatpush.bf16.msra.mxu0 %v7254
    %10115 = vmatpush.bf16.msra.mxu0 %v7246
    %10116 = vmatpush.bf16.msra.mxu0 %v7238
    %10117 = vmatpush.bf16.msra.mxu0 %v7230
    %10118 = vmatpush.bf16.msra.mxu0 %v7222
    %10119 = vmatmul.bf16.gmra.mxu0 %v150
    %v10120 = vpop.f32.mrf.mxu0
    %v10121 = vadd.f32 %v10107, %v10120
    %v10122 = vpop.f32.mrf.mxu0
    %v10123 = vadd.f32 %v10109, %v10122
    %10124 = vdwg.mxu0
    %10125 = vmatpush.bf16.msra.mxu0 %v7342
    %10126 = vmatpush.bf16.msra.mxu0 %v7334
    %10127 = vmatpush.bf16.msra.mxu0 %v7326
    %10128 = vmatpush.bf16.msra.mxu0 %v7318
    %10129 = vmatpush.bf16.msra.mxu0 %v7310
    %10130 = vmatpush.bf16.msra.mxu0 %v7302
    %10131 = vmatpush.bf16.msra.mxu0 %v7294
    %10132 = vmatpush.bf16.msra.mxu0 %v7286
    %10133 = vmatmul.bf16.gmra.mxu0 %v151
    %v10134 = vpop.f32.mrf.mxu0
    %v10135 = vadd.f32 %v10121, %v10134
    %v10136 = vpop.f32.mrf.mxu0
    %v10137 = vadd.f32 %v10123, %v10136
    %10138 = vdwg.mxu0
    %10139 = vmatpush.bf16.msra.mxu0 %v7406
    %10140 = vmatpush.bf16.msra.mxu0 %v7398
    %10141 = vmatpush.bf16.msra.mxu0 %v7390
    %10142 = vmatpush.bf16.msra.mxu0 %v7382
    %10143 = vmatpush.bf16.msra.mxu0 %v7374
    %10144 = vmatpush.bf16.msra.mxu0 %v7366
    %10145 = vmatpush.bf16.msra.mxu0 %v7358
    %10146 = vmatpush.bf16.msra.mxu0 %v7350
    %10147 = vmatmul.bf16.gmra.mxu0 %v152
    %v10148 = vpop.f32.mrf.mxu0
    %v10149 = vadd.f32 %v10135, %v10148
    %v10150 = vpop.f32.mrf.mxu0
    %v10151 = vadd.f32 %v10137, %v10150
    %10152 = vdwg.mxu0
    %10153 = vmatpush.bf16.msra.mxu0 %v7470
    %10154 = vmatpush.bf16.msra.mxu0 %v7462
    %10155 = vmatpush.bf16.msra.mxu0 %v7454
    %10156 = vmatpush.bf16.msra.mxu0 %v7446
    %10157 = vmatpush.bf16.msra.mxu0 %v7438
    %10158 = vmatpush.bf16.msra.mxu0 %v7430
    %10159 = vmatpush.bf16.msra.mxu0 %v7422
    %10160 = vmatpush.bf16.msra.mxu0 %v7414
    %10161 = vmatmul.bf16.gmra.mxu0 %v153
    %v10162 = vpop.f32.mrf.mxu0
    %v10163 = vadd.f32 %v10149, %v10162
    %v10164 = vpop.f32.mrf.mxu0
    %v10165 = vadd.f32 %v10151, %v10164
    %10166 = vdwg.mxu0
    %10167 = vmatpush.bf16.msra.mxu0 %v7534
    %10168 = vmatpush.bf16.msra.mxu0 %v7526
    %10169 = vmatpush.bf16.msra.mxu0 %v7518
    %10170 = vmatpush.bf16.msra.mxu0 %v7510
    %10171 = vmatpush.bf16.msra.mxu0 %v7502
    %10172 = vmatpush.bf16.msra.mxu0 %v7494
    %10173 = vmatpush.bf16.msra.mxu0 %v7486
    %10174 = vmatpush.bf16.msra.mxu0 %v7478
    %10175 = vmatmul.bf16.gmra.mxu0 %v154
    %v10176 = vpop.f32.mrf.mxu0
    %v10177 = vadd.f32 %v10163, %v10176
    %v10178 = vpop.f32.mrf.mxu0
    %v10179 = vadd.f32 %v10165, %v10178
    %10180 = vdwg.mxu0
    %10181 = vmatpush.bf16.msra.mxu0 %v7598
    %10182 = vmatpush.bf16.msra.mxu0 %v7590
    %10183 = vmatpush.bf16.msra.mxu0 %v7582
    %10184 = vmatpush.bf16.msra.mxu0 %v7574
    %10185 = vmatpush.bf16.msra.mxu0 %v7566
    %10186 = vmatpush.bf16.msra.mxu0 %v7558
    %10187 = vmatpush.bf16.msra.mxu0 %v7550
    %10188 = vmatpush.bf16.msra.mxu0 %v7542
    %10189 = vmatmul.bf16.gmra.mxu0 %v155
    %v10190 = vpop.f32.mrf.mxu0
    %v10191 = vadd.f32 %v10177, %v10190
    %v10192 = vpop.f32.mrf.mxu0
    %v10193 = vadd.f32 %v10179, %v10192
    %10194 = vdwg.mxu0
    %10195 = vmatpush.bf16.msra.mxu0 %v7662
    %10196 = vmatpush.bf16.msra.mxu0 %v7654
    %10197 = vmatpush.bf16.msra.mxu0 %v7646
    %10198 = vmatpush.bf16.msra.mxu0 %v7638
    %10199 = vmatpush.bf16.msra.mxu0 %v7630
    %10200 = vmatpush.bf16.msra.mxu0 %v7622
    %10201 = vmatpush.bf16.msra.mxu0 %v7614
    %10202 = vmatpush.bf16.msra.mxu0 %v7606
    %10203 = vmatmul.bf16.gmra.mxu0 %v156
    %v10204 = vpop.f32.mrf.mxu0
    %v10205 = vadd.f32 %v10191, %v10204
    %v10206 = vpop.f32.mrf.mxu0
    %v10207 = vadd.f32 %v10193, %v10206
    %10208 = vdwg.mxu0
    %10209 = vmatpush.bf16.msra.mxu0 %v7726
    %10210 = vmatpush.bf16.msra.mxu0 %v7718
    %10211 = vmatpush.bf16.msra.mxu0 %v7710
    %10212 = vmatpush.bf16.msra.mxu0 %v7702
    %10213 = vmatpush.bf16.msra.mxu0 %v7694
    %10214 = vmatpush.bf16.msra.mxu0 %v7686
    %10215 = vmatpush.bf16.msra.mxu0 %v7678
    %10216 = vmatpush.bf16.msra.mxu0 %v7670
    %10217 = vmatmul.bf16.gmra.mxu0 %v157
    %v10218 = vpop.f32.mrf.mxu0
    %v10219 = vadd.f32 %v10205, %v10218
    %v10220 = vpop.f32.mrf.mxu0
    %v10221 = vadd.f32 %v10207, %v10220
    %10222 = vdwg.mxu0
    %10223 = vmatpush.bf16.msra.mxu0 %v7790
    %10224 = vmatpush.bf16.msra.mxu0 %v7782
    %10225 = vmatpush.bf16.msra.mxu0 %v7774
    %10226 = vmatpush.bf16.msra.mxu0 %v7766
    %10227 = vmatpush.bf16.msra.mxu0 %v7758
    %10228 = vmatpush.bf16.msra.mxu0 %v7750
    %10229 = vmatpush.bf16.msra.mxu0 %v7742
    %10230 = vmatpush.bf16.msra.mxu0 %v7734
    %10231 = vmatmul.bf16.gmra.mxu0 %v158
    %v10232 = vpop.f32.mrf.mxu0
    %v10233 = vadd.f32 %v10219, %v10232
    %v10234 = vpop.f32.mrf.mxu0
    %v10235 = vadd.f32 %v10221, %v10234
    %10236 = vdwg.mxu0
    %10237 = vmatpush.bf16.msra.mxu0 %v7854
    %10238 = vmatpush.bf16.msra.mxu0 %v7846
    %10239 = vmatpush.bf16.msra.mxu0 %v7838
    %10240 = vmatpush.bf16.msra.mxu0 %v7830
    %10241 = vmatpush.bf16.msra.mxu0 %v7822
    %10242 = vmatpush.bf16.msra.mxu0 %v7814
    %10243 = vmatpush.bf16.msra.mxu0 %v7806
    %10244 = vmatpush.bf16.msra.mxu0 %v7798
    %10245 = vmatmul.bf16.gmra.mxu0 %v159
    %v10246 = vpop.f32.mrf.mxu0
    %v10247 = vadd.f32 %v10233, %v10246
    %v10248 = vpop.f32.mrf.mxu0
    %v10249 = vadd.f32 %v10235, %v10248
    %10250 = vdwg.mxu0
    %10251 = vmatpush.bf16.msra.mxu0 %v7918
    %10252 = vmatpush.bf16.msra.mxu0 %v7910
    %10253 = vmatpush.bf16.msra.mxu0 %v7902
    %10254 = vmatpush.bf16.msra.mxu0 %v7894
    %10255 = vmatpush.bf16.msra.mxu0 %v7886
    %10256 = vmatpush.bf16.msra.mxu0 %v7878
    %10257 = vmatpush.bf16.msra.mxu0 %v7870
    %10258 = vmatpush.bf16.msra.mxu0 %v7862
    %10259 = vmatmul.bf16.gmra.mxu0 %v160
    %v10260 = vpop.f32.mrf.mxu0
    %v10261 = vadd.f32 %v10247, %v10260
    %v10262 = vpop.f32.mrf.mxu0
    %v10263 = vadd.f32 %v10249, %v10262
    %10264 = vdwg.mxu0
    %10265 = vmatpush.bf16.msra.mxu0 %v7982
    %10266 = vmatpush.bf16.msra.mxu0 %v7974
    %10267 = vmatpush.bf16.msra.mxu0 %v7966
    %10268 = vmatpush.bf16.msra.mxu0 %v7958
    %10269 = vmatpush.bf16.msra.mxu0 %v7950
    %10270 = vmatpush.bf16.msra.mxu0 %v7942
    %10271 = vmatpush.bf16.msra.mxu0 %v7934
    %10272 = vmatpush.bf16.msra.mxu0 %v7926
    %10273 = vmatmul.bf16.gmra.mxu0 %v161
    %v10274 = vpop.f32.mrf.mxu0
    %v10275 = vadd.f32 %v10261, %v10274
    %v10276 = vpop.f32.mrf.mxu0
    %v10277 = vadd.f32 %v10263, %v10276
    %10278 = vdwg.mxu0
    %10279 = vmatpush.bf16.msra.mxu0 0
    %10280 = vmatpush.bf16.msra.mxu0 0
    %10281 = vmatpush.bf16.msra.mxu0 0
    %10282 = vmatpush.bf16.msra.mxu0 0
    %10283 = vmatpush.bf16.msra.mxu0 %v8014
    %10284 = vmatpush.bf16.msra.mxu0 %v8006
    %10285 = vmatpush.bf16.msra.mxu0 %v7998
    %10286 = vmatpush.bf16.msra.mxu0 %v7990
    %10287 = vmatmul.bf16.gmra.mxu0 %v9591
    %v10288 = vpop.f32.mrf.mxu0
    %v10289 = vadd.f32 %v10275, %v10288
    %v10290 = vpop.f32.mrf.mxu0
    %v10291 = vadd.f32 %v10277, %v10290
    %10292 = vdwg.mxu0
    %10293 = vmatpush.bf16.msra.mxu0 %v6511
    %10294 = vmatpush.bf16.msra.mxu0 %v6503
    %10295 = vmatpush.bf16.msra.mxu0 %v6495
    %10296 = vmatpush.bf16.msra.mxu0 %v6487
    %10297 = vmatpush.bf16.msra.mxu0 %v6479
    %10298 = vmatpush.bf16.msra.mxu0 %v6471
    %10299 = vmatpush.bf16.msra.mxu0 %v6463
    %10300 = vmatpush.bf16.msra.mxu0 %v6455
    %10301 = vmatmul.bf16.gmra.mxu0 %v138
    %v10302 = vpop.f32.mrf.mxu0
    %v10303 = vadd.f32 %v1735, %v10302
    %v10304 = vpop.f32.mrf.mxu0
    %v10305 = vadd.f32 %v1735, %v10304
    %10306 = vdwg.mxu0
    %10307 = vmatpush.bf16.msra.mxu0 %v6575
    %10308 = vmatpush.bf16.msra.mxu0 %v6567
    %10309 = vmatpush.bf16.msra.mxu0 %v6559
    %10310 = vmatpush.bf16.msra.mxu0 %v6551
    %10311 = vmatpush.bf16.msra.mxu0 %v6543
    %10312 = vmatpush.bf16.msra.mxu0 %v6535
    %10313 = vmatpush.bf16.msra.mxu0 %v6527
    %10314 = vmatpush.bf16.msra.mxu0 %v6519
    %10315 = vmatmul.bf16.gmra.mxu0 %v139
    %v10316 = vpop.f32.mrf.mxu0
    %v10317 = vadd.f32 %v10303, %v10316
    %v10318 = vpop.f32.mrf.mxu0
    %v10319 = vadd.f32 %v10305, %v10318
    %10320 = vdwg.mxu0
    %10321 = vmatpush.bf16.msra.mxu0 %v6639
    %10322 = vmatpush.bf16.msra.mxu0 %v6631
    %10323 = vmatpush.bf16.msra.mxu0 %v6623
    %10324 = vmatpush.bf16.msra.mxu0 %v6615
    %10325 = vmatpush.bf16.msra.mxu0 %v6607
    %10326 = vmatpush.bf16.msra.mxu0 %v6599
    %10327 = vmatpush.bf16.msra.mxu0 %v6591
    %10328 = vmatpush.bf16.msra.mxu0 %v6583
    %10329 = vmatmul.bf16.gmra.mxu0 %v140
    %v10330 = vpop.f32.mrf.mxu0
    %v10331 = vadd.f32 %v10317, %v10330
    %v10332 = vpop.f32.mrf.mxu0
    %v10333 = vadd.f32 %v10319, %v10332
    %10334 = vdwg.mxu0
    %10335 = vmatpush.bf16.msra.mxu0 %v6703
    %10336 = vmatpush.bf16.msra.mxu0 %v6695
    %10337 = vmatpush.bf16.msra.mxu0 %v6687
    %10338 = vmatpush.bf16.msra.mxu0 %v6679
    %10339 = vmatpush.bf16.msra.mxu0 %v6671
    %10340 = vmatpush.bf16.msra.mxu0 %v6663
    %10341 = vmatpush.bf16.msra.mxu0 %v6655
    %10342 = vmatpush.bf16.msra.mxu0 %v6647
    %10343 = vmatmul.bf16.gmra.mxu0 %v141
    %v10344 = vpop.f32.mrf.mxu0
    %v10345 = vadd.f32 %v10331, %v10344
    %v10346 = vpop.f32.mrf.mxu0
    %v10347 = vadd.f32 %v10333, %v10346
    %10348 = vdwg.mxu0
    %10349 = vmatpush.bf16.msra.mxu0 %v6767
    %10350 = vmatpush.bf16.msra.mxu0 %v6759
    %10351 = vmatpush.bf16.msra.mxu0 %v6751
    %10352 = vmatpush.bf16.msra.mxu0 %v6743
    %10353 = vmatpush.bf16.msra.mxu0 %v6735
    %10354 = vmatpush.bf16.msra.mxu0 %v6727
    %10355 = vmatpush.bf16.msra.mxu0 %v6719
    %10356 = vmatpush.bf16.msra.mxu0 %v6711
    %10357 = vmatmul.bf16.gmra.mxu0 %v142
    %v10358 = vpop.f32.mrf.mxu0
    %v10359 = vadd.f32 %v10345, %v10358
    %v10360 = vpop.f32.mrf.mxu0
    %v10361 = vadd.f32 %v10347, %v10360
    %10362 = vdwg.mxu0
    %10363 = vmatpush.bf16.msra.mxu0 %v6831
    %10364 = vmatpush.bf16.msra.mxu0 %v6823
    %10365 = vmatpush.bf16.msra.mxu0 %v6815
    %10366 = vmatpush.bf16.msra.mxu0 %v6807
    %10367 = vmatpush.bf16.msra.mxu0 %v6799
    %10368 = vmatpush.bf16.msra.mxu0 %v6791
    %10369 = vmatpush.bf16.msra.mxu0 %v6783
    %10370 = vmatpush.bf16.msra.mxu0 %v6775
    %10371 = vmatmul.bf16.gmra.mxu0 %v143
    %v10372 = vpop.f32.mrf.mxu0
    %v10373 = vadd.f32 %v10359, %v10372
    %v10374 = vpop.f32.mrf.mxu0
    %v10375 = vadd.f32 %v10361, %v10374
    %10376 = vdwg.mxu0
    %10377 = vmatpush.bf16.msra.mxu0 %v6895
    %10378 = vmatpush.bf16.msra.mxu0 %v6887
    %10379 = vmatpush.bf16.msra.mxu0 %v6879
    %10380 = vmatpush.bf16.msra.mxu0 %v6871
    %10381 = vmatpush.bf16.msra.mxu0 %v6863
    %10382 = vmatpush.bf16.msra.mxu0 %v6855
    %10383 = vmatpush.bf16.msra.mxu0 %v6847
    %10384 = vmatpush.bf16.msra.mxu0 %v6839
    %10385 = vmatmul.bf16.gmra.mxu0 %v144
    %v10386 = vpop.f32.mrf.mxu0
    %v10387 = vadd.f32 %v10373, %v10386
    %v10388 = vpop.f32.mrf.mxu0
    %v10389 = vadd.f32 %v10375, %v10388
    %10390 = vdwg.mxu0
    %10391 = vmatpush.bf16.msra.mxu0 %v6959
    %10392 = vmatpush.bf16.msra.mxu0 %v6951
    %10393 = vmatpush.bf16.msra.mxu0 %v6943
    %10394 = vmatpush.bf16.msra.mxu0 %v6935
    %10395 = vmatpush.bf16.msra.mxu0 %v6927
    %10396 = vmatpush.bf16.msra.mxu0 %v6919
    %10397 = vmatpush.bf16.msra.mxu0 %v6911
    %10398 = vmatpush.bf16.msra.mxu0 %v6903
    %10399 = vmatmul.bf16.gmra.mxu0 %v145
    %v10400 = vpop.f32.mrf.mxu0
    %v10401 = vadd.f32 %v10387, %v10400
    %v10402 = vpop.f32.mrf.mxu0
    %v10403 = vadd.f32 %v10389, %v10402
    %10404 = vdwg.mxu0
    %10405 = vmatpush.bf16.msra.mxu0 %v7023
    %10406 = vmatpush.bf16.msra.mxu0 %v7015
    %10407 = vmatpush.bf16.msra.mxu0 %v7007
    %10408 = vmatpush.bf16.msra.mxu0 %v6999
    %10409 = vmatpush.bf16.msra.mxu0 %v6991
    %10410 = vmatpush.bf16.msra.mxu0 %v6983
    %10411 = vmatpush.bf16.msra.mxu0 %v6975
    %10412 = vmatpush.bf16.msra.mxu0 %v6967
    %10413 = vmatmul.bf16.gmra.mxu0 %v146
    %v10414 = vpop.f32.mrf.mxu0
    %v10415 = vadd.f32 %v10401, %v10414
    %v10416 = vpop.f32.mrf.mxu0
    %v10417 = vadd.f32 %v10403, %v10416
    %10418 = vdwg.mxu0
    %10419 = vmatpush.bf16.msra.mxu0 %v7087
    %10420 = vmatpush.bf16.msra.mxu0 %v7079
    %10421 = vmatpush.bf16.msra.mxu0 %v7071
    %10422 = vmatpush.bf16.msra.mxu0 %v7063
    %10423 = vmatpush.bf16.msra.mxu0 %v7055
    %10424 = vmatpush.bf16.msra.mxu0 %v7047
    %10425 = vmatpush.bf16.msra.mxu0 %v7039
    %10426 = vmatpush.bf16.msra.mxu0 %v7031
    %10427 = vmatmul.bf16.gmra.mxu0 %v147
    %v10428 = vpop.f32.mrf.mxu0
    %v10429 = vadd.f32 %v10415, %v10428
    %v10430 = vpop.f32.mrf.mxu0
    %v10431 = vadd.f32 %v10417, %v10430
    %10432 = vdwg.mxu0
    %10433 = vmatpush.bf16.msra.mxu0 %v7151
    %10434 = vmatpush.bf16.msra.mxu0 %v7143
    %10435 = vmatpush.bf16.msra.mxu0 %v7135
    %10436 = vmatpush.bf16.msra.mxu0 %v7127
    %10437 = vmatpush.bf16.msra.mxu0 %v7119
    %10438 = vmatpush.bf16.msra.mxu0 %v7111
    %10439 = vmatpush.bf16.msra.mxu0 %v7103
    %10440 = vmatpush.bf16.msra.mxu0 %v7095
    %10441 = vmatmul.bf16.gmra.mxu0 %v148
    %v10442 = vpop.f32.mrf.mxu0
    %v10443 = vadd.f32 %v10429, %v10442
    %v10444 = vpop.f32.mrf.mxu0
    %v10445 = vadd.f32 %v10431, %v10444
    %10446 = vdwg.mxu0
    %10447 = vmatpush.bf16.msra.mxu0 %v7215
    %10448 = vmatpush.bf16.msra.mxu0 %v7207
    %10449 = vmatpush.bf16.msra.mxu0 %v7199
    %10450 = vmatpush.bf16.msra.mxu0 %v7191
    %10451 = vmatpush.bf16.msra.mxu0 %v7183
    %10452 = vmatpush.bf16.msra.mxu0 %v7175
    %10453 = vmatpush.bf16.msra.mxu0 %v7167
    %10454 = vmatpush.bf16.msra.mxu0 %v7159
    %10455 = vmatmul.bf16.gmra.mxu0 %v149
    %v10456 = vpop.f32.mrf.mxu0
    %v10457 = vadd.f32 %v10443, %v10456
    %v10458 = vpop.f32.mrf.mxu0
    %v10459 = vadd.f32 %v10445, %v10458
    %10460 = vdwg.mxu0
    %10461 = vmatpush.bf16.msra.mxu0 %v7279
    %10462 = vmatpush.bf16.msra.mxu0 %v7271
    %10463 = vmatpush.bf16.msra.mxu0 %v7263
    %10464 = vmatpush.bf16.msra.mxu0 %v7255
    %10465 = vmatpush.bf16.msra.mxu0 %v7247
    %10466 = vmatpush.bf16.msra.mxu0 %v7239
    %10467 = vmatpush.bf16.msra.mxu0 %v7231
    %10468 = vmatpush.bf16.msra.mxu0 %v7223
    %10469 = vmatmul.bf16.gmra.mxu0 %v150
    %v10470 = vpop.f32.mrf.mxu0
    %v10471 = vadd.f32 %v10457, %v10470
    %v10472 = vpop.f32.mrf.mxu0
    %v10473 = vadd.f32 %v10459, %v10472
    %10474 = vdwg.mxu0
    %10475 = vmatpush.bf16.msra.mxu0 %v7343
    %10476 = vmatpush.bf16.msra.mxu0 %v7335
    %10477 = vmatpush.bf16.msra.mxu0 %v7327
    %10478 = vmatpush.bf16.msra.mxu0 %v7319
    %10479 = vmatpush.bf16.msra.mxu0 %v7311
    %10480 = vmatpush.bf16.msra.mxu0 %v7303
    %10481 = vmatpush.bf16.msra.mxu0 %v7295
    %10482 = vmatpush.bf16.msra.mxu0 %v7287
    %10483 = vmatmul.bf16.gmra.mxu0 %v151
    %v10484 = vpop.f32.mrf.mxu0
    %v10485 = vadd.f32 %v10471, %v10484
    %v10486 = vpop.f32.mrf.mxu0
    %v10487 = vadd.f32 %v10473, %v10486
    %10488 = vdwg.mxu0
    %10489 = vmatpush.bf16.msra.mxu0 %v7407
    %10490 = vmatpush.bf16.msra.mxu0 %v7399
    %10491 = vmatpush.bf16.msra.mxu0 %v7391
    %10492 = vmatpush.bf16.msra.mxu0 %v7383
    %10493 = vmatpush.bf16.msra.mxu0 %v7375
    %10494 = vmatpush.bf16.msra.mxu0 %v7367
    %10495 = vmatpush.bf16.msra.mxu0 %v7359
    %10496 = vmatpush.bf16.msra.mxu0 %v7351
    %10497 = vmatmul.bf16.gmra.mxu0 %v152
    %v10498 = vpop.f32.mrf.mxu0
    %v10499 = vadd.f32 %v10485, %v10498
    %v10500 = vpop.f32.mrf.mxu0
    %v10501 = vadd.f32 %v10487, %v10500
    %10502 = vdwg.mxu0
    %10503 = vmatpush.bf16.msra.mxu0 %v7471
    %10504 = vmatpush.bf16.msra.mxu0 %v7463
    %10505 = vmatpush.bf16.msra.mxu0 %v7455
    %10506 = vmatpush.bf16.msra.mxu0 %v7447
    %10507 = vmatpush.bf16.msra.mxu0 %v7439
    %10508 = vmatpush.bf16.msra.mxu0 %v7431
    %10509 = vmatpush.bf16.msra.mxu0 %v7423
    %10510 = vmatpush.bf16.msra.mxu0 %v7415
    %10511 = vmatmul.bf16.gmra.mxu0 %v153
    %v10512 = vpop.f32.mrf.mxu0
    %v10513 = vadd.f32 %v10499, %v10512
    %v10514 = vpop.f32.mrf.mxu0
    %v10515 = vadd.f32 %v10501, %v10514
    %10516 = vdwg.mxu0
    %10517 = vmatpush.bf16.msra.mxu0 %v7535
    %10518 = vmatpush.bf16.msra.mxu0 %v7527
    %10519 = vmatpush.bf16.msra.mxu0 %v7519
    %10520 = vmatpush.bf16.msra.mxu0 %v7511
    %10521 = vmatpush.bf16.msra.mxu0 %v7503
    %10522 = vmatpush.bf16.msra.mxu0 %v7495
    %10523 = vmatpush.bf16.msra.mxu0 %v7487
    %10524 = vmatpush.bf16.msra.mxu0 %v7479
    %10525 = vmatmul.bf16.gmra.mxu0 %v154
    %v10526 = vpop.f32.mrf.mxu0
    %v10527 = vadd.f32 %v10513, %v10526
    %v10528 = vpop.f32.mrf.mxu0
    %v10529 = vadd.f32 %v10515, %v10528
    %10530 = vdwg.mxu0
    %10531 = vmatpush.bf16.msra.mxu0 %v7599
    %10532 = vmatpush.bf16.msra.mxu0 %v7591
    %10533 = vmatpush.bf16.msra.mxu0 %v7583
    %10534 = vmatpush.bf16.msra.mxu0 %v7575
    %10535 = vmatpush.bf16.msra.mxu0 %v7567
    %10536 = vmatpush.bf16.msra.mxu0 %v7559
    %10537 = vmatpush.bf16.msra.mxu0 %v7551
    %10538 = vmatpush.bf16.msra.mxu0 %v7543
    %10539 = vmatmul.bf16.gmra.mxu0 %v155
    %v10540 = vpop.f32.mrf.mxu0
    %v10541 = vadd.f32 %v10527, %v10540
    %v10542 = vpop.f32.mrf.mxu0
    %v10543 = vadd.f32 %v10529, %v10542
    %10544 = vdwg.mxu0
    %10545 = vmatpush.bf16.msra.mxu0 %v7663
    %10546 = vmatpush.bf16.msra.mxu0 %v7655
    %10547 = vmatpush.bf16.msra.mxu0 %v7647
    %10548 = vmatpush.bf16.msra.mxu0 %v7639
    %10549 = vmatpush.bf16.msra.mxu0 %v7631
    %10550 = vmatpush.bf16.msra.mxu0 %v7623
    %10551 = vmatpush.bf16.msra.mxu0 %v7615
    %10552 = vmatpush.bf16.msra.mxu0 %v7607
    %10553 = vmatmul.bf16.gmra.mxu0 %v156
    %v10554 = vpop.f32.mrf.mxu0
    %v10555 = vadd.f32 %v10541, %v10554
    %v10556 = vpop.f32.mrf.mxu0
    %v10557 = vadd.f32 %v10543, %v10556
    %10558 = vdwg.mxu0
    %10559 = vmatpush.bf16.msra.mxu0 %v7727
    %10560 = vmatpush.bf16.msra.mxu0 %v7719
    %10561 = vmatpush.bf16.msra.mxu0 %v7711
    %10562 = vmatpush.bf16.msra.mxu0 %v7703
    %10563 = vmatpush.bf16.msra.mxu0 %v7695
    %10564 = vmatpush.bf16.msra.mxu0 %v7687
    %10565 = vmatpush.bf16.msra.mxu0 %v7679
    %10566 = vmatpush.bf16.msra.mxu0 %v7671
    %10567 = vmatmul.bf16.gmra.mxu0 %v157
    %v10568 = vpop.f32.mrf.mxu0
    %v10569 = vadd.f32 %v10555, %v10568
    %v10570 = vpop.f32.mrf.mxu0
    %v10571 = vadd.f32 %v10557, %v10570
    %10572 = vdwg.mxu0
    %10573 = vmatpush.bf16.msra.mxu0 %v7791
    %10574 = vmatpush.bf16.msra.mxu0 %v7783
    %10575 = vmatpush.bf16.msra.mxu0 %v7775
    %10576 = vmatpush.bf16.msra.mxu0 %v7767
    %10577 = vmatpush.bf16.msra.mxu0 %v7759
    %10578 = vmatpush.bf16.msra.mxu0 %v7751
    %10579 = vmatpush.bf16.msra.mxu0 %v7743
    %10580 = vmatpush.bf16.msra.mxu0 %v7735
    %10581 = vmatmul.bf16.gmra.mxu0 %v158
    %v10582 = vpop.f32.mrf.mxu0
    %v10583 = vadd.f32 %v10569, %v10582
    %v10584 = vpop.f32.mrf.mxu0
    %v10585 = vadd.f32 %v10571, %v10584
    %10586 = vdwg.mxu0
    %10587 = vmatpush.bf16.msra.mxu0 %v7855
    %10588 = vmatpush.bf16.msra.mxu0 %v7847
    %10589 = vmatpush.bf16.msra.mxu0 %v7839
    %10590 = vmatpush.bf16.msra.mxu0 %v7831
    %10591 = vmatpush.bf16.msra.mxu0 %v7823
    %10592 = vmatpush.bf16.msra.mxu0 %v7815
    %10593 = vmatpush.bf16.msra.mxu0 %v7807
    %10594 = vmatpush.bf16.msra.mxu0 %v7799
    %10595 = vmatmul.bf16.gmra.mxu0 %v159
    %v10596 = vpop.f32.mrf.mxu0
    %v10597 = vadd.f32 %v10583, %v10596
    %v10598 = vpop.f32.mrf.mxu0
    %v10599 = vadd.f32 %v10585, %v10598
    %10600 = vdwg.mxu0
    %10601 = vmatpush.bf16.msra.mxu0 %v7919
    %10602 = vmatpush.bf16.msra.mxu0 %v7911
    %10603 = vmatpush.bf16.msra.mxu0 %v7903
    %10604 = vmatpush.bf16.msra.mxu0 %v7895
    %10605 = vmatpush.bf16.msra.mxu0 %v7887
    %10606 = vmatpush.bf16.msra.mxu0 %v7879
    %10607 = vmatpush.bf16.msra.mxu0 %v7871
    %10608 = vmatpush.bf16.msra.mxu0 %v7863
    %10609 = vmatmul.bf16.gmra.mxu0 %v160
    %v10610 = vpop.f32.mrf.mxu0
    %v10611 = vadd.f32 %v10597, %v10610
    %v10612 = vpop.f32.mrf.mxu0
    %v10613 = vadd.f32 %v10599, %v10612
    %10614 = vdwg.mxu0
    %10615 = vmatpush.bf16.msra.mxu0 %v7983
    %10616 = vmatpush.bf16.msra.mxu0 %v7975
    %10617 = vmatpush.bf16.msra.mxu0 %v7967
    %10618 = vmatpush.bf16.msra.mxu0 %v7959
    %10619 = vmatpush.bf16.msra.mxu0 %v7951
    %10620 = vmatpush.bf16.msra.mxu0 %v7943
    %10621 = vmatpush.bf16.msra.mxu0 %v7935
    %10622 = vmatpush.bf16.msra.mxu0 %v7927
    %10623 = vmatmul.bf16.gmra.mxu0 %v161
    %v10624 = vpop.f32.mrf.mxu0
    %v10625 = vadd.f32 %v10611, %v10624
    %v10626 = vpop.f32.mrf.mxu0
    %v10627 = vadd.f32 %v10613, %v10626
    %10628 = vdwg.mxu0
    %10629 = vmatpush.bf16.msra.mxu0 0
    %10630 = vmatpush.bf16.msra.mxu0 0
    %10631 = vmatpush.bf16.msra.mxu0 0
    %10632 = vmatpush.bf16.msra.mxu0 0
    %10633 = vmatpush.bf16.msra.mxu0 %v8015
    %10634 = vmatpush.bf16.msra.mxu0 %v8007
    %10635 = vmatpush.bf16.msra.mxu0 %v7999
    %10636 = vmatpush.bf16.msra.mxu0 %v7991
    %10637 = vmatmul.bf16.gmra.mxu0 %v9591
    %v10638 = vpop.f32.mrf.mxu0
    %v10639 = vadd.f32 %v10625, %v10638
    %v10640 = vpop.f32.mrf.mxu0
    %v10641 = vadd.f32 %v10627, %v10640
    %10642 = vdwg.mxu0
    %10643 = vmatpush.bf16.msra.mxu0 %v6512
    %10644 = vmatpush.bf16.msra.mxu0 %v6504
    %10645 = vmatpush.bf16.msra.mxu0 %v6496
    %10646 = vmatpush.bf16.msra.mxu0 %v6488
    %10647 = vmatpush.bf16.msra.mxu0 %v6480
    %10648 = vmatpush.bf16.msra.mxu0 %v6472
    %10649 = vmatpush.bf16.msra.mxu0 %v6464
    %10650 = vmatpush.bf16.msra.mxu0 %v6456
    %10651 = vmatmul.bf16.gmra.mxu0 %v138
    %v10652 = vpop.f32.mrf.mxu0
    %v10653 = vadd.f32 %v1736, %v10652
    %v10654 = vpop.f32.mrf.mxu0
    %v10655 = vadd.f32 %v1736, %v10654
    %10656 = vdwg.mxu0
    %10657 = vmatpush.bf16.msra.mxu0 %v6576
    %10658 = vmatpush.bf16.msra.mxu0 %v6568
    %10659 = vmatpush.bf16.msra.mxu0 %v6560
    %10660 = vmatpush.bf16.msra.mxu0 %v6552
    %10661 = vmatpush.bf16.msra.mxu0 %v6544
    %10662 = vmatpush.bf16.msra.mxu0 %v6536
    %10663 = vmatpush.bf16.msra.mxu0 %v6528
    %10664 = vmatpush.bf16.msra.mxu0 %v6520
    %10665 = vmatmul.bf16.gmra.mxu0 %v139
    %v10666 = vpop.f32.mrf.mxu0
    %v10667 = vadd.f32 %v10653, %v10666
    %v10668 = vpop.f32.mrf.mxu0
    %v10669 = vadd.f32 %v10655, %v10668
    %10670 = vdwg.mxu0
    %10671 = vmatpush.bf16.msra.mxu0 %v6640
    %10672 = vmatpush.bf16.msra.mxu0 %v6632
    %10673 = vmatpush.bf16.msra.mxu0 %v6624
    %10674 = vmatpush.bf16.msra.mxu0 %v6616
    %10675 = vmatpush.bf16.msra.mxu0 %v6608
    %10676 = vmatpush.bf16.msra.mxu0 %v6600
    %10677 = vmatpush.bf16.msra.mxu0 %v6592
    %10678 = vmatpush.bf16.msra.mxu0 %v6584
    %10679 = vmatmul.bf16.gmra.mxu0 %v140
    %v10680 = vpop.f32.mrf.mxu0
    %v10681 = vadd.f32 %v10667, %v10680
    %v10682 = vpop.f32.mrf.mxu0
    %v10683 = vadd.f32 %v10669, %v10682
    %10684 = vdwg.mxu0
    %10685 = vmatpush.bf16.msra.mxu0 %v6704
    %10686 = vmatpush.bf16.msra.mxu0 %v6696
    %10687 = vmatpush.bf16.msra.mxu0 %v6688
    %10688 = vmatpush.bf16.msra.mxu0 %v6680
    %10689 = vmatpush.bf16.msra.mxu0 %v6672
    %10690 = vmatpush.bf16.msra.mxu0 %v6664
    %10691 = vmatpush.bf16.msra.mxu0 %v6656
    %10692 = vmatpush.bf16.msra.mxu0 %v6648
    %10693 = vmatmul.bf16.gmra.mxu0 %v141
    %v10694 = vpop.f32.mrf.mxu0
    %v10695 = vadd.f32 %v10681, %v10694
    %v10696 = vpop.f32.mrf.mxu0
    %v10697 = vadd.f32 %v10683, %v10696
    %10698 = vdwg.mxu0
    %10699 = vmatpush.bf16.msra.mxu0 %v6768
    %10700 = vmatpush.bf16.msra.mxu0 %v6760
    %10701 = vmatpush.bf16.msra.mxu0 %v6752
    %10702 = vmatpush.bf16.msra.mxu0 %v6744
    %10703 = vmatpush.bf16.msra.mxu0 %v6736
    %10704 = vmatpush.bf16.msra.mxu0 %v6728
    %10705 = vmatpush.bf16.msra.mxu0 %v6720
    %10706 = vmatpush.bf16.msra.mxu0 %v6712
    %10707 = vmatmul.bf16.gmra.mxu0 %v142
    %v10708 = vpop.f32.mrf.mxu0
    %v10709 = vadd.f32 %v10695, %v10708
    %v10710 = vpop.f32.mrf.mxu0
    %v10711 = vadd.f32 %v10697, %v10710
    %10712 = vdwg.mxu0
    %10713 = vmatpush.bf16.msra.mxu0 %v6832
    %10714 = vmatpush.bf16.msra.mxu0 %v6824
    %10715 = vmatpush.bf16.msra.mxu0 %v6816
    %10716 = vmatpush.bf16.msra.mxu0 %v6808
    %10717 = vmatpush.bf16.msra.mxu0 %v6800
    %10718 = vmatpush.bf16.msra.mxu0 %v6792
    %10719 = vmatpush.bf16.msra.mxu0 %v6784
    %10720 = vmatpush.bf16.msra.mxu0 %v6776
    %10721 = vmatmul.bf16.gmra.mxu0 %v143
    %v10722 = vpop.f32.mrf.mxu0
    %v10723 = vadd.f32 %v10709, %v10722
    %v10724 = vpop.f32.mrf.mxu0
    %v10725 = vadd.f32 %v10711, %v10724
    %10726 = vdwg.mxu0
    %10727 = vmatpush.bf16.msra.mxu0 %v6896
    %10728 = vmatpush.bf16.msra.mxu0 %v6888
    %10729 = vmatpush.bf16.msra.mxu0 %v6880
    %10730 = vmatpush.bf16.msra.mxu0 %v6872
    %10731 = vmatpush.bf16.msra.mxu0 %v6864
    %10732 = vmatpush.bf16.msra.mxu0 %v6856
    %10733 = vmatpush.bf16.msra.mxu0 %v6848
    %10734 = vmatpush.bf16.msra.mxu0 %v6840
    %10735 = vmatmul.bf16.gmra.mxu0 %v144
    %v10736 = vpop.f32.mrf.mxu0
    %v10737 = vadd.f32 %v10723, %v10736
    %v10738 = vpop.f32.mrf.mxu0
    %v10739 = vadd.f32 %v10725, %v10738
    %10740 = vdwg.mxu0
    %10741 = vmatpush.bf16.msra.mxu0 %v6960
    %10742 = vmatpush.bf16.msra.mxu0 %v6952
    %10743 = vmatpush.bf16.msra.mxu0 %v6944
    %10744 = vmatpush.bf16.msra.mxu0 %v6936
    %10745 = vmatpush.bf16.msra.mxu0 %v6928
    %10746 = vmatpush.bf16.msra.mxu0 %v6920
    %10747 = vmatpush.bf16.msra.mxu0 %v6912
    %10748 = vmatpush.bf16.msra.mxu0 %v6904
    %10749 = vmatmul.bf16.gmra.mxu0 %v145
    %v10750 = vpop.f32.mrf.mxu0
    %v10751 = vadd.f32 %v10737, %v10750
    %v10752 = vpop.f32.mrf.mxu0
    %v10753 = vadd.f32 %v10739, %v10752
    %10754 = vdwg.mxu0
    %10755 = vmatpush.bf16.msra.mxu0 %v7024
    %10756 = vmatpush.bf16.msra.mxu0 %v7016
    %10757 = vmatpush.bf16.msra.mxu0 %v7008
    %10758 = vmatpush.bf16.msra.mxu0 %v7000
    %10759 = vmatpush.bf16.msra.mxu0 %v6992
    %10760 = vmatpush.bf16.msra.mxu0 %v6984
    %10761 = vmatpush.bf16.msra.mxu0 %v6976
    %10762 = vmatpush.bf16.msra.mxu0 %v6968
    %10763 = vmatmul.bf16.gmra.mxu0 %v146
    %v10764 = vpop.f32.mrf.mxu0
    %v10765 = vadd.f32 %v10751, %v10764
    %v10766 = vpop.f32.mrf.mxu0
    %v10767 = vadd.f32 %v10753, %v10766
    %10768 = vdwg.mxu0
    %10769 = vmatpush.bf16.msra.mxu0 %v7088
    %10770 = vmatpush.bf16.msra.mxu0 %v7080
    %10771 = vmatpush.bf16.msra.mxu0 %v7072
    %10772 = vmatpush.bf16.msra.mxu0 %v7064
    %10773 = vmatpush.bf16.msra.mxu0 %v7056
    %10774 = vmatpush.bf16.msra.mxu0 %v7048
    %10775 = vmatpush.bf16.msra.mxu0 %v7040
    %10776 = vmatpush.bf16.msra.mxu0 %v7032
    %10777 = vmatmul.bf16.gmra.mxu0 %v147
    %v10778 = vpop.f32.mrf.mxu0
    %v10779 = vadd.f32 %v10765, %v10778
    %v10780 = vpop.f32.mrf.mxu0
    %v10781 = vadd.f32 %v10767, %v10780
    %10782 = vdwg.mxu0
    %10783 = vmatpush.bf16.msra.mxu0 %v7152
    %10784 = vmatpush.bf16.msra.mxu0 %v7144
    %10785 = vmatpush.bf16.msra.mxu0 %v7136
    %10786 = vmatpush.bf16.msra.mxu0 %v7128
    %10787 = vmatpush.bf16.msra.mxu0 %v7120
    %10788 = vmatpush.bf16.msra.mxu0 %v7112
    %10789 = vmatpush.bf16.msra.mxu0 %v7104
    %10790 = vmatpush.bf16.msra.mxu0 %v7096
    %10791 = vmatmul.bf16.gmra.mxu0 %v148
    %v10792 = vpop.f32.mrf.mxu0
    %v10793 = vadd.f32 %v10779, %v10792
    %v10794 = vpop.f32.mrf.mxu0
    %v10795 = vadd.f32 %v10781, %v10794
    %10796 = vdwg.mxu0
    %10797 = vmatpush.bf16.msra.mxu0 %v7216
    %10798 = vmatpush.bf16.msra.mxu0 %v7208
    %10799 = vmatpush.bf16.msra.mxu0 %v7200
    %10800 = vmatpush.bf16.msra.mxu0 %v7192
    %10801 = vmatpush.bf16.msra.mxu0 %v7184
    %10802 = vmatpush.bf16.msra.mxu0 %v7176
    %10803 = vmatpush.bf16.msra.mxu0 %v7168
    %10804 = vmatpush.bf16.msra.mxu0 %v7160
    %10805 = vmatmul.bf16.gmra.mxu0 %v149
    %v10806 = vpop.f32.mrf.mxu0
    %v10807 = vadd.f32 %v10793, %v10806
    %v10808 = vpop.f32.mrf.mxu0
    %v10809 = vadd.f32 %v10795, %v10808
    %10810 = vdwg.mxu0
    %10811 = vmatpush.bf16.msra.mxu0 %v7280
    %10812 = vmatpush.bf16.msra.mxu0 %v7272
    %10813 = vmatpush.bf16.msra.mxu0 %v7264
    %10814 = vmatpush.bf16.msra.mxu0 %v7256
    %10815 = vmatpush.bf16.msra.mxu0 %v7248
    %10816 = vmatpush.bf16.msra.mxu0 %v7240
    %10817 = vmatpush.bf16.msra.mxu0 %v7232
    %10818 = vmatpush.bf16.msra.mxu0 %v7224
    %10819 = vmatmul.bf16.gmra.mxu0 %v150
    %v10820 = vpop.f32.mrf.mxu0
    %v10821 = vadd.f32 %v10807, %v10820
    %v10822 = vpop.f32.mrf.mxu0
    %v10823 = vadd.f32 %v10809, %v10822
    %10824 = vdwg.mxu0
    %10825 = vmatpush.bf16.msra.mxu0 %v7344
    %10826 = vmatpush.bf16.msra.mxu0 %v7336
    %10827 = vmatpush.bf16.msra.mxu0 %v7328
    %10828 = vmatpush.bf16.msra.mxu0 %v7320
    %10829 = vmatpush.bf16.msra.mxu0 %v7312
    %10830 = vmatpush.bf16.msra.mxu0 %v7304
    %10831 = vmatpush.bf16.msra.mxu0 %v7296
    %10832 = vmatpush.bf16.msra.mxu0 %v7288
    %10833 = vmatmul.bf16.gmra.mxu0 %v151
    %v10834 = vpop.f32.mrf.mxu0
    %v10835 = vadd.f32 %v10821, %v10834
    %v10836 = vpop.f32.mrf.mxu0
    %v10837 = vadd.f32 %v10823, %v10836
    %10838 = vdwg.mxu0
    %10839 = vmatpush.bf16.msra.mxu0 %v7408
    %10840 = vmatpush.bf16.msra.mxu0 %v7400
    %10841 = vmatpush.bf16.msra.mxu0 %v7392
    %10842 = vmatpush.bf16.msra.mxu0 %v7384
    %10843 = vmatpush.bf16.msra.mxu0 %v7376
    %10844 = vmatpush.bf16.msra.mxu0 %v7368
    %10845 = vmatpush.bf16.msra.mxu0 %v7360
    %10846 = vmatpush.bf16.msra.mxu0 %v7352
    %10847 = vmatmul.bf16.gmra.mxu0 %v152
    %v10848 = vpop.f32.mrf.mxu0
    %v10849 = vadd.f32 %v10835, %v10848
    %v10850 = vpop.f32.mrf.mxu0
    %v10851 = vadd.f32 %v10837, %v10850
    %10852 = vdwg.mxu0
    %10853 = vmatpush.bf16.msra.mxu0 %v7472
    %10854 = vmatpush.bf16.msra.mxu0 %v7464
    %10855 = vmatpush.bf16.msra.mxu0 %v7456
    %10856 = vmatpush.bf16.msra.mxu0 %v7448
    %10857 = vmatpush.bf16.msra.mxu0 %v7440
    %10858 = vmatpush.bf16.msra.mxu0 %v7432
    %10859 = vmatpush.bf16.msra.mxu0 %v7424
    %10860 = vmatpush.bf16.msra.mxu0 %v7416
    %10861 = vmatmul.bf16.gmra.mxu0 %v153
    %v10862 = vpop.f32.mrf.mxu0
    %v10863 = vadd.f32 %v10849, %v10862
    %v10864 = vpop.f32.mrf.mxu0
    %v10865 = vadd.f32 %v10851, %v10864
    %10866 = vdwg.mxu0
    %10867 = vmatpush.bf16.msra.mxu0 %v7536
    %10868 = vmatpush.bf16.msra.mxu0 %v7528
    %10869 = vmatpush.bf16.msra.mxu0 %v7520
    %10870 = vmatpush.bf16.msra.mxu0 %v7512
    %10871 = vmatpush.bf16.msra.mxu0 %v7504
    %10872 = vmatpush.bf16.msra.mxu0 %v7496
    %10873 = vmatpush.bf16.msra.mxu0 %v7488
    %10874 = vmatpush.bf16.msra.mxu0 %v7480
    %10875 = vmatmul.bf16.gmra.mxu0 %v154
    %v10876 = vpop.f32.mrf.mxu0
    %v10877 = vadd.f32 %v10863, %v10876
    %v10878 = vpop.f32.mrf.mxu0
    %v10879 = vadd.f32 %v10865, %v10878
    %10880 = vdwg.mxu0
    %10881 = vmatpush.bf16.msra.mxu0 %v7600
    %10882 = vmatpush.bf16.msra.mxu0 %v7592
    %10883 = vmatpush.bf16.msra.mxu0 %v7584
    %10884 = vmatpush.bf16.msra.mxu0 %v7576
    %10885 = vmatpush.bf16.msra.mxu0 %v7568
    %10886 = vmatpush.bf16.msra.mxu0 %v7560
    %10887 = vmatpush.bf16.msra.mxu0 %v7552
    %10888 = vmatpush.bf16.msra.mxu0 %v7544
    %10889 = vmatmul.bf16.gmra.mxu0 %v155
    %v10890 = vpop.f32.mrf.mxu0
    %v10891 = vadd.f32 %v10877, %v10890
    %v10892 = vpop.f32.mrf.mxu0
    %v10893 = vadd.f32 %v10879, %v10892
    %10894 = vdwg.mxu0
    %10895 = vmatpush.bf16.msra.mxu0 %v7664
    %10896 = vmatpush.bf16.msra.mxu0 %v7656
    %10897 = vmatpush.bf16.msra.mxu0 %v7648
    %10898 = vmatpush.bf16.msra.mxu0 %v7640
    %10899 = vmatpush.bf16.msra.mxu0 %v7632
    %10900 = vmatpush.bf16.msra.mxu0 %v7624
    %10901 = vmatpush.bf16.msra.mxu0 %v7616
    %10902 = vmatpush.bf16.msra.mxu0 %v7608
    %10903 = vmatmul.bf16.gmra.mxu0 %v156
    %v10904 = vpop.f32.mrf.mxu0
    %v10905 = vadd.f32 %v10891, %v10904
    %v10906 = vpop.f32.mrf.mxu0
    %v10907 = vadd.f32 %v10893, %v10906
    %10908 = vdwg.mxu0
    %10909 = vmatpush.bf16.msra.mxu0 %v7728
    %10910 = vmatpush.bf16.msra.mxu0 %v7720
    %10911 = vmatpush.bf16.msra.mxu0 %v7712
    %10912 = vmatpush.bf16.msra.mxu0 %v7704
    %10913 = vmatpush.bf16.msra.mxu0 %v7696
    %10914 = vmatpush.bf16.msra.mxu0 %v7688
    %10915 = vmatpush.bf16.msra.mxu0 %v7680
    %10916 = vmatpush.bf16.msra.mxu0 %v7672
    %10917 = vmatmul.bf16.gmra.mxu0 %v157
    %v10918 = vpop.f32.mrf.mxu0
    %v10919 = vadd.f32 %v10905, %v10918
    %v10920 = vpop.f32.mrf.mxu0
    %v10921 = vadd.f32 %v10907, %v10920
    %10922 = vdwg.mxu0
    %10923 = vmatpush.bf16.msra.mxu0 %v7792
    %10924 = vmatpush.bf16.msra.mxu0 %v7784
    %10925 = vmatpush.bf16.msra.mxu0 %v7776
    %10926 = vmatpush.bf16.msra.mxu0 %v7768
    %10927 = vmatpush.bf16.msra.mxu0 %v7760
    %10928 = vmatpush.bf16.msra.mxu0 %v7752
    %10929 = vmatpush.bf16.msra.mxu0 %v7744
    %10930 = vmatpush.bf16.msra.mxu0 %v7736
    %10931 = vmatmul.bf16.gmra.mxu0 %v158
    %v10932 = vpop.f32.mrf.mxu0
    %v10933 = vadd.f32 %v10919, %v10932
    %v10934 = vpop.f32.mrf.mxu0
    %v10935 = vadd.f32 %v10921, %v10934
    %10936 = vdwg.mxu0
    %10937 = vmatpush.bf16.msra.mxu0 %v7856
    %10938 = vmatpush.bf16.msra.mxu0 %v7848
    %10939 = vmatpush.bf16.msra.mxu0 %v7840
    %10940 = vmatpush.bf16.msra.mxu0 %v7832
    %10941 = vmatpush.bf16.msra.mxu0 %v7824
    %10942 = vmatpush.bf16.msra.mxu0 %v7816
    %10943 = vmatpush.bf16.msra.mxu0 %v7808
    %10944 = vmatpush.bf16.msra.mxu0 %v7800
    %10945 = vmatmul.bf16.gmra.mxu0 %v159
    %v10946 = vpop.f32.mrf.mxu0
    %v10947 = vadd.f32 %v10933, %v10946
    %v10948 = vpop.f32.mrf.mxu0
    %v10949 = vadd.f32 %v10935, %v10948
    %10950 = vdwg.mxu0
    %10951 = vmatpush.bf16.msra.mxu0 %v7920
    %10952 = vmatpush.bf16.msra.mxu0 %v7912
    %10953 = vmatpush.bf16.msra.mxu0 %v7904
    %10954 = vmatpush.bf16.msra.mxu0 %v7896
    %10955 = vmatpush.bf16.msra.mxu0 %v7888
    %10956 = vmatpush.bf16.msra.mxu0 %v7880
    %10957 = vmatpush.bf16.msra.mxu0 %v7872
    %10958 = vmatpush.bf16.msra.mxu0 %v7864
    %10959 = vmatmul.bf16.gmra.mxu0 %v160
    %v10960 = vpop.f32.mrf.mxu0
    %v10961 = vadd.f32 %v10947, %v10960
    %v10962 = vpop.f32.mrf.mxu0
    %v10963 = vadd.f32 %v10949, %v10962
    %10964 = vdwg.mxu0
    %10965 = vmatpush.bf16.msra.mxu0 %v7984
    %10966 = vmatpush.bf16.msra.mxu0 %v7976
    %10967 = vmatpush.bf16.msra.mxu0 %v7968
    %10968 = vmatpush.bf16.msra.mxu0 %v7960
    %10969 = vmatpush.bf16.msra.mxu0 %v7952
    %10970 = vmatpush.bf16.msra.mxu0 %v7944
    %10971 = vmatpush.bf16.msra.mxu0 %v7936
    %10972 = vmatpush.bf16.msra.mxu0 %v7928
    %10973 = vmatmul.bf16.gmra.mxu0 %v161
    %v10974 = vpop.f32.mrf.mxu0
    %v10975 = vadd.f32 %v10961, %v10974
    %v10976 = vpop.f32.mrf.mxu0
    %v10977 = vadd.f32 %v10963, %v10976
    %10978 = vdwg.mxu0
    %10979 = vmatpush.bf16.msra.mxu0 0
    %10980 = vmatpush.bf16.msra.mxu0 0
    %10981 = vmatpush.bf16.msra.mxu0 0
    %10982 = vmatpush.bf16.msra.mxu0 0
    %10983 = vmatpush.bf16.msra.mxu0 %v8016
    %10984 = vmatpush.bf16.msra.mxu0 %v8008
    %10985 = vmatpush.bf16.msra.mxu0 %v8000
    %10986 = vmatpush.bf16.msra.mxu0 %v7992
    %10987 = vmatmul.bf16.gmra.mxu0 %v9591
    %v10988 = vpop.f32.mrf.mxu0
    %v10989 = vadd.f32 %v10975, %v10988
    %v10990 = vpop.f32.mrf.mxu0
    %v10991 = vadd.f32 %v10977, %v10990
    %10992 = vdwg.mxu0
    %10993 = vmatpush.bf16.msra.mxu0 %v6513
    %10994 = vmatpush.bf16.msra.mxu0 %v6505
    %10995 = vmatpush.bf16.msra.mxu0 %v6497
    %10996 = vmatpush.bf16.msra.mxu0 %v6489
    %10997 = vmatpush.bf16.msra.mxu0 %v6481
    %10998 = vmatpush.bf16.msra.mxu0 %v6473
    %10999 = vmatpush.bf16.msra.mxu0 %v6465
    %11000 = vmatpush.bf16.msra.mxu0 %v6457
    %11001 = vmatmul.bf16.gmra.mxu0 %v138
    %v11002 = vpop.f32.mrf.mxu0
    %v11003 = vadd.f32 %v1737, %v11002
    %v11004 = vpop.f32.mrf.mxu0
    %v11005 = vadd.f32 %v1737, %v11004
    %11006 = vdwg.mxu0
    %11007 = vmatpush.bf16.msra.mxu0 %v6577
    %11008 = vmatpush.bf16.msra.mxu0 %v6569
    %11009 = vmatpush.bf16.msra.mxu0 %v6561
    %11010 = vmatpush.bf16.msra.mxu0 %v6553
    %11011 = vmatpush.bf16.msra.mxu0 %v6545
    %11012 = vmatpush.bf16.msra.mxu0 %v6537
    %11013 = vmatpush.bf16.msra.mxu0 %v6529
    %11014 = vmatpush.bf16.msra.mxu0 %v6521
    %11015 = vmatmul.bf16.gmra.mxu0 %v139
    %v11016 = vpop.f32.mrf.mxu0
    %v11017 = vadd.f32 %v11003, %v11016
    %v11018 = vpop.f32.mrf.mxu0
    %v11019 = vadd.f32 %v11005, %v11018
    %11020 = vdwg.mxu0
    %11021 = vmatpush.bf16.msra.mxu0 %v6641
    %11022 = vmatpush.bf16.msra.mxu0 %v6633
    %11023 = vmatpush.bf16.msra.mxu0 %v6625
    %11024 = vmatpush.bf16.msra.mxu0 %v6617
    %11025 = vmatpush.bf16.msra.mxu0 %v6609
    %11026 = vmatpush.bf16.msra.mxu0 %v6601
    %11027 = vmatpush.bf16.msra.mxu0 %v6593
    %11028 = vmatpush.bf16.msra.mxu0 %v6585
    %11029 = vmatmul.bf16.gmra.mxu0 %v140
    %v11030 = vpop.f32.mrf.mxu0
    %v11031 = vadd.f32 %v11017, %v11030
    %v11032 = vpop.f32.mrf.mxu0
    %v11033 = vadd.f32 %v11019, %v11032
    %11034 = vdwg.mxu0
    %11035 = vmatpush.bf16.msra.mxu0 %v6705
    %11036 = vmatpush.bf16.msra.mxu0 %v6697
    %11037 = vmatpush.bf16.msra.mxu0 %v6689
    %11038 = vmatpush.bf16.msra.mxu0 %v6681
    %11039 = vmatpush.bf16.msra.mxu0 %v6673
    %11040 = vmatpush.bf16.msra.mxu0 %v6665
    %11041 = vmatpush.bf16.msra.mxu0 %v6657
    %11042 = vmatpush.bf16.msra.mxu0 %v6649
    %11043 = vmatmul.bf16.gmra.mxu0 %v141
    %v11044 = vpop.f32.mrf.mxu0
    %v11045 = vadd.f32 %v11031, %v11044
    %v11046 = vpop.f32.mrf.mxu0
    %v11047 = vadd.f32 %v11033, %v11046
    %11048 = vdwg.mxu0
    %11049 = vmatpush.bf16.msra.mxu0 %v6769
    %11050 = vmatpush.bf16.msra.mxu0 %v6761
    %11051 = vmatpush.bf16.msra.mxu0 %v6753
    %11052 = vmatpush.bf16.msra.mxu0 %v6745
    %11053 = vmatpush.bf16.msra.mxu0 %v6737
    %11054 = vmatpush.bf16.msra.mxu0 %v6729
    %11055 = vmatpush.bf16.msra.mxu0 %v6721
    %11056 = vmatpush.bf16.msra.mxu0 %v6713
    %11057 = vmatmul.bf16.gmra.mxu0 %v142
    %v11058 = vpop.f32.mrf.mxu0
    %v11059 = vadd.f32 %v11045, %v11058
    %v11060 = vpop.f32.mrf.mxu0
    %v11061 = vadd.f32 %v11047, %v11060
    %11062 = vdwg.mxu0
    %11063 = vmatpush.bf16.msra.mxu0 %v6833
    %11064 = vmatpush.bf16.msra.mxu0 %v6825
    %11065 = vmatpush.bf16.msra.mxu0 %v6817
    %11066 = vmatpush.bf16.msra.mxu0 %v6809
    %11067 = vmatpush.bf16.msra.mxu0 %v6801
    %11068 = vmatpush.bf16.msra.mxu0 %v6793
    %11069 = vmatpush.bf16.msra.mxu0 %v6785
    %11070 = vmatpush.bf16.msra.mxu0 %v6777
    %11071 = vmatmul.bf16.gmra.mxu0 %v143
    %v11072 = vpop.f32.mrf.mxu0
    %v11073 = vadd.f32 %v11059, %v11072
    %v11074 = vpop.f32.mrf.mxu0
    %v11075 = vadd.f32 %v11061, %v11074
    %11076 = vdwg.mxu0
    %11077 = vmatpush.bf16.msra.mxu0 %v6897
    %11078 = vmatpush.bf16.msra.mxu0 %v6889
    %11079 = vmatpush.bf16.msra.mxu0 %v6881
    %11080 = vmatpush.bf16.msra.mxu0 %v6873
    %11081 = vmatpush.bf16.msra.mxu0 %v6865
    %11082 = vmatpush.bf16.msra.mxu0 %v6857
    %11083 = vmatpush.bf16.msra.mxu0 %v6849
    %11084 = vmatpush.bf16.msra.mxu0 %v6841
    %11085 = vmatmul.bf16.gmra.mxu0 %v144
    %v11086 = vpop.f32.mrf.mxu0
    %v11087 = vadd.f32 %v11073, %v11086
    %v11088 = vpop.f32.mrf.mxu0
    %v11089 = vadd.f32 %v11075, %v11088
    %11090 = vdwg.mxu0
    %11091 = vmatpush.bf16.msra.mxu0 %v6961
    %11092 = vmatpush.bf16.msra.mxu0 %v6953
    %11093 = vmatpush.bf16.msra.mxu0 %v6945
    %11094 = vmatpush.bf16.msra.mxu0 %v6937
    %11095 = vmatpush.bf16.msra.mxu0 %v6929
    %11096 = vmatpush.bf16.msra.mxu0 %v6921
    %11097 = vmatpush.bf16.msra.mxu0 %v6913
    %11098 = vmatpush.bf16.msra.mxu0 %v6905
    %11099 = vmatmul.bf16.gmra.mxu0 %v145
    %v11100 = vpop.f32.mrf.mxu0
    %v11101 = vadd.f32 %v11087, %v11100
    %v11102 = vpop.f32.mrf.mxu0
    %v11103 = vadd.f32 %v11089, %v11102
    %11104 = vdwg.mxu0
    %11105 = vmatpush.bf16.msra.mxu0 %v7025
    %11106 = vmatpush.bf16.msra.mxu0 %v7017
    %11107 = vmatpush.bf16.msra.mxu0 %v7009
    %11108 = vmatpush.bf16.msra.mxu0 %v7001
    %11109 = vmatpush.bf16.msra.mxu0 %v6993
    %11110 = vmatpush.bf16.msra.mxu0 %v6985
    %11111 = vmatpush.bf16.msra.mxu0 %v6977
    %11112 = vmatpush.bf16.msra.mxu0 %v6969
    %11113 = vmatmul.bf16.gmra.mxu0 %v146
    %v11114 = vpop.f32.mrf.mxu0
    %v11115 = vadd.f32 %v11101, %v11114
    %v11116 = vpop.f32.mrf.mxu0
    %v11117 = vadd.f32 %v11103, %v11116
    %11118 = vdwg.mxu0
    %11119 = vmatpush.bf16.msra.mxu0 %v7089
    %11120 = vmatpush.bf16.msra.mxu0 %v7081
    %11121 = vmatpush.bf16.msra.mxu0 %v7073
    %11122 = vmatpush.bf16.msra.mxu0 %v7065
    %11123 = vmatpush.bf16.msra.mxu0 %v7057
    %11124 = vmatpush.bf16.msra.mxu0 %v7049
    %11125 = vmatpush.bf16.msra.mxu0 %v7041
    %11126 = vmatpush.bf16.msra.mxu0 %v7033
    %11127 = vmatmul.bf16.gmra.mxu0 %v147
    %v11128 = vpop.f32.mrf.mxu0
    %v11129 = vadd.f32 %v11115, %v11128
    %v11130 = vpop.f32.mrf.mxu0
    %v11131 = vadd.f32 %v11117, %v11130
    %11132 = vdwg.mxu0
    %11133 = vmatpush.bf16.msra.mxu0 %v7153
    %11134 = vmatpush.bf16.msra.mxu0 %v7145
    %11135 = vmatpush.bf16.msra.mxu0 %v7137
    %11136 = vmatpush.bf16.msra.mxu0 %v7129
    %11137 = vmatpush.bf16.msra.mxu0 %v7121
    %11138 = vmatpush.bf16.msra.mxu0 %v7113
    %11139 = vmatpush.bf16.msra.mxu0 %v7105
    %11140 = vmatpush.bf16.msra.mxu0 %v7097
    %11141 = vmatmul.bf16.gmra.mxu0 %v148
    %v11142 = vpop.f32.mrf.mxu0
    %v11143 = vadd.f32 %v11129, %v11142
    %v11144 = vpop.f32.mrf.mxu0
    %v11145 = vadd.f32 %v11131, %v11144
    %11146 = vdwg.mxu0
    %11147 = vmatpush.bf16.msra.mxu0 %v7217
    %11148 = vmatpush.bf16.msra.mxu0 %v7209
    %11149 = vmatpush.bf16.msra.mxu0 %v7201
    %11150 = vmatpush.bf16.msra.mxu0 %v7193
    %11151 = vmatpush.bf16.msra.mxu0 %v7185
    %11152 = vmatpush.bf16.msra.mxu0 %v7177
    %11153 = vmatpush.bf16.msra.mxu0 %v7169
    %11154 = vmatpush.bf16.msra.mxu0 %v7161
    %11155 = vmatmul.bf16.gmra.mxu0 %v149
    %v11156 = vpop.f32.mrf.mxu0
    %v11157 = vadd.f32 %v11143, %v11156
    %v11158 = vpop.f32.mrf.mxu0
    %v11159 = vadd.f32 %v11145, %v11158
    %11160 = vdwg.mxu0
    %11161 = vmatpush.bf16.msra.mxu0 %v7281
    %11162 = vmatpush.bf16.msra.mxu0 %v7273
    %11163 = vmatpush.bf16.msra.mxu0 %v7265
    %11164 = vmatpush.bf16.msra.mxu0 %v7257
    %11165 = vmatpush.bf16.msra.mxu0 %v7249
    %11166 = vmatpush.bf16.msra.mxu0 %v7241
    %11167 = vmatpush.bf16.msra.mxu0 %v7233
    %11168 = vmatpush.bf16.msra.mxu0 %v7225
    %11169 = vmatmul.bf16.gmra.mxu0 %v150
    %v11170 = vpop.f32.mrf.mxu0
    %v11171 = vadd.f32 %v11157, %v11170
    %v11172 = vpop.f32.mrf.mxu0
    %v11173 = vadd.f32 %v11159, %v11172
    %11174 = vdwg.mxu0
    %11175 = vmatpush.bf16.msra.mxu0 %v7345
    %11176 = vmatpush.bf16.msra.mxu0 %v7337
    %11177 = vmatpush.bf16.msra.mxu0 %v7329
    %11178 = vmatpush.bf16.msra.mxu0 %v7321
    %11179 = vmatpush.bf16.msra.mxu0 %v7313
    %11180 = vmatpush.bf16.msra.mxu0 %v7305
    %11181 = vmatpush.bf16.msra.mxu0 %v7297
    %11182 = vmatpush.bf16.msra.mxu0 %v7289
    %11183 = vmatmul.bf16.gmra.mxu0 %v151
    %v11184 = vpop.f32.mrf.mxu0
    %v11185 = vadd.f32 %v11171, %v11184
    %v11186 = vpop.f32.mrf.mxu0
    %v11187 = vadd.f32 %v11173, %v11186
    %11188 = vdwg.mxu0
    %11189 = vmatpush.bf16.msra.mxu0 %v7409
    %11190 = vmatpush.bf16.msra.mxu0 %v7401
    %11191 = vmatpush.bf16.msra.mxu0 %v7393
    %11192 = vmatpush.bf16.msra.mxu0 %v7385
    %11193 = vmatpush.bf16.msra.mxu0 %v7377
    %11194 = vmatpush.bf16.msra.mxu0 %v7369
    %11195 = vmatpush.bf16.msra.mxu0 %v7361
    %11196 = vmatpush.bf16.msra.mxu0 %v7353
    %11197 = vmatmul.bf16.gmra.mxu0 %v152
    %v11198 = vpop.f32.mrf.mxu0
    %v11199 = vadd.f32 %v11185, %v11198
    %v11200 = vpop.f32.mrf.mxu0
    %v11201 = vadd.f32 %v11187, %v11200
    %11202 = vdwg.mxu0
    %11203 = vmatpush.bf16.msra.mxu0 %v7473
    %11204 = vmatpush.bf16.msra.mxu0 %v7465
    %11205 = vmatpush.bf16.msra.mxu0 %v7457
    %11206 = vmatpush.bf16.msra.mxu0 %v7449
    %11207 = vmatpush.bf16.msra.mxu0 %v7441
    %11208 = vmatpush.bf16.msra.mxu0 %v7433
    %11209 = vmatpush.bf16.msra.mxu0 %v7425
    %11210 = vmatpush.bf16.msra.mxu0 %v7417
    %11211 = vmatmul.bf16.gmra.mxu0 %v153
    %v11212 = vpop.f32.mrf.mxu0
    %v11213 = vadd.f32 %v11199, %v11212
    %v11214 = vpop.f32.mrf.mxu0
    %v11215 = vadd.f32 %v11201, %v11214
    %11216 = vdwg.mxu0
    %11217 = vmatpush.bf16.msra.mxu0 %v7537
    %11218 = vmatpush.bf16.msra.mxu0 %v7529
    %11219 = vmatpush.bf16.msra.mxu0 %v7521
    %11220 = vmatpush.bf16.msra.mxu0 %v7513
    %11221 = vmatpush.bf16.msra.mxu0 %v7505
    %11222 = vmatpush.bf16.msra.mxu0 %v7497
    %11223 = vmatpush.bf16.msra.mxu0 %v7489
    %11224 = vmatpush.bf16.msra.mxu0 %v7481
    %11225 = vmatmul.bf16.gmra.mxu0 %v154
    %v11226 = vpop.f32.mrf.mxu0
    %v11227 = vadd.f32 %v11213, %v11226
    %v11228 = vpop.f32.mrf.mxu0
    %v11229 = vadd.f32 %v11215, %v11228
    %11230 = vdwg.mxu0
    %11231 = vmatpush.bf16.msra.mxu0 %v7601
    %11232 = vmatpush.bf16.msra.mxu0 %v7593
    %11233 = vmatpush.bf16.msra.mxu0 %v7585
    %11234 = vmatpush.bf16.msra.mxu0 %v7577
    %11235 = vmatpush.bf16.msra.mxu0 %v7569
    %11236 = vmatpush.bf16.msra.mxu0 %v7561
    %11237 = vmatpush.bf16.msra.mxu0 %v7553
    %11238 = vmatpush.bf16.msra.mxu0 %v7545
    %11239 = vmatmul.bf16.gmra.mxu0 %v155
    %v11240 = vpop.f32.mrf.mxu0
    %v11241 = vadd.f32 %v11227, %v11240
    %v11242 = vpop.f32.mrf.mxu0
    %v11243 = vadd.f32 %v11229, %v11242
    %11244 = vdwg.mxu0
    %11245 = vmatpush.bf16.msra.mxu0 %v7665
    %11246 = vmatpush.bf16.msra.mxu0 %v7657
    %11247 = vmatpush.bf16.msra.mxu0 %v7649
    %11248 = vmatpush.bf16.msra.mxu0 %v7641
    %11249 = vmatpush.bf16.msra.mxu0 %v7633
    %11250 = vmatpush.bf16.msra.mxu0 %v7625
    %11251 = vmatpush.bf16.msra.mxu0 %v7617
    %11252 = vmatpush.bf16.msra.mxu0 %v7609
    %11253 = vmatmul.bf16.gmra.mxu0 %v156
    %v11254 = vpop.f32.mrf.mxu0
    %v11255 = vadd.f32 %v11241, %v11254
    %v11256 = vpop.f32.mrf.mxu0
    %v11257 = vadd.f32 %v11243, %v11256
    %11258 = vdwg.mxu0
    %11259 = vmatpush.bf16.msra.mxu0 %v7729
    %11260 = vmatpush.bf16.msra.mxu0 %v7721
    %11261 = vmatpush.bf16.msra.mxu0 %v7713
    %11262 = vmatpush.bf16.msra.mxu0 %v7705
    %11263 = vmatpush.bf16.msra.mxu0 %v7697
    %11264 = vmatpush.bf16.msra.mxu0 %v7689
    %11265 = vmatpush.bf16.msra.mxu0 %v7681
    %11266 = vmatpush.bf16.msra.mxu0 %v7673
    %11267 = vmatmul.bf16.gmra.mxu0 %v157
    %v11268 = vpop.f32.mrf.mxu0
    %v11269 = vadd.f32 %v11255, %v11268
    %v11270 = vpop.f32.mrf.mxu0
    %v11271 = vadd.f32 %v11257, %v11270
    %11272 = vdwg.mxu0
    %11273 = vmatpush.bf16.msra.mxu0 %v7793
    %11274 = vmatpush.bf16.msra.mxu0 %v7785
    %11275 = vmatpush.bf16.msra.mxu0 %v7777
    %11276 = vmatpush.bf16.msra.mxu0 %v7769
    %11277 = vmatpush.bf16.msra.mxu0 %v7761
    %11278 = vmatpush.bf16.msra.mxu0 %v7753
    %11279 = vmatpush.bf16.msra.mxu0 %v7745
    %11280 = vmatpush.bf16.msra.mxu0 %v7737
    %11281 = vmatmul.bf16.gmra.mxu0 %v158
    %v11282 = vpop.f32.mrf.mxu0
    %v11283 = vadd.f32 %v11269, %v11282
    %v11284 = vpop.f32.mrf.mxu0
    %v11285 = vadd.f32 %v11271, %v11284
    %11286 = vdwg.mxu0
    %11287 = vmatpush.bf16.msra.mxu0 %v7857
    %11288 = vmatpush.bf16.msra.mxu0 %v7849
    %11289 = vmatpush.bf16.msra.mxu0 %v7841
    %11290 = vmatpush.bf16.msra.mxu0 %v7833
    %11291 = vmatpush.bf16.msra.mxu0 %v7825
    %11292 = vmatpush.bf16.msra.mxu0 %v7817
    %11293 = vmatpush.bf16.msra.mxu0 %v7809
    %11294 = vmatpush.bf16.msra.mxu0 %v7801
    %11295 = vmatmul.bf16.gmra.mxu0 %v159
    %v11296 = vpop.f32.mrf.mxu0
    %v11297 = vadd.f32 %v11283, %v11296
    %v11298 = vpop.f32.mrf.mxu0
    %v11299 = vadd.f32 %v11285, %v11298
    %11300 = vdwg.mxu0
    %11301 = vmatpush.bf16.msra.mxu0 %v7921
    %11302 = vmatpush.bf16.msra.mxu0 %v7913
    %11303 = vmatpush.bf16.msra.mxu0 %v7905
    %11304 = vmatpush.bf16.msra.mxu0 %v7897
    %11305 = vmatpush.bf16.msra.mxu0 %v7889
    %11306 = vmatpush.bf16.msra.mxu0 %v7881
    %11307 = vmatpush.bf16.msra.mxu0 %v7873
    %11308 = vmatpush.bf16.msra.mxu0 %v7865
    %11309 = vmatmul.bf16.gmra.mxu0 %v160
    %v11310 = vpop.f32.mrf.mxu0
    %v11311 = vadd.f32 %v11297, %v11310
    %v11312 = vpop.f32.mrf.mxu0
    %v11313 = vadd.f32 %v11299, %v11312
    %11314 = vdwg.mxu0
    %11315 = vmatpush.bf16.msra.mxu0 %v7985
    %11316 = vmatpush.bf16.msra.mxu0 %v7977
    %11317 = vmatpush.bf16.msra.mxu0 %v7969
    %11318 = vmatpush.bf16.msra.mxu0 %v7961
    %11319 = vmatpush.bf16.msra.mxu0 %v7953
    %11320 = vmatpush.bf16.msra.mxu0 %v7945
    %11321 = vmatpush.bf16.msra.mxu0 %v7937
    %11322 = vmatpush.bf16.msra.mxu0 %v7929
    %11323 = vmatmul.bf16.gmra.mxu0 %v161
    %v11324 = vpop.f32.mrf.mxu0
    %v11325 = vadd.f32 %v11311, %v11324
    %v11326 = vpop.f32.mrf.mxu0
    %v11327 = vadd.f32 %v11313, %v11326
    %11328 = vdwg.mxu0
    %11329 = vmatpush.bf16.msra.mxu0 0
    %11330 = vmatpush.bf16.msra.mxu0 0
    %11331 = vmatpush.bf16.msra.mxu0 0
    %11332 = vmatpush.bf16.msra.mxu0 0
    %11333 = vmatpush.bf16.msra.mxu0 %v8017
    %11334 = vmatpush.bf16.msra.mxu0 %v8009
    %11335 = vmatpush.bf16.msra.mxu0 %v8001
    %11336 = vmatpush.bf16.msra.mxu0 %v7993
    %11337 = vmatmul.bf16.gmra.mxu0 %v9591
    %v11338 = vpop.f32.mrf.mxu0
    %v11339 = vadd.f32 %v11325, %v11338
    %v11340 = vpop.f32.mrf.mxu0
    %v11341 = vadd.f32 %v11327, %v11340
    %11342 = vdwg.mxu0
    %11343 = vmatpush.bf16.msra.mxu0 %v6514
    %11344 = vmatpush.bf16.msra.mxu0 %v6506
    %11345 = vmatpush.bf16.msra.mxu0 %v6498
    %11346 = vmatpush.bf16.msra.mxu0 %v6490
    %11347 = vmatpush.bf16.msra.mxu0 %v6482
    %11348 = vmatpush.bf16.msra.mxu0 %v6474
    %11349 = vmatpush.bf16.msra.mxu0 %v6466
    %11350 = vmatpush.bf16.msra.mxu0 %v6458
    %11351 = vmatmul.bf16.gmra.mxu0 %v138
    %v11352 = vpop.f32.mrf.mxu0
    %v11353 = vadd.f32 %v1738, %v11352
    %v11354 = vpop.f32.mrf.mxu0
    %v11355 = vadd.f32 %v1738, %v11354
    %11356 = vdwg.mxu0
    %11357 = vmatpush.bf16.msra.mxu0 %v6578
    %11358 = vmatpush.bf16.msra.mxu0 %v6570
    %11359 = vmatpush.bf16.msra.mxu0 %v6562
    %11360 = vmatpush.bf16.msra.mxu0 %v6554
    %11361 = vmatpush.bf16.msra.mxu0 %v6546
    %11362 = vmatpush.bf16.msra.mxu0 %v6538
    %11363 = vmatpush.bf16.msra.mxu0 %v6530
    %11364 = vmatpush.bf16.msra.mxu0 %v6522
    %11365 = vmatmul.bf16.gmra.mxu0 %v139
    %v11366 = vpop.f32.mrf.mxu0
    %v11367 = vadd.f32 %v11353, %v11366
    %v11368 = vpop.f32.mrf.mxu0
    %v11369 = vadd.f32 %v11355, %v11368
    %11370 = vdwg.mxu0
    %11371 = vmatpush.bf16.msra.mxu0 %v6642
    %11372 = vmatpush.bf16.msra.mxu0 %v6634
    %11373 = vmatpush.bf16.msra.mxu0 %v6626
    %11374 = vmatpush.bf16.msra.mxu0 %v6618
    %11375 = vmatpush.bf16.msra.mxu0 %v6610
    %11376 = vmatpush.bf16.msra.mxu0 %v6602
    %11377 = vmatpush.bf16.msra.mxu0 %v6594
    %11378 = vmatpush.bf16.msra.mxu0 %v6586
    %11379 = vmatmul.bf16.gmra.mxu0 %v140
    %v11380 = vpop.f32.mrf.mxu0
    %v11381 = vadd.f32 %v11367, %v11380
    %v11382 = vpop.f32.mrf.mxu0
    %v11383 = vadd.f32 %v11369, %v11382
    %11384 = vdwg.mxu0
    %11385 = vmatpush.bf16.msra.mxu0 %v6706
    %11386 = vmatpush.bf16.msra.mxu0 %v6698
    %11387 = vmatpush.bf16.msra.mxu0 %v6690
    %11388 = vmatpush.bf16.msra.mxu0 %v6682
    %11389 = vmatpush.bf16.msra.mxu0 %v6674
    %11390 = vmatpush.bf16.msra.mxu0 %v6666
    %11391 = vmatpush.bf16.msra.mxu0 %v6658
    %11392 = vmatpush.bf16.msra.mxu0 %v6650
    %11393 = vmatmul.bf16.gmra.mxu0 %v141
    %v11394 = vpop.f32.mrf.mxu0
    %v11395 = vadd.f32 %v11381, %v11394
    %v11396 = vpop.f32.mrf.mxu0
    %v11397 = vadd.f32 %v11383, %v11396
    %11398 = vdwg.mxu0
    %11399 = vmatpush.bf16.msra.mxu0 %v6770
    %11400 = vmatpush.bf16.msra.mxu0 %v6762
    %11401 = vmatpush.bf16.msra.mxu0 %v6754
    %11402 = vmatpush.bf16.msra.mxu0 %v6746
    %11403 = vmatpush.bf16.msra.mxu0 %v6738
    %11404 = vmatpush.bf16.msra.mxu0 %v6730
    %11405 = vmatpush.bf16.msra.mxu0 %v6722
    %11406 = vmatpush.bf16.msra.mxu0 %v6714
    %11407 = vmatmul.bf16.gmra.mxu0 %v142
    %v11408 = vpop.f32.mrf.mxu0
    %v11409 = vadd.f32 %v11395, %v11408
    %v11410 = vpop.f32.mrf.mxu0
    %v11411 = vadd.f32 %v11397, %v11410
    %11412 = vdwg.mxu0
    %11413 = vmatpush.bf16.msra.mxu0 %v6834
    %11414 = vmatpush.bf16.msra.mxu0 %v6826
    %11415 = vmatpush.bf16.msra.mxu0 %v6818
    %11416 = vmatpush.bf16.msra.mxu0 %v6810
    %11417 = vmatpush.bf16.msra.mxu0 %v6802
    %11418 = vmatpush.bf16.msra.mxu0 %v6794
    %11419 = vmatpush.bf16.msra.mxu0 %v6786
    %11420 = vmatpush.bf16.msra.mxu0 %v6778
    %11421 = vmatmul.bf16.gmra.mxu0 %v143
    %v11422 = vpop.f32.mrf.mxu0
    %v11423 = vadd.f32 %v11409, %v11422
    %v11424 = vpop.f32.mrf.mxu0
    %v11425 = vadd.f32 %v11411, %v11424
    %11426 = vdwg.mxu0
    %11427 = vmatpush.bf16.msra.mxu0 %v6898
    %11428 = vmatpush.bf16.msra.mxu0 %v6890
    %11429 = vmatpush.bf16.msra.mxu0 %v6882
    %11430 = vmatpush.bf16.msra.mxu0 %v6874
    %11431 = vmatpush.bf16.msra.mxu0 %v6866
    %11432 = vmatpush.bf16.msra.mxu0 %v6858
    %11433 = vmatpush.bf16.msra.mxu0 %v6850
    %11434 = vmatpush.bf16.msra.mxu0 %v6842
    %11435 = vmatmul.bf16.gmra.mxu0 %v144
    %v11436 = vpop.f32.mrf.mxu0
    %v11437 = vadd.f32 %v11423, %v11436
    %v11438 = vpop.f32.mrf.mxu0
    %v11439 = vadd.f32 %v11425, %v11438
    %11440 = vdwg.mxu0
    %11441 = vmatpush.bf16.msra.mxu0 %v6962
    %11442 = vmatpush.bf16.msra.mxu0 %v6954
    %11443 = vmatpush.bf16.msra.mxu0 %v6946
    %11444 = vmatpush.bf16.msra.mxu0 %v6938
    %11445 = vmatpush.bf16.msra.mxu0 %v6930
    %11446 = vmatpush.bf16.msra.mxu0 %v6922
    %11447 = vmatpush.bf16.msra.mxu0 %v6914
    %11448 = vmatpush.bf16.msra.mxu0 %v6906
    %11449 = vmatmul.bf16.gmra.mxu0 %v145
    %v11450 = vpop.f32.mrf.mxu0
    %v11451 = vadd.f32 %v11437, %v11450
    %v11452 = vpop.f32.mrf.mxu0
    %v11453 = vadd.f32 %v11439, %v11452
    %11454 = vdwg.mxu0
    %11455 = vmatpush.bf16.msra.mxu0 %v7026
    %11456 = vmatpush.bf16.msra.mxu0 %v7018
    %11457 = vmatpush.bf16.msra.mxu0 %v7010
    %11458 = vmatpush.bf16.msra.mxu0 %v7002
    %11459 = vmatpush.bf16.msra.mxu0 %v6994
    %11460 = vmatpush.bf16.msra.mxu0 %v6986
    %11461 = vmatpush.bf16.msra.mxu0 %v6978
    %11462 = vmatpush.bf16.msra.mxu0 %v6970
    %11463 = vmatmul.bf16.gmra.mxu0 %v146
    %v11464 = vpop.f32.mrf.mxu0
    %v11465 = vadd.f32 %v11451, %v11464
    %v11466 = vpop.f32.mrf.mxu0
    %v11467 = vadd.f32 %v11453, %v11466
    %11468 = vdwg.mxu0
    %11469 = vmatpush.bf16.msra.mxu0 %v7090
    %11470 = vmatpush.bf16.msra.mxu0 %v7082
    %11471 = vmatpush.bf16.msra.mxu0 %v7074
    %11472 = vmatpush.bf16.msra.mxu0 %v7066
    %11473 = vmatpush.bf16.msra.mxu0 %v7058
    %11474 = vmatpush.bf16.msra.mxu0 %v7050
    %11475 = vmatpush.bf16.msra.mxu0 %v7042
    %11476 = vmatpush.bf16.msra.mxu0 %v7034
    %11477 = vmatmul.bf16.gmra.mxu0 %v147
    %v11478 = vpop.f32.mrf.mxu0
    %v11479 = vadd.f32 %v11465, %v11478
    %v11480 = vpop.f32.mrf.mxu0
    %v11481 = vadd.f32 %v11467, %v11480
    %11482 = vdwg.mxu0
    %11483 = vmatpush.bf16.msra.mxu0 %v7154
    %11484 = vmatpush.bf16.msra.mxu0 %v7146
    %11485 = vmatpush.bf16.msra.mxu0 %v7138
    %11486 = vmatpush.bf16.msra.mxu0 %v7130
    %11487 = vmatpush.bf16.msra.mxu0 %v7122
    %11488 = vmatpush.bf16.msra.mxu0 %v7114
    %11489 = vmatpush.bf16.msra.mxu0 %v7106
    %11490 = vmatpush.bf16.msra.mxu0 %v7098
    %11491 = vmatmul.bf16.gmra.mxu0 %v148
    %v11492 = vpop.f32.mrf.mxu0
    %v11493 = vadd.f32 %v11479, %v11492
    %v11494 = vpop.f32.mrf.mxu0
    %v11495 = vadd.f32 %v11481, %v11494
    %11496 = vdwg.mxu0
    %11497 = vmatpush.bf16.msra.mxu0 %v7218
    %11498 = vmatpush.bf16.msra.mxu0 %v7210
    %11499 = vmatpush.bf16.msra.mxu0 %v7202
    %11500 = vmatpush.bf16.msra.mxu0 %v7194
    %11501 = vmatpush.bf16.msra.mxu0 %v7186
    %11502 = vmatpush.bf16.msra.mxu0 %v7178
    %11503 = vmatpush.bf16.msra.mxu0 %v7170
    %11504 = vmatpush.bf16.msra.mxu0 %v7162
    %11505 = vmatmul.bf16.gmra.mxu0 %v149
    %v11506 = vpop.f32.mrf.mxu0
    %v11507 = vadd.f32 %v11493, %v11506
    %v11508 = vpop.f32.mrf.mxu0
    %v11509 = vadd.f32 %v11495, %v11508
    %11510 = vdwg.mxu0
    %11511 = vmatpush.bf16.msra.mxu0 %v7282
    %11512 = vmatpush.bf16.msra.mxu0 %v7274
    %11513 = vmatpush.bf16.msra.mxu0 %v7266
    %11514 = vmatpush.bf16.msra.mxu0 %v7258
    %11515 = vmatpush.bf16.msra.mxu0 %v7250
    %11516 = vmatpush.bf16.msra.mxu0 %v7242
    %11517 = vmatpush.bf16.msra.mxu0 %v7234
    %11518 = vmatpush.bf16.msra.mxu0 %v7226
    %11519 = vmatmul.bf16.gmra.mxu0 %v150
    %v11520 = vpop.f32.mrf.mxu0
    %v11521 = vadd.f32 %v11507, %v11520
    %v11522 = vpop.f32.mrf.mxu0
    %v11523 = vadd.f32 %v11509, %v11522
    %11524 = vdwg.mxu0
    %11525 = vmatpush.bf16.msra.mxu0 %v7346
    %11526 = vmatpush.bf16.msra.mxu0 %v7338
    %11527 = vmatpush.bf16.msra.mxu0 %v7330
    %11528 = vmatpush.bf16.msra.mxu0 %v7322
    %11529 = vmatpush.bf16.msra.mxu0 %v7314
    %11530 = vmatpush.bf16.msra.mxu0 %v7306
    %11531 = vmatpush.bf16.msra.mxu0 %v7298
    %11532 = vmatpush.bf16.msra.mxu0 %v7290
    %11533 = vmatmul.bf16.gmra.mxu0 %v151
    %v11534 = vpop.f32.mrf.mxu0
    %v11535 = vadd.f32 %v11521, %v11534
    %v11536 = vpop.f32.mrf.mxu0
    %v11537 = vadd.f32 %v11523, %v11536
    %11538 = vdwg.mxu0
    %11539 = vmatpush.bf16.msra.mxu0 %v7410
    %11540 = vmatpush.bf16.msra.mxu0 %v7402
    %11541 = vmatpush.bf16.msra.mxu0 %v7394
    %11542 = vmatpush.bf16.msra.mxu0 %v7386
    %11543 = vmatpush.bf16.msra.mxu0 %v7378
    %11544 = vmatpush.bf16.msra.mxu0 %v7370
    %11545 = vmatpush.bf16.msra.mxu0 %v7362
    %11546 = vmatpush.bf16.msra.mxu0 %v7354
    %11547 = vmatmul.bf16.gmra.mxu0 %v152
    %v11548 = vpop.f32.mrf.mxu0
    %v11549 = vadd.f32 %v11535, %v11548
    %v11550 = vpop.f32.mrf.mxu0
    %v11551 = vadd.f32 %v11537, %v11550
    %11552 = vdwg.mxu0
    %11553 = vmatpush.bf16.msra.mxu0 %v7474
    %11554 = vmatpush.bf16.msra.mxu0 %v7466
    %11555 = vmatpush.bf16.msra.mxu0 %v7458
    %11556 = vmatpush.bf16.msra.mxu0 %v7450
    %11557 = vmatpush.bf16.msra.mxu0 %v7442
    %11558 = vmatpush.bf16.msra.mxu0 %v7434
    %11559 = vmatpush.bf16.msra.mxu0 %v7426
    %11560 = vmatpush.bf16.msra.mxu0 %v7418
    %11561 = vmatmul.bf16.gmra.mxu0 %v153
    %v11562 = vpop.f32.mrf.mxu0
    %v11563 = vadd.f32 %v11549, %v11562
    %v11564 = vpop.f32.mrf.mxu0
    %v11565 = vadd.f32 %v11551, %v11564
    %11566 = vdwg.mxu0
    %11567 = vmatpush.bf16.msra.mxu0 %v7538
    %11568 = vmatpush.bf16.msra.mxu0 %v7530
    %11569 = vmatpush.bf16.msra.mxu0 %v7522
    %11570 = vmatpush.bf16.msra.mxu0 %v7514
    %11571 = vmatpush.bf16.msra.mxu0 %v7506
    %11572 = vmatpush.bf16.msra.mxu0 %v7498
    %11573 = vmatpush.bf16.msra.mxu0 %v7490
    %11574 = vmatpush.bf16.msra.mxu0 %v7482
    %11575 = vmatmul.bf16.gmra.mxu0 %v154
    %v11576 = vpop.f32.mrf.mxu0
    %v11577 = vadd.f32 %v11563, %v11576
    %v11578 = vpop.f32.mrf.mxu0
    %v11579 = vadd.f32 %v11565, %v11578
    %11580 = vdwg.mxu0
    %11581 = vmatpush.bf16.msra.mxu0 %v7602
    %11582 = vmatpush.bf16.msra.mxu0 %v7594
    %11583 = vmatpush.bf16.msra.mxu0 %v7586
    %11584 = vmatpush.bf16.msra.mxu0 %v7578
    %11585 = vmatpush.bf16.msra.mxu0 %v7570
    %11586 = vmatpush.bf16.msra.mxu0 %v7562
    %11587 = vmatpush.bf16.msra.mxu0 %v7554
    %11588 = vmatpush.bf16.msra.mxu0 %v7546
    %11589 = vmatmul.bf16.gmra.mxu0 %v155
    %v11590 = vpop.f32.mrf.mxu0
    %v11591 = vadd.f32 %v11577, %v11590
    %v11592 = vpop.f32.mrf.mxu0
    %v11593 = vadd.f32 %v11579, %v11592
    %11594 = vdwg.mxu0
    %11595 = vmatpush.bf16.msra.mxu0 %v7666
    %11596 = vmatpush.bf16.msra.mxu0 %v7658
    %11597 = vmatpush.bf16.msra.mxu0 %v7650
    %11598 = vmatpush.bf16.msra.mxu0 %v7642
    %11599 = vmatpush.bf16.msra.mxu0 %v7634
    %11600 = vmatpush.bf16.msra.mxu0 %v7626
    %11601 = vmatpush.bf16.msra.mxu0 %v7618
    %11602 = vmatpush.bf16.msra.mxu0 %v7610
    %11603 = vmatmul.bf16.gmra.mxu0 %v156
    %v11604 = vpop.f32.mrf.mxu0
    %v11605 = vadd.f32 %v11591, %v11604
    %v11606 = vpop.f32.mrf.mxu0
    %v11607 = vadd.f32 %v11593, %v11606
    %11608 = vdwg.mxu0
    %11609 = vmatpush.bf16.msra.mxu0 %v7730
    %11610 = vmatpush.bf16.msra.mxu0 %v7722
    %11611 = vmatpush.bf16.msra.mxu0 %v7714
    %11612 = vmatpush.bf16.msra.mxu0 %v7706
    %11613 = vmatpush.bf16.msra.mxu0 %v7698
    %11614 = vmatpush.bf16.msra.mxu0 %v7690
    %11615 = vmatpush.bf16.msra.mxu0 %v7682
    %11616 = vmatpush.bf16.msra.mxu0 %v7674
    %11617 = vmatmul.bf16.gmra.mxu0 %v157
    %v11618 = vpop.f32.mrf.mxu0
    %v11619 = vadd.f32 %v11605, %v11618
    %v11620 = vpop.f32.mrf.mxu0
    %v11621 = vadd.f32 %v11607, %v11620
    %11622 = vdwg.mxu0
    %11623 = vmatpush.bf16.msra.mxu0 %v7794
    %11624 = vmatpush.bf16.msra.mxu0 %v7786
    %11625 = vmatpush.bf16.msra.mxu0 %v7778
    %11626 = vmatpush.bf16.msra.mxu0 %v7770
    %11627 = vmatpush.bf16.msra.mxu0 %v7762
    %11628 = vmatpush.bf16.msra.mxu0 %v7754
    %11629 = vmatpush.bf16.msra.mxu0 %v7746
    %11630 = vmatpush.bf16.msra.mxu0 %v7738
    %11631 = vmatmul.bf16.gmra.mxu0 %v158
    %v11632 = vpop.f32.mrf.mxu0
    %v11633 = vadd.f32 %v11619, %v11632
    %v11634 = vpop.f32.mrf.mxu0
    %v11635 = vadd.f32 %v11621, %v11634
    %11636 = vdwg.mxu0
    %11637 = vmatpush.bf16.msra.mxu0 %v7858
    %11638 = vmatpush.bf16.msra.mxu0 %v7850
    %11639 = vmatpush.bf16.msra.mxu0 %v7842
    %11640 = vmatpush.bf16.msra.mxu0 %v7834
    %11641 = vmatpush.bf16.msra.mxu0 %v7826
    %11642 = vmatpush.bf16.msra.mxu0 %v7818
    %11643 = vmatpush.bf16.msra.mxu0 %v7810
    %11644 = vmatpush.bf16.msra.mxu0 %v7802
    %11645 = vmatmul.bf16.gmra.mxu0 %v159
    %v11646 = vpop.f32.mrf.mxu0
    %v11647 = vadd.f32 %v11633, %v11646
    %v11648 = vpop.f32.mrf.mxu0
    %v11649 = vadd.f32 %v11635, %v11648
    %11650 = vdwg.mxu0
    %11651 = vmatpush.bf16.msra.mxu0 %v7922
    %11652 = vmatpush.bf16.msra.mxu0 %v7914
    %11653 = vmatpush.bf16.msra.mxu0 %v7906
    %11654 = vmatpush.bf16.msra.mxu0 %v7898
    %11655 = vmatpush.bf16.msra.mxu0 %v7890
    %11656 = vmatpush.bf16.msra.mxu0 %v7882
    %11657 = vmatpush.bf16.msra.mxu0 %v7874
    %11658 = vmatpush.bf16.msra.mxu0 %v7866
    %11659 = vmatmul.bf16.gmra.mxu0 %v160
    %v11660 = vpop.f32.mrf.mxu0
    %v11661 = vadd.f32 %v11647, %v11660
    %v11662 = vpop.f32.mrf.mxu0
    %v11663 = vadd.f32 %v11649, %v11662
    %11664 = vdwg.mxu0
    %11665 = vmatpush.bf16.msra.mxu0 %v7986
    %11666 = vmatpush.bf16.msra.mxu0 %v7978
    %11667 = vmatpush.bf16.msra.mxu0 %v7970
    %11668 = vmatpush.bf16.msra.mxu0 %v7962
    %11669 = vmatpush.bf16.msra.mxu0 %v7954
    %11670 = vmatpush.bf16.msra.mxu0 %v7946
    %11671 = vmatpush.bf16.msra.mxu0 %v7938
    %11672 = vmatpush.bf16.msra.mxu0 %v7930
    %11673 = vmatmul.bf16.gmra.mxu0 %v161
    %v11674 = vpop.f32.mrf.mxu0
    %v11675 = vadd.f32 %v11661, %v11674
    %v11676 = vpop.f32.mrf.mxu0
    %v11677 = vadd.f32 %v11663, %v11676
    %11678 = vdwg.mxu0
    %11679 = vmatpush.bf16.msra.mxu0 0
    %11680 = vmatpush.bf16.msra.mxu0 0
    %11681 = vmatpush.bf16.msra.mxu0 0
    %11682 = vmatpush.bf16.msra.mxu0 0
    %11683 = vmatpush.bf16.msra.mxu0 %v8018
    %11684 = vmatpush.bf16.msra.mxu0 %v8010
    %11685 = vmatpush.bf16.msra.mxu0 %v8002
    %11686 = vmatpush.bf16.msra.mxu0 %v7994
    %11687 = vmatmul.bf16.gmra.mxu0 %v9591
    %v11688 = vpop.f32.mrf.mxu0
    %v11689 = vadd.f32 %v11675, %v11688
    %v11690 = vpop.f32.mrf.mxu0
    %v11691 = vadd.f32 %v11677, %v11690
    %11692 = vdwg.mxu0
    %11693 = vmatpush.bf16.msra.mxu0 %v6515
    %11694 = vmatpush.bf16.msra.mxu0 %v6507
    %11695 = vmatpush.bf16.msra.mxu0 %v6499
    %11696 = vmatpush.bf16.msra.mxu0 %v6491
    %11697 = vmatpush.bf16.msra.mxu0 %v6483
    %11698 = vmatpush.bf16.msra.mxu0 %v6475
    %11699 = vmatpush.bf16.msra.mxu0 %v6467
    %11700 = vmatpush.bf16.msra.mxu0 %v6459
    %11701 = vmatmul.bf16.gmra.mxu0 %v138
    %v11702 = vpop.f32.mrf.mxu0
    %v11703 = vadd.f32 %v1739, %v11702
    %v11704 = vpop.f32.mrf.mxu0
    %v11705 = vadd.f32 %v1739, %v11704
    %11706 = vdwg.mxu0
    %11707 = vmatpush.bf16.msra.mxu0 %v6579
    %11708 = vmatpush.bf16.msra.mxu0 %v6571
    %11709 = vmatpush.bf16.msra.mxu0 %v6563
    %11710 = vmatpush.bf16.msra.mxu0 %v6555
    %11711 = vmatpush.bf16.msra.mxu0 %v6547
    %11712 = vmatpush.bf16.msra.mxu0 %v6539
    %11713 = vmatpush.bf16.msra.mxu0 %v6531
    %11714 = vmatpush.bf16.msra.mxu0 %v6523
    %11715 = vmatmul.bf16.gmra.mxu0 %v139
    %v11716 = vpop.f32.mrf.mxu0
    %v11717 = vadd.f32 %v11703, %v11716
    %v11718 = vpop.f32.mrf.mxu0
    %v11719 = vadd.f32 %v11705, %v11718
    %11720 = vdwg.mxu0
    %11721 = vmatpush.bf16.msra.mxu0 %v6643
    %11722 = vmatpush.bf16.msra.mxu0 %v6635
    %11723 = vmatpush.bf16.msra.mxu0 %v6627
    %11724 = vmatpush.bf16.msra.mxu0 %v6619
    %11725 = vmatpush.bf16.msra.mxu0 %v6611
    %11726 = vmatpush.bf16.msra.mxu0 %v6603
    %11727 = vmatpush.bf16.msra.mxu0 %v6595
    %11728 = vmatpush.bf16.msra.mxu0 %v6587
    %11729 = vmatmul.bf16.gmra.mxu0 %v140
    %v11730 = vpop.f32.mrf.mxu0
    %v11731 = vadd.f32 %v11717, %v11730
    %v11732 = vpop.f32.mrf.mxu0
    %v11733 = vadd.f32 %v11719, %v11732
    %11734 = vdwg.mxu0
    %11735 = vmatpush.bf16.msra.mxu0 %v6707
    %11736 = vmatpush.bf16.msra.mxu0 %v6699
    %11737 = vmatpush.bf16.msra.mxu0 %v6691
    %11738 = vmatpush.bf16.msra.mxu0 %v6683
    %11739 = vmatpush.bf16.msra.mxu0 %v6675
    %11740 = vmatpush.bf16.msra.mxu0 %v6667
    %11741 = vmatpush.bf16.msra.mxu0 %v6659
    %11742 = vmatpush.bf16.msra.mxu0 %v6651
    %11743 = vmatmul.bf16.gmra.mxu0 %v141
    %v11744 = vpop.f32.mrf.mxu0
    %v11745 = vadd.f32 %v11731, %v11744
    %v11746 = vpop.f32.mrf.mxu0
    %v11747 = vadd.f32 %v11733, %v11746
    %11748 = vdwg.mxu0
    %11749 = vmatpush.bf16.msra.mxu0 %v6771
    %11750 = vmatpush.bf16.msra.mxu0 %v6763
    %11751 = vmatpush.bf16.msra.mxu0 %v6755
    %11752 = vmatpush.bf16.msra.mxu0 %v6747
    %11753 = vmatpush.bf16.msra.mxu0 %v6739
    %11754 = vmatpush.bf16.msra.mxu0 %v6731
    %11755 = vmatpush.bf16.msra.mxu0 %v6723
    %11756 = vmatpush.bf16.msra.mxu0 %v6715
    %11757 = vmatmul.bf16.gmra.mxu0 %v142
    %v11758 = vpop.f32.mrf.mxu0
    %v11759 = vadd.f32 %v11745, %v11758
    %v11760 = vpop.f32.mrf.mxu0
    %v11761 = vadd.f32 %v11747, %v11760
    %11762 = vdwg.mxu0
    %11763 = vmatpush.bf16.msra.mxu0 %v6835
    %11764 = vmatpush.bf16.msra.mxu0 %v6827
    %11765 = vmatpush.bf16.msra.mxu0 %v6819
    %11766 = vmatpush.bf16.msra.mxu0 %v6811
    %11767 = vmatpush.bf16.msra.mxu0 %v6803
    %11768 = vmatpush.bf16.msra.mxu0 %v6795
    %11769 = vmatpush.bf16.msra.mxu0 %v6787
    %11770 = vmatpush.bf16.msra.mxu0 %v6779
    %11771 = vmatmul.bf16.gmra.mxu0 %v143
    %v11772 = vpop.f32.mrf.mxu0
    %v11773 = vadd.f32 %v11759, %v11772
    %v11774 = vpop.f32.mrf.mxu0
    %v11775 = vadd.f32 %v11761, %v11774
    %11776 = vdwg.mxu0
    %11777 = vmatpush.bf16.msra.mxu0 %v6899
    %11778 = vmatpush.bf16.msra.mxu0 %v6891
    %11779 = vmatpush.bf16.msra.mxu0 %v6883
    %11780 = vmatpush.bf16.msra.mxu0 %v6875
    %11781 = vmatpush.bf16.msra.mxu0 %v6867
    %11782 = vmatpush.bf16.msra.mxu0 %v6859
    %11783 = vmatpush.bf16.msra.mxu0 %v6851
    %11784 = vmatpush.bf16.msra.mxu0 %v6843
    %11785 = vmatmul.bf16.gmra.mxu0 %v144
    %v11786 = vpop.f32.mrf.mxu0
    %v11787 = vadd.f32 %v11773, %v11786
    %v11788 = vpop.f32.mrf.mxu0
    %v11789 = vadd.f32 %v11775, %v11788
    %11790 = vdwg.mxu0
    %11791 = vmatpush.bf16.msra.mxu0 %v6963
    %11792 = vmatpush.bf16.msra.mxu0 %v6955
    %11793 = vmatpush.bf16.msra.mxu0 %v6947
    %11794 = vmatpush.bf16.msra.mxu0 %v6939
    %11795 = vmatpush.bf16.msra.mxu0 %v6931
    %11796 = vmatpush.bf16.msra.mxu0 %v6923
    %11797 = vmatpush.bf16.msra.mxu0 %v6915
    %11798 = vmatpush.bf16.msra.mxu0 %v6907
    %11799 = vmatmul.bf16.gmra.mxu0 %v145
    %v11800 = vpop.f32.mrf.mxu0
    %v11801 = vadd.f32 %v11787, %v11800
    %v11802 = vpop.f32.mrf.mxu0
    %v11803 = vadd.f32 %v11789, %v11802
    %11804 = vdwg.mxu0
    %11805 = vmatpush.bf16.msra.mxu0 %v7027
    %11806 = vmatpush.bf16.msra.mxu0 %v7019
    %11807 = vmatpush.bf16.msra.mxu0 %v7011
    %11808 = vmatpush.bf16.msra.mxu0 %v7003
    %11809 = vmatpush.bf16.msra.mxu0 %v6995
    %11810 = vmatpush.bf16.msra.mxu0 %v6987
    %11811 = vmatpush.bf16.msra.mxu0 %v6979
    %11812 = vmatpush.bf16.msra.mxu0 %v6971
    %11813 = vmatmul.bf16.gmra.mxu0 %v146
    %v11814 = vpop.f32.mrf.mxu0
    %v11815 = vadd.f32 %v11801, %v11814
    %v11816 = vpop.f32.mrf.mxu0
    %v11817 = vadd.f32 %v11803, %v11816
    %11818 = vdwg.mxu0
    %11819 = vmatpush.bf16.msra.mxu0 %v7091
    %11820 = vmatpush.bf16.msra.mxu0 %v7083
    %11821 = vmatpush.bf16.msra.mxu0 %v7075
    %11822 = vmatpush.bf16.msra.mxu0 %v7067
    %11823 = vmatpush.bf16.msra.mxu0 %v7059
    %11824 = vmatpush.bf16.msra.mxu0 %v7051
    %11825 = vmatpush.bf16.msra.mxu0 %v7043
    %11826 = vmatpush.bf16.msra.mxu0 %v7035
    %11827 = vmatmul.bf16.gmra.mxu0 %v147
    %v11828 = vpop.f32.mrf.mxu0
    %v11829 = vadd.f32 %v11815, %v11828
    %v11830 = vpop.f32.mrf.mxu0
    %v11831 = vadd.f32 %v11817, %v11830
    %11832 = vdwg.mxu0
    %11833 = vmatpush.bf16.msra.mxu0 %v7155
    %11834 = vmatpush.bf16.msra.mxu0 %v7147
    %11835 = vmatpush.bf16.msra.mxu0 %v7139
    %11836 = vmatpush.bf16.msra.mxu0 %v7131
    %11837 = vmatpush.bf16.msra.mxu0 %v7123
    %11838 = vmatpush.bf16.msra.mxu0 %v7115
    %11839 = vmatpush.bf16.msra.mxu0 %v7107
    %11840 = vmatpush.bf16.msra.mxu0 %v7099
    %11841 = vmatmul.bf16.gmra.mxu0 %v148
    %v11842 = vpop.f32.mrf.mxu0
    %v11843 = vadd.f32 %v11829, %v11842
    %v11844 = vpop.f32.mrf.mxu0
    %v11845 = vadd.f32 %v11831, %v11844
    %11846 = vdwg.mxu0
    %11847 = vmatpush.bf16.msra.mxu0 %v7219
    %11848 = vmatpush.bf16.msra.mxu0 %v7211
    %11849 = vmatpush.bf16.msra.mxu0 %v7203
    %11850 = vmatpush.bf16.msra.mxu0 %v7195
    %11851 = vmatpush.bf16.msra.mxu0 %v7187
    %11852 = vmatpush.bf16.msra.mxu0 %v7179
    %11853 = vmatpush.bf16.msra.mxu0 %v7171
    %11854 = vmatpush.bf16.msra.mxu0 %v7163
    %11855 = vmatmul.bf16.gmra.mxu0 %v149
    %v11856 = vpop.f32.mrf.mxu0
    %v11857 = vadd.f32 %v11843, %v11856
    %v11858 = vpop.f32.mrf.mxu0
    %v11859 = vadd.f32 %v11845, %v11858
    %11860 = vdwg.mxu0
    %11861 = vmatpush.bf16.msra.mxu0 %v7283
    %11862 = vmatpush.bf16.msra.mxu0 %v7275
    %11863 = vmatpush.bf16.msra.mxu0 %v7267
    %11864 = vmatpush.bf16.msra.mxu0 %v7259
    %11865 = vmatpush.bf16.msra.mxu0 %v7251
    %11866 = vmatpush.bf16.msra.mxu0 %v7243
    %11867 = vmatpush.bf16.msra.mxu0 %v7235
    %11868 = vmatpush.bf16.msra.mxu0 %v7227
    %11869 = vmatmul.bf16.gmra.mxu0 %v150
    %v11870 = vpop.f32.mrf.mxu0
    %v11871 = vadd.f32 %v11857, %v11870
    %v11872 = vpop.f32.mrf.mxu0
    %v11873 = vadd.f32 %v11859, %v11872
    %11874 = vdwg.mxu0
    %11875 = vmatpush.bf16.msra.mxu0 %v7347
    %11876 = vmatpush.bf16.msra.mxu0 %v7339
    %11877 = vmatpush.bf16.msra.mxu0 %v7331
    %11878 = vmatpush.bf16.msra.mxu0 %v7323
    %11879 = vmatpush.bf16.msra.mxu0 %v7315
    %11880 = vmatpush.bf16.msra.mxu0 %v7307
    %11881 = vmatpush.bf16.msra.mxu0 %v7299
    %11882 = vmatpush.bf16.msra.mxu0 %v7291
    %11883 = vmatmul.bf16.gmra.mxu0 %v151
    %v11884 = vpop.f32.mrf.mxu0
    %v11885 = vadd.f32 %v11871, %v11884
    %v11886 = vpop.f32.mrf.mxu0
    %v11887 = vadd.f32 %v11873, %v11886
    %11888 = vdwg.mxu0
    %11889 = vmatpush.bf16.msra.mxu0 %v7411
    %11890 = vmatpush.bf16.msra.mxu0 %v7403
    %11891 = vmatpush.bf16.msra.mxu0 %v7395
    %11892 = vmatpush.bf16.msra.mxu0 %v7387
    %11893 = vmatpush.bf16.msra.mxu0 %v7379
    %11894 = vmatpush.bf16.msra.mxu0 %v7371
    %11895 = vmatpush.bf16.msra.mxu0 %v7363
    %11896 = vmatpush.bf16.msra.mxu0 %v7355
    %11897 = vmatmul.bf16.gmra.mxu0 %v152
    %v11898 = vpop.f32.mrf.mxu0
    %v11899 = vadd.f32 %v11885, %v11898
    %v11900 = vpop.f32.mrf.mxu0
    %v11901 = vadd.f32 %v11887, %v11900
    %11902 = vdwg.mxu0
    %11903 = vmatpush.bf16.msra.mxu0 %v7475
    %11904 = vmatpush.bf16.msra.mxu0 %v7467
    %11905 = vmatpush.bf16.msra.mxu0 %v7459
    %11906 = vmatpush.bf16.msra.mxu0 %v7451
    %11907 = vmatpush.bf16.msra.mxu0 %v7443
    %11908 = vmatpush.bf16.msra.mxu0 %v7435
    %11909 = vmatpush.bf16.msra.mxu0 %v7427
    %11910 = vmatpush.bf16.msra.mxu0 %v7419
    %11911 = vmatmul.bf16.gmra.mxu0 %v153
    %v11912 = vpop.f32.mrf.mxu0
    %v11913 = vadd.f32 %v11899, %v11912
    %v11914 = vpop.f32.mrf.mxu0
    %v11915 = vadd.f32 %v11901, %v11914
    %11916 = vdwg.mxu0
    %11917 = vmatpush.bf16.msra.mxu0 %v7539
    %11918 = vmatpush.bf16.msra.mxu0 %v7531
    %11919 = vmatpush.bf16.msra.mxu0 %v7523
    %11920 = vmatpush.bf16.msra.mxu0 %v7515
    %11921 = vmatpush.bf16.msra.mxu0 %v7507
    %11922 = vmatpush.bf16.msra.mxu0 %v7499
    %11923 = vmatpush.bf16.msra.mxu0 %v7491
    %11924 = vmatpush.bf16.msra.mxu0 %v7483
    %11925 = vmatmul.bf16.gmra.mxu0 %v154
    %v11926 = vpop.f32.mrf.mxu0
    %v11927 = vadd.f32 %v11913, %v11926
    %v11928 = vpop.f32.mrf.mxu0
    %v11929 = vadd.f32 %v11915, %v11928
    %11930 = vdwg.mxu0
    %11931 = vmatpush.bf16.msra.mxu0 %v7603
    %11932 = vmatpush.bf16.msra.mxu0 %v7595
    %11933 = vmatpush.bf16.msra.mxu0 %v7587
    %11934 = vmatpush.bf16.msra.mxu0 %v7579
    %11935 = vmatpush.bf16.msra.mxu0 %v7571
    %11936 = vmatpush.bf16.msra.mxu0 %v7563
    %11937 = vmatpush.bf16.msra.mxu0 %v7555
    %11938 = vmatpush.bf16.msra.mxu0 %v7547
    %11939 = vmatmul.bf16.gmra.mxu0 %v155
    %v11940 = vpop.f32.mrf.mxu0
    %v11941 = vadd.f32 %v11927, %v11940
    %v11942 = vpop.f32.mrf.mxu0
    %v11943 = vadd.f32 %v11929, %v11942
    %11944 = vdwg.mxu0
    %11945 = vmatpush.bf16.msra.mxu0 %v7667
    %11946 = vmatpush.bf16.msra.mxu0 %v7659
    %11947 = vmatpush.bf16.msra.mxu0 %v7651
    %11948 = vmatpush.bf16.msra.mxu0 %v7643
    %11949 = vmatpush.bf16.msra.mxu0 %v7635
    %11950 = vmatpush.bf16.msra.mxu0 %v7627
    %11951 = vmatpush.bf16.msra.mxu0 %v7619
    %11952 = vmatpush.bf16.msra.mxu0 %v7611
    %11953 = vmatmul.bf16.gmra.mxu0 %v156
    %v11954 = vpop.f32.mrf.mxu0
    %v11955 = vadd.f32 %v11941, %v11954
    %v11956 = vpop.f32.mrf.mxu0
    %v11957 = vadd.f32 %v11943, %v11956
    %11958 = vdwg.mxu0
    %11959 = vmatpush.bf16.msra.mxu0 %v7731
    %11960 = vmatpush.bf16.msra.mxu0 %v7723
    %11961 = vmatpush.bf16.msra.mxu0 %v7715
    %11962 = vmatpush.bf16.msra.mxu0 %v7707
    %11963 = vmatpush.bf16.msra.mxu0 %v7699
    %11964 = vmatpush.bf16.msra.mxu0 %v7691
    %11965 = vmatpush.bf16.msra.mxu0 %v7683
    %11966 = vmatpush.bf16.msra.mxu0 %v7675
    %11967 = vmatmul.bf16.gmra.mxu0 %v157
    %v11968 = vpop.f32.mrf.mxu0
    %v11969 = vadd.f32 %v11955, %v11968
    %v11970 = vpop.f32.mrf.mxu0
    %v11971 = vadd.f32 %v11957, %v11970
    %11972 = vdwg.mxu0
    %11973 = vmatpush.bf16.msra.mxu0 %v7795
    %11974 = vmatpush.bf16.msra.mxu0 %v7787
    %11975 = vmatpush.bf16.msra.mxu0 %v7779
    %11976 = vmatpush.bf16.msra.mxu0 %v7771
    %11977 = vmatpush.bf16.msra.mxu0 %v7763
    %11978 = vmatpush.bf16.msra.mxu0 %v7755
    %11979 = vmatpush.bf16.msra.mxu0 %v7747
    %11980 = vmatpush.bf16.msra.mxu0 %v7739
    %11981 = vmatmul.bf16.gmra.mxu0 %v158
    %v11982 = vpop.f32.mrf.mxu0
    %v11983 = vadd.f32 %v11969, %v11982
    %v11984 = vpop.f32.mrf.mxu0
    %v11985 = vadd.f32 %v11971, %v11984
    %11986 = vdwg.mxu0
    %11987 = vmatpush.bf16.msra.mxu0 %v7859
    %11988 = vmatpush.bf16.msra.mxu0 %v7851
    %11989 = vmatpush.bf16.msra.mxu0 %v7843
    %11990 = vmatpush.bf16.msra.mxu0 %v7835
    %11991 = vmatpush.bf16.msra.mxu0 %v7827
    %11992 = vmatpush.bf16.msra.mxu0 %v7819
    %11993 = vmatpush.bf16.msra.mxu0 %v7811
    %11994 = vmatpush.bf16.msra.mxu0 %v7803
    %11995 = vmatmul.bf16.gmra.mxu0 %v159
    %v11996 = vpop.f32.mrf.mxu0
    %v11997 = vadd.f32 %v11983, %v11996
    %v11998 = vpop.f32.mrf.mxu0
    %v11999 = vadd.f32 %v11985, %v11998
    %12000 = vdwg.mxu0
    %12001 = vmatpush.bf16.msra.mxu0 %v7923
    %12002 = vmatpush.bf16.msra.mxu0 %v7915
    %12003 = vmatpush.bf16.msra.mxu0 %v7907
    %12004 = vmatpush.bf16.msra.mxu0 %v7899
    %12005 = vmatpush.bf16.msra.mxu0 %v7891
    %12006 = vmatpush.bf16.msra.mxu0 %v7883
    %12007 = vmatpush.bf16.msra.mxu0 %v7875
    %12008 = vmatpush.bf16.msra.mxu0 %v7867
    %12009 = vmatmul.bf16.gmra.mxu0 %v160
    %v12010 = vpop.f32.mrf.mxu0
    %v12011 = vadd.f32 %v11997, %v12010
    %v12012 = vpop.f32.mrf.mxu0
    %v12013 = vadd.f32 %v11999, %v12012
    %12014 = vdwg.mxu0
    %12015 = vmatpush.bf16.msra.mxu0 %v7987
    %12016 = vmatpush.bf16.msra.mxu0 %v7979
    %12017 = vmatpush.bf16.msra.mxu0 %v7971
    %12018 = vmatpush.bf16.msra.mxu0 %v7963
    %12019 = vmatpush.bf16.msra.mxu0 %v7955
    %12020 = vmatpush.bf16.msra.mxu0 %v7947
    %12021 = vmatpush.bf16.msra.mxu0 %v7939
    %12022 = vmatpush.bf16.msra.mxu0 %v7931
    %12023 = vmatmul.bf16.gmra.mxu0 %v161
    %v12024 = vpop.f32.mrf.mxu0
    %v12025 = vadd.f32 %v12011, %v12024
    %v12026 = vpop.f32.mrf.mxu0
    %v12027 = vadd.f32 %v12013, %v12026
    %12028 = vdwg.mxu0
    %12029 = vmatpush.bf16.msra.mxu0 0
    %12030 = vmatpush.bf16.msra.mxu0 0
    %12031 = vmatpush.bf16.msra.mxu0 0
    %12032 = vmatpush.bf16.msra.mxu0 0
    %12033 = vmatpush.bf16.msra.mxu0 %v8019
    %12034 = vmatpush.bf16.msra.mxu0 %v8011
    %12035 = vmatpush.bf16.msra.mxu0 %v8003
    %12036 = vmatpush.bf16.msra.mxu0 %v7995
    %12037 = vmatmul.bf16.gmra.mxu0 %v9591
    %v12038 = vpop.f32.mrf.mxu0
    %v12039 = vadd.f32 %v12025, %v12038
    %v12040 = vpop.f32.mrf.mxu0
    %v12041 = vadd.f32 %v12027, %v12040
    %12042 = vdwg.mxu0
    %12043 = vmatpush.bf16.msra.mxu0 %v6516
    %12044 = vmatpush.bf16.msra.mxu0 %v6508
    %12045 = vmatpush.bf16.msra.mxu0 %v6500
    %12046 = vmatpush.bf16.msra.mxu0 %v6492
    %12047 = vmatpush.bf16.msra.mxu0 %v6484
    %12048 = vmatpush.bf16.msra.mxu0 %v6476
    %12049 = vmatpush.bf16.msra.mxu0 %v6468
    %12050 = vmatpush.bf16.msra.mxu0 %v6460
    %12051 = vmatmul.bf16.gmra.mxu0 %v138
    %v12052 = vpop.f32.mrf.mxu0
    %v12053 = vadd.f32 %v1740, %v12052
    %v12054 = vpop.f32.mrf.mxu0
    %v12055 = vadd.f32 %v1740, %v12054
    %12056 = vdwg.mxu0
    %12057 = vmatpush.bf16.msra.mxu0 %v6580
    %12058 = vmatpush.bf16.msra.mxu0 %v6572
    %12059 = vmatpush.bf16.msra.mxu0 %v6564
    %12060 = vmatpush.bf16.msra.mxu0 %v6556
    %12061 = vmatpush.bf16.msra.mxu0 %v6548
    %12062 = vmatpush.bf16.msra.mxu0 %v6540
    %12063 = vmatpush.bf16.msra.mxu0 %v6532
    %12064 = vmatpush.bf16.msra.mxu0 %v6524
    %12065 = vmatmul.bf16.gmra.mxu0 %v139
    %v12066 = vpop.f32.mrf.mxu0
    %v12067 = vadd.f32 %v12053, %v12066
    %v12068 = vpop.f32.mrf.mxu0
    %v12069 = vadd.f32 %v12055, %v12068
    %12070 = vdwg.mxu0
    %12071 = vmatpush.bf16.msra.mxu0 %v6644
    %12072 = vmatpush.bf16.msra.mxu0 %v6636
    %12073 = vmatpush.bf16.msra.mxu0 %v6628
    %12074 = vmatpush.bf16.msra.mxu0 %v6620
    %12075 = vmatpush.bf16.msra.mxu0 %v6612
    %12076 = vmatpush.bf16.msra.mxu0 %v6604
    %12077 = vmatpush.bf16.msra.mxu0 %v6596
    %12078 = vmatpush.bf16.msra.mxu0 %v6588
    %12079 = vmatmul.bf16.gmra.mxu0 %v140
    %v12080 = vpop.f32.mrf.mxu0
    %v12081 = vadd.f32 %v12067, %v12080
    %v12082 = vpop.f32.mrf.mxu0
    %v12083 = vadd.f32 %v12069, %v12082
    %12084 = vdwg.mxu0
    %12085 = vmatpush.bf16.msra.mxu0 %v6708
    %12086 = vmatpush.bf16.msra.mxu0 %v6700
    %12087 = vmatpush.bf16.msra.mxu0 %v6692
    %12088 = vmatpush.bf16.msra.mxu0 %v6684
    %12089 = vmatpush.bf16.msra.mxu0 %v6676
    %12090 = vmatpush.bf16.msra.mxu0 %v6668
    %12091 = vmatpush.bf16.msra.mxu0 %v6660
    %12092 = vmatpush.bf16.msra.mxu0 %v6652
    %12093 = vmatmul.bf16.gmra.mxu0 %v141
    %v12094 = vpop.f32.mrf.mxu0
    %v12095 = vadd.f32 %v12081, %v12094
    %v12096 = vpop.f32.mrf.mxu0
    %v12097 = vadd.f32 %v12083, %v12096
    %12098 = vdwg.mxu0
    %12099 = vmatpush.bf16.msra.mxu0 %v6772
    %12100 = vmatpush.bf16.msra.mxu0 %v6764
    %12101 = vmatpush.bf16.msra.mxu0 %v6756
    %12102 = vmatpush.bf16.msra.mxu0 %v6748
    %12103 = vmatpush.bf16.msra.mxu0 %v6740
    %12104 = vmatpush.bf16.msra.mxu0 %v6732
    %12105 = vmatpush.bf16.msra.mxu0 %v6724
    %12106 = vmatpush.bf16.msra.mxu0 %v6716
    %12107 = vmatmul.bf16.gmra.mxu0 %v142
    %v12108 = vpop.f32.mrf.mxu0
    %v12109 = vadd.f32 %v12095, %v12108
    %v12110 = vpop.f32.mrf.mxu0
    %v12111 = vadd.f32 %v12097, %v12110
    %12112 = vdwg.mxu0
    %12113 = vmatpush.bf16.msra.mxu0 %v6836
    %12114 = vmatpush.bf16.msra.mxu0 %v6828
    %12115 = vmatpush.bf16.msra.mxu0 %v6820
    %12116 = vmatpush.bf16.msra.mxu0 %v6812
    %12117 = vmatpush.bf16.msra.mxu0 %v6804
    %12118 = vmatpush.bf16.msra.mxu0 %v6796
    %12119 = vmatpush.bf16.msra.mxu0 %v6788
    %12120 = vmatpush.bf16.msra.mxu0 %v6780
    %12121 = vmatmul.bf16.gmra.mxu0 %v143
    %v12122 = vpop.f32.mrf.mxu0
    %v12123 = vadd.f32 %v12109, %v12122
    %v12124 = vpop.f32.mrf.mxu0
    %v12125 = vadd.f32 %v12111, %v12124
    %12126 = vdwg.mxu0
    %12127 = vmatpush.bf16.msra.mxu0 %v6900
    %12128 = vmatpush.bf16.msra.mxu0 %v6892
    %12129 = vmatpush.bf16.msra.mxu0 %v6884
    %12130 = vmatpush.bf16.msra.mxu0 %v6876
    %12131 = vmatpush.bf16.msra.mxu0 %v6868
    %12132 = vmatpush.bf16.msra.mxu0 %v6860
    %12133 = vmatpush.bf16.msra.mxu0 %v6852
    %12134 = vmatpush.bf16.msra.mxu0 %v6844
    %12135 = vmatmul.bf16.gmra.mxu0 %v144
    %v12136 = vpop.f32.mrf.mxu0
    %v12137 = vadd.f32 %v12123, %v12136
    %v12138 = vpop.f32.mrf.mxu0
    %v12139 = vadd.f32 %v12125, %v12138
    %12140 = vdwg.mxu0
    %12141 = vmatpush.bf16.msra.mxu0 %v6964
    %12142 = vmatpush.bf16.msra.mxu0 %v6956
    %12143 = vmatpush.bf16.msra.mxu0 %v6948
    %12144 = vmatpush.bf16.msra.mxu0 %v6940
    %12145 = vmatpush.bf16.msra.mxu0 %v6932
    %12146 = vmatpush.bf16.msra.mxu0 %v6924
    %12147 = vmatpush.bf16.msra.mxu0 %v6916
    %12148 = vmatpush.bf16.msra.mxu0 %v6908
    %12149 = vmatmul.bf16.gmra.mxu0 %v145
    %v12150 = vpop.f32.mrf.mxu0
    %v12151 = vadd.f32 %v12137, %v12150
    %v12152 = vpop.f32.mrf.mxu0
    %v12153 = vadd.f32 %v12139, %v12152
    %12154 = vdwg.mxu0
    %12155 = vmatpush.bf16.msra.mxu0 %v7028
    %12156 = vmatpush.bf16.msra.mxu0 %v7020
    %12157 = vmatpush.bf16.msra.mxu0 %v7012
    %12158 = vmatpush.bf16.msra.mxu0 %v7004
    %12159 = vmatpush.bf16.msra.mxu0 %v6996
    %12160 = vmatpush.bf16.msra.mxu0 %v6988
    %12161 = vmatpush.bf16.msra.mxu0 %v6980
    %12162 = vmatpush.bf16.msra.mxu0 %v6972
    %12163 = vmatmul.bf16.gmra.mxu0 %v146
    %v12164 = vpop.f32.mrf.mxu0
    %v12165 = vadd.f32 %v12151, %v12164
    %v12166 = vpop.f32.mrf.mxu0
    %v12167 = vadd.f32 %v12153, %v12166
    %12168 = vdwg.mxu0
    %12169 = vmatpush.bf16.msra.mxu0 %v7092
    %12170 = vmatpush.bf16.msra.mxu0 %v7084
    %12171 = vmatpush.bf16.msra.mxu0 %v7076
    %12172 = vmatpush.bf16.msra.mxu0 %v7068
    %12173 = vmatpush.bf16.msra.mxu0 %v7060
    %12174 = vmatpush.bf16.msra.mxu0 %v7052
    %12175 = vmatpush.bf16.msra.mxu0 %v7044
    %12176 = vmatpush.bf16.msra.mxu0 %v7036
    %12177 = vmatmul.bf16.gmra.mxu0 %v147
    %v12178 = vpop.f32.mrf.mxu0
    %v12179 = vadd.f32 %v12165, %v12178
    %v12180 = vpop.f32.mrf.mxu0
    %v12181 = vadd.f32 %v12167, %v12180
    %12182 = vdwg.mxu0
    %12183 = vmatpush.bf16.msra.mxu0 %v7156
    %12184 = vmatpush.bf16.msra.mxu0 %v7148
    %12185 = vmatpush.bf16.msra.mxu0 %v7140
    %12186 = vmatpush.bf16.msra.mxu0 %v7132
    %12187 = vmatpush.bf16.msra.mxu0 %v7124
    %12188 = vmatpush.bf16.msra.mxu0 %v7116
    %12189 = vmatpush.bf16.msra.mxu0 %v7108
    %12190 = vmatpush.bf16.msra.mxu0 %v7100
    %12191 = vmatmul.bf16.gmra.mxu0 %v148
    %v12192 = vpop.f32.mrf.mxu0
    %v12193 = vadd.f32 %v12179, %v12192
    %v12194 = vpop.f32.mrf.mxu0
    %v12195 = vadd.f32 %v12181, %v12194
    %12196 = vdwg.mxu0
    %12197 = vmatpush.bf16.msra.mxu0 %v7220
    %12198 = vmatpush.bf16.msra.mxu0 %v7212
    %12199 = vmatpush.bf16.msra.mxu0 %v7204
    %12200 = vmatpush.bf16.msra.mxu0 %v7196
    %12201 = vmatpush.bf16.msra.mxu0 %v7188
    %12202 = vmatpush.bf16.msra.mxu0 %v7180
    %12203 = vmatpush.bf16.msra.mxu0 %v7172
    %12204 = vmatpush.bf16.msra.mxu0 %v7164
    %12205 = vmatmul.bf16.gmra.mxu0 %v149
    %v12206 = vpop.f32.mrf.mxu0
    %v12207 = vadd.f32 %v12193, %v12206
    %v12208 = vpop.f32.mrf.mxu0
    %v12209 = vadd.f32 %v12195, %v12208
    %12210 = vdwg.mxu0
    %12211 = vmatpush.bf16.msra.mxu0 %v7284
    %12212 = vmatpush.bf16.msra.mxu0 %v7276
    %12213 = vmatpush.bf16.msra.mxu0 %v7268
    %12214 = vmatpush.bf16.msra.mxu0 %v7260
    %12215 = vmatpush.bf16.msra.mxu0 %v7252
    %12216 = vmatpush.bf16.msra.mxu0 %v7244
    %12217 = vmatpush.bf16.msra.mxu0 %v7236
    %12218 = vmatpush.bf16.msra.mxu0 %v7228
    %12219 = vmatmul.bf16.gmra.mxu0 %v150
    %v12220 = vpop.f32.mrf.mxu0
    %v12221 = vadd.f32 %v12207, %v12220
    %v12222 = vpop.f32.mrf.mxu0
    %v12223 = vadd.f32 %v12209, %v12222
    %12224 = vdwg.mxu0
    %12225 = vmatpush.bf16.msra.mxu0 %v7348
    %12226 = vmatpush.bf16.msra.mxu0 %v7340
    %12227 = vmatpush.bf16.msra.mxu0 %v7332
    %12228 = vmatpush.bf16.msra.mxu0 %v7324
    %12229 = vmatpush.bf16.msra.mxu0 %v7316
    %12230 = vmatpush.bf16.msra.mxu0 %v7308
    %12231 = vmatpush.bf16.msra.mxu0 %v7300
    %12232 = vmatpush.bf16.msra.mxu0 %v7292
    %12233 = vmatmul.bf16.gmra.mxu0 %v151
    %v12234 = vpop.f32.mrf.mxu0
    %v12235 = vadd.f32 %v12221, %v12234
    %v12236 = vpop.f32.mrf.mxu0
    %v12237 = vadd.f32 %v12223, %v12236
    %12238 = vdwg.mxu0
    %12239 = vmatpush.bf16.msra.mxu0 %v7412
    %12240 = vmatpush.bf16.msra.mxu0 %v7404
    %12241 = vmatpush.bf16.msra.mxu0 %v7396
    %12242 = vmatpush.bf16.msra.mxu0 %v7388
    %12243 = vmatpush.bf16.msra.mxu0 %v7380
    %12244 = vmatpush.bf16.msra.mxu0 %v7372
    %12245 = vmatpush.bf16.msra.mxu0 %v7364
    %12246 = vmatpush.bf16.msra.mxu0 %v7356
    %12247 = vmatmul.bf16.gmra.mxu0 %v152
    %v12248 = vpop.f32.mrf.mxu0
    %v12249 = vadd.f32 %v12235, %v12248
    %v12250 = vpop.f32.mrf.mxu0
    %v12251 = vadd.f32 %v12237, %v12250
    %12252 = vdwg.mxu0
    %12253 = vmatpush.bf16.msra.mxu0 %v7476
    %12254 = vmatpush.bf16.msra.mxu0 %v7468
    %12255 = vmatpush.bf16.msra.mxu0 %v7460
    %12256 = vmatpush.bf16.msra.mxu0 %v7452
    %12257 = vmatpush.bf16.msra.mxu0 %v7444
    %12258 = vmatpush.bf16.msra.mxu0 %v7436
    %12259 = vmatpush.bf16.msra.mxu0 %v7428
    %12260 = vmatpush.bf16.msra.mxu0 %v7420
    %12261 = vmatmul.bf16.gmra.mxu0 %v153
    %v12262 = vpop.f32.mrf.mxu0
    %v12263 = vadd.f32 %v12249, %v12262
    %v12264 = vpop.f32.mrf.mxu0
    %v12265 = vadd.f32 %v12251, %v12264
    %12266 = vdwg.mxu0
    %12267 = vmatpush.bf16.msra.mxu0 %v7540
    %12268 = vmatpush.bf16.msra.mxu0 %v7532
    %12269 = vmatpush.bf16.msra.mxu0 %v7524
    %12270 = vmatpush.bf16.msra.mxu0 %v7516
    %12271 = vmatpush.bf16.msra.mxu0 %v7508
    %12272 = vmatpush.bf16.msra.mxu0 %v7500
    %12273 = vmatpush.bf16.msra.mxu0 %v7492
    %12274 = vmatpush.bf16.msra.mxu0 %v7484
    %12275 = vmatmul.bf16.gmra.mxu0 %v154
    %v12276 = vpop.f32.mrf.mxu0
    %v12277 = vadd.f32 %v12263, %v12276
    %v12278 = vpop.f32.mrf.mxu0
    %v12279 = vadd.f32 %v12265, %v12278
    %12280 = vdwg.mxu0
    %12281 = vmatpush.bf16.msra.mxu0 %v7604
    %12282 = vmatpush.bf16.msra.mxu0 %v7596
    %12283 = vmatpush.bf16.msra.mxu0 %v7588
    %12284 = vmatpush.bf16.msra.mxu0 %v7580
    %12285 = vmatpush.bf16.msra.mxu0 %v7572
    %12286 = vmatpush.bf16.msra.mxu0 %v7564
    %12287 = vmatpush.bf16.msra.mxu0 %v7556
    %12288 = vmatpush.bf16.msra.mxu0 %v7548
    %12289 = vmatmul.bf16.gmra.mxu0 %v155
    %v12290 = vpop.f32.mrf.mxu0
    %v12291 = vadd.f32 %v12277, %v12290
    %v12292 = vpop.f32.mrf.mxu0
    %v12293 = vadd.f32 %v12279, %v12292
    %12294 = vdwg.mxu0
    %12295 = vmatpush.bf16.msra.mxu0 %v7668
    %12296 = vmatpush.bf16.msra.mxu0 %v7660
    %12297 = vmatpush.bf16.msra.mxu0 %v7652
    %12298 = vmatpush.bf16.msra.mxu0 %v7644
    %12299 = vmatpush.bf16.msra.mxu0 %v7636
    %12300 = vmatpush.bf16.msra.mxu0 %v7628
    %12301 = vmatpush.bf16.msra.mxu0 %v7620
    %12302 = vmatpush.bf16.msra.mxu0 %v7612
    %12303 = vmatmul.bf16.gmra.mxu0 %v156
    %v12304 = vpop.f32.mrf.mxu0
    %v12305 = vadd.f32 %v12291, %v12304
    %v12306 = vpop.f32.mrf.mxu0
    %v12307 = vadd.f32 %v12293, %v12306
    %12308 = vdwg.mxu0
    %12309 = vmatpush.bf16.msra.mxu0 %v7732
    %12310 = vmatpush.bf16.msra.mxu0 %v7724
    %12311 = vmatpush.bf16.msra.mxu0 %v7716
    %12312 = vmatpush.bf16.msra.mxu0 %v7708
    %12313 = vmatpush.bf16.msra.mxu0 %v7700
    %12314 = vmatpush.bf16.msra.mxu0 %v7692
    %12315 = vmatpush.bf16.msra.mxu0 %v7684
    %12316 = vmatpush.bf16.msra.mxu0 %v7676
    %12317 = vmatmul.bf16.gmra.mxu0 %v157
    %v12318 = vpop.f32.mrf.mxu0
    %v12319 = vadd.f32 %v12305, %v12318
    %v12320 = vpop.f32.mrf.mxu0
    %v12321 = vadd.f32 %v12307, %v12320
    %12322 = vdwg.mxu0
    %12323 = vmatpush.bf16.msra.mxu0 %v7796
    %12324 = vmatpush.bf16.msra.mxu0 %v7788
    %12325 = vmatpush.bf16.msra.mxu0 %v7780
    %12326 = vmatpush.bf16.msra.mxu0 %v7772
    %12327 = vmatpush.bf16.msra.mxu0 %v7764
    %12328 = vmatpush.bf16.msra.mxu0 %v7756
    %12329 = vmatpush.bf16.msra.mxu0 %v7748
    %12330 = vmatpush.bf16.msra.mxu0 %v7740
    %12331 = vmatmul.bf16.gmra.mxu0 %v158
    %v12332 = vpop.f32.mrf.mxu0
    %v12333 = vadd.f32 %v12319, %v12332
    %v12334 = vpop.f32.mrf.mxu0
    %v12335 = vadd.f32 %v12321, %v12334
    %12336 = vdwg.mxu0
    %12337 = vmatpush.bf16.msra.mxu0 %v7860
    %12338 = vmatpush.bf16.msra.mxu0 %v7852
    %12339 = vmatpush.bf16.msra.mxu0 %v7844
    %12340 = vmatpush.bf16.msra.mxu0 %v7836
    %12341 = vmatpush.bf16.msra.mxu0 %v7828
    %12342 = vmatpush.bf16.msra.mxu0 %v7820
    %12343 = vmatpush.bf16.msra.mxu0 %v7812
    %12344 = vmatpush.bf16.msra.mxu0 %v7804
    %12345 = vmatmul.bf16.gmra.mxu0 %v159
    %v12346 = vpop.f32.mrf.mxu0
    %v12347 = vadd.f32 %v12333, %v12346
    %v12348 = vpop.f32.mrf.mxu0
    %v12349 = vadd.f32 %v12335, %v12348
    %12350 = vdwg.mxu0
    %12351 = vmatpush.bf16.msra.mxu0 %v7924
    %12352 = vmatpush.bf16.msra.mxu0 %v7916
    %12353 = vmatpush.bf16.msra.mxu0 %v7908
    %12354 = vmatpush.bf16.msra.mxu0 %v7900
    %12355 = vmatpush.bf16.msra.mxu0 %v7892
    %12356 = vmatpush.bf16.msra.mxu0 %v7884
    %12357 = vmatpush.bf16.msra.mxu0 %v7876
    %12358 = vmatpush.bf16.msra.mxu0 %v7868
    %12359 = vmatmul.bf16.gmra.mxu0 %v160
    %v12360 = vpop.f32.mrf.mxu0
    %v12361 = vadd.f32 %v12347, %v12360
    %v12362 = vpop.f32.mrf.mxu0
    %v12363 = vadd.f32 %v12349, %v12362
    %12364 = vdwg.mxu0
    %12365 = vmatpush.bf16.msra.mxu0 %v7988
    %12366 = vmatpush.bf16.msra.mxu0 %v7980
    %12367 = vmatpush.bf16.msra.mxu0 %v7972
    %12368 = vmatpush.bf16.msra.mxu0 %v7964
    %12369 = vmatpush.bf16.msra.mxu0 %v7956
    %12370 = vmatpush.bf16.msra.mxu0 %v7948
    %12371 = vmatpush.bf16.msra.mxu0 %v7940
    %12372 = vmatpush.bf16.msra.mxu0 %v7932
    %12373 = vmatmul.bf16.gmra.mxu0 %v161
    %v12374 = vpop.f32.mrf.mxu0
    %v12375 = vadd.f32 %v12361, %v12374
    %v12376 = vpop.f32.mrf.mxu0
    %v12377 = vadd.f32 %v12363, %v12376
    %12378 = vdwg.mxu0
    %12379 = vmatpush.bf16.msra.mxu0 0
    %12380 = vmatpush.bf16.msra.mxu0 0
    %12381 = vmatpush.bf16.msra.mxu0 0
    %12382 = vmatpush.bf16.msra.mxu0 0
    %12383 = vmatpush.bf16.msra.mxu0 %v8020
    %12384 = vmatpush.bf16.msra.mxu0 %v8012
    %12385 = vmatpush.bf16.msra.mxu0 %v8004
    %12386 = vmatpush.bf16.msra.mxu0 %v7996
    %12387 = vmatmul.bf16.gmra.mxu0 %v9591
    %v12388 = vpop.f32.mrf.mxu0
    %v12389 = vadd.f32 %v12375, %v12388
    %v12390 = vpop.f32.mrf.mxu0
    %v12391 = vadd.f32 %v12377, %v12390
    %12392 = vdwg.mxu0
    %v12393 = vmax.f32 %v9939, 0.0
    %v12394 = vmax.f32 %v10289, 0.0
    %v12395 = vmax.f32 %v10639, 0.0
    %v12396 = vmax.f32 %v10989, 0.0
    %v12397 = vmax.f32 %v11339, 0.0
    %v12398 = vmax.f32 %v11689, 0.0
    %v12399 = vmax.f32 %v12039, 0.0
    %v12400 = vmax.f32 %v12389, 0.0
    %v12401 = vmax.f32 %v9941, 0.0
    %v12402 = vmax.f32 %v10291, 0.0
    %v12403 = vmax.f32 %v10641, 0.0
    %v12404 = vmax.f32 %v10991, 0.0
    %v12405 = vmax.f32 %v11341, 0.0
    %v12406 = vmax.f32 %v11691, 0.0
    %v12407 = vmax.f32 %v12041, 0.0
    %v12408 = vmax.f32 %v12391, 0.0
    %v12409 = vld [vmem:[%s3] sm:$0xff]
    %v12410 = vld [vmem:[%s3 + $0x8] sm:$0xff]
    %v12411 = vld [vmem:[%s3 + $0x10] sm:$0xff]
    %v12412 = vld [vmem:[%s3 + $0x18] sm:$0xff]
    %v12413 = vld [vmem:[%s3 + $0x20] sm:$0xff]
    %v12414 = vld [vmem:[%s3 + $0x28] sm:$0xff]
    %v12415 = vld [vmem:[%s3 + $0x30] sm:$0xff]
    %v12416 = vld [vmem:[%s3 + $0x38] sm:$0xff]
    %v12417 = vld [vmem:[%s3 + $0x40] sm:$0xff]
    %v12418 = vld [vmem:[%s3 + $0x48] sm:$0xff]
    %v12419 = vld [vmem:[%s3 + $0x50] sm:$0xff]
    %v12420 = vld [vmem:[%s3 + $0x58] sm:$0xff]
    %v12421 = vld [vmem:[%s3 + $0x60] sm:$0xff]
    %v12422 = vld [vmem:[%s3 + $0x68] sm:$0xff]
    %v12423 = vld [vmem:[%s3 + $0x70] sm:$0xff]
    %v12424 = vld [vmem:[%s3 + $0x78] sm:$0xff]
    %v12425 = vld [vmem:[%s3 + $0x80] sm:$0xff]
    %v12426 = vld [vmem:[%s3 + $0x88] sm:$0xff]
    %v12427 = vld [vmem:[%s3 + $0x90] sm:$0xff]
    %v12428 = vld [vmem:[%s3 + $0x98] sm:$0xff]
    %v12429 = vld [vmem:[%s3 + $0xa0] sm:$0xff]
    %v12430 = vld [vmem:[%s3 + $0xa8] sm:$0xff]
    %v12431 = vld [vmem:[%s3 + $0xb0] sm:$0xff]
    %v12432 = vld [vmem:[%s3 + $0xb8] sm:$0xff]
    %v12433 = vld [vmem:[%s3 + $0xc0] sm:$0xff]
    %v12434 = vld [vmem:[%s3 + $0xc8] sm:$0xff]
    %v12435 = vld [vmem:[%s3 + $0xd0] sm:$0xff]
    %v12436 = vld [vmem:[%s3 + $0xd8] sm:$0xff]
    %v12437 = vld [vmem:[%s3 + $0xe0] sm:$0xff]
    %v12438 = vld [vmem:[%s3 + $0xe8] sm:$0xff]
    %v12439 = vld [vmem:[%s3 + $0xf0] sm:$0xff]
    %v12440 = vld [vmem:[%s3 + $0xf8] sm:$0xff]
    %v12441 = vld [vmem:[%s3 + $0x100] sm:$0xff]
    %v12442 = vld [vmem:[%s3 + $0x108] sm:$0xff]
    %v12443 = vld [vmem:[%s3 + $0x110] sm:$0xff]
    %v12444 = vld [vmem:[%s3 + $0x118] sm:$0xff]
    %v12445 = vld [vmem:[%s3 + $0x120] sm:$0xff]
    %v12446 = vld [vmem:[%s3 + $0x128] sm:$0xff]
    %v12447 = vld [vmem:[%s3 + $0x130] sm:$0xff]
    %v12448 = vld [vmem:[%s3 + $0x138] sm:$0xff]
    %v12449 = vld [vmem:[%s3 + $0x140] sm:$0xff]
    %v12450 = vld [vmem:[%s3 + $0x148] sm:$0xff]
    %v12451 = vld [vmem:[%s3 + $0x150] sm:$0xff]
    %v12452 = vld [vmem:[%s3 + $0x158] sm:$0xff]
    %v12453 = vld [vmem:[%s3 + $0x160] sm:$0xff]
    %v12454 = vld [vmem:[%s3 + $0x168] sm:$0xff]
    %v12455 = vld [vmem:[%s3 + $0x170] sm:$0xff]
    %v12456 = vld [vmem:[%s3 + $0x178] sm:$0xff]
    %v12457 = vld [vmem:[%s3 + $0x180] sm:$0xff]
    %v12458 = vld [vmem:[%s3 + $0x188] sm:$0xff]
    %v12459 = vld [vmem:[%s3 + $0x190] sm:$0xff]
    %v12460 = vld [vmem:[%s3 + $0x198] sm:$0xff]
    %v12461 = vld [vmem:[%s3 + $0x1a0] sm:$0xff]
    %v12462 = vld [vmem:[%s3 + $0x1a8] sm:$0xff]
    %v12463 = vld [vmem:[%s3 + $0x1b0] sm:$0xff]
    %v12464 = vld [vmem:[%s3 + $0x1b8] sm:$0xff]
    %v12465 = vld [vmem:[%s3 + $0x1c0] sm:$0xff]
    %v12466 = vld [vmem:[%s3 + $0x1c8] sm:$0xff]
    %v12467 = vld [vmem:[%s3 + $0x1d0] sm:$0xff]
    %v12468 = vld [vmem:[%s3 + $0x1d8] sm:$0xff]
    %v12469 = vld [vmem:[%s3 + $0x1e0] sm:$0xff]
    %v12470 = vld [vmem:[%s3 + $0x1e8] sm:$0xff]
    %v12471 = vld [vmem:[%s3 + $0x1f0] sm:$0xff]
    %v12472 = vld [vmem:[%s3 + $0x1f8] sm:$0xff]
    %v12473 = vld [vmem:[#allocation2] sm:$0x1]
    %v12475 = vperm.slane %v12473, 0
    %12477 = vmatpush.msra.mxu0 %v12424
    %12478 = vmatpush.msra.mxu0 %v12423
    %12479 = vmatpush.msra.mxu0 %v12422
    %12480 = vmatpush.msra.mxu0 %v12421
    %12481 = vmatpush.msra.mxu0 %v12420
    %12482 = vmatpush.msra.mxu0 %v12419
    %12483 = vmatpush.msra.mxu0 %v12418
    %12484 = vmatpush.msra.mxu0 %v12417
    %12485 = vmatpush.msra.mxu0 %v12416
    %12486 = vmatpush.msra.mxu0 %v12415
    %12487 = vmatpush.msra.mxu0 %v12414
    %12488 = vmatpush.msra.mxu0 %v12413
    %12489 = vmatpush.msra.mxu0 %v12412
    %12490 = vmatpush.msra.mxu0 %v12411
    %12491 = vmatpush.msra.mxu0 %v12410
    %12492 = vmatpush.msra.mxu0 %v12409
    %12493 = vmatmul.f32.gmra.mxu0 %v12393
    %v12494 = vpop.f32.mrf.mxu0
    %v12495 = vadd.f32 %v12475, %v12494
    %12496 = vmatmul.f32.gmra.mxu0 %v12401
    %v12497 = vpop.f32.mrf.mxu0
    %v12498 = vadd.f32 %v12475, %v12497
    %12499 = vdwg.mxu0
    %12500 = vmatpush.msra.mxu0 %v12440
    %12501 = vmatpush.msra.mxu0 %v12439
    %12502 = vmatpush.msra.mxu0 %v12438
    %12503 = vmatpush.msra.mxu0 %v12437
    %12504 = vmatpush.msra.mxu0 %v12436
    %12505 = vmatpush.msra.mxu0 %v12435
    %12506 = vmatpush.msra.mxu0 %v12434
    %12507 = vmatpush.msra.mxu0 %v12433
    %12508 = vmatpush.msra.mxu0 %v12432
    %12509 = vmatpush.msra.mxu0 %v12431
    %12510 = vmatpush.msra.mxu0 %v12430
    %12511 = vmatpush.msra.mxu0 %v12429
    %12512 = vmatpush.msra.mxu0 %v12428
    %12513 = vmatpush.msra.mxu0 %v12427
    %12514 = vmatpush.msra.mxu0 %v12426
    %12515 = vmatpush.msra.mxu0 %v12425
    %12516 = vmatmul.f32.gmra.mxu0 %v12394
    %v12517 = vpop.f32.mrf.mxu0
    %v12518 = vadd.f32 %v12495, %v12517
    %12519 = vmatmul.f32.gmra.mxu0 %v12402
    %v12520 = vpop.f32.mrf.mxu0
    %v12521 = vadd.f32 %v12498, %v12520
    %12522 = vdwg.mxu0
    %12523 = vmatpush.msra.mxu0 %v12456
    %12524 = vmatpush.msra.mxu0 %v12455
    %12525 = vmatpush.msra.mxu0 %v12454
    %12526 = vmatpush.msra.mxu0 %v12453
    %12527 = vmatpush.msra.mxu0 %v12452
    %12528 = vmatpush.msra.mxu0 %v12451
    %12529 = vmatpush.msra.mxu0 %v12450
    %12530 = vmatpush.msra.mxu0 %v12449
    %12531 = vmatpush.msra.mxu0 %v12448
    %12532 = vmatpush.msra.mxu0 %v12447
    %12533 = vmatpush.msra.mxu0 %v12446
    %12534 = vmatpush.msra.mxu0 %v12445
    %12535 = vmatpush.msra.mxu0 %v12444
    %12536 = vmatpush.msra.mxu0 %v12443
    %12537 = vmatpush.msra.mxu0 %v12442
    %12538 = vmatpush.msra.mxu0 %v12441
    %12539 = vmatmul.f32.gmra.mxu0 %v12395
    %v12540 = vpop.f32.mrf.mxu0
    %v12541 = vadd.f32 %v12518, %v12540
    %12542 = vmatmul.f32.gmra.mxu0 %v12403
    %v12543 = vpop.f32.mrf.mxu0
    %v12544 = vadd.f32 %v12521, %v12543
    %12545 = vdwg.mxu0
    %12546 = vmatpush.msra.mxu0 %v12472
    %12547 = vmatpush.msra.mxu0 %v12471
    %12548 = vmatpush.msra.mxu0 %v12470
    %12549 = vmatpush.msra.mxu0 %v12469
    %12550 = vmatpush.msra.mxu0 %v12468
    %12551 = vmatpush.msra.mxu0 %v12467
    %12552 = vmatpush.msra.mxu0 %v12466
    %12553 = vmatpush.msra.mxu0 %v12465
    %12554 = vmatpush.msra.mxu0 %v12464
    %12555 = vmatpush.msra.mxu0 %v12463
    %12556 = vmatpush.msra.mxu0 %v12462
    %12557 = vmatpush.msra.mxu0 %v12461
    %12558 = vmatpush.msra.mxu0 %v12460
    %12559 = vmatpush.msra.mxu0 %v12459
    %12560 = vmatpush.msra.mxu0 %v12458
    %12561 = vmatpush.msra.mxu0 %v12457
    %12562 = vmatmul.f32.gmra.mxu0 %v12396
    %v12563 = vpop.f32.mrf.mxu0
    %v12564 = vadd.f32 %v12541, %v12563
    %12565 = vmatmul.f32.gmra.mxu0 %v12404
    %v12566 = vpop.f32.mrf.mxu0
    %v12567 = vadd.f32 %v12544, %v12566
    %12568 = vdwg.mxu0
    %v12569 = vld [vmem:[%s5] sm:$0xff]
    %v12570 = vld [vmem:[%s5 + $0x8] sm:$0xff]
    %v12571 = vld [vmem:[%s5 + $0x10] sm:$0xff]
    %v12572 = vld [vmem:[%s5 + $0x18] sm:$0xff]
    %v12573 = vld [vmem:[%s5 + $0x20] sm:$0xff]
    %v12574 = vld [vmem:[%s5 + $0x28] sm:$0xff]
    %v12575 = vld [vmem:[%s5 + $0x30] sm:$0xff]
    %v12576 = vld [vmem:[%s5 + $0x38] sm:$0xff]
    %v12577 = vld [vmem:[%s5 + $0x40] sm:$0xff]
    %v12578 = vld [vmem:[%s5 + $0x48] sm:$0xff]
    %v12579 = vld [vmem:[%s5 + $0x50] sm:$0xff]
    %v12580 = vld [vmem:[%s5 + $0x58] sm:$0xff]
    %v12581 = vld [vmem:[%s5 + $0x60] sm:$0xff]
    %v12582 = vld [vmem:[%s5 + $0x68] sm:$0xff]
    %v12583 = vld [vmem:[%s5 + $0x70] sm:$0xff]
    %v12584 = vld [vmem:[%s5 + $0x78] sm:$0xff]
    %v12585 = vld [vmem:[%s5 + $0x80] sm:$0xff]
    %v12586 = vld [vmem:[%s5 + $0x88] sm:$0xff]
    %v12587 = vld [vmem:[%s5 + $0x90] sm:$0xff]
    %v12588 = vld [vmem:[%s5 + $0x98] sm:$0xff]
    %v12589 = vld [vmem:[%s5 + $0xa0] sm:$0xff]
    %v12590 = vld [vmem:[%s5 + $0xa8] sm:$0xff]
    %v12591 = vld [vmem:[%s5 + $0xb0] sm:$0xff]
    %v12592 = vld [vmem:[%s5 + $0xb8] sm:$0xff]
    %v12593 = vld [vmem:[%s5 + $0xc0] sm:$0xff]
    %v12594 = vld [vmem:[%s5 + $0xc8] sm:$0xff]
    %v12595 = vld [vmem:[%s5 + $0xd0] sm:$0xff]
    %v12596 = vld [vmem:[%s5 + $0xd8] sm:$0xff]
    %v12597 = vld [vmem:[%s5 + $0xe0] sm:$0xff]
    %v12598 = vld [vmem:[%s5 + $0xe8] sm:$0xff]
    %v12599 = vld [vmem:[%s5 + $0xf0] sm:$0xff]
    %v12600 = vld [vmem:[%s5 + $0xf8] sm:$0xff]
    %v12601 = vld [vmem:[%s5 + $0x100] sm:$0xff]
    %v12602 = vld [vmem:[%s5 + $0x108] sm:$0xff]
    %v12603 = vld [vmem:[%s5 + $0x110] sm:$0xff]
    %v12604 = vld [vmem:[%s5 + $0x118] sm:$0xff]
    %v12605 = vld [vmem:[%s5 + $0x120] sm:$0xff]
    %v12606 = vld [vmem:[%s5 + $0x128] sm:$0xff]
    %v12607 = vld [vmem:[%s5 + $0x130] sm:$0xff]
    %v12608 = vld [vmem:[%s5 + $0x138] sm:$0xff]
    %v12609 = vld [vmem:[%s5 + $0x140] sm:$0xff]
    %v12610 = vld [vmem:[%s5 + $0x148] sm:$0xff]
    %v12611 = vld [vmem:[%s5 + $0x150] sm:$0xff]
    %v12612 = vld [vmem:[%s5 + $0x158] sm:$0xff]
    %v12613 = vld [vmem:[%s5 + $0x160] sm:$0xff]
    %v12614 = vld [vmem:[%s5 + $0x168] sm:$0xff]
    %v12615 = vld [vmem:[%s5 + $0x170] sm:$0xff]
    %v12616 = vld [vmem:[%s5 + $0x178] sm:$0xff]
    %v12617 = vld [vmem:[%s5 + $0x180] sm:$0xff]
    %v12618 = vld [vmem:[%s5 + $0x188] sm:$0xff]
    %v12619 = vld [vmem:[%s5 + $0x190] sm:$0xff]
    %v12620 = vld [vmem:[%s5 + $0x198] sm:$0xff]
    %v12621 = vld [vmem:[%s5 + $0x1a0] sm:$0xff]
    %v12622 = vld [vmem:[%s5 + $0x1a8] sm:$0xff]
    %v12623 = vld [vmem:[%s5 + $0x1b0] sm:$0xff]
    %v12624 = vld [vmem:[%s5 + $0x1b8] sm:$0xff]
    %v12625 = vld [vmem:[%s5 + $0x1c0] sm:$0xff]
    %v12626 = vld [vmem:[%s5 + $0x1c8] sm:$0xff]
    %v12627 = vld [vmem:[%s5 + $0x1d0] sm:$0xff]
    %v12628 = vld [vmem:[%s5 + $0x1d8] sm:$0xff]
    %v12629 = vld [vmem:[%s5 + $0x1e0] sm:$0xff]
    %v12630 = vld [vmem:[%s5 + $0x1e8] sm:$0xff]
    %v12631 = vld [vmem:[%s5 + $0x1f0] sm:$0xff]
    %v12632 = vld [vmem:[%s5 + $0x1f8] sm:$0xff]
    %v12633 = vld [vmem:[#allocation8] sm:$0x1]
    %v12635 = vperm.slane %v12633, 0
    %12637 = vmatpush.msra.mxu0 %v12584
    %12638 = vmatpush.msra.mxu0 %v12583
    %12639 = vmatpush.msra.mxu0 %v12582
    %12640 = vmatpush.msra.mxu0 %v12581
    %12641 = vmatpush.msra.mxu0 %v12580
    %12642 = vmatpush.msra.mxu0 %v12579
    %12643 = vmatpush.msra.mxu0 %v12578
    %12644 = vmatpush.msra.mxu0 %v12577
    %12645 = vmatpush.msra.mxu0 %v12576
    %12646 = vmatpush.msra.mxu0 %v12575
    %12647 = vmatpush.msra.mxu0 %v12574
    %12648 = vmatpush.msra.mxu0 %v12573
    %12649 = vmatpush.msra.mxu0 %v12572
    %12650 = vmatpush.msra.mxu0 %v12571
    %12651 = vmatpush.msra.mxu0 %v12570
    %12652 = vmatpush.msra.mxu0 %v12569
    %12653 = vmatmul.f32.gmra.mxu0 %v12397
    %v12654 = vpop.f32.mrf.mxu0
    %v12655 = vadd.f32 %v12635, %v12654
    %12656 = vmatmul.f32.gmra.mxu0 %v12405
    %v12657 = vpop.f32.mrf.mxu0
    %v12658 = vadd.f32 %v12635, %v12657
    %12659 = vdwg.mxu0
    %12660 = vmatpush.msra.mxu0 %v12600
    %12661 = vmatpush.msra.mxu0 %v12599
    %12662 = vmatpush.msra.mxu0 %v12598
    %12663 = vmatpush.msra.mxu0 %v12597
    %12664 = vmatpush.msra.mxu0 %v12596
    %12665 = vmatpush.msra.mxu0 %v12595
    %12666 = vmatpush.msra.mxu0 %v12594
    %12667 = vmatpush.msra.mxu0 %v12593
    %12668 = vmatpush.msra.mxu0 %v12592
    %12669 = vmatpush.msra.mxu0 %v12591
    %12670 = vmatpush.msra.mxu0 %v12590
    %12671 = vmatpush.msra.mxu0 %v12589
    %12672 = vmatpush.msra.mxu0 %v12588
    %12673 = vmatpush.msra.mxu0 %v12587
    %12674 = vmatpush.msra.mxu0 %v12586
    %12675 = vmatpush.msra.mxu0 %v12585
    %12676 = vmatmul.f32.gmra.mxu0 %v12398
    %v12677 = vpop.f32.mrf.mxu0
    %v12678 = vadd.f32 %v12655, %v12677
    %12679 = vmatmul.f32.gmra.mxu0 %v12406
    %v12680 = vpop.f32.mrf.mxu0
    %v12681 = vadd.f32 %v12658, %v12680
    %12682 = vdwg.mxu0
    %12683 = vmatpush.msra.mxu0 %v12616
    %12684 = vmatpush.msra.mxu0 %v12615
    %12685 = vmatpush.msra.mxu0 %v12614
    %12686 = vmatpush.msra.mxu0 %v12613
    %12687 = vmatpush.msra.mxu0 %v12612
    %12688 = vmatpush.msra.mxu0 %v12611
    %12689 = vmatpush.msra.mxu0 %v12610
    %12690 = vmatpush.msra.mxu0 %v12609
    %12691 = vmatpush.msra.mxu0 %v12608
    %12692 = vmatpush.msra.mxu0 %v12607
    %12693 = vmatpush.msra.mxu0 %v12606
    %12694 = vmatpush.msra.mxu0 %v12605
    %12695 = vmatpush.msra.mxu0 %v12604
    %12696 = vmatpush.msra.mxu0 %v12603
    %12697 = vmatpush.msra.mxu0 %v12602
    %12698 = vmatpush.msra.mxu0 %v12601
    %12699 = vmatmul.f32.gmra.mxu0 %v12399
    %v12700 = vpop.f32.mrf.mxu0
    %v12701 = vadd.f32 %v12678, %v12700
    %12702 = vmatmul.f32.gmra.mxu0 %v12407
    %v12703 = vpop.f32.mrf.mxu0
    %v12704 = vadd.f32 %v12681, %v12703
    %12705 = vdwg.mxu0
    %12706 = vmatpush.msra.mxu0 %v12632
    %12707 = vmatpush.msra.mxu0 %v12631
    %12708 = vmatpush.msra.mxu0 %v12630
    %12709 = vmatpush.msra.mxu0 %v12629
    %12710 = vmatpush.msra.mxu0 %v12628
    %12711 = vmatpush.msra.mxu0 %v12627
    %12712 = vmatpush.msra.mxu0 %v12626
    %12713 = vmatpush.msra.mxu0 %v12625
    %12714 = vmatpush.msra.mxu0 %v12624
    %12715 = vmatpush.msra.mxu0 %v12623
    %12716 = vmatpush.msra.mxu0 %v12622
    %12717 = vmatpush.msra.mxu0 %v12621
    %12718 = vmatpush.msra.mxu0 %v12620
    %12719 = vmatpush.msra.mxu0 %v12619
    %12720 = vmatpush.msra.mxu0 %v12618
    %12721 = vmatpush.msra.mxu0 %v12617
    %12722 = vmatmul.f32.gmra.mxu0 %v12400
    %v12723 = vpop.f32.mrf.mxu0
    %v12724 = vadd.f32 %v12701, %v12723
    %12725 = vmatmul.f32.gmra.mxu0 %v12408
    %v12726 = vpop.f32.mrf.mxu0
    %v12727 = vadd.f32 %v12704, %v12726
    %12728 = vdwg.mxu0
    %12730 = vset.pattern.permute.xlu0 0
    %12731 = vperm.xlu0 %12730, %v12564
    %v12732 = vpop.permute.xlu0 %12731
    %12735 = vset.pattern.permute.xlu0 0
    %12736 = vperm.xlu0 %12735, %v12567
    %v12737 = vpop.permute.xlu0 %12736
    %v12739 = vadd.f32 %v12732, %v12724
    %v12740 = vadd.f32 %v12737, %v12727
    %vm12741 = vcmask 31744
    %v12742 = vsel %vm12741, %v12724, 0.0
    %12743 = vadd.xlane.f32.xlu0 %v12742
    %v12744 = vpop.xlane.xlu0 %12743
    %v12745 = vsel %vm12741, %v12727, 0.0
    %12746 = vadd.xlane.f32.xlu0 %v12745
    %v12747 = vpop.xlane.xlu0 %12746
    %v12748 = vrcp.pop 4.0
    %v12749 = vmul.f32 4.0, %v12748
    %v12750 = vsub.f32 1.0, %v12749
    %v12751 = vmul.f32 %v12748, %v12750
    %v12752 = vadd.f32 %v12748, %v12751
    %vm12753 = vweird.f32 %v12748
    %v12754 = vsel %vm12753, %v12748, %v12752
    %v12755 = vmul.f32 %v12744, %v12754
    %v12756 = vmul.f32 %v12747, %v12754
    %v12757 = vsub.f32 %v12739, %v12755
    %v12758 = vsub.f32 %v12740, %v12756
    %12759 = vst.msk [vmem:[%s7] sm:$0xff] %vm12741, %v12757
    %12760 = vst.msk [vmem:[%s7 + $0x8] sm:$0xff] %vm12741, %v12758
    // Predicated region
    $region46: #{tpu_custom_call.1} parent=1 // pred_check
      _
    $region47: #{tpu_custom_call.1} parent=1 // pred_check_branch
      %12762 = sbr.rel (0) target = $region49
    $region48: #{tpu_custom_call.1} parent=1 // pred_region
      _
    $region49: #{tpu_custom_call.1} parent=1 // pred_fallthru
      _
    // Predicated region
    $region50: #{tpu_custom_call.1} parent=1 // pred_check
      _
    $region51: #{tpu_custom_call.1} parent=1 // pred_check_branch
      %12764 = sbr.rel (0) target = $region53
    $region52: #{tpu_custom_call.1} parent=1 // pred_region
      _
    $region53: #{tpu_custom_call.1} parent=1 // pred_fallthru
      _
    %12765 = vsyncpa [#allocation4], 1
    %12766 = vsyncpa [#allocation6], 1
    %12767 = vsyncpa [#allocation9], 1

</llo_original>
